<compile_context>
chip_gen: v5e
topology: v5e:2x2
jax: 0.10.0
libtpu: 0.0.40
codegen_flags: <defaults>
</compile_context>

<pallas_src>
from functools import partial

import numpy as np
import jax
import jax.numpy as jnp
from jax.experimental import pallas as pl
from jax.experimental.pallas import tpu as pltpu


def _round_up(x, m):
    return ((x + m - 1) // m) * m


def _cdiv(a, b):
    return -(-a // b)


_VMEM_LIMIT = 32 * 1024 * 1024  # safe on v5e/v6e (128 MiB) and v7x (64 MiB)


def _num_tensorcores():
    """Heuristic TC-per-chip count (megacore chips: v4 / v5p / v7x)."""
    try:
        kind = jax.devices()[0].device_kind.lower()
    except Exception:
        return 1
    return 2 if any(t in kind for t in ("v4", "v5p", "7")) else 1


_NUM_TC = _num_tensorcores()


# ----------------------------------------------------------------------------
# Pallas kernels
# ----------------------------------------------------------------------------
def _gemm_bias_act_kernel(a_ref, b_ref, bias_ref, o_ref, *, relu):
    """o = act(a @ b + bias) for one (tm, K) x (K, Npad) tile.

    a/b are bf16 (MXU-native); accumulation + bias + ReLU in f32; store in o's dtype
    (bf16) so the inter-layer HBM traffic is halved.
    """
    acc = jnp.dot(a_ref[...], b_ref[...], preferred_element_type=jnp.float32)
    acc = acc + bias_ref[...]            # (1, Npad) broadcasts over rows
    if relu:
        acc = jnp.maximum(acc, 0.0)
    o_ref[...] = acc.astype(o_ref.dtype)


# ----------------------------------------------------------------------------
# Pallas wrappers
# ----------------------------------------------------------------------------
def _pick_m_tiling(M, K, Npad, tm_target):
    """Choose (tm, grid) with no M padding.

    * small M -> one full-dim block (legal: block dims equal array dims), grid=1
      (no forced split on single-TC v5e/v6e).
    * large M -> tm multiple of 8, tm capped by a VMEM budget (double-buffered A and
      output blocks + resident weights), grid=cdiv(M, tm) rounded to a multiple of the
      TensorCore count on megacore chips for load balance.
    """
    bytes_per_row = 2 * K * 2 + 2 * Npad * 2          # dbl-buffered A (bf16) + out (bf16)
    resident = K * Npad * 2 + Npad * 4                 # weights (bf16) + bias (f32)
    budget = int(_VMEM_LIMIT * 0.6)
    tm_cap = max(8, (budget - resident) // max(bytes_per_row, 1))
    tm = max(8, min(tm_target, (tm_cap // 8) * 8))
    if M <= tm:
        return M, 1
    g = _cdiv(M, tm)
    if _NUM_TC > 1 and g % _NUM_TC:
        g += _NUM_TC - (g % _NUM_TC)
        tm = max(8, _round_up(_cdiv(M, g), 8))
        g = _cdiv(M, tm)
    return tm, g


def gemm_bias_act(a, b_packed, bias_packed, *, relu=True, tm_target=512):
    """a: (M, K) bf16, b_packed: (K, Npad) bf16, bias_packed: (1, Npad) f32.

    Returns (M, Npad) bf16 of act(a @ b + bias).  No M/K/N padding copies, no output
    slice: the weight's zero-padded rows/cols make extra channels exactly 0.
    """
    M, K = a.shape
    Kb, Npad = b_packed.shape
    assert K == Kb, (K, Kb)
    tm, g = _pick_m_tiling(M, K, Npad, tm_target)

    return pl.pallas_call(
        partial(_gemm_bias_act_kernel, relu=relu),
        out_shape=jax.ShapeDtypeStruct((M, Npad), jnp.bfloat16),
        grid=(g,),
        in_specs=[
            pl.BlockSpec((tm, K), lambda i: (i, 0)),
            pl.BlockSpec((K, Npad), lambda i: (0, 0)),    # resident weight block
            pl.BlockSpec((1, Npad), lambda i: (0, 0)),
        ],
        out_specs=pl.BlockSpec((tm, Npad), lambda i: (i, 0)),
        compiler_params=pltpu.CompilerParams(
            dimension_semantics=("parallel",),
            vmem_limit_bytes=_VMEM_LIMIT,
        ),
    )(a, b_packed, bias_packed)


def conv2d_relu(x, wmat, bias, *, ic, k, stride, padding, relu=True):
    """x: (N, H, W, C) bf16 NHWC with C >= ic (extra carried channels are ignored);
    wmat: (Kpad, Npad) bf16 packed in (kh, kw, c<ic) order with zero rows in the K pad;
    bias: (1, Npad) f32.  Returns (N, OH, OW, Npad) bf16 NHWC."""
    N, H, W, C = x.shape
    OH = (H + 2 * padding - k) // stride + 1
    OW = (W + 2 * padding - k) // stride + 1

    xp = jnp.pad(x, ((0, 0), (padding, padding), (padding, padding), (0, 0)))

    # im2col via strided slices, channels-last (bf16) => no transposes, half-size
    # intermediate.  Channel slice to `ic` drops carried pad channels for free.
    # TODO(synk): fold im2col into the GEMM kernel for the stride-1 convs (tap reduction
    # axis + element-offset index_maps) to remove the k*k blow-up on large inputs.
    pieces = []
    for kh in range(k):
        for kw in range(k):
            pieces.append(
                jax.lax.slice(
                    xp,
                    (0, kh, kw, 0),
                    (N, kh + stride * (OH - 1) + 1, kw + stride * (OW - 1) + 1, ic),
                    (1, stride, stride, 1),
                )
            )  # each: (N, OH, OW, ic)
    Kpad, Npad = wmat.shape
    K = k * k * ic
    if Kpad > K:
        # Zero piece fused into the concat: aligns K to 128 with no extra HBM pass.
        pieces.append(jnp.zeros((N, OH, OW, Kpad - K), x.dtype))
    patches = jnp.concatenate(pieces, axis=-1).reshape(N * OH * OW, Kpad)

    out = gemm_bias_act(patches, wmat, bias, relu=relu)       # (M, Npad) bf16
    return out.reshape(N, OH, OW, Npad)


def maxpool2d(x, *, k=3, s=2):
    """x: (N, H, W, C) -> (N, OH, OW, C): max over kxk windows with stride s.

    Fused plain-JAX pairwise maximum tree over the strided taps (XLA fuses the slices,
    nothing is materialized), replacing the old 9x-inflated window-stack Pallas kernel.
    # TODO(synk): dedicated Pallas kernel with in-kernel strided window reads if pooling
    # ever shows up as HBM-bound on large inputs.
    """
    N, H, W, C = x.shape
    OH = (H - k) // s + 1
    OW = (W - k) // s + 1
    out = None
    for kh in range(k):
        for kw in range(k):
            tap = jax.lax.slice(
                x,
                (0, kh, kw, 0),
                (N, kh + s * (OH - 1) + 1, kw + s * (OW - 1) + 1, C),
                (1, s, s, 1),
            )
            out = tap if out is None else jnp.maximum(out, tap)
    return out


def adaptive_avg_pool(x, out_hw=(6, 6)):
    """PyTorch AdaptiveAvgPool2d semantics on NHWC via two tiny averaging matrices.

    # TODO(synk): tiny tensor at this point; left as plain-JAX glue (single einsum)
    rather than a dedicated Pallas kernel.
    """
    N, H, W, C = x.shape
    OH, OW = out_hw

    def pmat(n_in, n_out):
        m = np.zeros((n_out, n_in), np.float32)
        for i in range(n_out):
            lo = (i * n_in) // n_out
            hi = -((-(i + 1) * n_in) // n_out)
            m[i, lo:hi] = 1.0 / (hi - lo)
        return jnp.asarray(m)

    return jnp.einsum("ih,jw,nhwc->nijc", pmat(H, OH), pmat(W, OW),
                      x.astype(jnp.float32))


# ----------------------------------------------------------------------------
# Feature module (AlexNet.features + avgpool + flatten)
# ----------------------------------------------------------------------------
LAYER_CFGS = [
    # (out_ch, in_ch, kernel, stride, padding)
    (64, 3, 11, 4, 2),
    (192, 64, 5, 1, 2),
    (384, 192, 3, 1, 1),
    (256, 384, 3, 1, 1),
    (256, 256, 3, 1, 1),
]
_POOL_AFTER = (True, True, False, False, True)


def init_params(key):
    """Deterministic He-style init; shapes match torchvision AlexNet.features.

    Weights are pre-packed ONCE into bf16 (Kpad, Npad) matrices (feature order kh, kw, c
    matching the NHWC im2col concat; zero rows for the K pad) and (1, Npad) f32 biases.
    Only conv1's N is padded (64 -> 128) for lane-dense stores; pad channels are exactly
    0 after bias+ReLU and are dropped for free inside conv2's im2col.
    """
    params = []
    for i, (oc, ic, k, _s, _p) in enumerate(LAYER_CFGS):
        kw_, kb_ = jax.random.split(jax.random.fold_in(key, i))
        fan_in = ic * k * k
        w = jax.random.normal(kw_, (oc, ic, k, k), jnp.float32) * jnp.sqrt(2.0 / fan_in)
        b = jax.random.normal(kb_, (oc,), jnp.float32) * 0.01

        K = k * k * ic
        Kpad = _round_up(K, 128)
        Npad = oc if oc >= 128 else 128
        wmat = w.transpose(2, 3, 1, 0).reshape(K, oc)          # (kh, kw, c) x oc
        wmat = jnp.pad(wmat, ((0, Kpad - K), (0, Npad - oc))).astype(jnp.bfloat16)
        bias = jnp.pad(b, (0, Npad - oc)).reshape(1, Npad).astype(jnp.float32)
        params.append((wmat, bias))
    return params


def feature_forward(params, x_nchw):
    # NCHW -> NHWC and f32 -> bf16 once at the module boundary; all layers channels-last.
    x = x_nchw.astype(jnp.bfloat16).transpose(0, 2, 3, 1)
    for (wmat, bias), (oc, ic, k, s, p), pool in zip(params, LAYER_CFGS, _POOL_AFTER):
        x = conv2d_relu(x, wmat, bias, ic=ic, k=k, stride=s, padding=p, relu=True)
        if pool:
            x = maxpool2d(x, k=3, s=2)
    oc_last = LAYER_CFGS[-1][0]
    if x.shape[-1] != oc_last:                      # no-op for AlexNet (256 == 256)
        x = x[..., :oc_last]
    x = adaptive_avg_pool(x, (6, 6))                # (N, 6, 6, 256) f32
    # Back to NCHW so torch.flatten(outp, 1) element order is matched exactly.
    x = x.transpose(0, 3, 1, 2)
    return x.reshape(x.shape[0], -1)


if __name__ == "__main__":
    key = jax.random.PRNGKey(0)
    params = init_params(key)
    # Smallest "small" spatial size AlexNet's conv/pool stack supports is >= 63.
    x = jax.random.normal(jax.random.fold_in(key, 1234), (2, 3, 64, 64), jnp.float32)

    fwd = jax.jit(feature_forward)
    out = jax.block_until_ready(fwd(params, x))

    assert out.shape == (2, 256 * 6 * 6), out.shape
    assert out.dtype == jnp.float32
    print("KERNEL_OK")
</pallas_src>

<mosaic_0001>
module attributes {stable_mosaic.version = 11 : i64} {
  func.func @_gemm_bias_act_kernel(%arg0: i32, %arg1: memref<450x384xbf16, #tpu.memory_space<vmem>>, %arg2: memref<384x128xbf16, #tpu.memory_space<vmem>>, %arg3: memref<1x128xf32, #tpu.memory_space<vmem>>, %arg4: memref<450x128xbf16, #tpu.memory_space<vmem>>) attributes {dimension_semantics = [#tpu.dimension_semantics<parallel>], iteration_bounds = array<i64: 1>, scalar_prefetch = 0 : i64, scratch_operands = 0 : i64, tpu.core_type = #tpu.core_type<tc>, window_params = [{transform_indices = @transform_0, window_bounds = array<i64: 450, 384>}, {pipeline_mode = #tpu.pipeline_mode<synchronous>, transform_indices = @transform_1, window_bounds = array<i64: 384, 128>}, {pipeline_mode = #tpu.pipeline_mode<synchronous>, transform_indices = @transform_2, window_bounds = array<i64: 1, 128>}, {transform_indices = @transform_3, window_bounds = array<i64: 450, 128>}]} {
    %c0 = arith.constant 0 : index
    %c0_0 = arith.constant 0 : index
    %0 = vector.load %arg1[%c0, %c0_0] : memref<450x384xbf16, #tpu.memory_space<vmem>>, vector<450x384xbf16>
    %c0_1 = arith.constant 0 : index
    %c0_2 = arith.constant 0 : index
    %1 = vector.load %arg2[%c0_1, %c0_2] : memref<384x128xbf16, #tpu.memory_space<vmem>>, vector<384x128xbf16>
    %cst = arith.constant dense<0.000000e+00> : vector<450x128xf32>
    %2 = tpu.matmul %0, %1, %cst {dimension_numbers = #tpu.dot_dimension_numbers<[1], [0], [0], [1], [0, 0, 1, 1], [], []>} : vector<450x384xbf16>, vector<384x128xbf16>, vector<450x128xf32> -> vector<450x128xf32>
    %c0_3 = arith.constant 0 : index
    %c0_4 = arith.constant 0 : index
    %3 = vector.load %arg3[%c0_3, %c0_4] : memref<1x128xf32, #tpu.memory_space<vmem>>, vector<1x128xf32>
    %4 = vector.broadcast %3 : vector<1x128xf32> to vector<450x128xf32>
    %5 = arith.addf %2, %4 : vector<450x128xf32>
    %cst_5 = arith.constant 0.000000e+00 : f32
    %6 = vector.broadcast %cst_5 : f32 to vector<450x128xf32>
    %7 = arith.maximumf %5, %6 : vector<450x128xf32>
    %8 = arith.truncf %7 : vector<450x128xf32> to vector<450x128xbf16>
    %c0_6 = arith.constant 0 : index
    %c0_7 = arith.constant 0 : index
    %9 = vector.load %arg4[%c0_6, %c0_7] : memref<450x128xbf16, #tpu.memory_space<vmem>>, vector<450x128xbf16>
    tpu.vector_store %arg4[%c0_6, %c0_7], %8 {strides = array<i32>} : memref<450x128xbf16, #tpu.memory_space<vmem>>, vector<450x128xbf16>,
    return
  }
  func.func @transform_0(%arg0: i32) -> (i32, i32) {
    %c0_i32 = arith.constant 0 : i32
    %c0_i32_0 = arith.constant 0 : i32
    return %arg0, %c0_i32 : i32, i32
  }
  func.func @transform_1(%arg0: i32) -> (i32, i32) {
    %c0_i32 = arith.constant 0 : i32
    %c0_i32_0 = arith.constant 0 : i32
    %c0_i32_1 = arith.constant 0 : i32
    return %c0_i32, %c0_i32_0 : i32, i32
  }
  func.func @transform_2(%arg0: i32) -> (i32, i32) {
    %c0_i32 = arith.constant 0 : i32
    %c0_i32_0 = arith.constant 0 : i32
    %c0_i32_1 = arith.constant 0 : i32
    return %c0_i32, %c0_i32_0 : i32, i32
  }
  func.func @transform_3(%arg0: i32) -> (i32, i32) {
    %c0_i32 = arith.constant 0 : i32
    %c0_i32_0 = arith.constant 0 : i32
    return %arg0, %c0_i32 : i32, i32
  }
}

module attributes {stable_mosaic.version = 11 : i64} {
  func.func @_gemm_bias_act_kernel(%arg0: i32, %arg1: memref<98x1664xbf16, #tpu.memory_space<vmem>>, %arg2: memref<1664x192xbf16, #tpu.memory_space<vmem>>, %arg3: memref<1x192xf32, #tpu.memory_space<vmem>>, %arg4: memref<98x192xbf16, #tpu.memory_space<vmem>>) attributes {dimension_semantics = [#tpu.dimension_semantics<parallel>], iteration_bounds = array<i64: 1>, scalar_prefetch = 0 : i64, scratch_operands = 0 : i64, tpu.core_type = #tpu.core_type<tc>, window_params = [{transform_indices = @transform_0, window_bounds = array<i64: 98, 1664>}, {pipeline_mode = #tpu.pipeline_mode<synchronous>, transform_indices = @transform_1, window_bounds = array<i64: 1664, 192>}, {pipeline_mode = #tpu.pipeline_mode<synchronous>, transform_indices = @transform_2, window_bounds = array<i64: 1, 192>}, {transform_indices = @transform_3, window_bounds = array<i64: 98, 192>}]} {
    %c0 = arith.constant 0 : index
    %c0_0 = arith.constant 0 : index
    %0 = vector.load %arg1[%c0, %c0_0] : memref<98x1664xbf16, #tpu.memory_space<vmem>>, vector<98x1664xbf16>
    %c0_1 = arith.constant 0 : index
    %c0_2 = arith.constant 0 : index
    %1 = vector.load %arg2[%c0_1, %c0_2] : memref<1664x192xbf16, #tpu.memory_space<vmem>>, vector<1664x192xbf16>
    %cst = arith.constant dense<0.000000e+00> : vector<98x192xf32>
    %2 = tpu.matmul %0, %1, %cst {dimension_numbers = #tpu.dot_dimension_numbers<[1], [0], [0], [1], [0, 0, 1, 1], [], []>} : vector<98x1664xbf16>, vector<1664x192xbf16>, vector<98x192xf32> -> vector<98x192xf32>
    %c0_3 = arith.constant 0 : index
    %c0_4 = arith.constant 0 : index
    %3 = vector.load %arg3[%c0_3, %c0_4] : memref<1x192xf32, #tpu.memory_space<vmem>>, vector<1x192xf32>
    %4 = vector.broadcast %3 : vector<1x192xf32> to vector<98x192xf32>
    %5 = arith.addf %2, %4 : vector<98x192xf32>
    %cst_5 = arith.constant 0.000000e+00 : f32
    %6 = vector.broadcast %cst_5 : f32 to vector<98x192xf32>
    %7 = arith.maximumf %5, %6 : vector<98x192xf32>
    %8 = arith.truncf %7 : vector<98x192xf32> to vector<98x192xbf16>
    %c0_6 = arith.constant 0 : index
    %c0_7 = arith.constant 0 : index
    %9 = vector.load %arg4[%c0_6, %c0_7] : memref<98x192xbf16, #tpu.memory_space<vmem>>, vector<98x192xbf16>
    tpu.vector_store %arg4[%c0_6, %c0_7], %8 {strides = array<i32>} : memref<98x192xbf16, #tpu.memory_space<vmem>>, vector<98x192xbf16>,
    return
  }
  func.func @transform_0(%arg0: i32) -> (i32, i32) {
    %c0_i32 = arith.constant 0 : i32
    %c0_i32_0 = arith.constant 0 : i32
    return %arg0, %c0_i32 : i32, i32
  }
  func.func @transform_1(%arg0: i32) -> (i32, i32) {
    %c0_i32 = arith.constant 0 : i32
    %c0_i32_0 = arith.constant 0 : i32
    %c0_i32_1 = arith.constant 0 : i32
    return %c0_i32, %c0_i32_0 : i32, i32
  }
  func.func @transform_2(%arg0: i32) -> (i32, i32) {
    %c0_i32 = arith.constant 0 : i32
    %c0_i32_0 = arith.constant 0 : i32
    %c0_i32_1 = arith.constant 0 : i32
    return %c0_i32, %c0_i32_0 : i32, i32
  }
  func.func @transform_3(%arg0: i32) -> (i32, i32) {
    %c0_i32 = arith.constant 0 : i32
    %c0_i32_0 = arith.constant 0 : i32
    return %arg0, %c0_i32 : i32, i32
  }
}

module attributes {stable_mosaic.version = 11 : i64} {
  func.func @_gemm_bias_act_kernel(%arg0: i32, %arg1: memref<18x1792xbf16, #tpu.memory_space<vmem>>, %arg2: memref<1792x384xbf16, #tpu.memory_space<vmem>>, %arg3: memref<1x384xf32, #tpu.memory_space<vmem>>, %arg4: memref<18x384xbf16, #tpu.memory_space<vmem>>) attributes {dimension_semantics = [#tpu.dimension_semantics<parallel>], iteration_bounds = array<i64: 1>, scalar_prefetch = 0 : i64, scratch_operands = 0 : i64, tpu.core_type = #tpu.core_type<tc>, window_params = [{transform_indices = @transform_0, window_bounds = array<i64: 18, 1792>}, {pipeline_mode = #tpu.pipeline_mode<synchronous>, transform_indices = @transform_1, window_bounds = array<i64: 1792, 384>}, {pipeline_mode = #tpu.pipeline_mode<synchronous>, transform_indices = @transform_2, window_bounds = array<i64: 1, 384>}, {transform_indices = @transform_3, window_bounds = array<i64: 18, 384>}]} {
    %c0 = arith.constant 0 : index
    %c0_0 = arith.constant 0 : index
    %0 = vector.load %arg1[%c0, %c0_0] : memref<18x1792xbf16, #tpu.memory_space<vmem>>, vector<18x1792xbf16>
    %c0_1 = arith.constant 0 : index
    %c0_2 = arith.constant 0 : index
    %1 = vector.load %arg2[%c0_1, %c0_2] : memref<1792x384xbf16, #tpu.memory_space<vmem>>, vector<1792x384xbf16>
    %cst = arith.constant dense<0.000000e+00> : vector<18x384xf32>
    %2 = tpu.matmul %0, %1, %cst {dimension_numbers = #tpu.dot_dimension_numbers<[1], [0], [0], [1], [0, 0, 1, 1], [], []>} : vector<18x1792xbf16>, vector<1792x384xbf16>, vector<18x384xf32> -> vector<18x384xf32>
    %c0_3 = arith.constant 0 : index
    %c0_4 = arith.constant 0 : index
    %3 = vector.load %arg3[%c0_3, %c0_4] : memref<1x384xf32, #tpu.memory_space<vmem>>, vector<1x384xf32>
    %4 = vector.broadcast %3 : vector<1x384xf32> to vector<18x384xf32>
    %5 = arith.addf %2, %4 : vector<18x384xf32>
    %cst_5 = arith.constant 0.000000e+00 : f32
    %6 = vector.broadcast %cst_5 : f32 to vector<18x384xf32>
    %7 = arith.maximumf %5, %6 : vector<18x384xf32>
    %8 = arith.truncf %7 : vector<18x384xf32> to vector<18x384xbf16>
    %c0_6 = arith.constant 0 : index
    %c0_7 = arith.constant 0 : index
    %9 = vector.load %arg4[%c0_6, %c0_7] : memref<18x384xbf16, #tpu.memory_space<vmem>>, vector<18x384xbf16>
    tpu.vector_store %arg4[%c0_6, %c0_7], %8 {strides = array<i32>} : memref<18x384xbf16, #tpu.memory_space<vmem>>, vector<18x384xbf16>,
    return
  }
  func.func @transform_0(%arg0: i32) -> (i32, i32) {
    %c0_i32 = arith.constant 0 : i32
    %c0_i32_0 = arith.constant 0 : i32
    return %arg0, %c0_i32 : i32, i32
  }
  func.func @transform_1(%arg0: i32) -> (i32, i32) {
    %c0_i32 = arith.constant 0 : i32
    %c0_i32_0 = arith.constant 0 : i32
    %c0_i32_1 = arith.constant 0 : i32
    return %c0_i32, %c0_i32_0 : i32, i32
  }
  func.func @transform_2(%arg0: i32) -> (i32, i32) {
    %c0_i32 = arith.constant 0 : i32
    %c0_i32_0 = arith.constant 0 : i32
    %c0_i32_1 = arith.constant 0 : i32
    return %c0_i32, %c0_i32_0 : i32, i32
  }
  func.func @transform_3(%arg0: i32) -> (i32, i32) {
    %c0_i32 = arith.constant 0 : i32
    %c0_i32_0 = arith.constant 0 : i32
    return %arg0, %c0_i32 : i32, i32
  }
}

module attributes {stable_mosaic.version = 11 : i64} {
  func.func @_gemm_bias_act_kernel(%arg0: i32, %arg1: memref<18x3456xbf16, #tpu.memory_space<vmem>>, %arg2: memref<3456x256xbf16, #tpu.memory_space<vmem>>, %arg3: memref<1x256xf32, #tpu.memory_space<vmem>>, %arg4: memref<18x256xbf16, #tpu.memory_space<vmem>>) attributes {dimension_semantics = [#tpu.dimension_semantics<parallel>], iteration_bounds = array<i64: 1>, scalar_prefetch = 0 : i64, scratch_operands = 0 : i64, tpu.core_type = #tpu.core_type<tc>, window_params = [{transform_indices = @transform_0, window_bounds = array<i64: 18, 3456>}, {pipeline_mode = #tpu.pipeline_mode<synchronous>, transform_indices = @transform_1, window_bounds = array<i64: 3456, 256>}, {pipeline_mode = #tpu.pipeline_mode<synchronous>, transform_indices = @transform_2, window_bounds = array<i64: 1, 256>}, {transform_indices = @transform_3, window_bounds = array<i64: 18, 256>}]} {
    %c0 = arith.constant 0 : index
    %c0_0 = arith.constant 0 : index
    %0 = vector.load %arg1[%c0, %c0_0] : memref<18x3456xbf16, #tpu.memory_space<vmem>>, vector<18x3456xbf16>
    %c0_1 = arith.constant 0 : index
    %c0_2 = arith.constant 0 : index
    %1 = vector.load %arg2[%c0_1, %c0_2] : memref<3456x256xbf16, #tpu.memory_space<vmem>>, vector<3456x256xbf16>
    %cst = arith.constant dense<0.000000e+00> : vector<18x256xf32>
    %2 = tpu.matmul %0, %1, %cst {dimension_numbers = #tpu.dot_dimension_numbers<[1], [0], [0], [1], [0, 0, 1, 1], [], []>} : vector<18x3456xbf16>, vector<3456x256xbf16>, vector<18x256xf32> -> vector<18x256xf32>
    %c0_3 = arith.constant 0 : index
    %c0_4 = arith.constant 0 : index
    %3 = vector.load %arg3[%c0_3, %c0_4] : memref<1x256xf32, #tpu.memory_space<vmem>>, vector<1x256xf32>
    %4 = vector.broadcast %3 : vector<1x256xf32> to vector<18x256xf32>
    %5 = arith.addf %2, %4 : vector<18x256xf32>
    %cst_5 = arith.constant 0.000000e+00 : f32
    %6 = vector.broadcast %cst_5 : f32 to vector<18x256xf32>
    %7 = arith.maximumf %5, %6 : vector<18x256xf32>
    %8 = arith.truncf %7 : vector<18x256xf32> to vector<18x256xbf16>
    %c0_6 = arith.constant 0 : index
    %c0_7 = arith.constant 0 : index
    %9 = vector.load %arg4[%c0_6, %c0_7] : memref<18x256xbf16, #tpu.memory_space<vmem>>, vector<18x256xbf16>
    tpu.vector_store %arg4[%c0_6, %c0_7], %8 {strides = array<i32>} : memref<18x256xbf16, #tpu.memory_space<vmem>>, vector<18x256xbf16>,
    return
  }
  func.func @transform_0(%arg0: i32) -> (i32, i32) {
    %c0_i32 = arith.constant 0 : i32
    %c0_i32_0 = arith.constant 0 : i32
    return %arg0, %c0_i32 : i32, i32
  }
  func.func @transform_1(%arg0: i32) -> (i32, i32) {
    %c0_i32 = arith.constant 0 : i32
    %c0_i32_0 = arith.constant 0 : i32
    %c0_i32_1 = arith.constant 0 : i32
    return %c0_i32, %c0_i32_0 : i32, i32
  }
  func.func @transform_2(%arg0: i32) -> (i32, i32) {
    %c0_i32 = arith.constant 0 : i32
    %c0_i32_0 = arith.constant 0 : i32
    %c0_i32_1 = arith.constant 0 : i32
    return %c0_i32, %c0_i32_0 : i32, i32
  }
  func.func @transform_3(%arg0: i32) -> (i32, i32) {
    %c0_i32 = arith.constant 0 : i32
    %c0_i32_0 = arith.constant 0 : i32
    return %arg0, %c0_i32 : i32, i32
  }
}

module attributes {stable_mosaic.version = 11 : i64} {
  func.func @_gemm_bias_act_kernel(%arg0: i32, %arg1: memref<18x2304xbf16, #tpu.memory_space<vmem>>, %arg2: memref<2304x256xbf16, #tpu.memory_space<vmem>>, %arg3: memref<1x256xf32, #tpu.memory_space<vmem>>, %arg4: memref<18x256xbf16, #tpu.memory_space<vmem>>) attributes {dimension_semantics = [#tpu.dimension_semantics<parallel>], iteration_bounds = array<i64: 1>, scalar_prefetch = 0 : i64, scratch_operands = 0 : i64, tpu.core_type = #tpu.core_type<tc>, window_params = [{transform_indices = @transform_0, window_bounds = array<i64: 18, 2304>}, {pipeline_mode = #tpu.pipeline_mode<synchronous>, transform_indices = @transform_1, window_bounds = array<i64: 2304, 256>}, {pipeline_mode = #tpu.pipeline_mode<synchronous>, transform_indices = @transform_2, window_bounds = array<i64: 1, 256>}, {transform_indices = @transform_3, window_bounds = array<i64: 18, 256>}]} {
    %c0 = arith.constant 0 : index
    %c0_0 = arith.constant 0 : index
    %0 = vector.load %arg1[%c0, %c0_0] : memref<18x2304xbf16, #tpu.memory_space<vmem>>, vector<18x2304xbf16>
    %c0_1 = arith.constant 0 : index
    %c0_2 = arith.constant 0 : index
    %1 = vector.load %arg2[%c0_1, %c0_2] : memref<2304x256xbf16, #tpu.memory_space<vmem>>, vector<2304x256xbf16>
    %cst = arith.constant dense<0.000000e+00> : vector<18x256xf32>
    %2 = tpu.matmul %0, %1, %cst {dimension_numbers = #tpu.dot_dimension_numbers<[1], [0], [0], [1], [0, 0, 1, 1], [], []>} : vector<18x2304xbf16>, vector<2304x256xbf16>, vector<18x256xf32> -> vector<18x256xf32>
    %c0_3 = arith.constant 0 : index
    %c0_4 = arith.constant 0 : index
    %3 = vector.load %arg3[%c0_3, %c0_4] : memref<1x256xf32, #tpu.memory_space<vmem>>, vector<1x256xf32>
    %4 = vector.broadcast %3 : vector<1x256xf32> to vector<18x256xf32>
    %5 = arith.addf %2, %4 : vector<18x256xf32>
    %cst_5 = arith.constant 0.000000e+00 : f32
    %6 = vector.broadcast %cst_5 : f32 to vector<18x256xf32>
    %7 = arith.maximumf %5, %6 : vector<18x256xf32>
    %8 = arith.truncf %7 : vector<18x256xf32> to vector<18x256xbf16>
    %c0_6 = arith.constant 0 : index
    %c0_7 = arith.constant 0 : index
    %9 = vector.load %arg4[%c0_6, %c0_7] : memref<18x256xbf16, #tpu.memory_space<vmem>>, vector<18x256xbf16>
    tpu.vector_store %arg4[%c0_6, %c0_7], %8 {strides = array<i32>} : memref<18x256xbf16, #tpu.memory_space<vmem>>, vector<18x256xbf16>,
    return
  }
  func.func @transform_0(%arg0: i32) -> (i32, i32) {
    %c0_i32 = arith.constant 0 : i32
    %c0_i32_0 = arith.constant 0 : i32
    return %arg0, %c0_i32 : i32, i32
  }
  func.func @transform_1(%arg0: i32) -> (i32, i32) {
    %c0_i32 = arith.constant 0 : i32
    %c0_i32_0 = arith.constant 0 : i32
    %c0_i32_1 = arith.constant 0 : i32
    return %c0_i32, %c0_i32_0 : i32, i32
  }
  func.func @transform_2(%arg0: i32) -> (i32, i32) {
    %c0_i32 = arith.constant 0 : i32
    %c0_i32_0 = arith.constant 0 : i32
    %c0_i32_1 = arith.constant 0 : i32
    return %c0_i32, %c0_i32_0 : i32, i32
  }
  func.func @transform_3(%arg0: i32) -> (i32, i32) {
    %c0_i32 = arith.constant 0 : i32
    %c0_i32_0 = arith.constant 0 : i32
    return %arg0, %c0_i32 : i32, i32
  }
}

</mosaic_0001>

<llo_original>
// kernel: feature_forward.5
$region0: #{feature_forward.5}
  #allocation0 [shape = 'u32[]', space=smem, size = 0x4, offset = 0x4, fixed_abs, tag = 'smem constant byte address 0x4 - core index']
  #allocation1 [shape = 'u32[72,128]{1,0:T(1,128)}', space=vmem, size = 0x9000, scoped, tag = 'internal scratch']
  %s0 = inlined_call_operand.vmem [shape: bf16[450,384], index: 0, kind: input, shape index: {}]
  %s1 = inlined_call_operand.vmem [shape: bf16[384,128], index: 1, kind: input, shape index: {}]
  %s2 = inlined_call_operand.vmem [shape: f32[1,128], index: 2, kind: input, shape index: {}]
  %s3 = inlined_call_operand.vmem [shape: bf16[450,128], index: 3, kind: output, shape index: {}]
  %s4 = sld [smem:[#allocation0]]
  $region22: #{feature_forward.5} parent=0
    _
  %s6 = ssub.s32 1, %s4
  %s7 = scalar_select 0, %s6, %s4
  // Predicated region
  $region2: #{feature_forward.5} parent=0 // pred_check
    _
  $region3: #{feature_forward.5} parent=0 // pred_check_branch
    %9 = sbr.rel (0) target = $region5
  $region4: #{feature_forward.5} parent=0 // pred_region
    _
  $region5: #{feature_forward.5} parent=0 // pred_fallthru
    _
  // Predicated region
  $region6: #{feature_forward.5} parent=0 // pred_check
    _
  $region7: #{feature_forward.5} parent=0 // pred_check_branch
    %11 = sbr.rel (0) target = $region9
  $region8: #{feature_forward.5} parent=0 // pred_region
    _
  $region9: #{feature_forward.5} parent=0 // pred_fallthru
    _
  // Predicated region
  $region10: #{feature_forward.5} parent=0 // pred_check
    _
  $region11: #{feature_forward.5} parent=0 // pred_check_branch
    %13 = sbr.rel (0) target = $region13
  $region12: #{feature_forward.5} parent=0 // pred_region
    _
  $region13: #{feature_forward.5} parent=0 // pred_fallthru
    _
  %v14 = vld [vmem:[%s0] sm:$0xff]
  %v15 = vld [vmem:[%s0 + $0x8] sm:$0xf]
  %v16 = vld [vmem:[%s0 + $0xc] sm:$0xff]
  %v17 = vld [vmem:[%s0 + $0x14] sm:$0xf]
  %v18 = vld [vmem:[%s0 + $0x18] sm:$0xff]
  %v19 = vld [vmem:[%s0 + $0x20] sm:$0xf]
  %v20 = vld [vmem:[%s0 + $0x24] sm:$0xff]
  %v21 = vld [vmem:[%s0 + $0x2c] sm:$0xf]
  %v22 = vld [vmem:[%s0 + $0x30] sm:$0xff]
  %v23 = vld [vmem:[%s0 + $0x38] sm:$0xf]
  %v24 = vld [vmem:[%s0 + $0x3c] sm:$0xff]
  %v25 = vld [vmem:[%s0 + $0x44] sm:$0xf]
  %v26 = vld [vmem:[%s0 + $0x48] sm:$0xff]
  %v27 = vld [vmem:[%s0 + $0x50] sm:$0xf]
  %v28 = vld [vmem:[%s0 + $0x54] sm:$0xff]
  %v29 = vld [vmem:[%s0 + $0x5c] sm:$0xf]
  %v30 = vld [vmem:[%s0 + $0x60] sm:$0xff]
  %v31 = vld [vmem:[%s0 + $0x68] sm:$0xf]
  %v32 = vld [vmem:[%s0 + $0x6c] sm:$0xff]
  %v33 = vld [vmem:[%s0 + $0x74] sm:$0xf]
  %v34 = vld [vmem:[%s0 + $0x78] sm:$0xff]
  %v35 = vld [vmem:[%s0 + $0x80] sm:$0xf]
  %v36 = vld [vmem:[%s0 + $0x84] sm:$0xff]
  %v37 = vld [vmem:[%s0 + $0x8c] sm:$0xf]
  %v38 = vld [vmem:[%s0 + $0x90] sm:$0xff]
  %v39 = vld [vmem:[%s0 + $0x98] sm:$0xf]
  %v40 = vld [vmem:[%s0 + $0x9c] sm:$0xff]
  %v41 = vld [vmem:[%s0 + $0xa4] sm:$0xf]
  %v42 = vld [vmem:[%s0 + $0xa8] sm:$0xff]
  %v43 = vld [vmem:[%s0 + $0xb0] sm:$0xf]
  %v44 = vld [vmem:[%s0 + $0xb4] sm:$0xff]
  %v45 = vld [vmem:[%s0 + $0xbc] sm:$0xf]
  %v46 = vld [vmem:[%s0 + $0xc0] sm:$0xff]
  %v47 = vld [vmem:[%s0 + $0xc8] sm:$0xf]
  %v48 = vld [vmem:[%s0 + $0xcc] sm:$0xff]
  %v49 = vld [vmem:[%s0 + $0xd4] sm:$0xf]
  %v50 = vld [vmem:[%s0 + $0xd8] sm:$0xff]
  %v51 = vld [vmem:[%s0 + $0xe0] sm:$0xf]
  %v52 = vld [vmem:[%s0 + $0xe4] sm:$0xff]
  %v53 = vld [vmem:[%s0 + $0xec] sm:$0xf]
  %v54 = vld [vmem:[%s0 + $0xf0] sm:$0xff]
  %v55 = vld [vmem:[%s0 + $0xf8] sm:$0xf]
  %v56 = vld [vmem:[%s0 + $0xfc] sm:$0xff]
  %v57 = vld [vmem:[%s0 + $0x104] sm:$0xf]
  %v58 = vld [vmem:[%s0 + $0x108] sm:$0xff]
  %v59 = vld [vmem:[%s0 + $0x110] sm:$0xf]
  %v60 = vld [vmem:[%s0 + $0x114] sm:$0xff]
  %v61 = vld [vmem:[%s0 + $0x11c] sm:$0xf]
  %v62 = vld [vmem:[%s0 + $0x120] sm:$0xff]
  %v63 = vld [vmem:[%s0 + $0x128] sm:$0xf]
  %v64 = vld [vmem:[%s0 + $0x12c] sm:$0xff]
  %v65 = vld [vmem:[%s0 + $0x134] sm:$0xf]
  %v66 = vld [vmem:[%s0 + $0x138] sm:$0xff]
  %v67 = vld [vmem:[%s0 + $0x140] sm:$0xf]
  %v68 = vld [vmem:[%s0 + $0x144] sm:$0xff]
  %v69 = vld [vmem:[%s0 + $0x14c] sm:$0xf]
  %v70 = vld [vmem:[%s0 + $0x150] sm:$0xff]
  %v71 = vld [vmem:[%s0 + $0x158] sm:$0xf]
  %v72 = vld [vmem:[%s0 + $0x15c] sm:$0xff]
  %v73 = vld [vmem:[%s0 + $0x164] sm:$0xf]
  %v74 = vld [vmem:[%s0 + $0x168] sm:$0xff]
  %v75 = vld [vmem:[%s0 + $0x170] sm:$0xf]
  %v76 = vld [vmem:[%s0 + $0x174] sm:$0xff]
  %v77 = vld [vmem:[%s0 + $0x17c] sm:$0xf]
  %v78 = vld [vmem:[%s0 + $0x180] sm:$0xff]
  %v79 = vld [vmem:[%s0 + $0x188] sm:$0xf]
  %v80 = vld [vmem:[%s0 + $0x18c] sm:$0xff]
  %v81 = vld [vmem:[%s0 + $0x194] sm:$0xf]
  %v82 = vld [vmem:[%s0 + $0x198] sm:$0xff]
  %v83 = vld [vmem:[%s0 + $0x1a0] sm:$0xf]
  %v84 = vld [vmem:[%s0 + $0x1a4] sm:$0xff]
  %v85 = vld [vmem:[%s0 + $0x1ac] sm:$0xf]
  %v86 = vld [vmem:[%s0 + $0x1b0] sm:$0xff]
  %v87 = vld [vmem:[%s0 + $0x1b8] sm:$0xf]
  %v88 = vld [vmem:[%s0 + $0x1bc] sm:$0xff]
  %v89 = vld [vmem:[%s0 + $0x1c4] sm:$0xf]
  %v90 = vld [vmem:[%s0 + $0x1c8] sm:$0xff]
  %v91 = vld [vmem:[%s0 + $0x1d0] sm:$0xf]
  %v92 = vld [vmem:[%s0 + $0x1d4] sm:$0xff]
  %v93 = vld [vmem:[%s0 + $0x1dc] sm:$0xf]
  %v94 = vld [vmem:[%s0 + $0x1e0] sm:$0xff]
  %v95 = vld [vmem:[%s0 + $0x1e8] sm:$0xf]
  %v96 = vld [vmem:[%s0 + $0x1ec] sm:$0xff]
  %v97 = vld [vmem:[%s0 + $0x1f4] sm:$0xf]
  %v98 = vld [vmem:[%s0 + $0x1f8] sm:$0xff]
  %v99 = vld [vmem:[%s0 + $0x200] sm:$0xf]
  %v100 = vld [vmem:[%s0 + $0x204] sm:$0xff]
  %v101 = vld [vmem:[%s0 + $0x20c] sm:$0xf]
  %v102 = vld [vmem:[%s0 + $0x210] sm:$0xff]
  %v103 = vld [vmem:[%s0 + $0x218] sm:$0xf]
  %v104 = vld [vmem:[%s0 + $0x21c] sm:$0xff]
  %v105 = vld [vmem:[%s0 + $0x224] sm:$0xf]
  %v106 = vld [vmem:[%s0 + $0x228] sm:$0xff]
  %v107 = vld [vmem:[%s0 + $0x230] sm:$0xf]
  %v108 = vld [vmem:[%s0 + $0x234] sm:$0xff]
  %v109 = vld [vmem:[%s0 + $0x23c] sm:$0xf]
  %v110 = vld [vmem:[%s0 + $0x240] sm:$0xff]
  %v111 = vld [vmem:[%s0 + $0x248] sm:$0xf]
  %v112 = vld [vmem:[%s0 + $0x24c] sm:$0xff]
  %v113 = vld [vmem:[%s0 + $0x254] sm:$0xf]
  %v114 = vld [vmem:[%s0 + $0x258] sm:$0xff]
  %v115 = vld [vmem:[%s0 + $0x260] sm:$0xf]
  %v116 = vld [vmem:[%s0 + $0x264] sm:$0xff]
  %v117 = vld [vmem:[%s0 + $0x26c] sm:$0xf]
  %v118 = vld [vmem:[%s0 + $0x270] sm:$0xff]
  %v119 = vld [vmem:[%s0 + $0x278] sm:$0xf]
  %v120 = vld [vmem:[%s0 + $0x27c] sm:$0xff]
  %v121 = vld [vmem:[%s0 + $0x284] sm:$0xf]
  %v122 = vld [vmem:[%s0 + $0x288] sm:$0xff]
  %v123 = vld [vmem:[%s0 + $0x290] sm:$0xf]
  %v124 = vld [vmem:[%s0 + $0x294] sm:$0xff]
  %v125 = vld [vmem:[%s0 + $0x29c] sm:$0xf]
  %v126 = vld [vmem:[%s0 + $0x2a0] sm:$0x11]
  %v127 = vld [vmem:[%s0 + $0x2a8] sm:$0x1]
  %v128 = vld [vmem:[%s1] sm:$0xf]
  %v129 = vld [vmem:[%s1 + $0x4] sm:$0xf]
  %v130 = vld [vmem:[%s1 + $0x8] sm:$0xf]
  %v131 = vld [vmem:[%s1 + $0xc] sm:$0xf]
  %v132 = vld [vmem:[%s1 + $0x10] sm:$0xf]
  %v133 = vld [vmem:[%s1 + $0x14] sm:$0xf]
  %v134 = vld [vmem:[%s1 + $0x18] sm:$0xf]
  %v135 = vld [vmem:[%s1 + $0x1c] sm:$0xf]
  %v136 = vld [vmem:[%s1 + $0x20] sm:$0xf]
  %v137 = vld [vmem:[%s1 + $0x24] sm:$0xf]
  %v138 = vld [vmem:[%s1 + $0x28] sm:$0xf]
  %v139 = vld [vmem:[%s1 + $0x2c] sm:$0xf]
  %v140 = vld [vmem:[%s1 + $0x30] sm:$0xf]
  %v141 = vld [vmem:[%s1 + $0x34] sm:$0xf]
  %v142 = vld [vmem:[%s1 + $0x38] sm:$0xf]
  %v143 = vld [vmem:[%s1 + $0x3c] sm:$0xf]
  %v144 = vld [vmem:[%s1 + $0x40] sm:$0xf]
  %v145 = vld [vmem:[%s1 + $0x44] sm:$0xf]
  %v146 = vld [vmem:[%s1 + $0x48] sm:$0xf]
  %v147 = vld [vmem:[%s1 + $0x4c] sm:$0xf]
  %v148 = vld [vmem:[%s1 + $0x50] sm:$0xf]
  %v149 = vld [vmem:[%s1 + $0x54] sm:$0xf]
  %v150 = vld [vmem:[%s1 + $0x58] sm:$0xf]
  %v151 = vld [vmem:[%s1 + $0x5c] sm:$0xf]
  %v152 = vld [vmem:[%s1 + $0x60] sm:$0xf]
  %v153 = vld [vmem:[%s1 + $0x64] sm:$0xf]
  %v154 = vld [vmem:[%s1 + $0x68] sm:$0xf]
  %v155 = vld [vmem:[%s1 + $0x6c] sm:$0xf]
  %v156 = vld [vmem:[%s1 + $0x70] sm:$0xf]
  %v157 = vld [vmem:[%s1 + $0x74] sm:$0xf]
  %v158 = vld [vmem:[%s1 + $0x78] sm:$0xf]
  %v159 = vld [vmem:[%s1 + $0x7c] sm:$0xf]
  %v160 = vld [vmem:[%s1 + $0x80] sm:$0xf]
  %v161 = vld [vmem:[%s1 + $0x84] sm:$0xf]
  %v162 = vld [vmem:[%s1 + $0x88] sm:$0xf]
  %v163 = vld [vmem:[%s1 + $0x8c] sm:$0xf]
  %v164 = vld [vmem:[%s1 + $0x90] sm:$0xf]
  %v165 = vld [vmem:[%s1 + $0x94] sm:$0xf]
  %v166 = vld [vmem:[%s1 + $0x98] sm:$0xf]
  %v167 = vld [vmem:[%s1 + $0x9c] sm:$0xf]
  %v168 = vld [vmem:[%s1 + $0xa0] sm:$0xf]
  %v169 = vld [vmem:[%s1 + $0xa4] sm:$0xf]
  %v170 = vld [vmem:[%s1 + $0xa8] sm:$0xf]
  %v171 = vld [vmem:[%s1 + $0xac] sm:$0xf]
  %v172 = vld [vmem:[%s1 + $0xb0] sm:$0xf]
  %v173 = vld [vmem:[%s1 + $0xb4] sm:$0xf]
  %v174 = vld [vmem:[%s1 + $0xb8] sm:$0xf]
  %v175 = vld [vmem:[%s1 + $0xbc] sm:$0xf]
  %v176 = vld [vmem:[%s2] sm:$0x1]
  %v178 = vperm.slane %v176, 0
  %v294 = vunpack.c.l.b16 %v14
  %v295 = vunpack.c.h.b16 %v14
  %v296 = vunpack.c.l.b16 %v15
  %v297 = vunpack.c.l.b16 %v16
  %v298 = vunpack.c.h.b16 %v16
  %v299 = vunpack.c.l.b16 %v17
  %v300 = vunpack.c.l.b16 %v18
  %v301 = vunpack.c.h.b16 %v18
  %v302 = vunpack.c.l.b16 %v19
  %v303 = vunpack.c.l.b16 %v20
  %v304 = vunpack.c.h.b16 %v20
  %v305 = vunpack.c.l.b16 %v21
  %v306 = vunpack.c.l.b16 %v22
  %v307 = vunpack.c.h.b16 %v22
  %v308 = vunpack.c.l.b16 %v23
  %v309 = vunpack.c.l.b16 %v24
  %v310 = vunpack.c.h.b16 %v24
  %v311 = vunpack.c.l.b16 %v25
  %v312 = vunpack.c.l.b16 %v26
  %v313 = vunpack.c.h.b16 %v26
  %v314 = vunpack.c.l.b16 %v27
  %v315 = vunpack.c.l.b16 %v28
  %v316 = vunpack.c.h.b16 %v28
  %v317 = vunpack.c.l.b16 %v29
  %v318 = vunpack.c.l.b16 %v30
  %v319 = vunpack.c.h.b16 %v30
  %v320 = vunpack.c.l.b16 %v31
  %v321 = vunpack.c.l.b16 %v32
  %v322 = vunpack.c.h.b16 %v32
  %v323 = vunpack.c.l.b16 %v33
  %v324 = vunpack.c.l.b16 %v34
  %v325 = vunpack.c.h.b16 %v34
  %v326 = vunpack.c.l.b16 %v35
  %v327 = vunpack.c.l.b16 %v36
  %v328 = vunpack.c.h.b16 %v36
  %v329 = vunpack.c.l.b16 %v37
  %v330 = vunpack.c.l.b16 %v38
  %v331 = vunpack.c.h.b16 %v38
  %v332 = vunpack.c.l.b16 %v39
  %v333 = vunpack.c.l.b16 %v40
  %v334 = vunpack.c.h.b16 %v40
  %v335 = vunpack.c.l.b16 %v41
  %v336 = vunpack.c.l.b16 %v42
  %v337 = vunpack.c.h.b16 %v42
  %v338 = vunpack.c.l.b16 %v43
  %v339 = vunpack.c.l.b16 %v44
  %v340 = vunpack.c.h.b16 %v44
  %v341 = vunpack.c.l.b16 %v45
  %v342 = vunpack.c.l.b16 %v46
  %v343 = vunpack.c.h.b16 %v46
  %v344 = vunpack.c.l.b16 %v47
  %v345 = vunpack.c.l.b16 %v48
  %v346 = vunpack.c.h.b16 %v48
  %v347 = vunpack.c.l.b16 %v49
  %v348 = vunpack.c.l.b16 %v50
  %v349 = vunpack.c.h.b16 %v50
  %v350 = vunpack.c.l.b16 %v51
  %v351 = vunpack.c.l.b16 %v52
  %v352 = vunpack.c.h.b16 %v52
  %v353 = vunpack.c.l.b16 %v53
  %v354 = vunpack.c.l.b16 %v54
  %v355 = vunpack.c.h.b16 %v54
  %v356 = vunpack.c.l.b16 %v55
  %v357 = vunpack.c.l.b16 %v56
  %v358 = vunpack.c.h.b16 %v56
  %v359 = vunpack.c.l.b16 %v57
  %v360 = vunpack.c.l.b16 %v58
  %v361 = vunpack.c.h.b16 %v58
  %v362 = vunpack.c.l.b16 %v59
  %v363 = vunpack.c.l.b16 %v60
  %v364 = vunpack.c.h.b16 %v60
  %v365 = vunpack.c.l.b16 %v61
  %v366 = vunpack.c.l.b16 %v62
  %v367 = vunpack.c.h.b16 %v62
  %v368 = vunpack.c.l.b16 %v63
  %v369 = vunpack.c.l.b16 %v64
  %v370 = vunpack.c.h.b16 %v64
  %v371 = vunpack.c.l.b16 %v65
  %v372 = vunpack.c.l.b16 %v66
  %v373 = vunpack.c.h.b16 %v66
  %v374 = vunpack.c.l.b16 %v67
  %v375 = vunpack.c.l.b16 %v68
  %v376 = vunpack.c.h.b16 %v68
  %v377 = vunpack.c.l.b16 %v69
  %v378 = vunpack.c.l.b16 %v70
  %v379 = vunpack.c.h.b16 %v70
  %v380 = vunpack.c.l.b16 %v71
  %v381 = vunpack.c.l.b16 %v72
  %v382 = vunpack.c.h.b16 %v72
  %v383 = vunpack.c.l.b16 %v73
  %v384 = vunpack.c.l.b16 %v74
  %v385 = vunpack.c.h.b16 %v74
  %v386 = vunpack.c.l.b16 %v75
  %v387 = vunpack.c.l.b16 %v76
  %v388 = vunpack.c.h.b16 %v76
  %v389 = vunpack.c.l.b16 %v77
  %v390 = vunpack.c.l.b16 %v78
  %v391 = vunpack.c.h.b16 %v78
  %v392 = vunpack.c.l.b16 %v79
  %v393 = vunpack.c.l.b16 %v80
  %v394 = vunpack.c.h.b16 %v80
  %v395 = vunpack.c.l.b16 %v81
  %v396 = vunpack.c.l.b16 %v82
  %v397 = vunpack.c.h.b16 %v82
  %v398 = vunpack.c.l.b16 %v83
  %v399 = vunpack.c.l.b16 %v84
  %v400 = vunpack.c.h.b16 %v84
  %v401 = vunpack.c.l.b16 %v85
  %v402 = vunpack.c.l.b16 %v86
  %v403 = vunpack.c.h.b16 %v86
  %v404 = vunpack.c.l.b16 %v87
  %v405 = vunpack.c.l.b16 %v88
  %v406 = vunpack.c.h.b16 %v88
  %v407 = vunpack.c.l.b16 %v89
  %v408 = vunpack.c.l.b16 %v90
  %v409 = vunpack.c.h.b16 %v90
  %v410 = vunpack.c.l.b16 %v91
  %v411 = vunpack.c.l.b16 %v92
  %v412 = vunpack.c.h.b16 %v92
  %v413 = vunpack.c.l.b16 %v93
  %v414 = vunpack.c.l.b16 %v94
  %v415 = vunpack.c.h.b16 %v94
  %v416 = vunpack.c.l.b16 %v95
  %v417 = vunpack.c.l.b16 %v96
  %v418 = vunpack.c.h.b16 %v96
  %v419 = vunpack.c.l.b16 %v97
  %v420 = vunpack.c.l.b16 %v98
  %v421 = vunpack.c.h.b16 %v98
  %v422 = vunpack.c.l.b16 %v99
  %v423 = vunpack.c.l.b16 %v100
  %v424 = vunpack.c.h.b16 %v100
  %v425 = vunpack.c.l.b16 %v101
  %v426 = vunpack.c.l.b16 %v102
  %v427 = vunpack.c.h.b16 %v102
  %v428 = vunpack.c.l.b16 %v103
  %v429 = vunpack.c.l.b16 %v104
  %v430 = vunpack.c.h.b16 %v104
  %v431 = vunpack.c.l.b16 %v105
  %v432 = vunpack.c.l.b16 %v106
  %v433 = vunpack.c.h.b16 %v106
  %v434 = vunpack.c.l.b16 %v107
  %v435 = vunpack.c.l.b16 %v108
  %v436 = vunpack.c.h.b16 %v108
  %v437 = vunpack.c.l.b16 %v109
  %v438 = vunpack.c.l.b16 %v110
  %v439 = vunpack.c.h.b16 %v110
  %v440 = vunpack.c.l.b16 %v111
  %v441 = vunpack.c.l.b16 %v112
  %v442 = vunpack.c.h.b16 %v112
  %v443 = vunpack.c.l.b16 %v113
  %v444 = vunpack.c.l.b16 %v114
  %v445 = vunpack.c.h.b16 %v114
  %v446 = vunpack.c.l.b16 %v115
  %v447 = vunpack.c.l.b16 %v116
  %v448 = vunpack.c.h.b16 %v116
  %v449 = vunpack.c.l.b16 %v117
  %v450 = vunpack.c.l.b16 %v118
  %v451 = vunpack.c.h.b16 %v118
  %v452 = vunpack.c.l.b16 %v119
  %v453 = vunpack.c.l.b16 %v120
  %v454 = vunpack.c.h.b16 %v120
  %v455 = vunpack.c.l.b16 %v121
  %v456 = vunpack.c.l.b16 %v122
  %v457 = vunpack.c.h.b16 %v122
  %v458 = vunpack.c.l.b16 %v123
  %v459 = vunpack.c.l.b16 %v124
  %v460 = vunpack.c.h.b16 %v124
  %v461 = vunpack.c.l.b16 %v125
  %v462 = vunpack.c.l.b16 %v126
  %v463 = vunpack.c.h.b16 %v126
  %v464 = vunpack.c.l.b16 %v127
  %v465 = vpack.c.b16 %v297, %v294
  %v466 = vpack.c.b16 %v298, %v295
  %v467 = vpack.c.b16 %v299, %v296
  %v468 = vpack.c.b16 %v303, %v300
  %v469 = vpack.c.b16 %v304, %v301
  %v470 = vpack.c.b16 %v305, %v302
  %v471 = vpack.c.b16 %v309, %v306
  %v472 = vpack.c.b16 %v310, %v307
  %v473 = vpack.c.b16 %v311, %v308
  %v474 = vpack.c.b16 %v315, %v312
  %v475 = vpack.c.b16 %v316, %v313
  %v476 = vpack.c.b16 %v317, %v314
  %v477 = vpack.c.b16 %v321, %v318
  %v478 = vpack.c.b16 %v322, %v319
  %v479 = vpack.c.b16 %v323, %v320
  %v480 = vpack.c.b16 %v327, %v324
  %v481 = vpack.c.b16 %v328, %v325
  %v482 = vpack.c.b16 %v329, %v326
  %v483 = vpack.c.b16 %v333, %v330
  %v484 = vpack.c.b16 %v334, %v331
  %v485 = vpack.c.b16 %v335, %v332
  %v486 = vpack.c.b16 %v339, %v336
  %v487 = vpack.c.b16 %v340, %v337
  %v488 = vpack.c.b16 %v341, %v338
  %v489 = vpack.c.b16 %v345, %v342
  %v490 = vpack.c.b16 %v346, %v343
  %v491 = vpack.c.b16 %v347, %v344
  %v492 = vpack.c.b16 %v351, %v348
  %v493 = vpack.c.b16 %v352, %v349
  %v494 = vpack.c.b16 %v353, %v350
  %v495 = vpack.c.b16 %v357, %v354
  %v496 = vpack.c.b16 %v358, %v355
  %v497 = vpack.c.b16 %v359, %v356
  %v498 = vpack.c.b16 %v363, %v360
  %v499 = vpack.c.b16 %v364, %v361
  %v500 = vpack.c.b16 %v365, %v362
  %v501 = vpack.c.b16 %v369, %v366
  %v502 = vpack.c.b16 %v370, %v367
  %v503 = vpack.c.b16 %v371, %v368
  %v504 = vpack.c.b16 %v375, %v372
  %v505 = vpack.c.b16 %v376, %v373
  %v506 = vpack.c.b16 %v377, %v374
  %v507 = vpack.c.b16 %v381, %v378
  %v508 = vpack.c.b16 %v382, %v379
  %v509 = vpack.c.b16 %v383, %v380
  %v510 = vpack.c.b16 %v387, %v384
  %v511 = vpack.c.b16 %v388, %v385
  %v512 = vpack.c.b16 %v389, %v386
  %v513 = vpack.c.b16 %v393, %v390
  %v514 = vpack.c.b16 %v394, %v391
  %v515 = vpack.c.b16 %v395, %v392
  %v516 = vpack.c.b16 %v399, %v396
  %v517 = vpack.c.b16 %v400, %v397
  %v518 = vpack.c.b16 %v401, %v398
  %v519 = vpack.c.b16 %v405, %v402
  %v520 = vpack.c.b16 %v406, %v403
  %v521 = vpack.c.b16 %v407, %v404
  %v522 = vpack.c.b16 %v411, %v408
  %v523 = vpack.c.b16 %v412, %v409
  %v524 = vpack.c.b16 %v413, %v410
  %v525 = vpack.c.b16 %v417, %v414
  %v526 = vpack.c.b16 %v418, %v415
  %v527 = vpack.c.b16 %v419, %v416
  %v528 = vpack.c.b16 %v423, %v420
  %v529 = vpack.c.b16 %v424, %v421
  %v530 = vpack.c.b16 %v425, %v422
  %v531 = vpack.c.b16 %v429, %v426
  %v532 = vpack.c.b16 %v430, %v427
  %v533 = vpack.c.b16 %v431, %v428
  %v534 = vpack.c.b16 %v435, %v432
  %v535 = vpack.c.b16 %v436, %v433
  %v536 = vpack.c.b16 %v437, %v434
  %v537 = vpack.c.b16 %v441, %v438
  %v538 = vpack.c.b16 %v442, %v439
  %v539 = vpack.c.b16 %v443, %v440
  %v540 = vpack.c.b16 %v447, %v444
  %v541 = vpack.c.b16 %v448, %v445
  %v542 = vpack.c.b16 %v449, %v446
  %v543 = vpack.c.b16 %v453, %v450
  %v544 = vpack.c.b16 %v454, %v451
  %v545 = vpack.c.b16 %v455, %v452
  %v546 = vpack.c.b16 %v459, %v456
  %v547 = vpack.c.b16 %v460, %v457
  %v548 = vpack.c.b16 %v461, %v458
  %v549 = vpack.c.b16 %v462, %v462
  %v550 = vpack.c.b16 %v463, %v463
  %v551 = vpack.c.b16 %v464, %v464
  %v687 = vunpack.c.l.b16 %v128
  %v688 = vunpack.c.l.b16 %v129
  %v689 = vunpack.c.l.b16 %v130
  %v690 = vunpack.c.l.b16 %v131
  %v691 = vunpack.c.l.b16 %v132
  %v692 = vunpack.c.l.b16 %v133
  %v693 = vunpack.c.l.b16 %v134
  %v694 = vunpack.c.l.b16 %v135
  %v695 = vunpack.c.l.b16 %v136
  %v696 = vunpack.c.l.b16 %v137
  %v697 = vunpack.c.l.b16 %v138
  %v698 = vunpack.c.l.b16 %v139
  %v699 = vunpack.c.l.b16 %v140
  %v700 = vunpack.c.l.b16 %v141
  %v701 = vunpack.c.l.b16 %v142
  %v702 = vunpack.c.l.b16 %v143
  %v703 = vunpack.c.l.b16 %v144
  %v704 = vunpack.c.l.b16 %v145
  %v705 = vunpack.c.l.b16 %v146
  %v706 = vunpack.c.l.b16 %v147
  %v707 = vunpack.c.l.b16 %v148
  %v708 = vunpack.c.l.b16 %v149
  %v709 = vunpack.c.l.b16 %v150
  %v710 = vunpack.c.l.b16 %v151
  %v711 = vunpack.c.l.b16 %v152
  %v712 = vunpack.c.l.b16 %v153
  %v713 = vunpack.c.l.b16 %v154
  %v714 = vunpack.c.l.b16 %v155
  %v715 = vunpack.c.l.b16 %v156
  %v716 = vunpack.c.l.b16 %v157
  %v717 = vunpack.c.l.b16 %v158
  %v718 = vunpack.c.l.b16 %v159
  %v719 = vunpack.c.l.b16 %v160
  %v720 = vunpack.c.l.b16 %v161
  %v721 = vunpack.c.l.b16 %v162
  %v722 = vunpack.c.l.b16 %v163
  %v723 = vunpack.c.l.b16 %v164
  %v724 = vunpack.c.l.b16 %v165
  %v725 = vunpack.c.l.b16 %v166
  %v726 = vunpack.c.l.b16 %v167
  %v727 = vunpack.c.l.b16 %v168
  %v728 = vunpack.c.l.b16 %v169
  %v729 = vunpack.c.l.b16 %v170
  %v730 = vunpack.c.l.b16 %v171
  %v731 = vunpack.c.l.b16 %v172
  %v732 = vunpack.c.l.b16 %v173
  %v733 = vunpack.c.l.b16 %v174
  %v734 = vunpack.c.l.b16 %v175
  %v735 = vpack.c.b16 %v688, %v687
  %v736 = vpack.c.b16 %v690, %v689
  %v737 = vpack.c.b16 %v692, %v691
  %v738 = vpack.c.b16 %v694, %v693
  %v739 = vpack.c.b16 %v696, %v695
  %v740 = vpack.c.b16 %v698, %v697
  %v741 = vpack.c.b16 %v700, %v699
  %v742 = vpack.c.b16 %v702, %v701
  %v743 = vpack.c.b16 %v704, %v703
  %v744 = vpack.c.b16 %v706, %v705
  %v745 = vpack.c.b16 %v708, %v707
  %v746 = vpack.c.b16 %v710, %v709
  %v747 = vpack.c.b16 %v712, %v711
  %v748 = vpack.c.b16 %v714, %v713
  %v749 = vpack.c.b16 %v716, %v715
  %v750 = vpack.c.b16 %v718, %v717
  %v751 = vpack.c.b16 %v720, %v719
  %v752 = vpack.c.b16 %v722, %v721
  %v753 = vpack.c.b16 %v724, %v723
  %v754 = vpack.c.b16 %v726, %v725
  %v755 = vpack.c.b16 %v728, %v727
  %v756 = vpack.c.b16 %v730, %v729
  %v757 = vpack.c.b16 %v732, %v731
  %v758 = vpack.c.b16 %v734, %v733
  %783 = vmatpush.bf16.msra.mxu0 %v742
  %784 = vmatpush.bf16.msra.mxu0 %v741
  %785 = vmatpush.bf16.msra.mxu0 %v740
  %786 = vmatpush.bf16.msra.mxu0 %v739
  %787 = vmatpush.bf16.msra.mxu0 %v738
  %788 = vmatpush.bf16.msra.mxu0 %v737
  %789 = vmatpush.bf16.msra.mxu0 %v736
  %790 = vmatpush.bf16.msra.mxu0 %v735
  %791 = vmatmul.bf16.gmra.mxu0 %v465
  %v792 = vpop.f32.mrf.mxu0
  %v793 = vadd.f32 %v178, %v792
  %v794 = vpop.f32.mrf.mxu0
  %v795 = vadd.f32 %v178, %v794
  %796 = vmatmul.bf16.gmra.mxu0 %v468
  %v797 = vpop.f32.mrf.mxu0
  %v798 = vadd.f32 %v178, %v797
  %v799 = vpop.f32.mrf.mxu0
  %v800 = vadd.f32 %v178, %v799
  %801 = vmatmul.bf16.gmra.mxu0 %v471
  %v802 = vpop.f32.mrf.mxu0
  %v803 = vadd.f32 %v178, %v802
  %v804 = vpop.f32.mrf.mxu0
  %v805 = vadd.f32 %v178, %v804
  %806 = vmatmul.bf16.gmra.mxu0 %v474
  %v807 = vpop.f32.mrf.mxu0
  %v808 = vadd.f32 %v178, %v807
  %v809 = vpop.f32.mrf.mxu0
  %v810 = vadd.f32 %v178, %v809
  %811 = vmatmul.bf16.gmra.mxu0 %v477
  %v812 = vpop.f32.mrf.mxu0
  %v813 = vadd.f32 %v178, %v812
  %v814 = vpop.f32.mrf.mxu0
  %v815 = vadd.f32 %v178, %v814
  %816 = vmatmul.bf16.gmra.mxu0 %v480
  %v817 = vpop.f32.mrf.mxu0
  %v818 = vadd.f32 %v178, %v817
  %v819 = vpop.f32.mrf.mxu0
  %v820 = vadd.f32 %v178, %v819
  %821 = vmatmul.bf16.gmra.mxu0 %v483
  %v822 = vpop.f32.mrf.mxu0
  %v823 = vadd.f32 %v178, %v822
  %v824 = vpop.f32.mrf.mxu0
  %v825 = vadd.f32 %v178, %v824
  %826 = vmatmul.bf16.gmra.mxu0 %v486
  %v827 = vpop.f32.mrf.mxu0
  %v828 = vadd.f32 %v178, %v827
  %v829 = vpop.f32.mrf.mxu0
  %v830 = vadd.f32 %v178, %v829
  %831 = vmatmul.bf16.gmra.mxu0 %v489
  %v832 = vpop.f32.mrf.mxu0
  %v833 = vadd.f32 %v178, %v832
  %v834 = vpop.f32.mrf.mxu0
  %v835 = vadd.f32 %v178, %v834
  %836 = vmatmul.bf16.gmra.mxu0 %v492
  %v837 = vpop.f32.mrf.mxu0
  %v838 = vadd.f32 %v178, %v837
  %v839 = vpop.f32.mrf.mxu0
  %v840 = vadd.f32 %v178, %v839
  %841 = vmatmul.bf16.gmra.mxu0 %v495
  %v842 = vpop.f32.mrf.mxu0
  %v843 = vadd.f32 %v178, %v842
  %v844 = vpop.f32.mrf.mxu0
  %v845 = vadd.f32 %v178, %v844
  %846 = vmatmul.bf16.gmra.mxu0 %v498
  %v847 = vpop.f32.mrf.mxu0
  %v848 = vadd.f32 %v178, %v847
  %v849 = vpop.f32.mrf.mxu0
  %v850 = vadd.f32 %v178, %v849
  %851 = vmatmul.bf16.gmra.mxu0 %v501
  %v852 = vpop.f32.mrf.mxu0
  %v853 = vadd.f32 %v178, %v852
  %v854 = vpop.f32.mrf.mxu0
  %v855 = vadd.f32 %v178, %v854
  %856 = vmatmul.bf16.gmra.mxu0 %v504
  %v857 = vpop.f32.mrf.mxu0
  %v858 = vadd.f32 %v178, %v857
  %v859 = vpop.f32.mrf.mxu0
  %v860 = vadd.f32 %v178, %v859
  %861 = vmatmul.bf16.gmra.mxu0 %v507
  %v862 = vpop.f32.mrf.mxu0
  %v863 = vadd.f32 %v178, %v862
  %v864 = vpop.f32.mrf.mxu0
  %v865 = vadd.f32 %v178, %v864
  %866 = vmatmul.bf16.gmra.mxu0 %v510
  %v867 = vpop.f32.mrf.mxu0
  %v868 = vadd.f32 %v178, %v867
  %v869 = vpop.f32.mrf.mxu0
  %v870 = vadd.f32 %v178, %v869
  %871 = vmatmul.bf16.gmra.mxu0 %v513
  %v872 = vpop.f32.mrf.mxu0
  %v873 = vadd.f32 %v178, %v872
  %v874 = vpop.f32.mrf.mxu0
  %v875 = vadd.f32 %v178, %v874
  %876 = vmatmul.bf16.gmra.mxu0 %v516
  %v877 = vpop.f32.mrf.mxu0
  %v878 = vadd.f32 %v178, %v877
  %v879 = vpop.f32.mrf.mxu0
  %v880 = vadd.f32 %v178, %v879
  %881 = vmatmul.bf16.gmra.mxu0 %v519
  %v882 = vpop.f32.mrf.mxu0
  %v883 = vadd.f32 %v178, %v882
  %v884 = vpop.f32.mrf.mxu0
  %v885 = vadd.f32 %v178, %v884
  %886 = vmatmul.bf16.gmra.mxu0 %v522
  %v887 = vpop.f32.mrf.mxu0
  %v888 = vadd.f32 %v178, %v887
  %v889 = vpop.f32.mrf.mxu0
  %v890 = vadd.f32 %v178, %v889
  %891 = vmatmul.bf16.gmra.mxu0 %v525
  %v892 = vpop.f32.mrf.mxu0
  %v893 = vadd.f32 %v178, %v892
  %v894 = vpop.f32.mrf.mxu0
  %v895 = vadd.f32 %v178, %v894
  %896 = vmatmul.bf16.gmra.mxu0 %v528
  %v897 = vpop.f32.mrf.mxu0
  %v898 = vadd.f32 %v178, %v897
  %v899 = vpop.f32.mrf.mxu0
  %v900 = vadd.f32 %v178, %v899
  %901 = vmatmul.bf16.gmra.mxu0 %v531
  %v902 = vpop.f32.mrf.mxu0
  %v903 = vadd.f32 %v178, %v902
  %v904 = vpop.f32.mrf.mxu0
  %v905 = vadd.f32 %v178, %v904
  %906 = vmatmul.bf16.gmra.mxu0 %v534
  %v907 = vpop.f32.mrf.mxu0
  %v908 = vadd.f32 %v178, %v907
  %v909 = vpop.f32.mrf.mxu0
  %v910 = vadd.f32 %v178, %v909
  %911 = vmatmul.bf16.gmra.mxu0 %v537
  %v912 = vpop.f32.mrf.mxu0
  %v913 = vadd.f32 %v178, %v912
  %v914 = vpop.f32.mrf.mxu0
  %v915 = vadd.f32 %v178, %v914
  %916 = vmatmul.bf16.gmra.mxu0 %v540
  %v917 = vpop.f32.mrf.mxu0
  %v918 = vadd.f32 %v178, %v917
  %v919 = vpop.f32.mrf.mxu0
  %v920 = vadd.f32 %v178, %v919
  %921 = vmatmul.bf16.gmra.mxu0 %v543
  %v922 = vpop.f32.mrf.mxu0
  %v923 = vadd.f32 %v178, %v922
  %v924 = vpop.f32.mrf.mxu0
  %v925 = vadd.f32 %v178, %v924
  %926 = vmatmul.bf16.gmra.mxu0 %v546
  %v927 = vpop.f32.mrf.mxu0
  %v928 = vadd.f32 %v178, %v927
  %v929 = vpop.f32.mrf.mxu0
  %v930 = vadd.f32 %v178, %v929
  %931 = vmatmul.bf16.gmra.mxu0 %v549
  %v932 = vpop.f32.mrf.mxu0
  %v933 = vadd.f32 %v178, %v932
  %v934 = vpop.f32.mrf.mxu0
  %935 = vdwg.mxu0
  %936 = vmatpush.bf16.msra.mxu0 %v750
  %937 = vmatpush.bf16.msra.mxu0 %v749
  %938 = vmatpush.bf16.msra.mxu0 %v748
  %939 = vmatpush.bf16.msra.mxu0 %v747
  %940 = vmatpush.bf16.msra.mxu0 %v746
  %941 = vmatpush.bf16.msra.mxu0 %v745
  %942 = vmatpush.bf16.msra.mxu0 %v744
  %943 = vmatpush.bf16.msra.mxu0 %v743
  %944 = vmatmul.bf16.gmra.mxu0 %v466
  %v945 = vpop.f32.mrf.mxu0
  %v946 = vadd.f32 %v793, %v945
  %v947 = vpop.f32.mrf.mxu0
  %v948 = vadd.f32 %v795, %v947
  %949 = vmatmul.bf16.gmra.mxu0 %v469
  %v950 = vpop.f32.mrf.mxu0
  %v951 = vadd.f32 %v798, %v950
  %v952 = vpop.f32.mrf.mxu0
  %v953 = vadd.f32 %v800, %v952
  %954 = vmatmul.bf16.gmra.mxu0 %v472
  %v955 = vpop.f32.mrf.mxu0
  %v956 = vadd.f32 %v803, %v955
  %v957 = vpop.f32.mrf.mxu0
  %v958 = vadd.f32 %v805, %v957
  %959 = vmatmul.bf16.gmra.mxu0 %v475
  %v960 = vpop.f32.mrf.mxu0
  %v961 = vadd.f32 %v808, %v960
  %v962 = vpop.f32.mrf.mxu0
  %v963 = vadd.f32 %v810, %v962
  %964 = vmatmul.bf16.gmra.mxu0 %v478
  %v965 = vpop.f32.mrf.mxu0
  %v966 = vadd.f32 %v813, %v965
  %v967 = vpop.f32.mrf.mxu0
  %v968 = vadd.f32 %v815, %v967
  %969 = vmatmul.bf16.gmra.mxu0 %v481
  %v970 = vpop.f32.mrf.mxu0
  %v971 = vadd.f32 %v818, %v970
  %v972 = vpop.f32.mrf.mxu0
  %v973 = vadd.f32 %v820, %v972
  %974 = vmatmul.bf16.gmra.mxu0 %v484
  %v975 = vpop.f32.mrf.mxu0
  %v976 = vadd.f32 %v823, %v975
  %v977 = vpop.f32.mrf.mxu0
  %v978 = vadd.f32 %v825, %v977
  %979 = vmatmul.bf16.gmra.mxu0 %v487
  %v980 = vpop.f32.mrf.mxu0
  %v981 = vadd.f32 %v828, %v980
  %v982 = vpop.f32.mrf.mxu0
  %v983 = vadd.f32 %v830, %v982
  %984 = vmatmul.bf16.gmra.mxu0 %v490
  %v985 = vpop.f32.mrf.mxu0
  %v986 = vadd.f32 %v833, %v985
  %v987 = vpop.f32.mrf.mxu0
  %v988 = vadd.f32 %v835, %v987
  %989 = vmatmul.bf16.gmra.mxu0 %v493
  %v990 = vpop.f32.mrf.mxu0
  %v991 = vadd.f32 %v838, %v990
  %v992 = vpop.f32.mrf.mxu0
  %v993 = vadd.f32 %v840, %v992
  %994 = vmatmul.bf16.gmra.mxu0 %v496
  %v995 = vpop.f32.mrf.mxu0
  %v996 = vadd.f32 %v843, %v995
  %v997 = vpop.f32.mrf.mxu0
  %v998 = vadd.f32 %v845, %v997
  %999 = vmatmul.bf16.gmra.mxu0 %v499
  %v1000 = vpop.f32.mrf.mxu0
  %v1001 = vadd.f32 %v848, %v1000
  %v1002 = vpop.f32.mrf.mxu0
  %v1003 = vadd.f32 %v850, %v1002
  %1004 = vmatmul.bf16.gmra.mxu0 %v502
  %v1005 = vpop.f32.mrf.mxu0
  %v1006 = vadd.f32 %v853, %v1005
  %v1007 = vpop.f32.mrf.mxu0
  %v1008 = vadd.f32 %v855, %v1007
  %1009 = vmatmul.bf16.gmra.mxu0 %v505
  %v1010 = vpop.f32.mrf.mxu0
  %v1011 = vadd.f32 %v858, %v1010
  %v1012 = vpop.f32.mrf.mxu0
  %v1013 = vadd.f32 %v860, %v1012
  %1014 = vmatmul.bf16.gmra.mxu0 %v508
  %v1015 = vpop.f32.mrf.mxu0
  %v1016 = vadd.f32 %v863, %v1015
  %v1017 = vpop.f32.mrf.mxu0
  %v1018 = vadd.f32 %v865, %v1017
  %1019 = vmatmul.bf16.gmra.mxu0 %v511
  %v1020 = vpop.f32.mrf.mxu0
  %v1021 = vadd.f32 %v868, %v1020
  %v1022 = vpop.f32.mrf.mxu0
  %v1023 = vadd.f32 %v870, %v1022
  %1024 = vmatmul.bf16.gmra.mxu0 %v514
  %v1025 = vpop.f32.mrf.mxu0
  %v1026 = vadd.f32 %v873, %v1025
  %v1027 = vpop.f32.mrf.mxu0
  %v1028 = vadd.f32 %v875, %v1027
  %1029 = vmatmul.bf16.gmra.mxu0 %v517
  %v1030 = vpop.f32.mrf.mxu0
  %v1031 = vadd.f32 %v878, %v1030
  %v1032 = vpop.f32.mrf.mxu0
  %v1033 = vadd.f32 %v880, %v1032
  %1034 = vmatmul.bf16.gmra.mxu0 %v520
  %v1035 = vpop.f32.mrf.mxu0
  %v1036 = vadd.f32 %v883, %v1035
  %v1037 = vpop.f32.mrf.mxu0
  %v1038 = vadd.f32 %v885, %v1037
  %1039 = vmatmul.bf16.gmra.mxu0 %v523
  %v1040 = vpop.f32.mrf.mxu0
  %v1041 = vadd.f32 %v888, %v1040
  %v1042 = vpop.f32.mrf.mxu0
  %v1043 = vadd.f32 %v890, %v1042
  %1044 = vmatmul.bf16.gmra.mxu0 %v526
  %v1045 = vpop.f32.mrf.mxu0
  %v1046 = vadd.f32 %v893, %v1045
  %v1047 = vpop.f32.mrf.mxu0
  %v1048 = vadd.f32 %v895, %v1047
  %1049 = vmatmul.bf16.gmra.mxu0 %v529
  %v1050 = vpop.f32.mrf.mxu0
  %v1051 = vadd.f32 %v898, %v1050
  %v1052 = vpop.f32.mrf.mxu0
  %v1053 = vadd.f32 %v900, %v1052
  %1054 = vmatmul.bf16.gmra.mxu0 %v532
  %v1055 = vpop.f32.mrf.mxu0
  %v1056 = vadd.f32 %v903, %v1055
  %v1057 = vpop.f32.mrf.mxu0
  %v1058 = vadd.f32 %v905, %v1057
  %1059 = vmatmul.bf16.gmra.mxu0 %v535
  %v1060 = vpop.f32.mrf.mxu0
  %v1061 = vadd.f32 %v908, %v1060
  %v1062 = vpop.f32.mrf.mxu0
  %v1063 = vadd.f32 %v910, %v1062
  %1064 = vmatmul.bf16.gmra.mxu0 %v538
  %v1065 = vpop.f32.mrf.mxu0
  %v1066 = vadd.f32 %v913, %v1065
  %v1067 = vpop.f32.mrf.mxu0
  %v1068 = vadd.f32 %v915, %v1067
  %1069 = vmatmul.bf16.gmra.mxu0 %v541
  %v1070 = vpop.f32.mrf.mxu0
  %v1071 = vadd.f32 %v918, %v1070
  %v1072 = vpop.f32.mrf.mxu0
  %v1073 = vadd.f32 %v920, %v1072
  %1074 = vmatmul.bf16.gmra.mxu0 %v544
  %v1075 = vpop.f32.mrf.mxu0
  %v1076 = vadd.f32 %v923, %v1075
  %v1077 = vpop.f32.mrf.mxu0
  %v1078 = vadd.f32 %v925, %v1077
  %1079 = vmatmul.bf16.gmra.mxu0 %v547
  %v1080 = vpop.f32.mrf.mxu0
  %v1081 = vadd.f32 %v928, %v1080
  %v1082 = vpop.f32.mrf.mxu0
  %v1083 = vadd.f32 %v930, %v1082
  %1084 = vmatmul.bf16.gmra.mxu0 %v550
  %v1085 = vpop.f32.mrf.mxu0
  %v1086 = vadd.f32 %v933, %v1085
  %v1087 = vpop.f32.mrf.mxu0
  %1088 = vdwg.mxu0
  %1089 = vmatpush.bf16.msra.mxu0 %v758
  %1090 = vmatpush.bf16.msra.mxu0 %v757
  %1091 = vmatpush.bf16.msra.mxu0 %v756
  %1092 = vmatpush.bf16.msra.mxu0 %v755
  %1093 = vmatpush.bf16.msra.mxu0 %v754
  %1094 = vmatpush.bf16.msra.mxu0 %v753
  %1095 = vmatpush.bf16.msra.mxu0 %v752
  %1096 = vmatpush.bf16.msra.mxu0 %v751
  %1097 = vmatmul.bf16.gmra.mxu0 %v467
  %v1098 = vpop.f32.mrf.mxu0
  %v1099 = vadd.f32 %v946, %v1098
  %v1100 = vpop.f32.mrf.mxu0
  %v1101 = vadd.f32 %v948, %v1100
  %1102 = vmatmul.bf16.gmra.mxu0 %v470
  %v1103 = vpop.f32.mrf.mxu0
  %v1104 = vadd.f32 %v951, %v1103
  %v1105 = vpop.f32.mrf.mxu0
  %v1106 = vadd.f32 %v953, %v1105
  %1107 = vmatmul.bf16.gmra.mxu0 %v473
  %v1108 = vpop.f32.mrf.mxu0
  %v1109 = vadd.f32 %v956, %v1108
  %v1110 = vpop.f32.mrf.mxu0
  %v1111 = vadd.f32 %v958, %v1110
  %1112 = vmatmul.bf16.gmra.mxu0 %v476
  %v1113 = vpop.f32.mrf.mxu0
  %v1114 = vadd.f32 %v961, %v1113
  %v1115 = vpop.f32.mrf.mxu0
  %v1116 = vadd.f32 %v963, %v1115
  %1117 = vmatmul.bf16.gmra.mxu0 %v479
  %v1118 = vpop.f32.mrf.mxu0
  %v1119 = vadd.f32 %v966, %v1118
  %v1120 = vpop.f32.mrf.mxu0
  %v1121 = vadd.f32 %v968, %v1120
  %1122 = vmatmul.bf16.gmra.mxu0 %v482
  %v1123 = vpop.f32.mrf.mxu0
  %v1124 = vadd.f32 %v971, %v1123
  %v1125 = vpop.f32.mrf.mxu0
  %v1126 = vadd.f32 %v973, %v1125
  %1127 = vmatmul.bf16.gmra.mxu0 %v485
  %v1128 = vpop.f32.mrf.mxu0
  %v1129 = vadd.f32 %v976, %v1128
  %v1130 = vpop.f32.mrf.mxu0
  %v1131 = vadd.f32 %v978, %v1130
  %1132 = vmatmul.bf16.gmra.mxu0 %v488
  %v1133 = vpop.f32.mrf.mxu0
  %v1134 = vadd.f32 %v981, %v1133
  %v1135 = vpop.f32.mrf.mxu0
  %v1136 = vadd.f32 %v983, %v1135
  %1137 = vmatmul.bf16.gmra.mxu0 %v491
  %v1138 = vpop.f32.mrf.mxu0
  %v1139 = vadd.f32 %v986, %v1138
  %v1140 = vpop.f32.mrf.mxu0
  %v1141 = vadd.f32 %v988, %v1140
  %1142 = vmatmul.bf16.gmra.mxu0 %v494
  %v1143 = vpop.f32.mrf.mxu0
  %v1144 = vadd.f32 %v991, %v1143
  %v1145 = vpop.f32.mrf.mxu0
  %v1146 = vadd.f32 %v993, %v1145
  %1147 = vmatmul.bf16.gmra.mxu0 %v497
  %v1148 = vpop.f32.mrf.mxu0
  %v1149 = vadd.f32 %v996, %v1148
  %v1150 = vpop.f32.mrf.mxu0
  %v1151 = vadd.f32 %v998, %v1150
  %1152 = vmatmul.bf16.gmra.mxu0 %v500
  %v1153 = vpop.f32.mrf.mxu0
  %v1154 = vadd.f32 %v1001, %v1153
  %v1155 = vpop.f32.mrf.mxu0
  %v1156 = vadd.f32 %v1003, %v1155
  %1157 = vmatmul.bf16.gmra.mxu0 %v503
  %v1158 = vpop.f32.mrf.mxu0
  %v1159 = vadd.f32 %v1006, %v1158
  %v1160 = vpop.f32.mrf.mxu0
  %v1161 = vadd.f32 %v1008, %v1160
  %1162 = vmatmul.bf16.gmra.mxu0 %v506
  %v1163 = vpop.f32.mrf.mxu0
  %v1164 = vadd.f32 %v1011, %v1163
  %v1165 = vpop.f32.mrf.mxu0
  %v1166 = vadd.f32 %v1013, %v1165
  %1167 = vmatmul.bf16.gmra.mxu0 %v509
  %v1168 = vpop.f32.mrf.mxu0
  %v1169 = vadd.f32 %v1016, %v1168
  %v1170 = vpop.f32.mrf.mxu0
  %v1171 = vadd.f32 %v1018, %v1170
  %1172 = vmatmul.bf16.gmra.mxu0 %v512
  %v1173 = vpop.f32.mrf.mxu0
  %v1174 = vadd.f32 %v1021, %v1173
  %v1175 = vpop.f32.mrf.mxu0
  %v1176 = vadd.f32 %v1023, %v1175
  %1177 = vmatmul.bf16.gmra.mxu0 %v515
  %v1178 = vpop.f32.mrf.mxu0
  %v1179 = vadd.f32 %v1026, %v1178
  %v1180 = vpop.f32.mrf.mxu0
  %v1181 = vadd.f32 %v1028, %v1180
  %1182 = vmatmul.bf16.gmra.mxu0 %v518
  %v1183 = vpop.f32.mrf.mxu0
  %v1184 = vadd.f32 %v1031, %v1183
  %v1185 = vpop.f32.mrf.mxu0
  %v1186 = vadd.f32 %v1033, %v1185
  %1187 = vmatmul.bf16.gmra.mxu0 %v521
  %v1188 = vpop.f32.mrf.mxu0
  %v1189 = vadd.f32 %v1036, %v1188
  %v1190 = vpop.f32.mrf.mxu0
  %v1191 = vadd.f32 %v1038, %v1190
  %1192 = vmatmul.bf16.gmra.mxu0 %v524
  %v1193 = vpop.f32.mrf.mxu0
  %v1194 = vadd.f32 %v1041, %v1193
  %v1195 = vpop.f32.mrf.mxu0
  %v1196 = vadd.f32 %v1043, %v1195
  %1197 = vmatmul.bf16.gmra.mxu0 %v527
  %v1198 = vpop.f32.mrf.mxu0
  %v1199 = vadd.f32 %v1046, %v1198
  %v1200 = vpop.f32.mrf.mxu0
  %v1201 = vadd.f32 %v1048, %v1200
  %1202 = vmatmul.bf16.gmra.mxu0 %v530
  %v1203 = vpop.f32.mrf.mxu0
  %v1204 = vadd.f32 %v1051, %v1203
  %v1205 = vpop.f32.mrf.mxu0
  %v1206 = vadd.f32 %v1053, %v1205
  %1207 = vmatmul.bf16.gmra.mxu0 %v533
  %v1208 = vpop.f32.mrf.mxu0
  %v1209 = vadd.f32 %v1056, %v1208
  %v1210 = vpop.f32.mrf.mxu0
  %v1211 = vadd.f32 %v1058, %v1210
  %1212 = vmatmul.bf16.gmra.mxu0 %v536
  %v1213 = vpop.f32.mrf.mxu0
  %v1214 = vadd.f32 %v1061, %v1213
  %v1215 = vpop.f32.mrf.mxu0
  %v1216 = vadd.f32 %v1063, %v1215
  %1217 = vmatmul.bf16.gmra.mxu0 %v539
  %v1218 = vpop.f32.mrf.mxu0
  %v1219 = vadd.f32 %v1066, %v1218
  %v1220 = vpop.f32.mrf.mxu0
  %v1221 = vadd.f32 %v1068, %v1220
  %1222 = vmatmul.bf16.gmra.mxu0 %v542
  %v1223 = vpop.f32.mrf.mxu0
  %v1224 = vadd.f32 %v1071, %v1223
  %v1225 = vpop.f32.mrf.mxu0
  %v1226 = vadd.f32 %v1073, %v1225
  %1227 = vmatmul.bf16.gmra.mxu0 %v545
  %v1228 = vpop.f32.mrf.mxu0
  %v1229 = vadd.f32 %v1076, %v1228
  %v1230 = vpop.f32.mrf.mxu0
  %v1231 = vadd.f32 %v1078, %v1230
  %1232 = vmatmul.bf16.gmra.mxu0 %v548
  %v1233 = vpop.f32.mrf.mxu0
  %v1234 = vadd.f32 %v1081, %v1233
  %v1235 = vpop.f32.mrf.mxu0
  %v1236 = vadd.f32 %v1083, %v1235
  %1237 = vmatmul.bf16.gmra.mxu0 %v551
  %v1238 = vpop.f32.mrf.mxu0
  %v1239 = vadd.f32 %v1086, %v1238
  %v1240 = vpop.f32.mrf.mxu0
  %1241 = vdwg.mxu0
  %v1242 = vmax.f32 %v1099, 0.0
  %v1243 = vmax.f32 %v1101, 0.0
  %v1244 = vmax.f32 %v1104, 0.0
  %v1245 = vmax.f32 %v1106, 0.0
  %v1246 = vmax.f32 %v1109, 0.0
  %v1247 = vmax.f32 %v1111, 0.0
  %v1248 = vmax.f32 %v1114, 0.0
  %v1249 = vmax.f32 %v1116, 0.0
  %v1250 = vmax.f32 %v1119, 0.0
  %v1251 = vmax.f32 %v1121, 0.0
  %v1252 = vmax.f32 %v1124, 0.0
  %v1253 = vmax.f32 %v1126, 0.0
  %v1254 = vmax.f32 %v1129, 0.0
  %v1255 = vmax.f32 %v1131, 0.0
  %v1256 = vmax.f32 %v1134, 0.0
  %v1257 = vmax.f32 %v1136, 0.0
  %v1258 = vmax.f32 %v1139, 0.0
  %v1259 = vmax.f32 %v1141, 0.0
  %v1260 = vmax.f32 %v1144, 0.0
  %v1261 = vmax.f32 %v1146, 0.0
  %v1262 = vmax.f32 %v1149, 0.0
  %v1263 = vmax.f32 %v1151, 0.0
  %v1264 = vmax.f32 %v1154, 0.0
  %v1265 = vmax.f32 %v1156, 0.0
  %v1266 = vmax.f32 %v1159, 0.0
  %v1267 = vmax.f32 %v1161, 0.0
  %v1268 = vmax.f32 %v1164, 0.0
  %v1269 = vmax.f32 %v1166, 0.0
  %v1270 = vmax.f32 %v1169, 0.0
  %v1271 = vmax.f32 %v1171, 0.0
  %v1272 = vmax.f32 %v1174, 0.0
  %v1273 = vmax.f32 %v1176, 0.0
  %v1274 = vmax.f32 %v1179, 0.0
  %v1275 = vmax.f32 %v1181, 0.0
  %v1276 = vmax.f32 %v1184, 0.0
  %v1277 = vmax.f32 %v1186, 0.0
  %v1278 = vmax.f32 %v1189, 0.0
  %v1279 = vmax.f32 %v1191, 0.0
  %v1280 = vmax.f32 %v1194, 0.0
  %v1281 = vmax.f32 %v1196, 0.0
  %v1282 = vmax.f32 %v1199, 0.0
  %v1283 = vmax.f32 %v1201, 0.0
  %v1284 = vmax.f32 %v1204, 0.0
  %v1285 = vmax.f32 %v1206, 0.0
  %v1286 = vmax.f32 %v1209, 0.0
  %v1287 = vmax.f32 %v1211, 0.0
  %v1288 = vmax.f32 %v1214, 0.0
  %v1289 = vmax.f32 %v1216, 0.0
  %v1290 = vmax.f32 %v1219, 0.0
  %v1291 = vmax.f32 %v1221, 0.0
  %v1292 = vmax.f32 %v1224, 0.0
  %v1293 = vmax.f32 %v1226, 0.0
  %v1294 = vmax.f32 %v1229, 0.0
  %v1295 = vmax.f32 %v1231, 0.0
  %v1296 = vmax.f32 %v1234, 0.0
  %v1297 = vmax.f32 %v1236, 0.0
  %v1298 = vmax.f32 %v1239, 0.0
  %v1299 = vpack.c.bf16 %v1242, %v1242
  %v1300 = vpack.c.bf16 %v1243, %v1243
  %v1301 = vpack.c.bf16 %v1244, %v1244
  %v1302 = vpack.c.bf16 %v1245, %v1245
  %v1303 = vpack.c.bf16 %v1246, %v1246
  %v1304 = vpack.c.bf16 %v1247, %v1247
  %v1305 = vpack.c.bf16 %v1248, %v1248
  %v1306 = vpack.c.bf16 %v1249, %v1249
  %v1307 = vpack.c.bf16 %v1250, %v1250
  %v1308 = vpack.c.bf16 %v1251, %v1251
  %v1309 = vpack.c.bf16 %v1252, %v1252
  %v1310 = vpack.c.bf16 %v1253, %v1253
  %v1311 = vpack.c.bf16 %v1254, %v1254
  %v1312 = vpack.c.bf16 %v1255, %v1255
  %v1313 = vpack.c.bf16 %v1256, %v1256
  %v1314 = vpack.c.bf16 %v1257, %v1257
  %v1315 = vpack.c.bf16 %v1258, %v1258
  %v1316 = vpack.c.bf16 %v1259, %v1259
  %v1317 = vpack.c.bf16 %v1260, %v1260
  %v1318 = vpack.c.bf16 %v1261, %v1261
  %v1319 = vpack.c.bf16 %v1262, %v1262
  %v1320 = vpack.c.bf16 %v1263, %v1263
  %v1321 = vpack.c.bf16 %v1264, %v1264
  %v1322 = vpack.c.bf16 %v1265, %v1265
  %v1323 = vpack.c.bf16 %v1266, %v1266
  %v1324 = vpack.c.bf16 %v1267, %v1267
  %v1325 = vpack.c.bf16 %v1268, %v1268
  %v1326 = vpack.c.bf16 %v1269, %v1269
  %v1327 = vpack.c.bf16 %v1270, %v1270
  %v1328 = vpack.c.bf16 %v1271, %v1271
  %v1329 = vpack.c.bf16 %v1272, %v1272
  %v1330 = vpack.c.bf16 %v1273, %v1273
  %v1331 = vpack.c.bf16 %v1274, %v1274
  %v1332 = vpack.c.bf16 %v1275, %v1275
  %v1333 = vpack.c.bf16 %v1276, %v1276
  %v1334 = vpack.c.bf16 %v1277, %v1277
  %v1335 = vpack.c.bf16 %v1278, %v1278
  %v1336 = vpack.c.bf16 %v1279, %v1279
  %v1337 = vpack.c.bf16 %v1280, %v1280
  %v1338 = vpack.c.bf16 %v1281, %v1281
  %v1339 = vpack.c.bf16 %v1282, %v1282
  %v1340 = vpack.c.bf16 %v1283, %v1283
  %v1341 = vpack.c.bf16 %v1284, %v1284
  %v1342 = vpack.c.bf16 %v1285, %v1285
  %v1343 = vpack.c.bf16 %v1286, %v1286
  %v1344 = vpack.c.bf16 %v1287, %v1287
  %v1345 = vpack.c.bf16 %v1288, %v1288
  %v1346 = vpack.c.bf16 %v1289, %v1289
  %v1347 = vpack.c.bf16 %v1290, %v1290
  %v1348 = vpack.c.bf16 %v1291, %v1291
  %v1349 = vpack.c.bf16 %v1292, %v1292
  %v1350 = vpack.c.bf16 %v1293, %v1293
  %v1351 = vpack.c.bf16 %v1294, %v1294
  %v1352 = vpack.c.bf16 %v1295, %v1295
  %v1353 = vpack.c.bf16 %v1296, %v1296
  %v1354 = vpack.c.bf16 %v1297, %v1297
  %v1355 = vpack.c.bf16 %v1298, %v1298
  %1356 = vst [vmem:[%s3] sm:$0xf] %v1299
  %1357 = vst [vmem:[%s3 + $0x4] sm:$0xf] %v1300
  %1358 = vst [vmem:[%s3 + $0x8] sm:$0xf] %v1301
  %1359 = vst [vmem:[%s3 + $0xc] sm:$0xf] %v1302
  %1360 = vst [vmem:[%s3 + $0x10] sm:$0xf] %v1303
  %1361 = vst [vmem:[%s3 + $0x14] sm:$0xf] %v1304
  %1362 = vst [vmem:[%s3 + $0x18] sm:$0xf] %v1305
  %1363 = vst [vmem:[%s3 + $0x1c] sm:$0xf] %v1306
  %1364 = vst [vmem:[%s3 + $0x20] sm:$0xf] %v1307
  %1365 = vst [vmem:[%s3 + $0x24] sm:$0xf] %v1308
  %1366 = vst [vmem:[%s3 + $0x28] sm:$0xf] %v1309
  %1367 = vst [vmem:[%s3 + $0x2c] sm:$0xf] %v1310
  %1368 = vst [vmem:[%s3 + $0x30] sm:$0xf] %v1311
  %1369 = vst [vmem:[%s3 + $0x34] sm:$0xf] %v1312
  %1370 = vst [vmem:[%s3 + $0x38] sm:$0xf] %v1313
  %1371 = vst [vmem:[%s3 + $0x3c] sm:$0xf] %v1314
  %1372 = vst [vmem:[%s3 + $0x40] sm:$0xf] %v1315
  %1373 = vst [vmem:[%s3 + $0x44] sm:$0xf] %v1316
  %1374 = vst [vmem:[%s3 + $0x48] sm:$0xf] %v1317
  %1375 = vst [vmem:[%s3 + $0x4c] sm:$0xf] %v1318
  %1376 = vst [vmem:[%s3 + $0x50] sm:$0xf] %v1319
  %1377 = vst [vmem:[%s3 + $0x54] sm:$0xf] %v1320
  %1378 = vst [vmem:[%s3 + $0x58] sm:$0xf] %v1321
  %1379 = vst [vmem:[%s3 + $0x5c] sm:$0xf] %v1322
  %1380 = vst [vmem:[%s3 + $0x60] sm:$0xf] %v1323
  %1381 = vst [vmem:[%s3 + $0x64] sm:$0xf] %v1324
  %1382 = vst [vmem:[%s3 + $0x68] sm:$0xf] %v1325
  %1383 = vst [vmem:[%s3 + $0x6c] sm:$0xf] %v1326
  %1384 = vst [vmem:[%s3 + $0x70] sm:$0xf] %v1327
  %1385 = vst [vmem:[%s3 + $0x74] sm:$0xf] %v1328
  %1386 = vst [vmem:[%s3 + $0x78] sm:$0xf] %v1329
  %1387 = vst [vmem:[%s3 + $0x7c] sm:$0xf] %v1330
  %1388 = vst [vmem:[%s3 + $0x80] sm:$0xf] %v1331
  %1389 = vst [vmem:[%s3 + $0x84] sm:$0xf] %v1332
  %1390 = vst [vmem:[%s3 + $0x88] sm:$0xf] %v1333
  %1391 = vst [vmem:[%s3 + $0x8c] sm:$0xf] %v1334
  %1392 = vst [vmem:[%s3 + $0x90] sm:$0xf] %v1335
  %1393 = vst [vmem:[%s3 + $0x94] sm:$0xf] %v1336
  %1394 = vst [vmem:[%s3 + $0x98] sm:$0xf] %v1337
  %1395 = vst [vmem:[%s3 + $0x9c] sm:$0xf] %v1338
  %1396 = vst [vmem:[%s3 + $0xa0] sm:$0xf] %v1339
  %1397 = vst [vmem:[%s3 + $0xa4] sm:$0xf] %v1340
  %1398 = vst [vmem:[%s3 + $0xa8] sm:$0xf] %v1341
  %1399 = vst [vmem:[%s3 + $0xac] sm:$0xf] %v1342
  %1400 = vst [vmem:[%s3 + $0xb0] sm:$0xf] %v1343
  %1401 = vst [vmem:[%s3 + $0xb4] sm:$0xf] %v1344
  %1402 = vst [vmem:[%s3 + $0xb8] sm:$0xf] %v1345
  %1403 = vst [vmem:[%s3 + $0xbc] sm:$0xf] %v1346
  %1404 = vst [vmem:[%s3 + $0xc0] sm:$0xf] %v1347
  %1405 = vst [vmem:[%s3 + $0xc4] sm:$0xf] %v1348
  %1406 = vst [vmem:[%s3 + $0xc8] sm:$0xf] %v1349
  %1407 = vst [vmem:[%s3 + $0xcc] sm:$0xf] %v1350
  %1408 = vst [vmem:[%s3 + $0xd0] sm:$0xf] %v1351
  %1409 = vst [vmem:[%s3 + $0xd4] sm:$0xf] %v1352
  %1410 = vst [vmem:[%s3 + $0xd8] sm:$0xf] %v1353
  %1411 = vst [vmem:[%s3 + $0xdc] sm:$0xf] %v1354
  %1412 = vst [vmem:[%s3 + $0xe0] sm:$0x1] %v1355
  // Predicated region
  $region14: #{feature_forward.5} parent=0 // pred_check
    _
  $region15: #{feature_forward.5} parent=0 // pred_check_branch
    %1414 = sbr.rel (0) target = $region17
  $region16: #{feature_forward.5} parent=0 // pred_region
    _
  $region17: #{feature_forward.5} parent=0 // pred_fallthru
    _
  // Predicated region
  $region18: #{feature_forward.5} parent=0 // pred_check
    _
  $region19: #{feature_forward.5} parent=0 // pred_check_branch
    %1416 = sbr.rel (0) target = $region21
  $region20: #{feature_forward.5} parent=0 // pred_region
    _
  $region21: #{feature_forward.5} parent=0 // pred_fallthru
    _

// kernel: feature_forward.6
$region0: #{feature_forward.6}
  #allocation0 [shape = 'u32[]', space=smem, size = 0x4, offset = 0x4, fixed_abs, tag = 'smem constant byte address 0x4 - core index']
  #allocation1 [shape = 'u32[72,128]{1,0:T(1,128)}', space=vmem, size = 0x9000, scoped, tag = 'internal scratch']
  %s0 = inlined_call_operand.vmem [shape: bf16[98,1664], index: 0, kind: input, shape index: {}]
  %s1 = inlined_call_operand.vmem [shape: bf16[1664,192], index: 1, kind: input, shape index: {}]
  %s2 = inlined_call_operand.vmem [shape: f32[1,192], index: 2, kind: input, shape index: {}]
  %s3 = inlined_call_operand.vmem [shape: bf16[98,192], index: 3, kind: output, shape index: {}]
  %s4 = sld [smem:[#allocation0]]
  $region22: #{feature_forward.6} parent=0
    _
  %s6 = ssub.s32 1, %s4
  %s7 = scalar_select 0, %s6, %s4
  // Predicated region
  $region2: #{feature_forward.6} parent=0 // pred_check
    _
  $region3: #{feature_forward.6} parent=0 // pred_check_branch
    %9 = sbr.rel (0) target = $region5
  $region4: #{feature_forward.6} parent=0 // pred_region
    _
  $region5: #{feature_forward.6} parent=0 // pred_fallthru
    _
  // Predicated region
  $region6: #{feature_forward.6} parent=0 // pred_check
    _
  $region7: #{feature_forward.6} parent=0 // pred_check_branch
    %11 = sbr.rel (0) target = $region9
  $region8: #{feature_forward.6} parent=0 // pred_region
    _
  $region9: #{feature_forward.6} parent=0 // pred_fallthru
    _
  // Predicated region
  $region10: #{feature_forward.6} parent=0 // pred_check
    _
  $region11: #{feature_forward.6} parent=0 // pred_check_branch
    %13 = sbr.rel (0) target = $region13
  $region12: #{feature_forward.6} parent=0 // pred_region
    _
  $region13: #{feature_forward.6} parent=0 // pred_fallthru
    _
  %v14 = vld [vmem:[%s0] sm:$0xff]
  %v15 = vld [vmem:[%s0 + $0x8] sm:$0xff]
  %v16 = vld [vmem:[%s0 + $0x10] sm:$0xff]
  %v17 = vld [vmem:[%s0 + $0x18] sm:$0xff]
  %v18 = vld [vmem:[%s0 + $0x20] sm:$0xff]
  %v19 = vld [vmem:[%s0 + $0x28] sm:$0xff]
  %v20 = vld [vmem:[%s0 + $0x30] sm:$0xf]
  %v21 = vld [vmem:[%s0 + $0x34] sm:$0xff]
  %v22 = vld [vmem:[%s0 + $0x3c] sm:$0xff]
  %v23 = vld [vmem:[%s0 + $0x44] sm:$0xff]
  %v24 = vld [vmem:[%s0 + $0x4c] sm:$0xff]
  %v25 = vld [vmem:[%s0 + $0x54] sm:$0xff]
  %v26 = vld [vmem:[%s0 + $0x5c] sm:$0xff]
  %v27 = vld [vmem:[%s0 + $0x64] sm:$0xf]
  %v28 = vld [vmem:[%s0 + $0x68] sm:$0xff]
  %v29 = vld [vmem:[%s0 + $0x70] sm:$0xff]
  %v30 = vld [vmem:[%s0 + $0x78] sm:$0xff]
  %v31 = vld [vmem:[%s0 + $0x80] sm:$0xff]
  %v32 = vld [vmem:[%s0 + $0x88] sm:$0xff]
  %v33 = vld [vmem:[%s0 + $0x90] sm:$0xff]
  %v34 = vld [vmem:[%s0 + $0x98] sm:$0xf]
  %v35 = vld [vmem:[%s0 + $0x9c] sm:$0xff]
  %v36 = vld [vmem:[%s0 + $0xa4] sm:$0xff]
  %v37 = vld [vmem:[%s0 + $0xac] sm:$0xff]
  %v38 = vld [vmem:[%s0 + $0xb4] sm:$0xff]
  %v39 = vld [vmem:[%s0 + $0xbc] sm:$0xff]
  %v40 = vld [vmem:[%s0 + $0xc4] sm:$0xff]
  %v41 = vld [vmem:[%s0 + $0xcc] sm:$0xf]
  %v42 = vld [vmem:[%s0 + $0xd0] sm:$0xff]
  %v43 = vld [vmem:[%s0 + $0xd8] sm:$0xff]
  %v44 = vld [vmem:[%s0 + $0xe0] sm:$0xff]
  %v45 = vld [vmem:[%s0 + $0xe8] sm:$0xff]
  %v46 = vld [vmem:[%s0 + $0xf0] sm:$0xff]
  %v47 = vld [vmem:[%s0 + $0xf8] sm:$0xff]
  %v48 = vld [vmem:[%s0 + $0x100] sm:$0xf]
  %v49 = vld [vmem:[%s0 + $0x104] sm:$0xff]
  %v50 = vld [vmem:[%s0 + $0x10c] sm:$0xff]
  %v51 = vld [vmem:[%s0 + $0x114] sm:$0xff]
  %v52 = vld [vmem:[%s0 + $0x11c] sm:$0xff]
  %v53 = vld [vmem:[%s0 + $0x124] sm:$0xff]
  %v54 = vld [vmem:[%s0 + $0x12c] sm:$0xff]
  %v55 = vld [vmem:[%s0 + $0x134] sm:$0xf]
  %v56 = vld [vmem:[%s0 + $0x138] sm:$0xff]
  %v57 = vld [vmem:[%s0 + $0x140] sm:$0xff]
  %v58 = vld [vmem:[%s0 + $0x148] sm:$0xff]
  %v59 = vld [vmem:[%s0 + $0x150] sm:$0xff]
  %v60 = vld [vmem:[%s0 + $0x158] sm:$0xff]
  %v61 = vld [vmem:[%s0 + $0x160] sm:$0xff]
  %v62 = vld [vmem:[%s0 + $0x168] sm:$0xf]
  %v63 = vld [vmem:[%s0 + $0x16c] sm:$0xff]
  %v64 = vld [vmem:[%s0 + $0x174] sm:$0xff]
  %v65 = vld [vmem:[%s0 + $0x17c] sm:$0xff]
  %v66 = vld [vmem:[%s0 + $0x184] sm:$0xff]
  %v67 = vld [vmem:[%s0 + $0x18c] sm:$0xff]
  %v68 = vld [vmem:[%s0 + $0x194] sm:$0xff]
  %v69 = vld [vmem:[%s0 + $0x19c] sm:$0xf]
  %v70 = vld [vmem:[%s0 + $0x1a0] sm:$0xff]
  %v71 = vld [vmem:[%s0 + $0x1a8] sm:$0xff]
  %v72 = vld [vmem:[%s0 + $0x1b0] sm:$0xff]
  %v73 = vld [vmem:[%s0 + $0x1b8] sm:$0xff]
  %v74 = vld [vmem:[%s0 + $0x1c0] sm:$0xff]
  %v75 = vld [vmem:[%s0 + $0x1c8] sm:$0xff]
  %v76 = vld [vmem:[%s0 + $0x1d0] sm:$0xf]
  %v77 = vld [vmem:[%s0 + $0x1d4] sm:$0xff]
  %v78 = vld [vmem:[%s0 + $0x1dc] sm:$0xff]
  %v79 = vld [vmem:[%s0 + $0x1e4] sm:$0xff]
  %v80 = vld [vmem:[%s0 + $0x1ec] sm:$0xff]
  %v81 = vld [vmem:[%s0 + $0x1f4] sm:$0xff]
  %v82 = vld [vmem:[%s0 + $0x1fc] sm:$0xff]
  %v83 = vld [vmem:[%s0 + $0x204] sm:$0xf]
  %v84 = vld [vmem:[%s0 + $0x208] sm:$0xff]
  %v85 = vld [vmem:[%s0 + $0x210] sm:$0xff]
  %v86 = vld [vmem:[%s0 + $0x218] sm:$0xff]
  %v87 = vld [vmem:[%s0 + $0x220] sm:$0xff]
  %v88 = vld [vmem:[%s0 + $0x228] sm:$0xff]
  %v89 = vld [vmem:[%s0 + $0x230] sm:$0xff]
  %v90 = vld [vmem:[%s0 + $0x238] sm:$0xf]
  %v91 = vld [vmem:[%s0 + $0x23c] sm:$0xff]
  %v92 = vld [vmem:[%s0 + $0x244] sm:$0xff]
  %v93 = vld [vmem:[%s0 + $0x24c] sm:$0xff]
  %v94 = vld [vmem:[%s0 + $0x254] sm:$0xff]
  %v95 = vld [vmem:[%s0 + $0x25c] sm:$0xff]
  %v96 = vld [vmem:[%s0 + $0x264] sm:$0xff]
  %v97 = vld [vmem:[%s0 + $0x26c] sm:$0xf]
  %v98 = vld [vmem:[%s0 + $0x270] sm:$0x11]
  %v99 = vld [vmem:[%s0 + $0x278] sm:$0x11]
  %v100 = vld [vmem:[%s0 + $0x280] sm:$0x11]
  %v101 = vld [vmem:[%s0 + $0x288] sm:$0x11]
  %v102 = vld [vmem:[%s0 + $0x290] sm:$0x11]
  %v103 = vld [vmem:[%s0 + $0x298] sm:$0x11]
  %v104 = vld [vmem:[%s0 + $0x2a0] sm:$0x1]
  %v105 = vld [vmem:[%s1] sm:$0xff]
  %v106 = vld [vmem:[%s1 + $0x8] sm:$0xff]
  %v107 = vld [vmem:[%s1 + $0x10] sm:$0xff]
  %v108 = vld [vmem:[%s1 + $0x18] sm:$0xff]
  %v109 = vld [vmem:[%s1 + $0x20] sm:$0xff]
  %v110 = vld [vmem:[%s1 + $0x28] sm:$0xff]
  %v111 = vld [vmem:[%s1 + $0x30] sm:$0xff]
  %v112 = vld [vmem:[%s1 + $0x38] sm:$0xff]
  %v113 = vld [vmem:[%s1 + $0x40] sm:$0xff]
  %v114 = vld [vmem:[%s1 + $0x48] sm:$0xff]
  %v115 = vld [vmem:[%s1 + $0x50] sm:$0xff]
  %v116 = vld [vmem:[%s1 + $0x58] sm:$0xff]
  %v117 = vld [vmem:[%s1 + $0x60] sm:$0xff]
  %v118 = vld [vmem:[%s1 + $0x68] sm:$0xff]
  %v119 = vld [vmem:[%s1 + $0x70] sm:$0xff]
  %v120 = vld [vmem:[%s1 + $0x78] sm:$0xff]
  %v121 = vld [vmem:[%s1 + $0x80] sm:$0xff]
  %v122 = vld [vmem:[%s1 + $0x88] sm:$0xff]
  %v123 = vld [vmem:[%s1 + $0x90] sm:$0xff]
  %v124 = vld [vmem:[%s1 + $0x98] sm:$0xff]
  %v125 = vld [vmem:[%s1 + $0xa0] sm:$0xff]
  %v126 = vld [vmem:[%s1 + $0xa8] sm:$0xff]
  %v127 = vld [vmem:[%s1 + $0xb0] sm:$0xff]
  %v128 = vld [vmem:[%s1 + $0xb8] sm:$0xff]
  %v129 = vld [vmem:[%s1 + $0xc0] sm:$0xff]
  %v130 = vld [vmem:[%s1 + $0xc8] sm:$0xff]
  %v131 = vld [vmem:[%s1 + $0xd0] sm:$0xff]
  %v132 = vld [vmem:[%s1 + $0xd8] sm:$0xff]
  %v133 = vld [vmem:[%s1 + $0xe0] sm:$0xff]
  %v134 = vld [vmem:[%s1 + $0xe8] sm:$0xff]
  %v135 = vld [vmem:[%s1 + $0xf0] sm:$0xff]
  %v136 = vld [vmem:[%s1 + $0xf8] sm:$0xff]
  %v137 = vld [vmem:[%s1 + $0x100] sm:$0xff]
  %v138 = vld [vmem:[%s1 + $0x108] sm:$0xff]
  %v139 = vld [vmem:[%s1 + $0x110] sm:$0xff]
  %v140 = vld [vmem:[%s1 + $0x118] sm:$0xff]
  %v141 = vld [vmem:[%s1 + $0x120] sm:$0xff]
  %v142 = vld [vmem:[%s1 + $0x128] sm:$0xff]
  %v143 = vld [vmem:[%s1 + $0x130] sm:$0xff]
  %v144 = vld [vmem:[%s1 + $0x138] sm:$0xff]
  %v145 = vld [vmem:[%s1 + $0x140] sm:$0xff]
  %v146 = vld [vmem:[%s1 + $0x148] sm:$0xff]
  %v147 = vld [vmem:[%s1 + $0x150] sm:$0xff]
  %v148 = vld [vmem:[%s1 + $0x158] sm:$0xff]
  %v149 = vld [vmem:[%s1 + $0x160] sm:$0xff]
  %v150 = vld [vmem:[%s1 + $0x168] sm:$0xff]
  %v151 = vld [vmem:[%s1 + $0x170] sm:$0xff]
  %v152 = vld [vmem:[%s1 + $0x178] sm:$0xff]
  %v153 = vld [vmem:[%s1 + $0x180] sm:$0xff]
  %v154 = vld [vmem:[%s1 + $0x188] sm:$0xff]
  %v155 = vld [vmem:[%s1 + $0x190] sm:$0xff]
  %v156 = vld [vmem:[%s1 + $0x198] sm:$0xff]
  %v157 = vld [vmem:[%s1 + $0x1a0] sm:$0xff]
  %v158 = vld [vmem:[%s1 + $0x1a8] sm:$0xff]
  %v159 = vld [vmem:[%s1 + $0x1b0] sm:$0xff]
  %v160 = vld [vmem:[%s1 + $0x1b8] sm:$0xff]
  %v161 = vld [vmem:[%s1 + $0x1c0] sm:$0xff]
  %v162 = vld [vmem:[%s1 + $0x1c8] sm:$0xff]
  %v163 = vld [vmem:[%s1 + $0x1d0] sm:$0xff]
  %v164 = vld [vmem:[%s1 + $0x1d8] sm:$0xff]
  %v165 = vld [vmem:[%s1 + $0x1e0] sm:$0xff]
  %v166 = vld [vmem:[%s1 + $0x1e8] sm:$0xff]
  %v167 = vld [vmem:[%s1 + $0x1f0] sm:$0xff]
  %v168 = vld [vmem:[%s1 + $0x1f8] sm:$0xff]
  %v169 = vld [vmem:[%s1 + $0x200] sm:$0xff]
  %v170 = vld [vmem:[%s1 + $0x208] sm:$0xff]
  %v171 = vld [vmem:[%s1 + $0x210] sm:$0xff]
  %v172 = vld [vmem:[%s1 + $0x218] sm:$0xff]
  %v173 = vld [vmem:[%s1 + $0x220] sm:$0xff]
  %v174 = vld [vmem:[%s1 + $0x228] sm:$0xff]
  %v175 = vld [vmem:[%s1 + $0x230] sm:$0xff]
  %v176 = vld [vmem:[%s1 + $0x238] sm:$0xff]
  %v177 = vld [vmem:[%s1 + $0x240] sm:$0xff]
  %v178 = vld [vmem:[%s1 + $0x248] sm:$0xff]
  %v179 = vld [vmem:[%s1 + $0x250] sm:$0xff]
  %v180 = vld [vmem:[%s1 + $0x258] sm:$0xff]
  %v181 = vld [vmem:[%s1 + $0x260] sm:$0xff]
  %v182 = vld [vmem:[%s1 + $0x268] sm:$0xff]
  %v183 = vld [vmem:[%s1 + $0x270] sm:$0xff]
  %v184 = vld [vmem:[%s1 + $0x278] sm:$0xff]
  %v185 = vld [vmem:[%s1 + $0x280] sm:$0xff]
  %v186 = vld [vmem:[%s1 + $0x288] sm:$0xff]
  %v187 = vld [vmem:[%s1 + $0x290] sm:$0xff]
  %v188 = vld [vmem:[%s1 + $0x298] sm:$0xff]
  %v189 = vld [vmem:[%s1 + $0x2a0] sm:$0xff]
  %v190 = vld [vmem:[%s1 + $0x2a8] sm:$0xff]
  %v191 = vld [vmem:[%s1 + $0x2b0] sm:$0xff]
  %v192 = vld [vmem:[%s1 + $0x2b8] sm:$0xff]
  %v193 = vld [vmem:[%s1 + $0x2c0] sm:$0xff]
  %v194 = vld [vmem:[%s1 + $0x2c8] sm:$0xff]
  %v195 = vld [vmem:[%s1 + $0x2d0] sm:$0xff]
  %v196 = vld [vmem:[%s1 + $0x2d8] sm:$0xff]
  %v197 = vld [vmem:[%s1 + $0x2e0] sm:$0xff]
  %v198 = vld [vmem:[%s1 + $0x2e8] sm:$0xff]
  %v199 = vld [vmem:[%s1 + $0x2f0] sm:$0xff]
  %v200 = vld [vmem:[%s1 + $0x2f8] sm:$0xff]
  %v201 = vld [vmem:[%s1 + $0x300] sm:$0xff]
  %v202 = vld [vmem:[%s1 + $0x308] sm:$0xff]
  %v203 = vld [vmem:[%s1 + $0x310] sm:$0xff]
  %v204 = vld [vmem:[%s1 + $0x318] sm:$0xff]
  %v205 = vld [vmem:[%s1 + $0x320] sm:$0xff]
  %v206 = vld [vmem:[%s1 + $0x328] sm:$0xff]
  %v207 = vld [vmem:[%s1 + $0x330] sm:$0xff]
  %v208 = vld [vmem:[%s1 + $0x338] sm:$0xff]
  %v209 = vld [vmem:[%s1 + $0x340] sm:$0xff]
  %v210 = vld [vmem:[%s1 + $0x348] sm:$0xff]
  %v211 = vld [vmem:[%s1 + $0x350] sm:$0xff]
  %v212 = vld [vmem:[%s1 + $0x358] sm:$0xff]
  %v213 = vld [vmem:[%s1 + $0x360] sm:$0xff]
  %v214 = vld [vmem:[%s1 + $0x368] sm:$0xff]
  %v215 = vld [vmem:[%s1 + $0x370] sm:$0xff]
  %v216 = vld [vmem:[%s1 + $0x378] sm:$0xff]
  %v217 = vld [vmem:[%s1 + $0x380] sm:$0xff]
  %v218 = vld [vmem:[%s1 + $0x388] sm:$0xff]
  %v219 = vld [vmem:[%s1 + $0x390] sm:$0xff]
  %v220 = vld [vmem:[%s1 + $0x398] sm:$0xff]
  %v221 = vld [vmem:[%s1 + $0x3a0] sm:$0xff]
  %v222 = vld [vmem:[%s1 + $0x3a8] sm:$0xff]
  %v223 = vld [vmem:[%s1 + $0x3b0] sm:$0xff]
  %v224 = vld [vmem:[%s1 + $0x3b8] sm:$0xff]
  %v225 = vld [vmem:[%s1 + $0x3c0] sm:$0xff]
  %v226 = vld [vmem:[%s1 + $0x3c8] sm:$0xff]
  %v227 = vld [vmem:[%s1 + $0x3d0] sm:$0xff]
  %v228 = vld [vmem:[%s1 + $0x3d8] sm:$0xff]
  %v229 = vld [vmem:[%s1 + $0x3e0] sm:$0xff]
  %v230 = vld [vmem:[%s1 + $0x3e8] sm:$0xff]
  %v231 = vld [vmem:[%s1 + $0x3f0] sm:$0xff]
  %v232 = vld [vmem:[%s1 + $0x3f8] sm:$0xff]
  %v233 = vld [vmem:[%s1 + $0x400] sm:$0xff]
  %v234 = vld [vmem:[%s1 + $0x408] sm:$0xff]
  %v235 = vld [vmem:[%s1 + $0x410] sm:$0xff]
  %v236 = vld [vmem:[%s1 + $0x418] sm:$0xff]
  %v237 = vld [vmem:[%s1 + $0x420] sm:$0xff]
  %v238 = vld [vmem:[%s1 + $0x428] sm:$0xff]
  %v239 = vld [vmem:[%s1 + $0x430] sm:$0xff]
  %v240 = vld [vmem:[%s1 + $0x438] sm:$0xff]
  %v241 = vld [vmem:[%s1 + $0x440] sm:$0xff]
  %v242 = vld [vmem:[%s1 + $0x448] sm:$0xff]
  %v243 = vld [vmem:[%s1 + $0x450] sm:$0xff]
  %v244 = vld [vmem:[%s1 + $0x458] sm:$0xff]
  %v245 = vld [vmem:[%s1 + $0x460] sm:$0xff]
  %v246 = vld [vmem:[%s1 + $0x468] sm:$0xff]
  %v247 = vld [vmem:[%s1 + $0x470] sm:$0xff]
  %v248 = vld [vmem:[%s1 + $0x478] sm:$0xff]
  %v249 = vld [vmem:[%s1 + $0x480] sm:$0xff]
  %v250 = vld [vmem:[%s1 + $0x488] sm:$0xff]
  %v251 = vld [vmem:[%s1 + $0x490] sm:$0xff]
  %v252 = vld [vmem:[%s1 + $0x498] sm:$0xff]
  %v253 = vld [vmem:[%s1 + $0x4a0] sm:$0xff]
  %v254 = vld [vmem:[%s1 + $0x4a8] sm:$0xff]
  %v255 = vld [vmem:[%s1 + $0x4b0] sm:$0xff]
  %v256 = vld [vmem:[%s1 + $0x4b8] sm:$0xff]
  %v257 = vld [vmem:[%s1 + $0x4c0] sm:$0xff]
  %v258 = vld [vmem:[%s1 + $0x4c8] sm:$0xff]
  %v259 = vld [vmem:[%s1 + $0x4d0] sm:$0xff]
  %v260 = vld [vmem:[%s1 + $0x4d8] sm:$0xff]
  %v261 = vld [vmem:[%s1 + $0x4e0] sm:$0xff]
  %v262 = vld [vmem:[%s1 + $0x4e8] sm:$0xff]
  %v263 = vld [vmem:[%s1 + $0x4f0] sm:$0xff]
  %v264 = vld [vmem:[%s1 + $0x4f8] sm:$0xff]
  %v265 = vld [vmem:[%s1 + $0x500] sm:$0xff]
  %v266 = vld [vmem:[%s1 + $0x508] sm:$0xff]
  %v267 = vld [vmem:[%s1 + $0x510] sm:$0xff]
  %v268 = vld [vmem:[%s1 + $0x518] sm:$0xff]
  %v269 = vld [vmem:[%s1 + $0x520] sm:$0xff]
  %v270 = vld [vmem:[%s1 + $0x528] sm:$0xff]
  %v271 = vld [vmem:[%s1 + $0x530] sm:$0xff]
  %v272 = vld [vmem:[%s1 + $0x538] sm:$0xff]
  %v273 = vld [vmem:[%s1 + $0x540] sm:$0xff]
  %v274 = vld [vmem:[%s1 + $0x548] sm:$0xff]
  %v275 = vld [vmem:[%s1 + $0x550] sm:$0xff]
  %v276 = vld [vmem:[%s1 + $0x558] sm:$0xff]
  %v277 = vld [vmem:[%s1 + $0x560] sm:$0xff]
  %v278 = vld [vmem:[%s1 + $0x568] sm:$0xff]
  %v279 = vld [vmem:[%s1 + $0x570] sm:$0xff]
  %v280 = vld [vmem:[%s1 + $0x578] sm:$0xff]
  %v281 = vld [vmem:[%s1 + $0x580] sm:$0xff]
  %v282 = vld [vmem:[%s1 + $0x588] sm:$0xff]
  %v283 = vld [vmem:[%s1 + $0x590] sm:$0xff]
  %v284 = vld [vmem:[%s1 + $0x598] sm:$0xff]
  %v285 = vld [vmem:[%s1 + $0x5a0] sm:$0xff]
  %v286 = vld [vmem:[%s1 + $0x5a8] sm:$0xff]
  %v287 = vld [vmem:[%s1 + $0x5b0] sm:$0xff]
  %v288 = vld [vmem:[%s1 + $0x5b8] sm:$0xff]
  %v289 = vld [vmem:[%s1 + $0x5c0] sm:$0xff]
  %v290 = vld [vmem:[%s1 + $0x5c8] sm:$0xff]
  %v291 = vld [vmem:[%s1 + $0x5d0] sm:$0xff]
  %v292 = vld [vmem:[%s1 + $0x5d8] sm:$0xff]
  %v293 = vld [vmem:[%s1 + $0x5e0] sm:$0xff]
  %v294 = vld [vmem:[%s1 + $0x5e8] sm:$0xff]
  %v295 = vld [vmem:[%s1 + $0x5f0] sm:$0xff]
  %v296 = vld [vmem:[%s1 + $0x5f8] sm:$0xff]
  %v297 = vld [vmem:[%s1 + $0x600] sm:$0xff]
  %v298 = vld [vmem:[%s1 + $0x608] sm:$0xff]
  %v299 = vld [vmem:[%s1 + $0x610] sm:$0xff]
  %v300 = vld [vmem:[%s1 + $0x618] sm:$0xff]
  %v301 = vld [vmem:[%s1 + $0x620] sm:$0xff]
  %v302 = vld [vmem:[%s1 + $0x628] sm:$0xff]
  %v303 = vld [vmem:[%s1 + $0x630] sm:$0xff]
  %v304 = vld [vmem:[%s1 + $0x638] sm:$0xff]
  %v305 = vld [vmem:[%s1 + $0x640] sm:$0xff]
  %v306 = vld [vmem:[%s1 + $0x648] sm:$0xff]
  %v307 = vld [vmem:[%s1 + $0x650] sm:$0xff]
  %v308 = vld [vmem:[%s1 + $0x658] sm:$0xff]
  %v309 = vld [vmem:[%s1 + $0x660] sm:$0xff]
  %v310 = vld [vmem:[%s1 + $0x668] sm:$0xff]
  %v311 = vld [vmem:[%s1 + $0x670] sm:$0xff]
  %v312 = vld [vmem:[%s1 + $0x678] sm:$0xff]
  %v313 = vld [vmem:[%s2] sm:$0x3]
  %v315 = vperm.slane %v313, 0
  %v316 = vperm.slane %v313, 1
  %v410 = vunpack.c.l.b16 %v14
  %v411 = vunpack.c.h.b16 %v14
  %v412 = vunpack.c.l.b16 %v15
  %v413 = vunpack.c.h.b16 %v15
  %v414 = vunpack.c.l.b16 %v16
  %v415 = vunpack.c.h.b16 %v16
  %v416 = vunpack.c.l.b16 %v17
  %v417 = vunpack.c.h.b16 %v17
  %v418 = vunpack.c.l.b16 %v18
  %v419 = vunpack.c.h.b16 %v18
  %v420 = vunpack.c.l.b16 %v19
  %v421 = vunpack.c.h.b16 %v19
  %v422 = vunpack.c.l.b16 %v20
  %v423 = vunpack.c.l.b16 %v21
  %v424 = vunpack.c.h.b16 %v21
  %v425 = vunpack.c.l.b16 %v22
  %v426 = vunpack.c.h.b16 %v22
  %v427 = vunpack.c.l.b16 %v23
  %v428 = vunpack.c.h.b16 %v23
  %v429 = vunpack.c.l.b16 %v24
  %v430 = vunpack.c.h.b16 %v24
  %v431 = vunpack.c.l.b16 %v25
  %v432 = vunpack.c.h.b16 %v25
  %v433 = vunpack.c.l.b16 %v26
  %v434 = vunpack.c.h.b16 %v26
  %v435 = vunpack.c.l.b16 %v27
  %v436 = vunpack.c.l.b16 %v28
  %v437 = vunpack.c.h.b16 %v28
  %v438 = vunpack.c.l.b16 %v29
  %v439 = vunpack.c.h.b16 %v29
  %v440 = vunpack.c.l.b16 %v30
  %v441 = vunpack.c.h.b16 %v30
  %v442 = vunpack.c.l.b16 %v31
  %v443 = vunpack.c.h.b16 %v31
  %v444 = vunpack.c.l.b16 %v32
  %v445 = vunpack.c.h.b16 %v32
  %v446 = vunpack.c.l.b16 %v33
  %v447 = vunpack.c.h.b16 %v33
  %v448 = vunpack.c.l.b16 %v34
  %v449 = vunpack.c.l.b16 %v35
  %v450 = vunpack.c.h.b16 %v35
  %v451 = vunpack.c.l.b16 %v36
  %v452 = vunpack.c.h.b16 %v36
  %v453 = vunpack.c.l.b16 %v37
  %v454 = vunpack.c.h.b16 %v37
  %v455 = vunpack.c.l.b16 %v38
  %v456 = vunpack.c.h.b16 %v38
  %v457 = vunpack.c.l.b16 %v39
  %v458 = vunpack.c.h.b16 %v39
  %v459 = vunpack.c.l.b16 %v40
  %v460 = vunpack.c.h.b16 %v40
  %v461 = vunpack.c.l.b16 %v41
  %v462 = vunpack.c.l.b16 %v42
  %v463 = vunpack.c.h.b16 %v42
  %v464 = vunpack.c.l.b16 %v43
  %v465 = vunpack.c.h.b16 %v43
  %v466 = vunpack.c.l.b16 %v44
  %v467 = vunpack.c.h.b16 %v44
  %v468 = vunpack.c.l.b16 %v45
  %v469 = vunpack.c.h.b16 %v45
  %v470 = vunpack.c.l.b16 %v46
  %v471 = vunpack.c.h.b16 %v46
  %v472 = vunpack.c.l.b16 %v47
  %v473 = vunpack.c.h.b16 %v47
  %v474 = vunpack.c.l.b16 %v48
  %v475 = vunpack.c.l.b16 %v49
  %v476 = vunpack.c.h.b16 %v49
  %v477 = vunpack.c.l.b16 %v50
  %v478 = vunpack.c.h.b16 %v50
  %v479 = vunpack.c.l.b16 %v51
  %v480 = vunpack.c.h.b16 %v51
  %v481 = vunpack.c.l.b16 %v52
  %v482 = vunpack.c.h.b16 %v52
  %v483 = vunpack.c.l.b16 %v53
  %v484 = vunpack.c.h.b16 %v53
  %v485 = vunpack.c.l.b16 %v54
  %v486 = vunpack.c.h.b16 %v54
  %v487 = vunpack.c.l.b16 %v55
  %v488 = vunpack.c.l.b16 %v56
  %v489 = vunpack.c.h.b16 %v56
  %v490 = vunpack.c.l.b16 %v57
  %v491 = vunpack.c.h.b16 %v57
  %v492 = vunpack.c.l.b16 %v58
  %v493 = vunpack.c.h.b16 %v58
  %v494 = vunpack.c.l.b16 %v59
  %v495 = vunpack.c.h.b16 %v59
  %v496 = vunpack.c.l.b16 %v60
  %v497 = vunpack.c.h.b16 %v60
  %v498 = vunpack.c.l.b16 %v61
  %v499 = vunpack.c.h.b16 %v61
  %v500 = vunpack.c.l.b16 %v62
  %v501 = vunpack.c.l.b16 %v63
  %v502 = vunpack.c.h.b16 %v63
  %v503 = vunpack.c.l.b16 %v64
  %v504 = vunpack.c.h.b16 %v64
  %v505 = vunpack.c.l.b16 %v65
  %v506 = vunpack.c.h.b16 %v65
  %v507 = vunpack.c.l.b16 %v66
  %v508 = vunpack.c.h.b16 %v66
  %v509 = vunpack.c.l.b16 %v67
  %v510 = vunpack.c.h.b16 %v67
  %v511 = vunpack.c.l.b16 %v68
  %v512 = vunpack.c.h.b16 %v68
  %v513 = vunpack.c.l.b16 %v69
  %v514 = vunpack.c.l.b16 %v70
  %v515 = vunpack.c.h.b16 %v70
  %v516 = vunpack.c.l.b16 %v71
  %v517 = vunpack.c.h.b16 %v71
  %v518 = vunpack.c.l.b16 %v72
  %v519 = vunpack.c.h.b16 %v72
  %v520 = vunpack.c.l.b16 %v73
  %v521 = vunpack.c.h.b16 %v73
  %v522 = vunpack.c.l.b16 %v74
  %v523 = vunpack.c.h.b16 %v74
  %v524 = vunpack.c.l.b16 %v75
  %v525 = vunpack.c.h.b16 %v75
  %v526 = vunpack.c.l.b16 %v76
  %v527 = vunpack.c.l.b16 %v77
  %v528 = vunpack.c.h.b16 %v77
  %v529 = vunpack.c.l.b16 %v78
  %v530 = vunpack.c.h.b16 %v78
  %v531 = vunpack.c.l.b16 %v79
  %v532 = vunpack.c.h.b16 %v79
  %v533 = vunpack.c.l.b16 %v80
  %v534 = vunpack.c.h.b16 %v80
  %v535 = vunpack.c.l.b16 %v81
  %v536 = vunpack.c.h.b16 %v81
  %v537 = vunpack.c.l.b16 %v82
  %v538 = vunpack.c.h.b16 %v82
  %v539 = vunpack.c.l.b16 %v83
  %v540 = vunpack.c.l.b16 %v84
  %v541 = vunpack.c.h.b16 %v84
  %v542 = vunpack.c.l.b16 %v85
  %v543 = vunpack.c.h.b16 %v85
  %v544 = vunpack.c.l.b16 %v86
  %v545 = vunpack.c.h.b16 %v86
  %v546 = vunpack.c.l.b16 %v87
  %v547 = vunpack.c.h.b16 %v87
  %v548 = vunpack.c.l.b16 %v88
  %v549 = vunpack.c.h.b16 %v88
  %v550 = vunpack.c.l.b16 %v89
  %v551 = vunpack.c.h.b16 %v89
  %v552 = vunpack.c.l.b16 %v90
  %v553 = vunpack.c.l.b16 %v91
  %v554 = vunpack.c.h.b16 %v91
  %v555 = vunpack.c.l.b16 %v92
  %v556 = vunpack.c.h.b16 %v92
  %v557 = vunpack.c.l.b16 %v93
  %v558 = vunpack.c.h.b16 %v93
  %v559 = vunpack.c.l.b16 %v94
  %v560 = vunpack.c.h.b16 %v94
  %v561 = vunpack.c.l.b16 %v95
  %v562 = vunpack.c.h.b16 %v95
  %v563 = vunpack.c.l.b16 %v96
  %v564 = vunpack.c.h.b16 %v96
  %v565 = vunpack.c.l.b16 %v97
  %v566 = vunpack.c.l.b16 %v98
  %v567 = vunpack.c.h.b16 %v98
  %v568 = vunpack.c.l.b16 %v99
  %v569 = vunpack.c.h.b16 %v99
  %v570 = vunpack.c.l.b16 %v100
  %v571 = vunpack.c.h.b16 %v100
  %v572 = vunpack.c.l.b16 %v101
  %v573 = vunpack.c.h.b16 %v101
  %v574 = vunpack.c.l.b16 %v102
  %v575 = vunpack.c.h.b16 %v102
  %v576 = vunpack.c.l.b16 %v103
  %v577 = vunpack.c.h.b16 %v103
  %v578 = vunpack.c.l.b16 %v104
  %v579 = vpack.c.b16 %v423, %v410
  %v580 = vpack.c.b16 %v424, %v411
  %v581 = vpack.c.b16 %v425, %v412
  %v582 = vpack.c.b16 %v426, %v413
  %v583 = vpack.c.b16 %v427, %v414
  %v584 = vpack.c.b16 %v428, %v415
  %v585 = vpack.c.b16 %v429, %v416
  %v586 = vpack.c.b16 %v430, %v417
  %v587 = vpack.c.b16 %v431, %v418
  %v588 = vpack.c.b16 %v432, %v419
  %v589 = vpack.c.b16 %v433, %v420
  %v590 = vpack.c.b16 %v434, %v421
  %v591 = vpack.c.b16 %v435, %v422
  %v592 = vpack.c.b16 %v449, %v436
  %v593 = vpack.c.b16 %v450, %v437
  %v594 = vpack.c.b16 %v451, %v438
  %v595 = vpack.c.b16 %v452, %v439
  %v596 = vpack.c.b16 %v453, %v440
  %v597 = vpack.c.b16 %v454, %v441
  %v598 = vpack.c.b16 %v455, %v442
  %v599 = vpack.c.b16 %v456, %v443
  %v600 = vpack.c.b16 %v457, %v444
  %v601 = vpack.c.b16 %v458, %v445
  %v602 = vpack.c.b16 %v459, %v446
  %v603 = vpack.c.b16 %v460, %v447
  %v604 = vpack.c.b16 %v461, %v448
  %v605 = vpack.c.b16 %v475, %v462
  %v606 = vpack.c.b16 %v476, %v463
  %v607 = vpack.c.b16 %v477, %v464
  %v608 = vpack.c.b16 %v478, %v465
  %v609 = vpack.c.b16 %v479, %v466
  %v610 = vpack.c.b16 %v480, %v467
  %v611 = vpack.c.b16 %v481, %v468
  %v612 = vpack.c.b16 %v482, %v469
  %v613 = vpack.c.b16 %v483, %v470
  %v614 = vpack.c.b16 %v484, %v471
  %v615 = vpack.c.b16 %v485, %v472
  %v616 = vpack.c.b16 %v486, %v473
  %v617 = vpack.c.b16 %v487, %v474
  %v618 = vpack.c.b16 %v501, %v488
  %v619 = vpack.c.b16 %v502, %v489
  %v620 = vpack.c.b16 %v503, %v490
  %v621 = vpack.c.b16 %v504, %v491
  %v622 = vpack.c.b16 %v505, %v492
  %v623 = vpack.c.b16 %v506, %v493
  %v624 = vpack.c.b16 %v507, %v494
  %v625 = vpack.c.b16 %v508, %v495
  %v626 = vpack.c.b16 %v509, %v496
  %v627 = vpack.c.b16 %v510, %v497
  %v628 = vpack.c.b16 %v511, %v498
  %v629 = vpack.c.b16 %v512, %v499
  %v630 = vpack.c.b16 %v513, %v500
  %v631 = vpack.c.b16 %v527, %v514
  %v632 = vpack.c.b16 %v528, %v515
  %v633 = vpack.c.b16 %v529, %v516
  %v634 = vpack.c.b16 %v530, %v517
  %v635 = vpack.c.b16 %v531, %v518
  %v636 = vpack.c.b16 %v532, %v519
  %v637 = vpack.c.b16 %v533, %v520
  %v638 = vpack.c.b16 %v534, %v521
  %v639 = vpack.c.b16 %v535, %v522
  %v640 = vpack.c.b16 %v536, %v523
  %v641 = vpack.c.b16 %v537, %v524
  %v642 = vpack.c.b16 %v538, %v525
  %v643 = vpack.c.b16 %v539, %v526
  %v644 = vpack.c.b16 %v553, %v540
  %v645 = vpack.c.b16 %v554, %v541
  %v646 = vpack.c.b16 %v555, %v542
  %v647 = vpack.c.b16 %v556, %v543
  %v648 = vpack.c.b16 %v557, %v544
  %v649 = vpack.c.b16 %v558, %v545
  %v650 = vpack.c.b16 %v559, %v546
  %v651 = vpack.c.b16 %v560, %v547
  %v652 = vpack.c.b16 %v561, %v548
  %v653 = vpack.c.b16 %v562, %v549
  %v654 = vpack.c.b16 %v563, %v550
  %v655 = vpack.c.b16 %v564, %v551
  %v656 = vpack.c.b16 %v565, %v552
  %v657 = vpack.c.b16 %v566, %v566
  %v658 = vpack.c.b16 %v567, %v567
  %v659 = vpack.c.b16 %v568, %v568
  %v660 = vpack.c.b16 %v569, %v569
  %v661 = vpack.c.b16 %v570, %v570
  %v662 = vpack.c.b16 %v571, %v571
  %v663 = vpack.c.b16 %v572, %v572
  %v664 = vpack.c.b16 %v573, %v573
  %v665 = vpack.c.b16 %v574, %v574
  %v666 = vpack.c.b16 %v575, %v575
  %v667 = vpack.c.b16 %v576, %v576
  %v668 = vpack.c.b16 %v577, %v577
  %v669 = vpack.c.b16 %v578, %v578
  %v969 = vunpack.c.l.b16 %v105
  %v970 = vunpack.c.h.b16 %v105
  %v971 = vunpack.c.l.b16 %v106
  %v972 = vunpack.c.h.b16 %v106
  %v973 = vunpack.c.l.b16 %v107
  %v974 = vunpack.c.h.b16 %v107
  %v975 = vunpack.c.l.b16 %v108
  %v976 = vunpack.c.h.b16 %v108
  %v977 = vunpack.c.l.b16 %v109
  %v978 = vunpack.c.h.b16 %v109
  %v979 = vunpack.c.l.b16 %v110
  %v980 = vunpack.c.h.b16 %v110
  %v981 = vunpack.c.l.b16 %v111
  %v982 = vunpack.c.h.b16 %v111
  %v983 = vunpack.c.l.b16 %v112
  %v984 = vunpack.c.h.b16 %v112
  %v985 = vunpack.c.l.b16 %v113
  %v986 = vunpack.c.h.b16 %v113
  %v987 = vunpack.c.l.b16 %v114
  %v988 = vunpack.c.h.b16 %v114
  %v989 = vunpack.c.l.b16 %v115
  %v990 = vunpack.c.h.b16 %v115
  %v991 = vunpack.c.l.b16 %v116
  %v992 = vunpack.c.h.b16 %v116
  %v993 = vunpack.c.l.b16 %v117
  %v994 = vunpack.c.h.b16 %v117
  %v995 = vunpack.c.l.b16 %v118
  %v996 = vunpack.c.h.b16 %v118
  %v997 = vunpack.c.l.b16 %v119
  %v998 = vunpack.c.h.b16 %v119
  %v999 = vunpack.c.l.b16 %v120
  %v1000 = vunpack.c.h.b16 %v120
  %v1001 = vunpack.c.l.b16 %v121
  %v1002 = vunpack.c.h.b16 %v121
  %v1003 = vunpack.c.l.b16 %v122
  %v1004 = vunpack.c.h.b16 %v122
  %v1005 = vunpack.c.l.b16 %v123
  %v1006 = vunpack.c.h.b16 %v123
  %v1007 = vunpack.c.l.b16 %v124
  %v1008 = vunpack.c.h.b16 %v124
  %v1009 = vunpack.c.l.b16 %v125
  %v1010 = vunpack.c.h.b16 %v125
  %v1011 = vunpack.c.l.b16 %v126
  %v1012 = vunpack.c.h.b16 %v126
  %v1013 = vunpack.c.l.b16 %v127
  %v1014 = vunpack.c.h.b16 %v127
  %v1015 = vunpack.c.l.b16 %v128
  %v1016 = vunpack.c.h.b16 %v128
  %v1017 = vunpack.c.l.b16 %v129
  %v1018 = vunpack.c.h.b16 %v129
  %v1019 = vunpack.c.l.b16 %v130
  %v1020 = vunpack.c.h.b16 %v130
  %v1021 = vunpack.c.l.b16 %v131
  %v1022 = vunpack.c.h.b16 %v131
  %v1023 = vunpack.c.l.b16 %v132
  %v1024 = vunpack.c.h.b16 %v132
  %v1025 = vunpack.c.l.b16 %v133
  %v1026 = vunpack.c.h.b16 %v133
  %v1027 = vunpack.c.l.b16 %v134
  %v1028 = vunpack.c.h.b16 %v134
  %v1029 = vunpack.c.l.b16 %v135
  %v1030 = vunpack.c.h.b16 %v135
  %v1031 = vunpack.c.l.b16 %v136
  %v1032 = vunpack.c.h.b16 %v136
  %v1033 = vunpack.c.l.b16 %v137
  %v1034 = vunpack.c.h.b16 %v137
  %v1035 = vunpack.c.l.b16 %v138
  %v1036 = vunpack.c.h.b16 %v138
  %v1037 = vunpack.c.l.b16 %v139
  %v1038 = vunpack.c.h.b16 %v139
  %v1039 = vunpack.c.l.b16 %v140
  %v1040 = vunpack.c.h.b16 %v140
  %v1041 = vunpack.c.l.b16 %v141
  %v1042 = vunpack.c.h.b16 %v141
  %v1043 = vunpack.c.l.b16 %v142
  %v1044 = vunpack.c.h.b16 %v142
  %v1045 = vunpack.c.l.b16 %v143
  %v1046 = vunpack.c.h.b16 %v143
  %v1047 = vunpack.c.l.b16 %v144
  %v1048 = vunpack.c.h.b16 %v144
  %v1049 = vunpack.c.l.b16 %v145
  %v1050 = vunpack.c.h.b16 %v145
  %v1051 = vunpack.c.l.b16 %v146
  %v1052 = vunpack.c.h.b16 %v146
  %v1053 = vunpack.c.l.b16 %v147
  %v1054 = vunpack.c.h.b16 %v147
  %v1055 = vunpack.c.l.b16 %v148
  %v1056 = vunpack.c.h.b16 %v148
  %v1057 = vunpack.c.l.b16 %v149
  %v1058 = vunpack.c.h.b16 %v149
  %v1059 = vunpack.c.l.b16 %v150
  %v1060 = vunpack.c.h.b16 %v150
  %v1061 = vunpack.c.l.b16 %v151
  %v1062 = vunpack.c.h.b16 %v151
  %v1063 = vunpack.c.l.b16 %v152
  %v1064 = vunpack.c.h.b16 %v152
  %v1065 = vunpack.c.l.b16 %v153
  %v1066 = vunpack.c.h.b16 %v153
  %v1067 = vunpack.c.l.b16 %v154
  %v1068 = vunpack.c.h.b16 %v154
  %v1069 = vunpack.c.l.b16 %v155
  %v1070 = vunpack.c.h.b16 %v155
  %v1071 = vunpack.c.l.b16 %v156
  %v1072 = vunpack.c.h.b16 %v156
  %v1073 = vunpack.c.l.b16 %v157
  %v1074 = vunpack.c.h.b16 %v157
  %v1075 = vunpack.c.l.b16 %v158
  %v1076 = vunpack.c.h.b16 %v158
  %v1077 = vunpack.c.l.b16 %v159
  %v1078 = vunpack.c.h.b16 %v159
  %v1079 = vunpack.c.l.b16 %v160
  %v1080 = vunpack.c.h.b16 %v160
  %v1081 = vunpack.c.l.b16 %v161
  %v1082 = vunpack.c.h.b16 %v161
  %v1083 = vunpack.c.l.b16 %v162
  %v1084 = vunpack.c.h.b16 %v162
  %v1085 = vunpack.c.l.b16 %v163
  %v1086 = vunpack.c.h.b16 %v163
  %v1087 = vunpack.c.l.b16 %v164
  %v1088 = vunpack.c.h.b16 %v164
  %v1089 = vunpack.c.l.b16 %v165
  %v1090 = vunpack.c.h.b16 %v165
  %v1091 = vunpack.c.l.b16 %v166
  %v1092 = vunpack.c.h.b16 %v166
  %v1093 = vunpack.c.l.b16 %v167
  %v1094 = vunpack.c.h.b16 %v167
  %v1095 = vunpack.c.l.b16 %v168
  %v1096 = vunpack.c.h.b16 %v168
  %v1097 = vunpack.c.l.b16 %v169
  %v1098 = vunpack.c.h.b16 %v169
  %v1099 = vunpack.c.l.b16 %v170
  %v1100 = vunpack.c.h.b16 %v170
  %v1101 = vunpack.c.l.b16 %v171
  %v1102 = vunpack.c.h.b16 %v171
  %v1103 = vunpack.c.l.b16 %v172
  %v1104 = vunpack.c.h.b16 %v172
  %v1105 = vunpack.c.l.b16 %v173
  %v1106 = vunpack.c.h.b16 %v173
  %v1107 = vunpack.c.l.b16 %v174
  %v1108 = vunpack.c.h.b16 %v174
  %v1109 = vunpack.c.l.b16 %v175
  %v1110 = vunpack.c.h.b16 %v175
  %v1111 = vunpack.c.l.b16 %v176
  %v1112 = vunpack.c.h.b16 %v176
  %v1113 = vunpack.c.l.b16 %v177
  %v1114 = vunpack.c.h.b16 %v177
  %v1115 = vunpack.c.l.b16 %v178
  %v1116 = vunpack.c.h.b16 %v178
  %v1117 = vunpack.c.l.b16 %v179
  %v1118 = vunpack.c.h.b16 %v179
  %v1119 = vunpack.c.l.b16 %v180
  %v1120 = vunpack.c.h.b16 %v180
  %v1121 = vunpack.c.l.b16 %v181
  %v1122 = vunpack.c.h.b16 %v181
  %v1123 = vunpack.c.l.b16 %v182
  %v1124 = vunpack.c.h.b16 %v182
  %v1125 = vunpack.c.l.b16 %v183
  %v1126 = vunpack.c.h.b16 %v183
  %v1127 = vunpack.c.l.b16 %v184
  %v1128 = vunpack.c.h.b16 %v184
  %v1129 = vunpack.c.l.b16 %v185
  %v1130 = vunpack.c.h.b16 %v185
  %v1131 = vunpack.c.l.b16 %v186
  %v1132 = vunpack.c.h.b16 %v186
  %v1133 = vunpack.c.l.b16 %v187
  %v1134 = vunpack.c.h.b16 %v187
  %v1135 = vunpack.c.l.b16 %v188
  %v1136 = vunpack.c.h.b16 %v188
  %v1137 = vunpack.c.l.b16 %v189
  %v1138 = vunpack.c.h.b16 %v189
  %v1139 = vunpack.c.l.b16 %v190
  %v1140 = vunpack.c.h.b16 %v190
  %v1141 = vunpack.c.l.b16 %v191
  %v1142 = vunpack.c.h.b16 %v191
  %v1143 = vunpack.c.l.b16 %v192
  %v1144 = vunpack.c.h.b16 %v192
  %v1145 = vunpack.c.l.b16 %v193
  %v1146 = vunpack.c.h.b16 %v193
  %v1147 = vunpack.c.l.b16 %v194
  %v1148 = vunpack.c.h.b16 %v194
  %v1149 = vunpack.c.l.b16 %v195
  %v1150 = vunpack.c.h.b16 %v195
  %v1151 = vunpack.c.l.b16 %v196
  %v1152 = vunpack.c.h.b16 %v196
  %v1153 = vunpack.c.l.b16 %v197
  %v1154 = vunpack.c.h.b16 %v197
  %v1155 = vunpack.c.l.b16 %v198
  %v1156 = vunpack.c.h.b16 %v198
  %v1157 = vunpack.c.l.b16 %v199
  %v1158 = vunpack.c.h.b16 %v199
  %v1159 = vunpack.c.l.b16 %v200
  %v1160 = vunpack.c.h.b16 %v200
  %v1161 = vunpack.c.l.b16 %v201
  %v1162 = vunpack.c.h.b16 %v201
  %v1163 = vunpack.c.l.b16 %v202
  %v1164 = vunpack.c.h.b16 %v202
  %v1165 = vunpack.c.l.b16 %v203
  %v1166 = vunpack.c.h.b16 %v203
  %v1167 = vunpack.c.l.b16 %v204
  %v1168 = vunpack.c.h.b16 %v204
  %v1169 = vunpack.c.l.b16 %v205
  %v1170 = vunpack.c.h.b16 %v205
  %v1171 = vunpack.c.l.b16 %v206
  %v1172 = vunpack.c.h.b16 %v206
  %v1173 = vunpack.c.l.b16 %v207
  %v1174 = vunpack.c.h.b16 %v207
  %v1175 = vunpack.c.l.b16 %v208
  %v1176 = vunpack.c.h.b16 %v208
  %v1177 = vunpack.c.l.b16 %v209
  %v1178 = vunpack.c.h.b16 %v209
  %v1179 = vunpack.c.l.b16 %v210
  %v1180 = vunpack.c.h.b16 %v210
  %v1181 = vunpack.c.l.b16 %v211
  %v1182 = vunpack.c.h.b16 %v211
  %v1183 = vunpack.c.l.b16 %v212
  %v1184 = vunpack.c.h.b16 %v212
  %v1185 = vunpack.c.l.b16 %v213
  %v1186 = vunpack.c.h.b16 %v213
  %v1187 = vunpack.c.l.b16 %v214
  %v1188 = vunpack.c.h.b16 %v214
  %v1189 = vunpack.c.l.b16 %v215
  %v1190 = vunpack.c.h.b16 %v215
  %v1191 = vunpack.c.l.b16 %v216
  %v1192 = vunpack.c.h.b16 %v216
  %v1193 = vunpack.c.l.b16 %v217
  %v1194 = vunpack.c.h.b16 %v217
  %v1195 = vunpack.c.l.b16 %v218
  %v1196 = vunpack.c.h.b16 %v218
  %v1197 = vunpack.c.l.b16 %v219
  %v1198 = vunpack.c.h.b16 %v219
  %v1199 = vunpack.c.l.b16 %v220
  %v1200 = vunpack.c.h.b16 %v220
  %v1201 = vunpack.c.l.b16 %v221
  %v1202 = vunpack.c.h.b16 %v221
  %v1203 = vunpack.c.l.b16 %v222
  %v1204 = vunpack.c.h.b16 %v222
  %v1205 = vunpack.c.l.b16 %v223
  %v1206 = vunpack.c.h.b16 %v223
  %v1207 = vunpack.c.l.b16 %v224
  %v1208 = vunpack.c.h.b16 %v224
  %v1209 = vunpack.c.l.b16 %v225
  %v1210 = vunpack.c.h.b16 %v225
  %v1211 = vunpack.c.l.b16 %v226
  %v1212 = vunpack.c.h.b16 %v226
  %v1213 = vunpack.c.l.b16 %v227
  %v1214 = vunpack.c.h.b16 %v227
  %v1215 = vunpack.c.l.b16 %v228
  %v1216 = vunpack.c.h.b16 %v228
  %v1217 = vunpack.c.l.b16 %v229
  %v1218 = vunpack.c.h.b16 %v229
  %v1219 = vunpack.c.l.b16 %v230
  %v1220 = vunpack.c.h.b16 %v230
  %v1221 = vunpack.c.l.b16 %v231
  %v1222 = vunpack.c.h.b16 %v231
  %v1223 = vunpack.c.l.b16 %v232
  %v1224 = vunpack.c.h.b16 %v232
  %v1225 = vunpack.c.l.b16 %v233
  %v1226 = vunpack.c.h.b16 %v233
  %v1227 = vunpack.c.l.b16 %v234
  %v1228 = vunpack.c.h.b16 %v234
  %v1229 = vunpack.c.l.b16 %v235
  %v1230 = vunpack.c.h.b16 %v235
  %v1231 = vunpack.c.l.b16 %v236
  %v1232 = vunpack.c.h.b16 %v236
  %v1233 = vunpack.c.l.b16 %v237
  %v1234 = vunpack.c.h.b16 %v237
  %v1235 = vunpack.c.l.b16 %v238
  %v1236 = vunpack.c.h.b16 %v238
  %v1237 = vunpack.c.l.b16 %v239
  %v1238 = vunpack.c.h.b16 %v239
  %v1239 = vunpack.c.l.b16 %v240
  %v1240 = vunpack.c.h.b16 %v240
  %v1241 = vunpack.c.l.b16 %v241
  %v1242 = vunpack.c.h.b16 %v241
  %v1243 = vunpack.c.l.b16 %v242
  %v1244 = vunpack.c.h.b16 %v242
  %v1245 = vunpack.c.l.b16 %v243
  %v1246 = vunpack.c.h.b16 %v243
  %v1247 = vunpack.c.l.b16 %v244
  %v1248 = vunpack.c.h.b16 %v244
  %v1249 = vunpack.c.l.b16 %v245
  %v1250 = vunpack.c.h.b16 %v245
  %v1251 = vunpack.c.l.b16 %v246
  %v1252 = vunpack.c.h.b16 %v246
  %v1253 = vunpack.c.l.b16 %v247
  %v1254 = vunpack.c.h.b16 %v247
  %v1255 = vunpack.c.l.b16 %v248
  %v1256 = vunpack.c.h.b16 %v248
  %v1257 = vunpack.c.l.b16 %v249
  %v1258 = vunpack.c.h.b16 %v249
  %v1259 = vunpack.c.l.b16 %v250
  %v1260 = vunpack.c.h.b16 %v250
  %v1261 = vunpack.c.l.b16 %v251
  %v1262 = vunpack.c.h.b16 %v251
  %v1263 = vunpack.c.l.b16 %v252
  %v1264 = vunpack.c.h.b16 %v252
  %v1265 = vunpack.c.l.b16 %v253
  %v1266 = vunpack.c.h.b16 %v253
  %v1267 = vunpack.c.l.b16 %v254
  %v1268 = vunpack.c.h.b16 %v254
  %v1269 = vunpack.c.l.b16 %v255
  %v1270 = vunpack.c.h.b16 %v255
  %v1271 = vunpack.c.l.b16 %v256
  %v1272 = vunpack.c.h.b16 %v256
  %v1273 = vunpack.c.l.b16 %v257
  %v1274 = vunpack.c.h.b16 %v257
  %v1275 = vunpack.c.l.b16 %v258
  %v1276 = vunpack.c.h.b16 %v258
  %v1277 = vunpack.c.l.b16 %v259
  %v1278 = vunpack.c.h.b16 %v259
  %v1279 = vunpack.c.l.b16 %v260
  %v1280 = vunpack.c.h.b16 %v260
  %v1281 = vunpack.c.l.b16 %v261
  %v1282 = vunpack.c.h.b16 %v261
  %v1283 = vunpack.c.l.b16 %v262
  %v1284 = vunpack.c.h.b16 %v262
  %v1285 = vunpack.c.l.b16 %v263
  %v1286 = vunpack.c.h.b16 %v263
  %v1287 = vunpack.c.l.b16 %v264
  %v1288 = vunpack.c.h.b16 %v264
  %v1289 = vunpack.c.l.b16 %v265
  %v1290 = vunpack.c.h.b16 %v265
  %v1291 = vunpack.c.l.b16 %v266
  %v1292 = vunpack.c.h.b16 %v266
  %v1293 = vunpack.c.l.b16 %v267
  %v1294 = vunpack.c.h.b16 %v267
  %v1295 = vunpack.c.l.b16 %v268
  %v1296 = vunpack.c.h.b16 %v268
  %v1297 = vunpack.c.l.b16 %v269
  %v1298 = vunpack.c.h.b16 %v269
  %v1299 = vunpack.c.l.b16 %v270
  %v1300 = vunpack.c.h.b16 %v270
  %v1301 = vunpack.c.l.b16 %v271
  %v1302 = vunpack.c.h.b16 %v271
  %v1303 = vunpack.c.l.b16 %v272
  %v1304 = vunpack.c.h.b16 %v272
  %v1305 = vunpack.c.l.b16 %v273
  %v1306 = vunpack.c.h.b16 %v273
  %v1307 = vunpack.c.l.b16 %v274
  %v1308 = vunpack.c.h.b16 %v274
  %v1309 = vunpack.c.l.b16 %v275
  %v1310 = vunpack.c.h.b16 %v275
  %v1311 = vunpack.c.l.b16 %v276
  %v1312 = vunpack.c.h.b16 %v276
  %v1313 = vunpack.c.l.b16 %v277
  %v1314 = vunpack.c.h.b16 %v277
  %v1315 = vunpack.c.l.b16 %v278
  %v1316 = vunpack.c.h.b16 %v278
  %v1317 = vunpack.c.l.b16 %v279
  %v1318 = vunpack.c.h.b16 %v279
  %v1319 = vunpack.c.l.b16 %v280
  %v1320 = vunpack.c.h.b16 %v280
  %v1321 = vunpack.c.l.b16 %v281
  %v1322 = vunpack.c.h.b16 %v281
  %v1323 = vunpack.c.l.b16 %v282
  %v1324 = vunpack.c.h.b16 %v282
  %v1325 = vunpack.c.l.b16 %v283
  %v1326 = vunpack.c.h.b16 %v283
  %v1327 = vunpack.c.l.b16 %v284
  %v1328 = vunpack.c.h.b16 %v284
  %v1329 = vunpack.c.l.b16 %v285
  %v1330 = vunpack.c.h.b16 %v285
  %v1331 = vunpack.c.l.b16 %v286
  %v1332 = vunpack.c.h.b16 %v286
  %v1333 = vunpack.c.l.b16 %v287
  %v1334 = vunpack.c.h.b16 %v287
  %v1335 = vunpack.c.l.b16 %v288
  %v1336 = vunpack.c.h.b16 %v288
  %v1337 = vunpack.c.l.b16 %v289
  %v1338 = vunpack.c.h.b16 %v289
  %v1339 = vunpack.c.l.b16 %v290
  %v1340 = vunpack.c.h.b16 %v290
  %v1341 = vunpack.c.l.b16 %v291
  %v1342 = vunpack.c.h.b16 %v291
  %v1343 = vunpack.c.l.b16 %v292
  %v1344 = vunpack.c.h.b16 %v292
  %v1345 = vunpack.c.l.b16 %v293
  %v1346 = vunpack.c.h.b16 %v293
  %v1347 = vunpack.c.l.b16 %v294
  %v1348 = vunpack.c.h.b16 %v294
  %v1349 = vunpack.c.l.b16 %v295
  %v1350 = vunpack.c.h.b16 %v295
  %v1351 = vunpack.c.l.b16 %v296
  %v1352 = vunpack.c.h.b16 %v296
  %v1353 = vunpack.c.l.b16 %v297
  %v1354 = vunpack.c.h.b16 %v297
  %v1355 = vunpack.c.l.b16 %v298
  %v1356 = vunpack.c.h.b16 %v298
  %v1357 = vunpack.c.l.b16 %v299
  %v1358 = vunpack.c.h.b16 %v299
  %v1359 = vunpack.c.l.b16 %v300
  %v1360 = vunpack.c.h.b16 %v300
  %v1361 = vunpack.c.l.b16 %v301
  %v1362 = vunpack.c.h.b16 %v301
  %v1363 = vunpack.c.l.b16 %v302
  %v1364 = vunpack.c.h.b16 %v302
  %v1365 = vunpack.c.l.b16 %v303
  %v1366 = vunpack.c.h.b16 %v303
  %v1367 = vunpack.c.l.b16 %v304
  %v1368 = vunpack.c.h.b16 %v304
  %v1369 = vunpack.c.l.b16 %v305
  %v1370 = vunpack.c.h.b16 %v305
  %v1371 = vunpack.c.l.b16 %v306
  %v1372 = vunpack.c.h.b16 %v306
  %v1373 = vunpack.c.l.b16 %v307
  %v1374 = vunpack.c.h.b16 %v307
  %v1375 = vunpack.c.l.b16 %v308
  %v1376 = vunpack.c.h.b16 %v308
  %v1377 = vunpack.c.l.b16 %v309
  %v1378 = vunpack.c.h.b16 %v309
  %v1379 = vunpack.c.l.b16 %v310
  %v1380 = vunpack.c.h.b16 %v310
  %v1381 = vunpack.c.l.b16 %v311
  %v1382 = vunpack.c.h.b16 %v311
  %v1383 = vunpack.c.l.b16 %v312
  %v1384 = vunpack.c.h.b16 %v312
  %v1385 = vpack.c.b16 %v971, %v969
  %v1386 = vpack.c.b16 %v972, %v970
  %v1387 = vpack.c.b16 %v975, %v973
  %v1388 = vpack.c.b16 %v976, %v974
  %v1389 = vpack.c.b16 %v979, %v977
  %v1390 = vpack.c.b16 %v980, %v978
  %v1391 = vpack.c.b16 %v983, %v981
  %v1392 = vpack.c.b16 %v984, %v982
  %v1393 = vpack.c.b16 %v987, %v985
  %v1394 = vpack.c.b16 %v988, %v986
  %v1395 = vpack.c.b16 %v991, %v989
  %v1396 = vpack.c.b16 %v992, %v990
  %v1397 = vpack.c.b16 %v995, %v993
  %v1398 = vpack.c.b16 %v996, %v994
  %v1399 = vpack.c.b16 %v999, %v997
  %v1400 = vpack.c.b16 %v1000, %v998
  %v1401 = vpack.c.b16 %v1003, %v1001
  %v1402 = vpack.c.b16 %v1004, %v1002
  %v1403 = vpack.c.b16 %v1007, %v1005
  %v1404 = vpack.c.b16 %v1008, %v1006
  %v1405 = vpack.c.b16 %v1011, %v1009
  %v1406 = vpack.c.b16 %v1012, %v1010
  %v1407 = vpack.c.b16 %v1015, %v1013
  %v1408 = vpack.c.b16 %v1016, %v1014
  %v1409 = vpack.c.b16 %v1019, %v1017
  %v1410 = vpack.c.b16 %v1020, %v1018
  %v1411 = vpack.c.b16 %v1023, %v1021
  %v1412 = vpack.c.b16 %v1024, %v1022
  %v1413 = vpack.c.b16 %v1027, %v1025
  %v1414 = vpack.c.b16 %v1028, %v1026
  %v1415 = vpack.c.b16 %v1031, %v1029
  %v1416 = vpack.c.b16 %v1032, %v1030
  %v1417 = vpack.c.b16 %v1035, %v1033
  %v1418 = vpack.c.b16 %v1036, %v1034
  %v1419 = vpack.c.b16 %v1039, %v1037
  %v1420 = vpack.c.b16 %v1040, %v1038
  %v1421 = vpack.c.b16 %v1043, %v1041
  %v1422 = vpack.c.b16 %v1044, %v1042
  %v1423 = vpack.c.b16 %v1047, %v1045
  %v1424 = vpack.c.b16 %v1048, %v1046
  %v1425 = vpack.c.b16 %v1051, %v1049
  %v1426 = vpack.c.b16 %v1052, %v1050
  %v1427 = vpack.c.b16 %v1055, %v1053
  %v1428 = vpack.c.b16 %v1056, %v1054
  %v1429 = vpack.c.b16 %v1059, %v1057
  %v1430 = vpack.c.b16 %v1060, %v1058
  %v1431 = vpack.c.b16 %v1063, %v1061
  %v1432 = vpack.c.b16 %v1064, %v1062
  %v1433 = vpack.c.b16 %v1067, %v1065
  %v1434 = vpack.c.b16 %v1068, %v1066
  %v1435 = vpack.c.b16 %v1071, %v1069
  %v1436 = vpack.c.b16 %v1072, %v1070
  %v1437 = vpack.c.b16 %v1075, %v1073
  %v1438 = vpack.c.b16 %v1076, %v1074
  %v1439 = vpack.c.b16 %v1079, %v1077
  %v1440 = vpack.c.b16 %v1080, %v1078
  %v1441 = vpack.c.b16 %v1083, %v1081
  %v1442 = vpack.c.b16 %v1084, %v1082
  %v1443 = vpack.c.b16 %v1087, %v1085
  %v1444 = vpack.c.b16 %v1088, %v1086
  %v1445 = vpack.c.b16 %v1091, %v1089
  %v1446 = vpack.c.b16 %v1092, %v1090
  %v1447 = vpack.c.b16 %v1095, %v1093
  %v1448 = vpack.c.b16 %v1096, %v1094
  %v1449 = vpack.c.b16 %v1099, %v1097
  %v1450 = vpack.c.b16 %v1100, %v1098
  %v1451 = vpack.c.b16 %v1103, %v1101
  %v1452 = vpack.c.b16 %v1104, %v1102
  %v1453 = vpack.c.b16 %v1107, %v1105
  %v1454 = vpack.c.b16 %v1108, %v1106
  %v1455 = vpack.c.b16 %v1111, %v1109
  %v1456 = vpack.c.b16 %v1112, %v1110
  %v1457 = vpack.c.b16 %v1115, %v1113
  %v1458 = vpack.c.b16 %v1116, %v1114
  %v1459 = vpack.c.b16 %v1119, %v1117
  %v1460 = vpack.c.b16 %v1120, %v1118
  %v1461 = vpack.c.b16 %v1123, %v1121
  %v1462 = vpack.c.b16 %v1124, %v1122
  %v1463 = vpack.c.b16 %v1127, %v1125
  %v1464 = vpack.c.b16 %v1128, %v1126
  %v1465 = vpack.c.b16 %v1131, %v1129
  %v1466 = vpack.c.b16 %v1132, %v1130
  %v1467 = vpack.c.b16 %v1135, %v1133
  %v1468 = vpack.c.b16 %v1136, %v1134
  %v1469 = vpack.c.b16 %v1139, %v1137
  %v1470 = vpack.c.b16 %v1140, %v1138
  %v1471 = vpack.c.b16 %v1143, %v1141
  %v1472 = vpack.c.b16 %v1144, %v1142
  %v1473 = vpack.c.b16 %v1147, %v1145
  %v1474 = vpack.c.b16 %v1148, %v1146
  %v1475 = vpack.c.b16 %v1151, %v1149
  %v1476 = vpack.c.b16 %v1152, %v1150
  %v1477 = vpack.c.b16 %v1155, %v1153
  %v1478 = vpack.c.b16 %v1156, %v1154
  %v1479 = vpack.c.b16 %v1159, %v1157
  %v1480 = vpack.c.b16 %v1160, %v1158
  %v1481 = vpack.c.b16 %v1163, %v1161
  %v1482 = vpack.c.b16 %v1164, %v1162
  %v1483 = vpack.c.b16 %v1167, %v1165
  %v1484 = vpack.c.b16 %v1168, %v1166
  %v1485 = vpack.c.b16 %v1171, %v1169
  %v1486 = vpack.c.b16 %v1172, %v1170
  %v1487 = vpack.c.b16 %v1175, %v1173
  %v1488 = vpack.c.b16 %v1176, %v1174
  %v1489 = vpack.c.b16 %v1179, %v1177
  %v1490 = vpack.c.b16 %v1180, %v1178
  %v1491 = vpack.c.b16 %v1183, %v1181
  %v1492 = vpack.c.b16 %v1184, %v1182
  %v1493 = vpack.c.b16 %v1187, %v1185
  %v1494 = vpack.c.b16 %v1188, %v1186
  %v1495 = vpack.c.b16 %v1191, %v1189
  %v1496 = vpack.c.b16 %v1192, %v1190
  %v1497 = vpack.c.b16 %v1195, %v1193
  %v1498 = vpack.c.b16 %v1196, %v1194
  %v1499 = vpack.c.b16 %v1199, %v1197
  %v1500 = vpack.c.b16 %v1200, %v1198
  %v1501 = vpack.c.b16 %v1203, %v1201
  %v1502 = vpack.c.b16 %v1204, %v1202
  %v1503 = vpack.c.b16 %v1207, %v1205
  %v1504 = vpack.c.b16 %v1208, %v1206
  %v1505 = vpack.c.b16 %v1211, %v1209
  %v1506 = vpack.c.b16 %v1212, %v1210
  %v1507 = vpack.c.b16 %v1215, %v1213
  %v1508 = vpack.c.b16 %v1216, %v1214
  %v1509 = vpack.c.b16 %v1219, %v1217
  %v1510 = vpack.c.b16 %v1220, %v1218
  %v1511 = vpack.c.b16 %v1223, %v1221
  %v1512 = vpack.c.b16 %v1224, %v1222
  %v1513 = vpack.c.b16 %v1227, %v1225
  %v1514 = vpack.c.b16 %v1228, %v1226
  %v1515 = vpack.c.b16 %v1231, %v1229
  %v1516 = vpack.c.b16 %v1232, %v1230
  %v1517 = vpack.c.b16 %v1235, %v1233
  %v1518 = vpack.c.b16 %v1236, %v1234
  %v1519 = vpack.c.b16 %v1239, %v1237
  %v1520 = vpack.c.b16 %v1240, %v1238
  %v1521 = vpack.c.b16 %v1243, %v1241
  %v1522 = vpack.c.b16 %v1244, %v1242
  %v1523 = vpack.c.b16 %v1247, %v1245
  %v1524 = vpack.c.b16 %v1248, %v1246
  %v1525 = vpack.c.b16 %v1251, %v1249
  %v1526 = vpack.c.b16 %v1252, %v1250
  %v1527 = vpack.c.b16 %v1255, %v1253
  %v1528 = vpack.c.b16 %v1256, %v1254
  %v1529 = vpack.c.b16 %v1259, %v1257
  %v1530 = vpack.c.b16 %v1260, %v1258
  %v1531 = vpack.c.b16 %v1263, %v1261
  %v1532 = vpack.c.b16 %v1264, %v1262
  %v1533 = vpack.c.b16 %v1267, %v1265
  %v1534 = vpack.c.b16 %v1268, %v1266
  %v1535 = vpack.c.b16 %v1271, %v1269
  %v1536 = vpack.c.b16 %v1272, %v1270
  %v1537 = vpack.c.b16 %v1275, %v1273
  %v1538 = vpack.c.b16 %v1276, %v1274
  %v1539 = vpack.c.b16 %v1279, %v1277
  %v1540 = vpack.c.b16 %v1280, %v1278
  %v1541 = vpack.c.b16 %v1283, %v1281
  %v1542 = vpack.c.b16 %v1284, %v1282
  %v1543 = vpack.c.b16 %v1287, %v1285
  %v1544 = vpack.c.b16 %v1288, %v1286
  %v1545 = vpack.c.b16 %v1291, %v1289
  %v1546 = vpack.c.b16 %v1292, %v1290
  %v1547 = vpack.c.b16 %v1295, %v1293
  %v1548 = vpack.c.b16 %v1296, %v1294
  %v1549 = vpack.c.b16 %v1299, %v1297
  %v1550 = vpack.c.b16 %v1300, %v1298
  %v1551 = vpack.c.b16 %v1303, %v1301
  %v1552 = vpack.c.b16 %v1304, %v1302
  %v1553 = vpack.c.b16 %v1307, %v1305
  %v1554 = vpack.c.b16 %v1308, %v1306
  %v1555 = vpack.c.b16 %v1311, %v1309
  %v1556 = vpack.c.b16 %v1312, %v1310
  %v1557 = vpack.c.b16 %v1315, %v1313
  %v1558 = vpack.c.b16 %v1316, %v1314
  %v1559 = vpack.c.b16 %v1319, %v1317
  %v1560 = vpack.c.b16 %v1320, %v1318
  %v1561 = vpack.c.b16 %v1323, %v1321
  %v1562 = vpack.c.b16 %v1324, %v1322
  %v1563 = vpack.c.b16 %v1327, %v1325
  %v1564 = vpack.c.b16 %v1328, %v1326
  %v1565 = vpack.c.b16 %v1331, %v1329
  %v1566 = vpack.c.b16 %v1332, %v1330
  %v1567 = vpack.c.b16 %v1335, %v1333
  %v1568 = vpack.c.b16 %v1336, %v1334
  %v1569 = vpack.c.b16 %v1339, %v1337
  %v1570 = vpack.c.b16 %v1340, %v1338
  %v1571 = vpack.c.b16 %v1343, %v1341
  %v1572 = vpack.c.b16 %v1344, %v1342
  %v1573 = vpack.c.b16 %v1347, %v1345
  %v1574 = vpack.c.b16 %v1348, %v1346
  %v1575 = vpack.c.b16 %v1351, %v1349
  %v1576 = vpack.c.b16 %v1352, %v1350
  %v1577 = vpack.c.b16 %v1355, %v1353
  %v1578 = vpack.c.b16 %v1356, %v1354
  %v1579 = vpack.c.b16 %v1359, %v1357
  %v1580 = vpack.c.b16 %v1360, %v1358
  %v1581 = vpack.c.b16 %v1363, %v1361
  %v1582 = vpack.c.b16 %v1364, %v1362
  %v1583 = vpack.c.b16 %v1367, %v1365
  %v1584 = vpack.c.b16 %v1368, %v1366
  %v1585 = vpack.c.b16 %v1371, %v1369
  %v1586 = vpack.c.b16 %v1372, %v1370
  %v1587 = vpack.c.b16 %v1375, %v1373
  %v1588 = vpack.c.b16 %v1376, %v1374
  %v1589 = vpack.c.b16 %v1379, %v1377
  %v1590 = vpack.c.b16 %v1380, %v1378
  %v1591 = vpack.c.b16 %v1383, %v1381
  %v1592 = vpack.c.b16 %v1384, %v1382
  %1801 = vmatpush.bf16.msra.mxu0 %v1399
  %1802 = vmatpush.bf16.msra.mxu0 %v1397
  %1803 = vmatpush.bf16.msra.mxu0 %v1395
  %1804 = vmatpush.bf16.msra.mxu0 %v1393
  %1805 = vmatpush.bf16.msra.mxu0 %v1391
  %1806 = vmatpush.bf16.msra.mxu0 %v1389
  %1807 = vmatpush.bf16.msra.mxu0 %v1387
  %1808 = vmatpush.bf16.msra.mxu0 %v1385
  %1809 = vmatmul.bf16.gmra.mxu0 %v579
  %v1810 = vpop.f32.mrf.mxu0
  %v1811 = vadd.f32 %v315, %v1810
  %v1812 = vpop.f32.mrf.mxu0
  %v1813 = vadd.f32 %v315, %v1812
  %1814 = vmatmul.bf16.gmra.mxu0 %v592
  %v1815 = vpop.f32.mrf.mxu0
  %v1816 = vadd.f32 %v315, %v1815
  %v1817 = vpop.f32.mrf.mxu0
  %v1818 = vadd.f32 %v315, %v1817
  %1819 = vmatmul.bf16.gmra.mxu0 %v605
  %v1820 = vpop.f32.mrf.mxu0
  %v1821 = vadd.f32 %v315, %v1820
  %v1822 = vpop.f32.mrf.mxu0
  %v1823 = vadd.f32 %v315, %v1822
  %1824 = vmatmul.bf16.gmra.mxu0 %v618
  %v1825 = vpop.f32.mrf.mxu0
  %v1826 = vadd.f32 %v315, %v1825
  %v1827 = vpop.f32.mrf.mxu0
  %v1828 = vadd.f32 %v315, %v1827
  %1829 = vmatmul.bf16.gmra.mxu0 %v631
  %v1830 = vpop.f32.mrf.mxu0
  %v1831 = vadd.f32 %v315, %v1830
  %v1832 = vpop.f32.mrf.mxu0
  %v1833 = vadd.f32 %v315, %v1832
  %1834 = vmatmul.bf16.gmra.mxu0 %v644
  %v1835 = vpop.f32.mrf.mxu0
  %v1836 = vadd.f32 %v315, %v1835
  %v1837 = vpop.f32.mrf.mxu0
  %v1838 = vadd.f32 %v315, %v1837
  %1839 = vmatmul.bf16.gmra.mxu0 %v657
  %v1840 = vpop.f32.mrf.mxu0
  %v1841 = vadd.f32 %v315, %v1840
  %v1842 = vpop.f32.mrf.mxu0
  %1843 = vdwg.mxu0
  %1844 = vmatpush.bf16.msra.mxu0 %v1415
  %1845 = vmatpush.bf16.msra.mxu0 %v1413
  %1846 = vmatpush.bf16.msra.mxu0 %v1411
  %1847 = vmatpush.bf16.msra.mxu0 %v1409
  %1848 = vmatpush.bf16.msra.mxu0 %v1407
  %1849 = vmatpush.bf16.msra.mxu0 %v1405
  %1850 = vmatpush.bf16.msra.mxu0 %v1403
  %1851 = vmatpush.bf16.msra.mxu0 %v1401
  %1852 = vmatmul.bf16.gmra.mxu0 %v580
  %v1853 = vpop.f32.mrf.mxu0
  %v1854 = vadd.f32 %v1811, %v1853
  %v1855 = vpop.f32.mrf.mxu0
  %v1856 = vadd.f32 %v1813, %v1855
  %1857 = vmatmul.bf16.gmra.mxu0 %v593
  %v1858 = vpop.f32.mrf.mxu0
  %v1859 = vadd.f32 %v1816, %v1858
  %v1860 = vpop.f32.mrf.mxu0
  %v1861 = vadd.f32 %v1818, %v1860
  %1862 = vmatmul.bf16.gmra.mxu0 %v606
  %v1863 = vpop.f32.mrf.mxu0
  %v1864 = vadd.f32 %v1821, %v1863
  %v1865 = vpop.f32.mrf.mxu0
  %v1866 = vadd.f32 %v1823, %v1865
  %1867 = vmatmul.bf16.gmra.mxu0 %v619
  %v1868 = vpop.f32.mrf.mxu0
  %v1869 = vadd.f32 %v1826, %v1868
  %v1870 = vpop.f32.mrf.mxu0
  %v1871 = vadd.f32 %v1828, %v1870
  %1872 = vmatmul.bf16.gmra.mxu0 %v632
  %v1873 = vpop.f32.mrf.mxu0
  %v1874 = vadd.f32 %v1831, %v1873
  %v1875 = vpop.f32.mrf.mxu0
  %v1876 = vadd.f32 %v1833, %v1875
  %1877 = vmatmul.bf16.gmra.mxu0 %v645
  %v1878 = vpop.f32.mrf.mxu0
  %v1879 = vadd.f32 %v1836, %v1878
  %v1880 = vpop.f32.mrf.mxu0
  %v1881 = vadd.f32 %v1838, %v1880
  %1882 = vmatmul.bf16.gmra.mxu0 %v658
  %v1883 = vpop.f32.mrf.mxu0
  %v1884 = vadd.f32 %v1841, %v1883
  %v1885 = vpop.f32.mrf.mxu0
  %1886 = vdwg.mxu0
  %1887 = vmatpush.bf16.msra.mxu0 %v1431
  %1888 = vmatpush.bf16.msra.mxu0 %v1429
  %1889 = vmatpush.bf16.msra.mxu0 %v1427
  %1890 = vmatpush.bf16.msra.mxu0 %v1425
  %1891 = vmatpush.bf16.msra.mxu0 %v1423
  %1892 = vmatpush.bf16.msra.mxu0 %v1421
  %1893 = vmatpush.bf16.msra.mxu0 %v1419
  %1894 = vmatpush.bf16.msra.mxu0 %v1417
  %1895 = vmatmul.bf16.gmra.mxu0 %v581
  %v1896 = vpop.f32.mrf.mxu0
  %v1897 = vadd.f32 %v1854, %v1896
  %v1898 = vpop.f32.mrf.mxu0
  %v1899 = vadd.f32 %v1856, %v1898
  %1900 = vmatmul.bf16.gmra.mxu0 %v594
  %v1901 = vpop.f32.mrf.mxu0
  %v1902 = vadd.f32 %v1859, %v1901
  %v1903 = vpop.f32.mrf.mxu0
  %v1904 = vadd.f32 %v1861, %v1903
  %1905 = vmatmul.bf16.gmra.mxu0 %v607
  %v1906 = vpop.f32.mrf.mxu0
  %v1907 = vadd.f32 %v1864, %v1906
  %v1908 = vpop.f32.mrf.mxu0
  %v1909 = vadd.f32 %v1866, %v1908
  %1910 = vmatmul.bf16.gmra.mxu0 %v620
  %v1911 = vpop.f32.mrf.mxu0
  %v1912 = vadd.f32 %v1869, %v1911
  %v1913 = vpop.f32.mrf.mxu0
  %v1914 = vadd.f32 %v1871, %v1913
  %1915 = vmatmul.bf16.gmra.mxu0 %v633
  %v1916 = vpop.f32.mrf.mxu0
  %v1917 = vadd.f32 %v1874, %v1916
  %v1918 = vpop.f32.mrf.mxu0
  %v1919 = vadd.f32 %v1876, %v1918
  %1920 = vmatmul.bf16.gmra.mxu0 %v646
  %v1921 = vpop.f32.mrf.mxu0
  %v1922 = vadd.f32 %v1879, %v1921
  %v1923 = vpop.f32.mrf.mxu0
  %v1924 = vadd.f32 %v1881, %v1923
  %1925 = vmatmul.bf16.gmra.mxu0 %v659
  %v1926 = vpop.f32.mrf.mxu0
  %v1927 = vadd.f32 %v1884, %v1926
  %v1928 = vpop.f32.mrf.mxu0
  %1929 = vdwg.mxu0
  %1930 = vmatpush.bf16.msra.mxu0 %v1447
  %1931 = vmatpush.bf16.msra.mxu0 %v1445
  %1932 = vmatpush.bf16.msra.mxu0 %v1443
  %1933 = vmatpush.bf16.msra.mxu0 %v1441
  %1934 = vmatpush.bf16.msra.mxu0 %v1439
  %1935 = vmatpush.bf16.msra.mxu0 %v1437
  %1936 = vmatpush.bf16.msra.mxu0 %v1435
  %1937 = vmatpush.bf16.msra.mxu0 %v1433
  %1938 = vmatmul.bf16.gmra.mxu0 %v582
  %v1939 = vpop.f32.mrf.mxu0
  %v1940 = vadd.f32 %v1897, %v1939
  %v1941 = vpop.f32.mrf.mxu0
  %v1942 = vadd.f32 %v1899, %v1941
  %1943 = vmatmul.bf16.gmra.mxu0 %v595
  %v1944 = vpop.f32.mrf.mxu0
  %v1945 = vadd.f32 %v1902, %v1944
  %v1946 = vpop.f32.mrf.mxu0
  %v1947 = vadd.f32 %v1904, %v1946
  %1948 = vmatmul.bf16.gmra.mxu0 %v608
  %v1949 = vpop.f32.mrf.mxu0
  %v1950 = vadd.f32 %v1907, %v1949
  %v1951 = vpop.f32.mrf.mxu0
  %v1952 = vadd.f32 %v1909, %v1951
  %1953 = vmatmul.bf16.gmra.mxu0 %v621
  %v1954 = vpop.f32.mrf.mxu0
  %v1955 = vadd.f32 %v1912, %v1954
  %v1956 = vpop.f32.mrf.mxu0
  %v1957 = vadd.f32 %v1914, %v1956
  %1958 = vmatmul.bf16.gmra.mxu0 %v634
  %v1959 = vpop.f32.mrf.mxu0
  %v1960 = vadd.f32 %v1917, %v1959
  %v1961 = vpop.f32.mrf.mxu0
  %v1962 = vadd.f32 %v1919, %v1961
  %1963 = vmatmul.bf16.gmra.mxu0 %v647
  %v1964 = vpop.f32.mrf.mxu0
  %v1965 = vadd.f32 %v1922, %v1964
  %v1966 = vpop.f32.mrf.mxu0
  %v1967 = vadd.f32 %v1924, %v1966
  %1968 = vmatmul.bf16.gmra.mxu0 %v660
  %v1969 = vpop.f32.mrf.mxu0
  %v1970 = vadd.f32 %v1927, %v1969
  %v1971 = vpop.f32.mrf.mxu0
  %1972 = vdwg.mxu0
  %1973 = vmatpush.bf16.msra.mxu0 %v1463
  %1974 = vmatpush.bf16.msra.mxu0 %v1461
  %1975 = vmatpush.bf16.msra.mxu0 %v1459
  %1976 = vmatpush.bf16.msra.mxu0 %v1457
  %1977 = vmatpush.bf16.msra.mxu0 %v1455
  %1978 = vmatpush.bf16.msra.mxu0 %v1453
  %1979 = vmatpush.bf16.msra.mxu0 %v1451
  %1980 = vmatpush.bf16.msra.mxu0 %v1449
  %1981 = vmatmul.bf16.gmra.mxu0 %v583
  %v1982 = vpop.f32.mrf.mxu0
  %v1983 = vadd.f32 %v1940, %v1982
  %v1984 = vpop.f32.mrf.mxu0
  %v1985 = vadd.f32 %v1942, %v1984
  %1986 = vmatmul.bf16.gmra.mxu0 %v596
  %v1987 = vpop.f32.mrf.mxu0
  %v1988 = vadd.f32 %v1945, %v1987
  %v1989 = vpop.f32.mrf.mxu0
  %v1990 = vadd.f32 %v1947, %v1989
  %1991 = vmatmul.bf16.gmra.mxu0 %v609
  %v1992 = vpop.f32.mrf.mxu0
  %v1993 = vadd.f32 %v1950, %v1992
  %v1994 = vpop.f32.mrf.mxu0
  %v1995 = vadd.f32 %v1952, %v1994
  %1996 = vmatmul.bf16.gmra.mxu0 %v622
  %v1997 = vpop.f32.mrf.mxu0
  %v1998 = vadd.f32 %v1955, %v1997
  %v1999 = vpop.f32.mrf.mxu0
  %v2000 = vadd.f32 %v1957, %v1999
  %2001 = vmatmul.bf16.gmra.mxu0 %v635
  %v2002 = vpop.f32.mrf.mxu0
  %v2003 = vadd.f32 %v1960, %v2002
  %v2004 = vpop.f32.mrf.mxu0
  %v2005 = vadd.f32 %v1962, %v2004
  %2006 = vmatmul.bf16.gmra.mxu0 %v648
  %v2007 = vpop.f32.mrf.mxu0
  %v2008 = vadd.f32 %v1965, %v2007
  %v2009 = vpop.f32.mrf.mxu0
  %v2010 = vadd.f32 %v1967, %v2009
  %2011 = vmatmul.bf16.gmra.mxu0 %v661
  %v2012 = vpop.f32.mrf.mxu0
  %v2013 = vadd.f32 %v1970, %v2012
  %v2014 = vpop.f32.mrf.mxu0
  %2015 = vdwg.mxu0
  %2016 = vmatpush.bf16.msra.mxu0 %v1479
  %2017 = vmatpush.bf16.msra.mxu0 %v1477
  %2018 = vmatpush.bf16.msra.mxu0 %v1475
  %2019 = vmatpush.bf16.msra.mxu0 %v1473
  %2020 = vmatpush.bf16.msra.mxu0 %v1471
  %2021 = vmatpush.bf16.msra.mxu0 %v1469
  %2022 = vmatpush.bf16.msra.mxu0 %v1467
  %2023 = vmatpush.bf16.msra.mxu0 %v1465
  %2024 = vmatmul.bf16.gmra.mxu0 %v584
  %v2025 = vpop.f32.mrf.mxu0
  %v2026 = vadd.f32 %v1983, %v2025
  %v2027 = vpop.f32.mrf.mxu0
  %v2028 = vadd.f32 %v1985, %v2027
  %2029 = vmatmul.bf16.gmra.mxu0 %v597
  %v2030 = vpop.f32.mrf.mxu0
  %v2031 = vadd.f32 %v1988, %v2030
  %v2032 = vpop.f32.mrf.mxu0
  %v2033 = vadd.f32 %v1990, %v2032
  %2034 = vmatmul.bf16.gmra.mxu0 %v610
  %v2035 = vpop.f32.mrf.mxu0
  %v2036 = vadd.f32 %v1993, %v2035
  %v2037 = vpop.f32.mrf.mxu0
  %v2038 = vadd.f32 %v1995, %v2037
  %2039 = vmatmul.bf16.gmra.mxu0 %v623
  %v2040 = vpop.f32.mrf.mxu0
  %v2041 = vadd.f32 %v1998, %v2040
  %v2042 = vpop.f32.mrf.mxu0
  %v2043 = vadd.f32 %v2000, %v2042
  %2044 = vmatmul.bf16.gmra.mxu0 %v636
  %v2045 = vpop.f32.mrf.mxu0
  %v2046 = vadd.f32 %v2003, %v2045
  %v2047 = vpop.f32.mrf.mxu0
  %v2048 = vadd.f32 %v2005, %v2047
  %2049 = vmatmul.bf16.gmra.mxu0 %v649
  %v2050 = vpop.f32.mrf.mxu0
  %v2051 = vadd.f32 %v2008, %v2050
  %v2052 = vpop.f32.mrf.mxu0
  %v2053 = vadd.f32 %v2010, %v2052
  %2054 = vmatmul.bf16.gmra.mxu0 %v662
  %v2055 = vpop.f32.mrf.mxu0
  %v2056 = vadd.f32 %v2013, %v2055
  %v2057 = vpop.f32.mrf.mxu0
  %2058 = vdwg.mxu0
  %2059 = vmatpush.bf16.msra.mxu0 %v1495
  %2060 = vmatpush.bf16.msra.mxu0 %v1493
  %2061 = vmatpush.bf16.msra.mxu0 %v1491
  %2062 = vmatpush.bf16.msra.mxu0 %v1489
  %2063 = vmatpush.bf16.msra.mxu0 %v1487
  %2064 = vmatpush.bf16.msra.mxu0 %v1485
  %2065 = vmatpush.bf16.msra.mxu0 %v1483
  %2066 = vmatpush.bf16.msra.mxu0 %v1481
  %2067 = vmatmul.bf16.gmra.mxu0 %v585
  %v2068 = vpop.f32.mrf.mxu0
  %v2069 = vadd.f32 %v2026, %v2068
  %v2070 = vpop.f32.mrf.mxu0
  %v2071 = vadd.f32 %v2028, %v2070
  %2072 = vmatmul.bf16.gmra.mxu0 %v598
  %v2073 = vpop.f32.mrf.mxu0
  %v2074 = vadd.f32 %v2031, %v2073
  %v2075 = vpop.f32.mrf.mxu0
  %v2076 = vadd.f32 %v2033, %v2075
  %2077 = vmatmul.bf16.gmra.mxu0 %v611
  %v2078 = vpop.f32.mrf.mxu0
  %v2079 = vadd.f32 %v2036, %v2078
  %v2080 = vpop.f32.mrf.mxu0
  %v2081 = vadd.f32 %v2038, %v2080
  %2082 = vmatmul.bf16.gmra.mxu0 %v624
  %v2083 = vpop.f32.mrf.mxu0
  %v2084 = vadd.f32 %v2041, %v2083
  %v2085 = vpop.f32.mrf.mxu0
  %v2086 = vadd.f32 %v2043, %v2085
  %2087 = vmatmul.bf16.gmra.mxu0 %v637
  %v2088 = vpop.f32.mrf.mxu0
  %v2089 = vadd.f32 %v2046, %v2088
  %v2090 = vpop.f32.mrf.mxu0
  %v2091 = vadd.f32 %v2048, %v2090
  %2092 = vmatmul.bf16.gmra.mxu0 %v650
  %v2093 = vpop.f32.mrf.mxu0
  %v2094 = vadd.f32 %v2051, %v2093
  %v2095 = vpop.f32.mrf.mxu0
  %v2096 = vadd.f32 %v2053, %v2095
  %2097 = vmatmul.bf16.gmra.mxu0 %v663
  %v2098 = vpop.f32.mrf.mxu0
  %v2099 = vadd.f32 %v2056, %v2098
  %v2100 = vpop.f32.mrf.mxu0
  %2101 = vdwg.mxu0
  %2102 = vmatpush.bf16.msra.mxu0 %v1511
  %2103 = vmatpush.bf16.msra.mxu0 %v1509
  %2104 = vmatpush.bf16.msra.mxu0 %v1507
  %2105 = vmatpush.bf16.msra.mxu0 %v1505
  %2106 = vmatpush.bf16.msra.mxu0 %v1503
  %2107 = vmatpush.bf16.msra.mxu0 %v1501
  %2108 = vmatpush.bf16.msra.mxu0 %v1499
  %2109 = vmatpush.bf16.msra.mxu0 %v1497
  %2110 = vmatmul.bf16.gmra.mxu0 %v586
  %v2111 = vpop.f32.mrf.mxu0
  %v2112 = vadd.f32 %v2069, %v2111
  %v2113 = vpop.f32.mrf.mxu0
  %v2114 = vadd.f32 %v2071, %v2113
  %2115 = vmatmul.bf16.gmra.mxu0 %v599
  %v2116 = vpop.f32.mrf.mxu0
  %v2117 = vadd.f32 %v2074, %v2116
  %v2118 = vpop.f32.mrf.mxu0
  %v2119 = vadd.f32 %v2076, %v2118
  %2120 = vmatmul.bf16.gmra.mxu0 %v612
  %v2121 = vpop.f32.mrf.mxu0
  %v2122 = vadd.f32 %v2079, %v2121
  %v2123 = vpop.f32.mrf.mxu0
  %v2124 = vadd.f32 %v2081, %v2123
  %2125 = vmatmul.bf16.gmra.mxu0 %v625
  %v2126 = vpop.f32.mrf.mxu0
  %v2127 = vadd.f32 %v2084, %v2126
  %v2128 = vpop.f32.mrf.mxu0
  %v2129 = vadd.f32 %v2086, %v2128
  %2130 = vmatmul.bf16.gmra.mxu0 %v638
  %v2131 = vpop.f32.mrf.mxu0
  %v2132 = vadd.f32 %v2089, %v2131
  %v2133 = vpop.f32.mrf.mxu0
  %v2134 = vadd.f32 %v2091, %v2133
  %2135 = vmatmul.bf16.gmra.mxu0 %v651
  %v2136 = vpop.f32.mrf.mxu0
  %v2137 = vadd.f32 %v2094, %v2136
  %v2138 = vpop.f32.mrf.mxu0
  %v2139 = vadd.f32 %v2096, %v2138
  %2140 = vmatmul.bf16.gmra.mxu0 %v664
  %v2141 = vpop.f32.mrf.mxu0
  %v2142 = vadd.f32 %v2099, %v2141
  %v2143 = vpop.f32.mrf.mxu0
  %2144 = vdwg.mxu0
  %2145 = vmatpush.bf16.msra.mxu0 %v1527
  %2146 = vmatpush.bf16.msra.mxu0 %v1525
  %2147 = vmatpush.bf16.msra.mxu0 %v1523
  %2148 = vmatpush.bf16.msra.mxu0 %v1521
  %2149 = vmatpush.bf16.msra.mxu0 %v1519
  %2150 = vmatpush.bf16.msra.mxu0 %v1517
  %2151 = vmatpush.bf16.msra.mxu0 %v1515
  %2152 = vmatpush.bf16.msra.mxu0 %v1513
  %2153 = vmatmul.bf16.gmra.mxu0 %v587
  %v2154 = vpop.f32.mrf.mxu0
  %v2155 = vadd.f32 %v2112, %v2154
  %v2156 = vpop.f32.mrf.mxu0
  %v2157 = vadd.f32 %v2114, %v2156
  %2158 = vmatmul.bf16.gmra.mxu0 %v600
  %v2159 = vpop.f32.mrf.mxu0
  %v2160 = vadd.f32 %v2117, %v2159
  %v2161 = vpop.f32.mrf.mxu0
  %v2162 = vadd.f32 %v2119, %v2161
  %2163 = vmatmul.bf16.gmra.mxu0 %v613
  %v2164 = vpop.f32.mrf.mxu0
  %v2165 = vadd.f32 %v2122, %v2164
  %v2166 = vpop.f32.mrf.mxu0
  %v2167 = vadd.f32 %v2124, %v2166
  %2168 = vmatmul.bf16.gmra.mxu0 %v626
  %v2169 = vpop.f32.mrf.mxu0
  %v2170 = vadd.f32 %v2127, %v2169
  %v2171 = vpop.f32.mrf.mxu0
  %v2172 = vadd.f32 %v2129, %v2171
  %2173 = vmatmul.bf16.gmra.mxu0 %v639
  %v2174 = vpop.f32.mrf.mxu0
  %v2175 = vadd.f32 %v2132, %v2174
  %v2176 = vpop.f32.mrf.mxu0
  %v2177 = vadd.f32 %v2134, %v2176
  %2178 = vmatmul.bf16.gmra.mxu0 %v652
  %v2179 = vpop.f32.mrf.mxu0
  %v2180 = vadd.f32 %v2137, %v2179
  %v2181 = vpop.f32.mrf.mxu0
  %v2182 = vadd.f32 %v2139, %v2181
  %2183 = vmatmul.bf16.gmra.mxu0 %v665
  %v2184 = vpop.f32.mrf.mxu0
  %v2185 = vadd.f32 %v2142, %v2184
  %v2186 = vpop.f32.mrf.mxu0
  %2187 = vdwg.mxu0
  %2188 = vmatpush.bf16.msra.mxu0 %v1543
  %2189 = vmatpush.bf16.msra.mxu0 %v1541
  %2190 = vmatpush.bf16.msra.mxu0 %v1539
  %2191 = vmatpush.bf16.msra.mxu0 %v1537
  %2192 = vmatpush.bf16.msra.mxu0 %v1535
  %2193 = vmatpush.bf16.msra.mxu0 %v1533
  %2194 = vmatpush.bf16.msra.mxu0 %v1531
  %2195 = vmatpush.bf16.msra.mxu0 %v1529
  %2196 = vmatmul.bf16.gmra.mxu0 %v588
  %v2197 = vpop.f32.mrf.mxu0
  %v2198 = vadd.f32 %v2155, %v2197
  %v2199 = vpop.f32.mrf.mxu0
  %v2200 = vadd.f32 %v2157, %v2199
  %2201 = vmatmul.bf16.gmra.mxu0 %v601
  %v2202 = vpop.f32.mrf.mxu0
  %v2203 = vadd.f32 %v2160, %v2202
  %v2204 = vpop.f32.mrf.mxu0
  %v2205 = vadd.f32 %v2162, %v2204
  %2206 = vmatmul.bf16.gmra.mxu0 %v614
  %v2207 = vpop.f32.mrf.mxu0
  %v2208 = vadd.f32 %v2165, %v2207
  %v2209 = vpop.f32.mrf.mxu0
  %v2210 = vadd.f32 %v2167, %v2209
  %2211 = vmatmul.bf16.gmra.mxu0 %v627
  %v2212 = vpop.f32.mrf.mxu0
  %v2213 = vadd.f32 %v2170, %v2212
  %v2214 = vpop.f32.mrf.mxu0
  %v2215 = vadd.f32 %v2172, %v2214
  %2216 = vmatmul.bf16.gmra.mxu0 %v640
  %v2217 = vpop.f32.mrf.mxu0
  %v2218 = vadd.f32 %v2175, %v2217
  %v2219 = vpop.f32.mrf.mxu0
  %v2220 = vadd.f32 %v2177, %v2219
  %2221 = vmatmul.bf16.gmra.mxu0 %v653
  %v2222 = vpop.f32.mrf.mxu0
  %v2223 = vadd.f32 %v2180, %v2222
  %v2224 = vpop.f32.mrf.mxu0
  %v2225 = vadd.f32 %v2182, %v2224
  %2226 = vmatmul.bf16.gmra.mxu0 %v666
  %v2227 = vpop.f32.mrf.mxu0
  %v2228 = vadd.f32 %v2185, %v2227
  %v2229 = vpop.f32.mrf.mxu0
  %2230 = vdwg.mxu0
  %2231 = vmatpush.bf16.msra.mxu0 %v1559
  %2232 = vmatpush.bf16.msra.mxu0 %v1557
  %2233 = vmatpush.bf16.msra.mxu0 %v1555
  %2234 = vmatpush.bf16.msra.mxu0 %v1553
  %2235 = vmatpush.bf16.msra.mxu0 %v1551
  %2236 = vmatpush.bf16.msra.mxu0 %v1549
  %2237 = vmatpush.bf16.msra.mxu0 %v1547
  %2238 = vmatpush.bf16.msra.mxu0 %v1545
  %2239 = vmatmul.bf16.gmra.mxu0 %v589
  %v2240 = vpop.f32.mrf.mxu0
  %v2241 = vadd.f32 %v2198, %v2240
  %v2242 = vpop.f32.mrf.mxu0
  %v2243 = vadd.f32 %v2200, %v2242
  %2244 = vmatmul.bf16.gmra.mxu0 %v602
  %v2245 = vpop.f32.mrf.mxu0
  %v2246 = vadd.f32 %v2203, %v2245
  %v2247 = vpop.f32.mrf.mxu0
  %v2248 = vadd.f32 %v2205, %v2247
  %2249 = vmatmul.bf16.gmra.mxu0 %v615
  %v2250 = vpop.f32.mrf.mxu0
  %v2251 = vadd.f32 %v2208, %v2250
  %v2252 = vpop.f32.mrf.mxu0
  %v2253 = vadd.f32 %v2210, %v2252
  %2254 = vmatmul.bf16.gmra.mxu0 %v628
  %v2255 = vpop.f32.mrf.mxu0
  %v2256 = vadd.f32 %v2213, %v2255
  %v2257 = vpop.f32.mrf.mxu0
  %v2258 = vadd.f32 %v2215, %v2257
  %2259 = vmatmul.bf16.gmra.mxu0 %v641
  %v2260 = vpop.f32.mrf.mxu0
  %v2261 = vadd.f32 %v2218, %v2260
  %v2262 = vpop.f32.mrf.mxu0
  %v2263 = vadd.f32 %v2220, %v2262
  %2264 = vmatmul.bf16.gmra.mxu0 %v654
  %v2265 = vpop.f32.mrf.mxu0
  %v2266 = vadd.f32 %v2223, %v2265
  %v2267 = vpop.f32.mrf.mxu0
  %v2268 = vadd.f32 %v2225, %v2267
  %2269 = vmatmul.bf16.gmra.mxu0 %v667
  %v2270 = vpop.f32.mrf.mxu0
  %v2271 = vadd.f32 %v2228, %v2270
  %v2272 = vpop.f32.mrf.mxu0
  %2273 = vdwg.mxu0
  %2274 = vmatpush.bf16.msra.mxu0 %v1575
  %2275 = vmatpush.bf16.msra.mxu0 %v1573
  %2276 = vmatpush.bf16.msra.mxu0 %v1571
  %2277 = vmatpush.bf16.msra.mxu0 %v1569
  %2278 = vmatpush.bf16.msra.mxu0 %v1567
  %2279 = vmatpush.bf16.msra.mxu0 %v1565
  %2280 = vmatpush.bf16.msra.mxu0 %v1563
  %2281 = vmatpush.bf16.msra.mxu0 %v1561
  %2282 = vmatmul.bf16.gmra.mxu0 %v590
  %v2283 = vpop.f32.mrf.mxu0
  %v2284 = vadd.f32 %v2241, %v2283
  %v2285 = vpop.f32.mrf.mxu0
  %v2286 = vadd.f32 %v2243, %v2285
  %2287 = vmatmul.bf16.gmra.mxu0 %v603
  %v2288 = vpop.f32.mrf.mxu0
  %v2289 = vadd.f32 %v2246, %v2288
  %v2290 = vpop.f32.mrf.mxu0
  %v2291 = vadd.f32 %v2248, %v2290
  %2292 = vmatmul.bf16.gmra.mxu0 %v616
  %v2293 = vpop.f32.mrf.mxu0
  %v2294 = vadd.f32 %v2251, %v2293
  %v2295 = vpop.f32.mrf.mxu0
  %v2296 = vadd.f32 %v2253, %v2295
  %2297 = vmatmul.bf16.gmra.mxu0 %v629
  %v2298 = vpop.f32.mrf.mxu0
  %v2299 = vadd.f32 %v2256, %v2298
  %v2300 = vpop.f32.mrf.mxu0
  %v2301 = vadd.f32 %v2258, %v2300
  %2302 = vmatmul.bf16.gmra.mxu0 %v642
  %v2303 = vpop.f32.mrf.mxu0
  %v2304 = vadd.f32 %v2261, %v2303
  %v2305 = vpop.f32.mrf.mxu0
  %v2306 = vadd.f32 %v2263, %v2305
  %2307 = vmatmul.bf16.gmra.mxu0 %v655
  %v2308 = vpop.f32.mrf.mxu0
  %v2309 = vadd.f32 %v2266, %v2308
  %v2310 = vpop.f32.mrf.mxu0
  %v2311 = vadd.f32 %v2268, %v2310
  %2312 = vmatmul.bf16.gmra.mxu0 %v668
  %v2313 = vpop.f32.mrf.mxu0
  %v2314 = vadd.f32 %v2271, %v2313
  %v2315 = vpop.f32.mrf.mxu0
  %2316 = vdwg.mxu0
  %2317 = vmatpush.bf16.msra.mxu0 %v1591
  %2318 = vmatpush.bf16.msra.mxu0 %v1589
  %2319 = vmatpush.bf16.msra.mxu0 %v1587
  %2320 = vmatpush.bf16.msra.mxu0 %v1585
  %2321 = vmatpush.bf16.msra.mxu0 %v1583
  %2322 = vmatpush.bf16.msra.mxu0 %v1581
  %2323 = vmatpush.bf16.msra.mxu0 %v1579
  %2324 = vmatpush.bf16.msra.mxu0 %v1577
  %2325 = vmatmul.bf16.gmra.mxu0 %v591
  %v2326 = vpop.f32.mrf.mxu0
  %v2327 = vadd.f32 %v2284, %v2326
  %v2328 = vpop.f32.mrf.mxu0
  %v2329 = vadd.f32 %v2286, %v2328
  %2330 = vmatmul.bf16.gmra.mxu0 %v604
  %v2331 = vpop.f32.mrf.mxu0
  %v2332 = vadd.f32 %v2289, %v2331
  %v2333 = vpop.f32.mrf.mxu0
  %v2334 = vadd.f32 %v2291, %v2333
  %2335 = vmatmul.bf16.gmra.mxu0 %v617
  %v2336 = vpop.f32.mrf.mxu0
  %v2337 = vadd.f32 %v2294, %v2336
  %v2338 = vpop.f32.mrf.mxu0
  %v2339 = vadd.f32 %v2296, %v2338
  %2340 = vmatmul.bf16.gmra.mxu0 %v630
  %v2341 = vpop.f32.mrf.mxu0
  %v2342 = vadd.f32 %v2299, %v2341
  %v2343 = vpop.f32.mrf.mxu0
  %v2344 = vadd.f32 %v2301, %v2343
  %2345 = vmatmul.bf16.gmra.mxu0 %v643
  %v2346 = vpop.f32.mrf.mxu0
  %v2347 = vadd.f32 %v2304, %v2346
  %v2348 = vpop.f32.mrf.mxu0
  %v2349 = vadd.f32 %v2306, %v2348
  %2350 = vmatmul.bf16.gmra.mxu0 %v656
  %v2351 = vpop.f32.mrf.mxu0
  %v2352 = vadd.f32 %v2309, %v2351
  %v2353 = vpop.f32.mrf.mxu0
  %v2354 = vadd.f32 %v2311, %v2353
  %2355 = vmatmul.bf16.gmra.mxu0 %v669
  %v2356 = vpop.f32.mrf.mxu0
  %v2357 = vadd.f32 %v2314, %v2356
  %v2358 = vpop.f32.mrf.mxu0
  %2359 = vdwg.mxu0
  %2360 = vmatpush.bf16.msra.mxu0 %v1400
  %2361 = vmatpush.bf16.msra.mxu0 %v1398
  %2362 = vmatpush.bf16.msra.mxu0 %v1396
  %2363 = vmatpush.bf16.msra.mxu0 %v1394
  %2364 = vmatpush.bf16.msra.mxu0 %v1392
  %2365 = vmatpush.bf16.msra.mxu0 %v1390
  %2366 = vmatpush.bf16.msra.mxu0 %v1388
  %2367 = vmatpush.bf16.msra.mxu0 %v1386
  %2368 = vmatmul.bf16.gmra.mxu0 %v579
  %v2369 = vpop.f32.mrf.mxu0
  %v2370 = vadd.f32 %v316, %v2369
  %v2371 = vpop.f32.mrf.mxu0
  %v2372 = vadd.f32 %v316, %v2371
  %2373 = vmatmul.bf16.gmra.mxu0 %v592
  %v2374 = vpop.f32.mrf.mxu0
  %v2375 = vadd.f32 %v316, %v2374
  %v2376 = vpop.f32.mrf.mxu0
  %v2377 = vadd.f32 %v316, %v2376
  %2378 = vmatmul.bf16.gmra.mxu0 %v605
  %v2379 = vpop.f32.mrf.mxu0
  %v2380 = vadd.f32 %v316, %v2379
  %v2381 = vpop.f32.mrf.mxu0
  %v2382 = vadd.f32 %v316, %v2381
  %2383 = vmatmul.bf16.gmra.mxu0 %v618
  %v2384 = vpop.f32.mrf.mxu0
  %v2385 = vadd.f32 %v316, %v2384
  %v2386 = vpop.f32.mrf.mxu0
  %v2387 = vadd.f32 %v316, %v2386
  %2388 = vmatmul.bf16.gmra.mxu0 %v631
  %v2389 = vpop.f32.mrf.mxu0
  %v2390 = vadd.f32 %v316, %v2389
  %v2391 = vpop.f32.mrf.mxu0
  %v2392 = vadd.f32 %v316, %v2391
  %2393 = vmatmul.bf16.gmra.mxu0 %v644
  %v2394 = vpop.f32.mrf.mxu0
  %v2395 = vadd.f32 %v316, %v2394
  %v2396 = vpop.f32.mrf.mxu0
  %v2397 = vadd.f32 %v316, %v2396
  %2398 = vmatmul.bf16.gmra.mxu0 %v657
  %v2399 = vpop.f32.mrf.mxu0
  %v2400 = vadd.f32 %v316, %v2399
  %v2401 = vpop.f32.mrf.mxu0
  %2402 = vdwg.mxu0
  %2403 = vmatpush.bf16.msra.mxu0 %v1416
  %2404 = vmatpush.bf16.msra.mxu0 %v1414
  %2405 = vmatpush.bf16.msra.mxu0 %v1412
  %2406 = vmatpush.bf16.msra.mxu0 %v1410
  %2407 = vmatpush.bf16.msra.mxu0 %v1408
  %2408 = vmatpush.bf16.msra.mxu0 %v1406
  %2409 = vmatpush.bf16.msra.mxu0 %v1404
  %2410 = vmatpush.bf16.msra.mxu0 %v1402
  %2411 = vmatmul.bf16.gmra.mxu0 %v580
  %v2412 = vpop.f32.mrf.mxu0
  %v2413 = vadd.f32 %v2370, %v2412
  %v2414 = vpop.f32.mrf.mxu0
  %v2415 = vadd.f32 %v2372, %v2414
  %2416 = vmatmul.bf16.gmra.mxu0 %v593
  %v2417 = vpop.f32.mrf.mxu0
  %v2418 = vadd.f32 %v2375, %v2417
  %v2419 = vpop.f32.mrf.mxu0
  %v2420 = vadd.f32 %v2377, %v2419
  %2421 = vmatmul.bf16.gmra.mxu0 %v606
  %v2422 = vpop.f32.mrf.mxu0
  %v2423 = vadd.f32 %v2380, %v2422
  %v2424 = vpop.f32.mrf.mxu0
  %v2425 = vadd.f32 %v2382, %v2424
  %2426 = vmatmul.bf16.gmra.mxu0 %v619
  %v2427 = vpop.f32.mrf.mxu0
  %v2428 = vadd.f32 %v2385, %v2427
  %v2429 = vpop.f32.mrf.mxu0
  %v2430 = vadd.f32 %v2387, %v2429
  %2431 = vmatmul.bf16.gmra.mxu0 %v632
  %v2432 = vpop.f32.mrf.mxu0
  %v2433 = vadd.f32 %v2390, %v2432
  %v2434 = vpop.f32.mrf.mxu0
  %v2435 = vadd.f32 %v2392, %v2434
  %2436 = vmatmul.bf16.gmra.mxu0 %v645
  %v2437 = vpop.f32.mrf.mxu0
  %v2438 = vadd.f32 %v2395, %v2437
  %v2439 = vpop.f32.mrf.mxu0
  %v2440 = vadd.f32 %v2397, %v2439
  %2441 = vmatmul.bf16.gmra.mxu0 %v658
  %v2442 = vpop.f32.mrf.mxu0
  %v2443 = vadd.f32 %v2400, %v2442
  %v2444 = vpop.f32.mrf.mxu0
  %2445 = vdwg.mxu0
  %2446 = vmatpush.bf16.msra.mxu0 %v1432
  %2447 = vmatpush.bf16.msra.mxu0 %v1430
  %2448 = vmatpush.bf16.msra.mxu0 %v1428
  %2449 = vmatpush.bf16.msra.mxu0 %v1426
  %2450 = vmatpush.bf16.msra.mxu0 %v1424
  %2451 = vmatpush.bf16.msra.mxu0 %v1422
  %2452 = vmatpush.bf16.msra.mxu0 %v1420
  %2453 = vmatpush.bf16.msra.mxu0 %v1418
  %2454 = vmatmul.bf16.gmra.mxu0 %v581
  %v2455 = vpop.f32.mrf.mxu0
  %v2456 = vadd.f32 %v2413, %v2455
  %v2457 = vpop.f32.mrf.mxu0
  %v2458 = vadd.f32 %v2415, %v2457
  %2459 = vmatmul.bf16.gmra.mxu0 %v594
  %v2460 = vpop.f32.mrf.mxu0
  %v2461 = vadd.f32 %v2418, %v2460
  %v2462 = vpop.f32.mrf.mxu0
  %v2463 = vadd.f32 %v2420, %v2462
  %2464 = vmatmul.bf16.gmra.mxu0 %v607
  %v2465 = vpop.f32.mrf.mxu0
  %v2466 = vadd.f32 %v2423, %v2465
  %v2467 = vpop.f32.mrf.mxu0
  %v2468 = vadd.f32 %v2425, %v2467
  %2469 = vmatmul.bf16.gmra.mxu0 %v620
  %v2470 = vpop.f32.mrf.mxu0
  %v2471 = vadd.f32 %v2428, %v2470
  %v2472 = vpop.f32.mrf.mxu0
  %v2473 = vadd.f32 %v2430, %v2472
  %2474 = vmatmul.bf16.gmra.mxu0 %v633
  %v2475 = vpop.f32.mrf.mxu0
  %v2476 = vadd.f32 %v2433, %v2475
  %v2477 = vpop.f32.mrf.mxu0
  %v2478 = vadd.f32 %v2435, %v2477
  %2479 = vmatmul.bf16.gmra.mxu0 %v646
  %v2480 = vpop.f32.mrf.mxu0
  %v2481 = vadd.f32 %v2438, %v2480
  %v2482 = vpop.f32.mrf.mxu0
  %v2483 = vadd.f32 %v2440, %v2482
  %2484 = vmatmul.bf16.gmra.mxu0 %v659
  %v2485 = vpop.f32.mrf.mxu0
  %v2486 = vadd.f32 %v2443, %v2485
  %v2487 = vpop.f32.mrf.mxu0
  %2488 = vdwg.mxu0
  %2489 = vmatpush.bf16.msra.mxu0 %v1448
  %2490 = vmatpush.bf16.msra.mxu0 %v1446
  %2491 = vmatpush.bf16.msra.mxu0 %v1444
  %2492 = vmatpush.bf16.msra.mxu0 %v1442
  %2493 = vmatpush.bf16.msra.mxu0 %v1440
  %2494 = vmatpush.bf16.msra.mxu0 %v1438
  %2495 = vmatpush.bf16.msra.mxu0 %v1436
  %2496 = vmatpush.bf16.msra.mxu0 %v1434
  %2497 = vmatmul.bf16.gmra.mxu0 %v582
  %v2498 = vpop.f32.mrf.mxu0
  %v2499 = vadd.f32 %v2456, %v2498
  %v2500 = vpop.f32.mrf.mxu0
  %v2501 = vadd.f32 %v2458, %v2500
  %2502 = vmatmul.bf16.gmra.mxu0 %v595
  %v2503 = vpop.f32.mrf.mxu0
  %v2504 = vadd.f32 %v2461, %v2503
  %v2505 = vpop.f32.mrf.mxu0
  %v2506 = vadd.f32 %v2463, %v2505
  %2507 = vmatmul.bf16.gmra.mxu0 %v608
  %v2508 = vpop.f32.mrf.mxu0
  %v2509 = vadd.f32 %v2466, %v2508
  %v2510 = vpop.f32.mrf.mxu0
  %v2511 = vadd.f32 %v2468, %v2510
  %2512 = vmatmul.bf16.gmra.mxu0 %v621
  %v2513 = vpop.f32.mrf.mxu0
  %v2514 = vadd.f32 %v2471, %v2513
  %v2515 = vpop.f32.mrf.mxu0
  %v2516 = vadd.f32 %v2473, %v2515
  %2517 = vmatmul.bf16.gmra.mxu0 %v634
  %v2518 = vpop.f32.mrf.mxu0
  %v2519 = vadd.f32 %v2476, %v2518
  %v2520 = vpop.f32.mrf.mxu0
  %v2521 = vadd.f32 %v2478, %v2520
  %2522 = vmatmul.bf16.gmra.mxu0 %v647
  %v2523 = vpop.f32.mrf.mxu0
  %v2524 = vadd.f32 %v2481, %v2523
  %v2525 = vpop.f32.mrf.mxu0
  %v2526 = vadd.f32 %v2483, %v2525
  %2527 = vmatmul.bf16.gmra.mxu0 %v660
  %v2528 = vpop.f32.mrf.mxu0
  %v2529 = vadd.f32 %v2486, %v2528
  %v2530 = vpop.f32.mrf.mxu0
  %2531 = vdwg.mxu0
  %2532 = vmatpush.bf16.msra.mxu0 %v1464
  %2533 = vmatpush.bf16.msra.mxu0 %v1462
  %2534 = vmatpush.bf16.msra.mxu0 %v1460
  %2535 = vmatpush.bf16.msra.mxu0 %v1458
  %2536 = vmatpush.bf16.msra.mxu0 %v1456
  %2537 = vmatpush.bf16.msra.mxu0 %v1454
  %2538 = vmatpush.bf16.msra.mxu0 %v1452
  %2539 = vmatpush.bf16.msra.mxu0 %v1450
  %2540 = vmatmul.bf16.gmra.mxu0 %v583
  %v2541 = vpop.f32.mrf.mxu0
  %v2542 = vadd.f32 %v2499, %v2541
  %v2543 = vpop.f32.mrf.mxu0
  %v2544 = vadd.f32 %v2501, %v2543
  %2545 = vmatmul.bf16.gmra.mxu0 %v596
  %v2546 = vpop.f32.mrf.mxu0
  %v2547 = vadd.f32 %v2504, %v2546
  %v2548 = vpop.f32.mrf.mxu0
  %v2549 = vadd.f32 %v2506, %v2548
  %2550 = vmatmul.bf16.gmra.mxu0 %v609
  %v2551 = vpop.f32.mrf.mxu0
  %v2552 = vadd.f32 %v2509, %v2551
  %v2553 = vpop.f32.mrf.mxu0
  %v2554 = vadd.f32 %v2511, %v2553
  %2555 = vmatmul.bf16.gmra.mxu0 %v622
  %v2556 = vpop.f32.mrf.mxu0
  %v2557 = vadd.f32 %v2514, %v2556
  %v2558 = vpop.f32.mrf.mxu0
  %v2559 = vadd.f32 %v2516, %v2558
  %2560 = vmatmul.bf16.gmra.mxu0 %v635
  %v2561 = vpop.f32.mrf.mxu0
  %v2562 = vadd.f32 %v2519, %v2561
  %v2563 = vpop.f32.mrf.mxu0
  %v2564 = vadd.f32 %v2521, %v2563
  %2565 = vmatmul.bf16.gmra.mxu0 %v648
  %v2566 = vpop.f32.mrf.mxu0
  %v2567 = vadd.f32 %v2524, %v2566
  %v2568 = vpop.f32.mrf.mxu0
  %v2569 = vadd.f32 %v2526, %v2568
  %2570 = vmatmul.bf16.gmra.mxu0 %v661
  %v2571 = vpop.f32.mrf.mxu0
  %v2572 = vadd.f32 %v2529, %v2571
  %v2573 = vpop.f32.mrf.mxu0
  %2574 = vdwg.mxu0
  %2575 = vmatpush.bf16.msra.mxu0 %v1480
  %2576 = vmatpush.bf16.msra.mxu0 %v1478
  %2577 = vmatpush.bf16.msra.mxu0 %v1476
  %2578 = vmatpush.bf16.msra.mxu0 %v1474
  %2579 = vmatpush.bf16.msra.mxu0 %v1472
  %2580 = vmatpush.bf16.msra.mxu0 %v1470
  %2581 = vmatpush.bf16.msra.mxu0 %v1468
  %2582 = vmatpush.bf16.msra.mxu0 %v1466
  %2583 = vmatmul.bf16.gmra.mxu0 %v584
  %v2584 = vpop.f32.mrf.mxu0
  %v2585 = vadd.f32 %v2542, %v2584
  %v2586 = vpop.f32.mrf.mxu0
  %v2587 = vadd.f32 %v2544, %v2586
  %2588 = vmatmul.bf16.gmra.mxu0 %v597
  %v2589 = vpop.f32.mrf.mxu0
  %v2590 = vadd.f32 %v2547, %v2589
  %v2591 = vpop.f32.mrf.mxu0
  %v2592 = vadd.f32 %v2549, %v2591
  %2593 = vmatmul.bf16.gmra.mxu0 %v610
  %v2594 = vpop.f32.mrf.mxu0
  %v2595 = vadd.f32 %v2552, %v2594
  %v2596 = vpop.f32.mrf.mxu0
  %v2597 = vadd.f32 %v2554, %v2596
  %2598 = vmatmul.bf16.gmra.mxu0 %v623
  %v2599 = vpop.f32.mrf.mxu0
  %v2600 = vadd.f32 %v2557, %v2599
  %v2601 = vpop.f32.mrf.mxu0
  %v2602 = vadd.f32 %v2559, %v2601
  %2603 = vmatmul.bf16.gmra.mxu0 %v636
  %v2604 = vpop.f32.mrf.mxu0
  %v2605 = vadd.f32 %v2562, %v2604
  %v2606 = vpop.f32.mrf.mxu0
  %v2607 = vadd.f32 %v2564, %v2606
  %2608 = vmatmul.bf16.gmra.mxu0 %v649
  %v2609 = vpop.f32.mrf.mxu0
  %v2610 = vadd.f32 %v2567, %v2609
  %v2611 = vpop.f32.mrf.mxu0
  %v2612 = vadd.f32 %v2569, %v2611
  %2613 = vmatmul.bf16.gmra.mxu0 %v662
  %v2614 = vpop.f32.mrf.mxu0
  %v2615 = vadd.f32 %v2572, %v2614
  %v2616 = vpop.f32.mrf.mxu0
  %2617 = vdwg.mxu0
  %2618 = vmatpush.bf16.msra.mxu0 %v1496
  %2619 = vmatpush.bf16.msra.mxu0 %v1494
  %2620 = vmatpush.bf16.msra.mxu0 %v1492
  %2621 = vmatpush.bf16.msra.mxu0 %v1490
  %2622 = vmatpush.bf16.msra.mxu0 %v1488
  %2623 = vmatpush.bf16.msra.mxu0 %v1486
  %2624 = vmatpush.bf16.msra.mxu0 %v1484
  %2625 = vmatpush.bf16.msra.mxu0 %v1482
  %2626 = vmatmul.bf16.gmra.mxu0 %v585
  %v2627 = vpop.f32.mrf.mxu0
  %v2628 = vadd.f32 %v2585, %v2627
  %v2629 = vpop.f32.mrf.mxu0
  %v2630 = vadd.f32 %v2587, %v2629
  %2631 = vmatmul.bf16.gmra.mxu0 %v598
  %v2632 = vpop.f32.mrf.mxu0
  %v2633 = vadd.f32 %v2590, %v2632
  %v2634 = vpop.f32.mrf.mxu0
  %v2635 = vadd.f32 %v2592, %v2634
  %2636 = vmatmul.bf16.gmra.mxu0 %v611
  %v2637 = vpop.f32.mrf.mxu0
  %v2638 = vadd.f32 %v2595, %v2637
  %v2639 = vpop.f32.mrf.mxu0
  %v2640 = vadd.f32 %v2597, %v2639
  %2641 = vmatmul.bf16.gmra.mxu0 %v624
  %v2642 = vpop.f32.mrf.mxu0
  %v2643 = vadd.f32 %v2600, %v2642
  %v2644 = vpop.f32.mrf.mxu0
  %v2645 = vadd.f32 %v2602, %v2644
  %2646 = vmatmul.bf16.gmra.mxu0 %v637
  %v2647 = vpop.f32.mrf.mxu0
  %v2648 = vadd.f32 %v2605, %v2647
  %v2649 = vpop.f32.mrf.mxu0
  %v2650 = vadd.f32 %v2607, %v2649
  %2651 = vmatmul.bf16.gmra.mxu0 %v650
  %v2652 = vpop.f32.mrf.mxu0
  %v2653 = vadd.f32 %v2610, %v2652
  %v2654 = vpop.f32.mrf.mxu0
  %v2655 = vadd.f32 %v2612, %v2654
  %2656 = vmatmul.bf16.gmra.mxu0 %v663
  %v2657 = vpop.f32.mrf.mxu0
  %v2658 = vadd.f32 %v2615, %v2657
  %v2659 = vpop.f32.mrf.mxu0
  %2660 = vdwg.mxu0
  %2661 = vmatpush.bf16.msra.mxu0 %v1512
  %2662 = vmatpush.bf16.msra.mxu0 %v1510
  %2663 = vmatpush.bf16.msra.mxu0 %v1508
  %2664 = vmatpush.bf16.msra.mxu0 %v1506
  %2665 = vmatpush.bf16.msra.mxu0 %v1504
  %2666 = vmatpush.bf16.msra.mxu0 %v1502
  %2667 = vmatpush.bf16.msra.mxu0 %v1500
  %2668 = vmatpush.bf16.msra.mxu0 %v1498
  %2669 = vmatmul.bf16.gmra.mxu0 %v586
  %v2670 = vpop.f32.mrf.mxu0
  %v2671 = vadd.f32 %v2628, %v2670
  %v2672 = vpop.f32.mrf.mxu0
  %v2673 = vadd.f32 %v2630, %v2672
  %2674 = vmatmul.bf16.gmra.mxu0 %v599
  %v2675 = vpop.f32.mrf.mxu0
  %v2676 = vadd.f32 %v2633, %v2675
  %v2677 = vpop.f32.mrf.mxu0
  %v2678 = vadd.f32 %v2635, %v2677
  %2679 = vmatmul.bf16.gmra.mxu0 %v612
  %v2680 = vpop.f32.mrf.mxu0
  %v2681 = vadd.f32 %v2638, %v2680
  %v2682 = vpop.f32.mrf.mxu0
  %v2683 = vadd.f32 %v2640, %v2682
  %2684 = vmatmul.bf16.gmra.mxu0 %v625
  %v2685 = vpop.f32.mrf.mxu0
  %v2686 = vadd.f32 %v2643, %v2685
  %v2687 = vpop.f32.mrf.mxu0
  %v2688 = vadd.f32 %v2645, %v2687
  %2689 = vmatmul.bf16.gmra.mxu0 %v638
  %v2690 = vpop.f32.mrf.mxu0
  %v2691 = vadd.f32 %v2648, %v2690
  %v2692 = vpop.f32.mrf.mxu0
  %v2693 = vadd.f32 %v2650, %v2692
  %2694 = vmatmul.bf16.gmra.mxu0 %v651
  %v2695 = vpop.f32.mrf.mxu0
  %v2696 = vadd.f32 %v2653, %v2695
  %v2697 = vpop.f32.mrf.mxu0
  %v2698 = vadd.f32 %v2655, %v2697
  %2699 = vmatmul.bf16.gmra.mxu0 %v664
  %v2700 = vpop.f32.mrf.mxu0
  %v2701 = vadd.f32 %v2658, %v2700
  %v2702 = vpop.f32.mrf.mxu0
  %2703 = vdwg.mxu0
  %2704 = vmatpush.bf16.msra.mxu0 %v1528
  %2705 = vmatpush.bf16.msra.mxu0 %v1526
  %2706 = vmatpush.bf16.msra.mxu0 %v1524
  %2707 = vmatpush.bf16.msra.mxu0 %v1522
  %2708 = vmatpush.bf16.msra.mxu0 %v1520
  %2709 = vmatpush.bf16.msra.mxu0 %v1518
  %2710 = vmatpush.bf16.msra.mxu0 %v1516
  %2711 = vmatpush.bf16.msra.mxu0 %v1514
  %2712 = vmatmul.bf16.gmra.mxu0 %v587
  %v2713 = vpop.f32.mrf.mxu0
  %v2714 = vadd.f32 %v2671, %v2713
  %v2715 = vpop.f32.mrf.mxu0
  %v2716 = vadd.f32 %v2673, %v2715
  %2717 = vmatmul.bf16.gmra.mxu0 %v600
  %v2718 = vpop.f32.mrf.mxu0
  %v2719 = vadd.f32 %v2676, %v2718
  %v2720 = vpop.f32.mrf.mxu0
  %v2721 = vadd.f32 %v2678, %v2720
  %2722 = vmatmul.bf16.gmra.mxu0 %v613
  %v2723 = vpop.f32.mrf.mxu0
  %v2724 = vadd.f32 %v2681, %v2723
  %v2725 = vpop.f32.mrf.mxu0
  %v2726 = vadd.f32 %v2683, %v2725
  %2727 = vmatmul.bf16.gmra.mxu0 %v626
  %v2728 = vpop.f32.mrf.mxu0
  %v2729 = vadd.f32 %v2686, %v2728
  %v2730 = vpop.f32.mrf.mxu0
  %v2731 = vadd.f32 %v2688, %v2730
  %2732 = vmatmul.bf16.gmra.mxu0 %v639
  %v2733 = vpop.f32.mrf.mxu0
  %v2734 = vadd.f32 %v2691, %v2733
  %v2735 = vpop.f32.mrf.mxu0
  %v2736 = vadd.f32 %v2693, %v2735
  %2737 = vmatmul.bf16.gmra.mxu0 %v652
  %v2738 = vpop.f32.mrf.mxu0
  %v2739 = vadd.f32 %v2696, %v2738
  %v2740 = vpop.f32.mrf.mxu0
  %v2741 = vadd.f32 %v2698, %v2740
  %2742 = vmatmul.bf16.gmra.mxu0 %v665
  %v2743 = vpop.f32.mrf.mxu0
  %v2744 = vadd.f32 %v2701, %v2743
  %v2745 = vpop.f32.mrf.mxu0
  %2746 = vdwg.mxu0
  %2747 = vmatpush.bf16.msra.mxu0 %v1544
  %2748 = vmatpush.bf16.msra.mxu0 %v1542
  %2749 = vmatpush.bf16.msra.mxu0 %v1540
  %2750 = vmatpush.bf16.msra.mxu0 %v1538
  %2751 = vmatpush.bf16.msra.mxu0 %v1536
  %2752 = vmatpush.bf16.msra.mxu0 %v1534
  %2753 = vmatpush.bf16.msra.mxu0 %v1532
  %2754 = vmatpush.bf16.msra.mxu0 %v1530
  %2755 = vmatmul.bf16.gmra.mxu0 %v588
  %v2756 = vpop.f32.mrf.mxu0
  %v2757 = vadd.f32 %v2714, %v2756
  %v2758 = vpop.f32.mrf.mxu0
  %v2759 = vadd.f32 %v2716, %v2758
  %2760 = vmatmul.bf16.gmra.mxu0 %v601
  %v2761 = vpop.f32.mrf.mxu0
  %v2762 = vadd.f32 %v2719, %v2761
  %v2763 = vpop.f32.mrf.mxu0
  %v2764 = vadd.f32 %v2721, %v2763
  %2765 = vmatmul.bf16.gmra.mxu0 %v614
  %v2766 = vpop.f32.mrf.mxu0
  %v2767 = vadd.f32 %v2724, %v2766
  %v2768 = vpop.f32.mrf.mxu0
  %v2769 = vadd.f32 %v2726, %v2768
  %2770 = vmatmul.bf16.gmra.mxu0 %v627
  %v2771 = vpop.f32.mrf.mxu0
  %v2772 = vadd.f32 %v2729, %v2771
  %v2773 = vpop.f32.mrf.mxu0
  %v2774 = vadd.f32 %v2731, %v2773
  %2775 = vmatmul.bf16.gmra.mxu0 %v640
  %v2776 = vpop.f32.mrf.mxu0
  %v2777 = vadd.f32 %v2734, %v2776
  %v2778 = vpop.f32.mrf.mxu0
  %v2779 = vadd.f32 %v2736, %v2778
  %2780 = vmatmul.bf16.gmra.mxu0 %v653
  %v2781 = vpop.f32.mrf.mxu0
  %v2782 = vadd.f32 %v2739, %v2781
  %v2783 = vpop.f32.mrf.mxu0
  %v2784 = vadd.f32 %v2741, %v2783
  %2785 = vmatmul.bf16.gmra.mxu0 %v666
  %v2786 = vpop.f32.mrf.mxu0
  %v2787 = vadd.f32 %v2744, %v2786
  %v2788 = vpop.f32.mrf.mxu0
  %2789 = vdwg.mxu0
  %2790 = vmatpush.bf16.msra.mxu0 %v1560
  %2791 = vmatpush.bf16.msra.mxu0 %v1558
  %2792 = vmatpush.bf16.msra.mxu0 %v1556
  %2793 = vmatpush.bf16.msra.mxu0 %v1554
  %2794 = vmatpush.bf16.msra.mxu0 %v1552
  %2795 = vmatpush.bf16.msra.mxu0 %v1550
  %2796 = vmatpush.bf16.msra.mxu0 %v1548
  %2797 = vmatpush.bf16.msra.mxu0 %v1546
  %2798 = vmatmul.bf16.gmra.mxu0 %v589
  %v2799 = vpop.f32.mrf.mxu0
  %v2800 = vadd.f32 %v2757, %v2799
  %v2801 = vpop.f32.mrf.mxu0
  %v2802 = vadd.f32 %v2759, %v2801
  %2803 = vmatmul.bf16.gmra.mxu0 %v602
  %v2804 = vpop.f32.mrf.mxu0
  %v2805 = vadd.f32 %v2762, %v2804
  %v2806 = vpop.f32.mrf.mxu0
  %v2807 = vadd.f32 %v2764, %v2806
  %2808 = vmatmul.bf16.gmra.mxu0 %v615
  %v2809 = vpop.f32.mrf.mxu0
  %v2810 = vadd.f32 %v2767, %v2809
  %v2811 = vpop.f32.mrf.mxu0
  %v2812 = vadd.f32 %v2769, %v2811
  %2813 = vmatmul.bf16.gmra.mxu0 %v628
  %v2814 = vpop.f32.mrf.mxu0
  %v2815 = vadd.f32 %v2772, %v2814
  %v2816 = vpop.f32.mrf.mxu0
  %v2817 = vadd.f32 %v2774, %v2816
  %2818 = vmatmul.bf16.gmra.mxu0 %v641
  %v2819 = vpop.f32.mrf.mxu0
  %v2820 = vadd.f32 %v2777, %v2819
  %v2821 = vpop.f32.mrf.mxu0
  %v2822 = vadd.f32 %v2779, %v2821
  %2823 = vmatmul.bf16.gmra.mxu0 %v654
  %v2824 = vpop.f32.mrf.mxu0
  %v2825 = vadd.f32 %v2782, %v2824
  %v2826 = vpop.f32.mrf.mxu0
  %v2827 = vadd.f32 %v2784, %v2826
  %2828 = vmatmul.bf16.gmra.mxu0 %v667
  %v2829 = vpop.f32.mrf.mxu0
  %v2830 = vadd.f32 %v2787, %v2829
  %v2831 = vpop.f32.mrf.mxu0
  %2832 = vdwg.mxu0
  %2833 = vmatpush.bf16.msra.mxu0 %v1576
  %2834 = vmatpush.bf16.msra.mxu0 %v1574
  %2835 = vmatpush.bf16.msra.mxu0 %v1572
  %2836 = vmatpush.bf16.msra.mxu0 %v1570
  %2837 = vmatpush.bf16.msra.mxu0 %v1568
  %2838 = vmatpush.bf16.msra.mxu0 %v1566
  %2839 = vmatpush.bf16.msra.mxu0 %v1564
  %2840 = vmatpush.bf16.msra.mxu0 %v1562
  %2841 = vmatmul.bf16.gmra.mxu0 %v590
  %v2842 = vpop.f32.mrf.mxu0
  %v2843 = vadd.f32 %v2800, %v2842
  %v2844 = vpop.f32.mrf.mxu0
  %v2845 = vadd.f32 %v2802, %v2844
  %2846 = vmatmul.bf16.gmra.mxu0 %v603
  %v2847 = vpop.f32.mrf.mxu0
  %v2848 = vadd.f32 %v2805, %v2847
  %v2849 = vpop.f32.mrf.mxu0
  %v2850 = vadd.f32 %v2807, %v2849
  %2851 = vmatmul.bf16.gmra.mxu0 %v616
  %v2852 = vpop.f32.mrf.mxu0
  %v2853 = vadd.f32 %v2810, %v2852
  %v2854 = vpop.f32.mrf.mxu0
  %v2855 = vadd.f32 %v2812, %v2854
  %2856 = vmatmul.bf16.gmra.mxu0 %v629
  %v2857 = vpop.f32.mrf.mxu0
  %v2858 = vadd.f32 %v2815, %v2857
  %v2859 = vpop.f32.mrf.mxu0
  %v2860 = vadd.f32 %v2817, %v2859
  %2861 = vmatmul.bf16.gmra.mxu0 %v642
  %v2862 = vpop.f32.mrf.mxu0
  %v2863 = vadd.f32 %v2820, %v2862
  %v2864 = vpop.f32.mrf.mxu0
  %v2865 = vadd.f32 %v2822, %v2864
  %2866 = vmatmul.bf16.gmra.mxu0 %v655
  %v2867 = vpop.f32.mrf.mxu0
  %v2868 = vadd.f32 %v2825, %v2867
  %v2869 = vpop.f32.mrf.mxu0
  %v2870 = vadd.f32 %v2827, %v2869
  %2871 = vmatmul.bf16.gmra.mxu0 %v668
  %v2872 = vpop.f32.mrf.mxu0
  %v2873 = vadd.f32 %v2830, %v2872
  %v2874 = vpop.f32.mrf.mxu0
  %2875 = vdwg.mxu0
  %2876 = vmatpush.bf16.msra.mxu0 %v1592
  %2877 = vmatpush.bf16.msra.mxu0 %v1590
  %2878 = vmatpush.bf16.msra.mxu0 %v1588
  %2879 = vmatpush.bf16.msra.mxu0 %v1586
  %2880 = vmatpush.bf16.msra.mxu0 %v1584
  %2881 = vmatpush.bf16.msra.mxu0 %v1582
  %2882 = vmatpush.bf16.msra.mxu0 %v1580
  %2883 = vmatpush.bf16.msra.mxu0 %v1578
  %2884 = vmatmul.bf16.gmra.mxu0 %v591
  %v2885 = vpop.f32.mrf.mxu0
  %v2886 = vadd.f32 %v2843, %v2885
  %v2887 = vpop.f32.mrf.mxu0
  %v2888 = vadd.f32 %v2845, %v2887
  %2889 = vmatmul.bf16.gmra.mxu0 %v604
  %v2890 = vpop.f32.mrf.mxu0
  %v2891 = vadd.f32 %v2848, %v2890
  %v2892 = vpop.f32.mrf.mxu0
  %v2893 = vadd.f32 %v2850, %v2892
  %2894 = vmatmul.bf16.gmra.mxu0 %v617
  %v2895 = vpop.f32.mrf.mxu0
  %v2896 = vadd.f32 %v2853, %v2895
  %v2897 = vpop.f32.mrf.mxu0
  %v2898 = vadd.f32 %v2855, %v2897
  %2899 = vmatmul.bf16.gmra.mxu0 %v630
  %v2900 = vpop.f32.mrf.mxu0
  %v2901 = vadd.f32 %v2858, %v2900
  %v2902 = vpop.f32.mrf.mxu0
  %v2903 = vadd.f32 %v2860, %v2902
  %2904 = vmatmul.bf16.gmra.mxu0 %v643
  %v2905 = vpop.f32.mrf.mxu0
  %v2906 = vadd.f32 %v2863, %v2905
  %v2907 = vpop.f32.mrf.mxu0
  %v2908 = vadd.f32 %v2865, %v2907
  %2909 = vmatmul.bf16.gmra.mxu0 %v656
  %v2910 = vpop.f32.mrf.mxu0
  %v2911 = vadd.f32 %v2868, %v2910
  %v2912 = vpop.f32.mrf.mxu0
  %v2913 = vadd.f32 %v2870, %v2912
  %2914 = vmatmul.bf16.gmra.mxu0 %v669
  %v2915 = vpop.f32.mrf.mxu0
  %v2916 = vadd.f32 %v2873, %v2915
  %v2917 = vpop.f32.mrf.mxu0
  %2918 = vdwg.mxu0
  %v2919 = vmax.f32 %v2327, 0.0
  %v2920 = vmax.f32 %v2886, 0.0
  %v2921 = vmax.f32 %v2329, 0.0
  %v2922 = vmax.f32 %v2888, 0.0
  %v2923 = vmax.f32 %v2332, 0.0
  %v2924 = vmax.f32 %v2891, 0.0
  %v2925 = vmax.f32 %v2334, 0.0
  %v2926 = vmax.f32 %v2893, 0.0
  %v2927 = vmax.f32 %v2337, 0.0
  %v2928 = vmax.f32 %v2896, 0.0
  %v2929 = vmax.f32 %v2339, 0.0
  %v2930 = vmax.f32 %v2898, 0.0
  %v2931 = vmax.f32 %v2342, 0.0
  %v2932 = vmax.f32 %v2901, 0.0
  %v2933 = vmax.f32 %v2344, 0.0
  %v2934 = vmax.f32 %v2903, 0.0
  %v2935 = vmax.f32 %v2347, 0.0
  %v2936 = vmax.f32 %v2906, 0.0
  %v2937 = vmax.f32 %v2349, 0.0
  %v2938 = vmax.f32 %v2908, 0.0
  %v2939 = vmax.f32 %v2352, 0.0
  %v2940 = vmax.f32 %v2911, 0.0
  %v2941 = vmax.f32 %v2354, 0.0
  %v2942 = vmax.f32 %v2913, 0.0
  %v2943 = vmax.f32 %v2357, 0.0
  %v2944 = vmax.f32 %v2916, 0.0
  %v2945 = vpack.c.bf16 %v2920, %v2919
  %v2946 = vpack.c.bf16 %v2922, %v2921
  %v2947 = vpack.c.bf16 %v2924, %v2923
  %v2948 = vpack.c.bf16 %v2926, %v2925
  %v2949 = vpack.c.bf16 %v2928, %v2927
  %v2950 = vpack.c.bf16 %v2930, %v2929
  %v2951 = vpack.c.bf16 %v2932, %v2931
  %v2952 = vpack.c.bf16 %v2934, %v2933
  %v2953 = vpack.c.bf16 %v2936, %v2935
  %v2954 = vpack.c.bf16 %v2938, %v2937
  %v2955 = vpack.c.bf16 %v2940, %v2939
  %v2956 = vpack.c.bf16 %v2942, %v2941
  %v2957 = vpack.c.bf16 %v2944, %v2943
  %vm2958 = vcmask 1043456
  %vm2959 = vcmask 523268
  %vm2960 = vmor %vm2959, %vm2958
  %2961 = vst.msk [vmem:[%s3] sm:$0xff] %vm2960, %v2945
  %2962 = vst.msk [vmem:[%s3 + $0x8] sm:$0xff] %vm2960, %v2946
  %2963 = vst.msk [vmem:[%s3 + $0x10] sm:$0xff] %vm2960, %v2947
  %2964 = vst.msk [vmem:[%s3 + $0x18] sm:$0xff] %vm2960, %v2948
  %2965 = vst.msk [vmem:[%s3 + $0x20] sm:$0xff] %vm2960, %v2949
  %2966 = vst.msk [vmem:[%s3 + $0x28] sm:$0xff] %vm2960, %v2950
  %2967 = vst.msk [vmem:[%s3 + $0x30] sm:$0xff] %vm2960, %v2951
  %2968 = vst.msk [vmem:[%s3 + $0x38] sm:$0xff] %vm2960, %v2952
  %2969 = vst.msk [vmem:[%s3 + $0x40] sm:$0xff] %vm2960, %v2953
  %2970 = vst.msk [vmem:[%s3 + $0x48] sm:$0xff] %vm2960, %v2954
  %2971 = vst.msk [vmem:[%s3 + $0x50] sm:$0xff] %vm2960, %v2955
  %2972 = vst.msk [vmem:[%s3 + $0x58] sm:$0xff] %vm2960, %v2956
  %vm2973 = vcmask 1040384
  %vm2974 = vcmask 520196
  %vm2975 = vmor %vm2974, %vm2973
  %2976 = vst.msk [vmem:[%s3 + $0x60] sm:$0x11] %vm2975, %v2957
  // Predicated region
  $region14: #{feature_forward.6} parent=0 // pred_check
    _
  $region15: #{feature_forward.6} parent=0 // pred_check_branch
    %2978 = sbr.rel (0) target = $region17
  $region16: #{feature_forward.6} parent=0 // pred_region
    _
  $region17: #{feature_forward.6} parent=0 // pred_fallthru
    _
  // Predicated region
  $region18: #{feature_forward.6} parent=0 // pred_check
    _
  $region19: #{feature_forward.6} parent=0 // pred_check_branch
    %2980 = sbr.rel (0) target = $region21
  $region20: #{feature_forward.6} parent=0 // pred_region
    _
  $region21: #{feature_forward.6} parent=0 // pred_fallthru
    _

// kernel: feature_forward.7
$region0: #{feature_forward.7}
  #allocation0 [shape = 'u32[]', space=smem, size = 0x4, offset = 0x4, fixed_abs, tag = 'smem constant byte address 0x4 - core index']
  #allocation1 [shape = 'u32[72,128]{1,0:T(1,128)}', space=vmem, size = 0x9000, scoped, tag = 'internal scratch']
  %s0 = inlined_call_operand.vmem [shape: bf16[18,1792], index: 0, kind: input, shape index: {}]
  %s1 = inlined_call_operand.vmem [shape: bf16[1792,384], index: 1, kind: input, shape index: {}]
  %s2 = inlined_call_operand.vmem [shape: f32[1,384], index: 2, kind: input, shape index: {}]
  %s3 = inlined_call_operand.vmem [shape: bf16[18,384], index: 3, kind: output, shape index: {}]
  %s4 = sld [smem:[#allocation0]]
  $region22: #{feature_forward.7} parent=0
    _
  %s6 = ssub.s32 1, %s4
  %s7 = scalar_select 0, %s6, %s4
  // Predicated region
  $region2: #{feature_forward.7} parent=0 // pred_check
    _
  $region3: #{feature_forward.7} parent=0 // pred_check_branch
    %9 = sbr.rel (0) target = $region5
  $region4: #{feature_forward.7} parent=0 // pred_region
    _
  $region5: #{feature_forward.7} parent=0 // pred_fallthru
    _
  // Predicated region
  $region6: #{feature_forward.7} parent=0 // pred_check
    _
  $region7: #{feature_forward.7} parent=0 // pred_check_branch
    %11 = sbr.rel (0) target = $region9
  $region8: #{feature_forward.7} parent=0 // pred_region
    _
  $region9: #{feature_forward.7} parent=0 // pred_fallthru
    _
  // Predicated region
  $region10: #{feature_forward.7} parent=0 // pred_check
    _
  $region11: #{feature_forward.7} parent=0 // pred_check_branch
    %13 = sbr.rel (0) target = $region13
  $region12: #{feature_forward.7} parent=0 // pred_region
    _
  $region13: #{feature_forward.7} parent=0 // pred_fallthru
    _
  %v14 = vld [vmem:[%s0] sm:$0xff]
  %v15 = vld [vmem:[%s0 + $0x8] sm:$0xff]
  %v16 = vld [vmem:[%s0 + $0x10] sm:$0xff]
  %v17 = vld [vmem:[%s0 + $0x18] sm:$0xff]
  %v18 = vld [vmem:[%s0 + $0x20] sm:$0xff]
  %v19 = vld [vmem:[%s0 + $0x28] sm:$0xff]
  %v20 = vld [vmem:[%s0 + $0x30] sm:$0xff]
  %v21 = vld [vmem:[%s0 + $0x38] sm:$0xff]
  %v22 = vld [vmem:[%s0 + $0x40] sm:$0xff]
  %v23 = vld [vmem:[%s0 + $0x48] sm:$0xff]
  %v24 = vld [vmem:[%s0 + $0x50] sm:$0xff]
  %v25 = vld [vmem:[%s0 + $0x58] sm:$0xff]
  %v26 = vld [vmem:[%s0 + $0x60] sm:$0xff]
  %v27 = vld [vmem:[%s0 + $0x68] sm:$0xff]
  %v28 = vld [vmem:[%s0 + $0x70] sm:$0x11]
  %v29 = vld [vmem:[%s0 + $0x78] sm:$0x11]
  %v30 = vld [vmem:[%s0 + $0x80] sm:$0x11]
  %v31 = vld [vmem:[%s0 + $0x88] sm:$0x11]
  %v32 = vld [vmem:[%s0 + $0x90] sm:$0x11]
  %v33 = vld [vmem:[%s0 + $0x98] sm:$0x11]
  %v34 = vld [vmem:[%s0 + $0xa0] sm:$0x11]
  %v35 = vld [vmem:[%s1] sm:$0xff]
  %v36 = vld [vmem:[%s1 + $0x8] sm:$0xf]
  %v37 = vld [vmem:[%s1 + $0xc] sm:$0xff]
  %v38 = vld [vmem:[%s1 + $0x14] sm:$0xf]
  %v39 = vld [vmem:[%s1 + $0x18] sm:$0xff]
  %v40 = vld [vmem:[%s1 + $0x20] sm:$0xf]
  %v41 = vld [vmem:[%s1 + $0x24] sm:$0xff]
  %v42 = vld [vmem:[%s1 + $0x2c] sm:$0xf]
  %v43 = vld [vmem:[%s1 + $0x30] sm:$0xff]
  %v44 = vld [vmem:[%s1 + $0x38] sm:$0xf]
  %v45 = vld [vmem:[%s1 + $0x3c] sm:$0xff]
  %v46 = vld [vmem:[%s1 + $0x44] sm:$0xf]
  %v47 = vld [vmem:[%s1 + $0x48] sm:$0xff]
  %v48 = vld [vmem:[%s1 + $0x50] sm:$0xf]
  %v49 = vld [vmem:[%s1 + $0x54] sm:$0xff]
  %v50 = vld [vmem:[%s1 + $0x5c] sm:$0xf]
  %v51 = vld [vmem:[%s1 + $0x60] sm:$0xff]
  %v52 = vld [vmem:[%s1 + $0x68] sm:$0xf]
  %v53 = vld [vmem:[%s1 + $0x6c] sm:$0xff]
  %v54 = vld [vmem:[%s1 + $0x74] sm:$0xf]
  %v55 = vld [vmem:[%s1 + $0x78] sm:$0xff]
  %v56 = vld [vmem:[%s1 + $0x80] sm:$0xf]
  %v57 = vld [vmem:[%s1 + $0x84] sm:$0xff]
  %v58 = vld [vmem:[%s1 + $0x8c] sm:$0xf]
  %v59 = vld [vmem:[%s1 + $0x90] sm:$0xff]
  %v60 = vld [vmem:[%s1 + $0x98] sm:$0xf]
  %v61 = vld [vmem:[%s1 + $0x9c] sm:$0xff]
  %v62 = vld [vmem:[%s1 + $0xa4] sm:$0xf]
  %v63 = vld [vmem:[%s1 + $0xa8] sm:$0xff]
  %v64 = vld [vmem:[%s1 + $0xb0] sm:$0xf]
  %v65 = vld [vmem:[%s1 + $0xb4] sm:$0xff]
  %v66 = vld [vmem:[%s1 + $0xbc] sm:$0xf]
  %v67 = vld [vmem:[%s1 + $0xc0] sm:$0xff]
  %v68 = vld [vmem:[%s1 + $0xc8] sm:$0xf]
  %v69 = vld [vmem:[%s1 + $0xcc] sm:$0xff]
  %v70 = vld [vmem:[%s1 + $0xd4] sm:$0xf]
  %v71 = vld [vmem:[%s1 + $0xd8] sm:$0xff]
  %v72 = vld [vmem:[%s1 + $0xe0] sm:$0xf]
  %v73 = vld [vmem:[%s1 + $0xe4] sm:$0xff]
  %v74 = vld [vmem:[%s1 + $0xec] sm:$0xf]
  %v75 = vld [vmem:[%s1 + $0xf0] sm:$0xff]
  %v76 = vld [vmem:[%s1 + $0xf8] sm:$0xf]
  %v77 = vld [vmem:[%s1 + $0xfc] sm:$0xff]
  %v78 = vld [vmem:[%s1 + $0x104] sm:$0xf]
  %v79 = vld [vmem:[%s1 + $0x108] sm:$0xff]
  %v80 = vld [vmem:[%s1 + $0x110] sm:$0xf]
  %v81 = vld [vmem:[%s1 + $0x114] sm:$0xff]
  %v82 = vld [vmem:[%s1 + $0x11c] sm:$0xf]
  %v83 = vld [vmem:[%s1 + $0x120] sm:$0xff]
  %v84 = vld [vmem:[%s1 + $0x128] sm:$0xf]
  %v85 = vld [vmem:[%s1 + $0x12c] sm:$0xff]
  %v86 = vld [vmem:[%s1 + $0x134] sm:$0xf]
  %v87 = vld [vmem:[%s1 + $0x138] sm:$0xff]
  %v88 = vld [vmem:[%s1 + $0x140] sm:$0xf]
  %v89 = vld [vmem:[%s1 + $0x144] sm:$0xff]
  %v90 = vld [vmem:[%s1 + $0x14c] sm:$0xf]
  %v91 = vld [vmem:[%s1 + $0x150] sm:$0xff]
  %v92 = vld [vmem:[%s1 + $0x158] sm:$0xf]
  %v93 = vld [vmem:[%s1 + $0x15c] sm:$0xff]
  %v94 = vld [vmem:[%s1 + $0x164] sm:$0xf]
  %v95 = vld [vmem:[%s1 + $0x168] sm:$0xff]
  %v96 = vld [vmem:[%s1 + $0x170] sm:$0xf]
  %v97 = vld [vmem:[%s1 + $0x174] sm:$0xff]
  %v98 = vld [vmem:[%s1 + $0x17c] sm:$0xf]
  %v99 = vld [vmem:[%s1 + $0x180] sm:$0xff]
  %v100 = vld [vmem:[%s1 + $0x188] sm:$0xf]
  %v101 = vld [vmem:[%s1 + $0x18c] sm:$0xff]
  %v102 = vld [vmem:[%s1 + $0x194] sm:$0xf]
  %v103 = vld [vmem:[%s1 + $0x198] sm:$0xff]
  %v104 = vld [vmem:[%s1 + $0x1a0] sm:$0xf]
  %v105 = vld [vmem:[%s1 + $0x1a4] sm:$0xff]
  %v106 = vld [vmem:[%s1 + $0x1ac] sm:$0xf]
  %v107 = vld [vmem:[%s1 + $0x1b0] sm:$0xff]
  %v108 = vld [vmem:[%s1 + $0x1b8] sm:$0xf]
  %v109 = vld [vmem:[%s1 + $0x1bc] sm:$0xff]
  %v110 = vld [vmem:[%s1 + $0x1c4] sm:$0xf]
  %v111 = vld [vmem:[%s1 + $0x1c8] sm:$0xff]
  %v112 = vld [vmem:[%s1 + $0x1d0] sm:$0xf]
  %v113 = vld [vmem:[%s1 + $0x1d4] sm:$0xff]
  %v114 = vld [vmem:[%s1 + $0x1dc] sm:$0xf]
  %v115 = vld [vmem:[%s1 + $0x1e0] sm:$0xff]
  %v116 = vld [vmem:[%s1 + $0x1e8] sm:$0xf]
  %v117 = vld [vmem:[%s1 + $0x1ec] sm:$0xff]
  %v118 = vld [vmem:[%s1 + $0x1f4] sm:$0xf]
  %v119 = vld [vmem:[%s1 + $0x1f8] sm:$0xff]
  %v120 = vld [vmem:[%s1 + $0x200] sm:$0xf]
  %v121 = vld [vmem:[%s1 + $0x204] sm:$0xff]
  %v122 = vld [vmem:[%s1 + $0x20c] sm:$0xf]
  %v123 = vld [vmem:[%s1 + $0x210] sm:$0xff]
  %v124 = vld [vmem:[%s1 + $0x218] sm:$0xf]
  %v125 = vld [vmem:[%s1 + $0x21c] sm:$0xff]
  %v126 = vld [vmem:[%s1 + $0x224] sm:$0xf]
  %v127 = vld [vmem:[%s1 + $0x228] sm:$0xff]
  %v128 = vld [vmem:[%s1 + $0x230] sm:$0xf]
  %v129 = vld [vmem:[%s1 + $0x234] sm:$0xff]
  %v130 = vld [vmem:[%s1 + $0x23c] sm:$0xf]
  %v131 = vld [vmem:[%s1 + $0x240] sm:$0xff]
  %v132 = vld [vmem:[%s1 + $0x248] sm:$0xf]
  %v133 = vld [vmem:[%s1 + $0x24c] sm:$0xff]
  %v134 = vld [vmem:[%s1 + $0x254] sm:$0xf]
  %v135 = vld [vmem:[%s1 + $0x258] sm:$0xff]
  %v136 = vld [vmem:[%s1 + $0x260] sm:$0xf]
  %v137 = vld [vmem:[%s1 + $0x264] sm:$0xff]
  %v138 = vld [vmem:[%s1 + $0x26c] sm:$0xf]
  %v139 = vld [vmem:[%s1 + $0x270] sm:$0xff]
  %v140 = vld [vmem:[%s1 + $0x278] sm:$0xf]
  %v141 = vld [vmem:[%s1 + $0x27c] sm:$0xff]
  %v142 = vld [vmem:[%s1 + $0x284] sm:$0xf]
  %v143 = vld [vmem:[%s1 + $0x288] sm:$0xff]
  %v144 = vld [vmem:[%s1 + $0x290] sm:$0xf]
  %v145 = vld [vmem:[%s1 + $0x294] sm:$0xff]
  %v146 = vld [vmem:[%s1 + $0x29c] sm:$0xf]
  %v147 = vld [vmem:[%s1 + $0x2a0] sm:$0xff]
  %v148 = vld [vmem:[%s1 + $0x2a8] sm:$0xf]
  %v149 = vld [vmem:[%s1 + $0x2ac] sm:$0xff]
  %v150 = vld [vmem:[%s1 + $0x2b4] sm:$0xf]
  %v151 = vld [vmem:[%s1 + $0x2b8] sm:$0xff]
  %v152 = vld [vmem:[%s1 + $0x2c0] sm:$0xf]
  %v153 = vld [vmem:[%s1 + $0x2c4] sm:$0xff]
  %v154 = vld [vmem:[%s1 + $0x2cc] sm:$0xf]
  %v155 = vld [vmem:[%s1 + $0x2d0] sm:$0xff]
  %v156 = vld [vmem:[%s1 + $0x2d8] sm:$0xf]
  %v157 = vld [vmem:[%s1 + $0x2dc] sm:$0xff]
  %v158 = vld [vmem:[%s1 + $0x2e4] sm:$0xf]
  %v159 = vld [vmem:[%s1 + $0x2e8] sm:$0xff]
  %v160 = vld [vmem:[%s1 + $0x2f0] sm:$0xf]
  %v161 = vld [vmem:[%s1 + $0x2f4] sm:$0xff]
  %v162 = vld [vmem:[%s1 + $0x2fc] sm:$0xf]
  %v163 = vld [vmem:[%s1 + $0x300] sm:$0xff]
  %v164 = vld [vmem:[%s1 + $0x308] sm:$0xf]
  %v165 = vld [vmem:[%s1 + $0x30c] sm:$0xff]
  %v166 = vld [vmem:[%s1 + $0x314] sm:$0xf]
  %v167 = vld [vmem:[%s1 + $0x318] sm:$0xff]
  %v168 = vld [vmem:[%s1 + $0x320] sm:$0xf]
  %v169 = vld [vmem:[%s1 + $0x324] sm:$0xff]
  %v170 = vld [vmem:[%s1 + $0x32c] sm:$0xf]
  %v171 = vld [vmem:[%s1 + $0x330] sm:$0xff]
  %v172 = vld [vmem:[%s1 + $0x338] sm:$0xf]
  %v173 = vld [vmem:[%s1 + $0x33c] sm:$0xff]
  %v174 = vld [vmem:[%s1 + $0x344] sm:$0xf]
  %v175 = vld [vmem:[%s1 + $0x348] sm:$0xff]
  %v176 = vld [vmem:[%s1 + $0x350] sm:$0xf]
  %v177 = vld [vmem:[%s1 + $0x354] sm:$0xff]
  %v178 = vld [vmem:[%s1 + $0x35c] sm:$0xf]
  %v179 = vld [vmem:[%s1 + $0x360] sm:$0xff]
  %v180 = vld [vmem:[%s1 + $0x368] sm:$0xf]
  %v181 = vld [vmem:[%s1 + $0x36c] sm:$0xff]
  %v182 = vld [vmem:[%s1 + $0x374] sm:$0xf]
  %v183 = vld [vmem:[%s1 + $0x378] sm:$0xff]
  %v184 = vld [vmem:[%s1 + $0x380] sm:$0xf]
  %v185 = vld [vmem:[%s1 + $0x384] sm:$0xff]
  %v186 = vld [vmem:[%s1 + $0x38c] sm:$0xf]
  %v187 = vld [vmem:[%s1 + $0x390] sm:$0xff]
  %v188 = vld [vmem:[%s1 + $0x398] sm:$0xf]
  %v189 = vld [vmem:[%s1 + $0x39c] sm:$0xff]
  %v190 = vld [vmem:[%s1 + $0x3a4] sm:$0xf]
  %v191 = vld [vmem:[%s1 + $0x3a8] sm:$0xff]
  %v192 = vld [vmem:[%s1 + $0x3b0] sm:$0xf]
  %v193 = vld [vmem:[%s1 + $0x3b4] sm:$0xff]
  %v194 = vld [vmem:[%s1 + $0x3bc] sm:$0xf]
  %v195 = vld [vmem:[%s1 + $0x3c0] sm:$0xff]
  %v196 = vld [vmem:[%s1 + $0x3c8] sm:$0xf]
  %v197 = vld [vmem:[%s1 + $0x3cc] sm:$0xff]
  %v198 = vld [vmem:[%s1 + $0x3d4] sm:$0xf]
  %v199 = vld [vmem:[%s1 + $0x3d8] sm:$0xff]
  %v200 = vld [vmem:[%s1 + $0x3e0] sm:$0xf]
  %v201 = vld [vmem:[%s1 + $0x3e4] sm:$0xff]
  %v202 = vld [vmem:[%s1 + $0x3ec] sm:$0xf]
  %v203 = vld [vmem:[%s1 + $0x3f0] sm:$0xff]
  %v204 = vld [vmem:[%s1 + $0x3f8] sm:$0xf]
  %v205 = vld [vmem:[%s1 + $0x3fc] sm:$0xff]
  %v206 = vld [vmem:[%s1 + $0x404] sm:$0xf]
  %v207 = vld [vmem:[%s1 + $0x408] sm:$0xff]
  %v208 = vld [vmem:[%s1 + $0x410] sm:$0xf]
  %v209 = vld [vmem:[%s1 + $0x414] sm:$0xff]
  %v210 = vld [vmem:[%s1 + $0x41c] sm:$0xf]
  %v211 = vld [vmem:[%s1 + $0x420] sm:$0xff]
  %v212 = vld [vmem:[%s1 + $0x428] sm:$0xf]
  %v213 = vld [vmem:[%s1 + $0x42c] sm:$0xff]
  %v214 = vld [vmem:[%s1 + $0x434] sm:$0xf]
  %v215 = vld [vmem:[%s1 + $0x438] sm:$0xff]
  %v216 = vld [vmem:[%s1 + $0x440] sm:$0xf]
  %v217 = vld [vmem:[%s1 + $0x444] sm:$0xff]
  %v218 = vld [vmem:[%s1 + $0x44c] sm:$0xf]
  %v219 = vld [vmem:[%s1 + $0x450] sm:$0xff]
  %v220 = vld [vmem:[%s1 + $0x458] sm:$0xf]
  %v221 = vld [vmem:[%s1 + $0x45c] sm:$0xff]
  %v222 = vld [vmem:[%s1 + $0x464] sm:$0xf]
  %v223 = vld [vmem:[%s1 + $0x468] sm:$0xff]
  %v224 = vld [vmem:[%s1 + $0x470] sm:$0xf]
  %v225 = vld [vmem:[%s1 + $0x474] sm:$0xff]
  %v226 = vld [vmem:[%s1 + $0x47c] sm:$0xf]
  %v227 = vld [vmem:[%s1 + $0x480] sm:$0xff]
  %v228 = vld [vmem:[%s1 + $0x488] sm:$0xf]
  %v229 = vld [vmem:[%s1 + $0x48c] sm:$0xff]
  %v230 = vld [vmem:[%s1 + $0x494] sm:$0xf]
  %v231 = vld [vmem:[%s1 + $0x498] sm:$0xff]
  %v232 = vld [vmem:[%s1 + $0x4a0] sm:$0xf]
  %v233 = vld [vmem:[%s1 + $0x4a4] sm:$0xff]
  %v234 = vld [vmem:[%s1 + $0x4ac] sm:$0xf]
  %v235 = vld [vmem:[%s1 + $0x4b0] sm:$0xff]
  %v236 = vld [vmem:[%s1 + $0x4b8] sm:$0xf]
  %v237 = vld [vmem:[%s1 + $0x4bc] sm:$0xff]
  %v238 = vld [vmem:[%s1 + $0x4c4] sm:$0xf]
  %v239 = vld [vmem:[%s1 + $0x4c8] sm:$0xff]
  %v240 = vld [vmem:[%s1 + $0x4d0] sm:$0xf]
  %v241 = vld [vmem:[%s1 + $0x4d4] sm:$0xff]
  %v242 = vld [vmem:[%s1 + $0x4dc] sm:$0xf]
  %v243 = vld [vmem:[%s1 + $0x4e0] sm:$0xff]
  %v244 = vld [vmem:[%s1 + $0x4e8] sm:$0xf]
  %v245 = vld [vmem:[%s1 + $0x4ec] sm:$0xff]
  %v246 = vld [vmem:[%s1 + $0x4f4] sm:$0xf]
  %v247 = vld [vmem:[%s1 + $0x4f8] sm:$0xff]
  %v248 = vld [vmem:[%s1 + $0x500] sm:$0xf]
  %v249 = vld [vmem:[%s1 + $0x504] sm:$0xff]
  %v250 = vld [vmem:[%s1 + $0x50c] sm:$0xf]
  %v251 = vld [vmem:[%s1 + $0x510] sm:$0xff]
  %v252 = vld [vmem:[%s1 + $0x518] sm:$0xf]
  %v253 = vld [vmem:[%s1 + $0x51c] sm:$0xff]
  %v254 = vld [vmem:[%s1 + $0x524] sm:$0xf]
  %v255 = vld [vmem:[%s1 + $0x528] sm:$0xff]
  %v256 = vld [vmem:[%s1 + $0x530] sm:$0xf]
  %v257 = vld [vmem:[%s1 + $0x534] sm:$0xff]
  %v258 = vld [vmem:[%s1 + $0x53c] sm:$0xf]
  %v259 = vld [vmem:[%s1 + $0x540] sm:$0xff]
  %v260 = vld [vmem:[%s1 + $0x548] sm:$0xf]
  %v261 = vld [vmem:[%s1 + $0x54c] sm:$0xff]
  %v262 = vld [vmem:[%s1 + $0x554] sm:$0xf]
  %v263 = vld [vmem:[%s1 + $0x558] sm:$0xff]
  %v264 = vld [vmem:[%s1 + $0x560] sm:$0xf]
  %v265 = vld [vmem:[%s1 + $0x564] sm:$0xff]
  %v266 = vld [vmem:[%s1 + $0x56c] sm:$0xf]
  %v267 = vld [vmem:[%s1 + $0x570] sm:$0xff]
  %v268 = vld [vmem:[%s1 + $0x578] sm:$0xf]
  %v269 = vld [vmem:[%s1 + $0x57c] sm:$0xff]
  %v270 = vld [vmem:[%s1 + $0x584] sm:$0xf]
  %v271 = vld [vmem:[%s1 + $0x588] sm:$0xff]
  %v272 = vld [vmem:[%s1 + $0x590] sm:$0xf]
  %v273 = vld [vmem:[%s1 + $0x594] sm:$0xff]
  %v274 = vld [vmem:[%s1 + $0x59c] sm:$0xf]
  %v275 = vld [vmem:[%s1 + $0x5a0] sm:$0xff]
  %v276 = vld [vmem:[%s1 + $0x5a8] sm:$0xf]
  %v277 = vld [vmem:[%s1 + $0x5ac] sm:$0xff]
  %v278 = vld [vmem:[%s1 + $0x5b4] sm:$0xf]
  %v279 = vld [vmem:[%s1 + $0x5b8] sm:$0xff]
  %v280 = vld [vmem:[%s1 + $0x5c0] sm:$0xf]
  %v281 = vld [vmem:[%s1 + $0x5c4] sm:$0xff]
  %v282 = vld [vmem:[%s1 + $0x5cc] sm:$0xf]
  %v283 = vld [vmem:[%s1 + $0x5d0] sm:$0xff]
  %v284 = vld [vmem:[%s1 + $0x5d8] sm:$0xf]
  %v285 = vld [vmem:[%s1 + $0x5dc] sm:$0xff]
  %v286 = vld [vmem:[%s1 + $0x5e4] sm:$0xf]
  %v287 = vld [vmem:[%s1 + $0x5e8] sm:$0xff]
  %v288 = vld [vmem:[%s1 + $0x5f0] sm:$0xf]
  %v289 = vld [vmem:[%s1 + $0x5f4] sm:$0xff]
  %v290 = vld [vmem:[%s1 + $0x5fc] sm:$0xf]
  %v291 = vld [vmem:[%s1 + $0x600] sm:$0xff]
  %v292 = vld [vmem:[%s1 + $0x608] sm:$0xf]
  %v293 = vld [vmem:[%s1 + $0x60c] sm:$0xff]
  %v294 = vld [vmem:[%s1 + $0x614] sm:$0xf]
  %v295 = vld [vmem:[%s1 + $0x618] sm:$0xff]
  %v296 = vld [vmem:[%s1 + $0x620] sm:$0xf]
  %v297 = vld [vmem:[%s1 + $0x624] sm:$0xff]
  %v298 = vld [vmem:[%s1 + $0x62c] sm:$0xf]
  %v299 = vld [vmem:[%s1 + $0x630] sm:$0xff]
  %v300 = vld [vmem:[%s1 + $0x638] sm:$0xf]
  %v301 = vld [vmem:[%s1 + $0x63c] sm:$0xff]
  %v302 = vld [vmem:[%s1 + $0x644] sm:$0xf]
  %v303 = vld [vmem:[%s1 + $0x648] sm:$0xff]
  %v304 = vld [vmem:[%s1 + $0x650] sm:$0xf]
  %v305 = vld [vmem:[%s1 + $0x654] sm:$0xff]
  %v306 = vld [vmem:[%s1 + $0x65c] sm:$0xf]
  %v307 = vld [vmem:[%s1 + $0x660] sm:$0xff]
  %v308 = vld [vmem:[%s1 + $0x668] sm:$0xf]
  %v309 = vld [vmem:[%s1 + $0x66c] sm:$0xff]
  %v310 = vld [vmem:[%s1 + $0x674] sm:$0xf]
  %v311 = vld [vmem:[%s1 + $0x678] sm:$0xff]
  %v312 = vld [vmem:[%s1 + $0x680] sm:$0xf]
  %v313 = vld [vmem:[%s1 + $0x684] sm:$0xff]
  %v314 = vld [vmem:[%s1 + $0x68c] sm:$0xf]
  %v315 = vld [vmem:[%s1 + $0x690] sm:$0xff]
  %v316 = vld [vmem:[%s1 + $0x698] sm:$0xf]
  %v317 = vld [vmem:[%s1 + $0x69c] sm:$0xff]
  %v318 = vld [vmem:[%s1 + $0x6a4] sm:$0xf]
  %v319 = vld [vmem:[%s1 + $0x6a8] sm:$0xff]
  %v320 = vld [vmem:[%s1 + $0x6b0] sm:$0xf]
  %v321 = vld [vmem:[%s1 + $0x6b4] sm:$0xff]
  %v322 = vld [vmem:[%s1 + $0x6bc] sm:$0xf]
  %v323 = vld [vmem:[%s1 + $0x6c0] sm:$0xff]
  %v324 = vld [vmem:[%s1 + $0x6c8] sm:$0xf]
  %v325 = vld [vmem:[%s1 + $0x6cc] sm:$0xff]
  %v326 = vld [vmem:[%s1 + $0x6d4] sm:$0xf]
  %v327 = vld [vmem:[%s1 + $0x6d8] sm:$0xff]
  %v328 = vld [vmem:[%s1 + $0x6e0] sm:$0xf]
  %v329 = vld [vmem:[%s1 + $0x6e4] sm:$0xff]
  %v330 = vld [vmem:[%s1 + $0x6ec] sm:$0xf]
  %v331 = vld [vmem:[%s1 + $0x6f0] sm:$0xff]
  %v332 = vld [vmem:[%s1 + $0x6f8] sm:$0xf]
  %v333 = vld [vmem:[%s1 + $0x6fc] sm:$0xff]
  %v334 = vld [vmem:[%s1 + $0x704] sm:$0xf]
  %v335 = vld [vmem:[%s1 + $0x708] sm:$0xff]
  %v336 = vld [vmem:[%s1 + $0x710] sm:$0xf]
  %v337 = vld [vmem:[%s1 + $0x714] sm:$0xff]
  %v338 = vld [vmem:[%s1 + $0x71c] sm:$0xf]
  %v339 = vld [vmem:[%s1 + $0x720] sm:$0xff]
  %v340 = vld [vmem:[%s1 + $0x728] sm:$0xf]
  %v341 = vld [vmem:[%s1 + $0x72c] sm:$0xff]
  %v342 = vld [vmem:[%s1 + $0x734] sm:$0xf]
  %v343 = vld [vmem:[%s1 + $0x738] sm:$0xff]
  %v344 = vld [vmem:[%s1 + $0x740] sm:$0xf]
  %v345 = vld [vmem:[%s1 + $0x744] sm:$0xff]
  %v346 = vld [vmem:[%s1 + $0x74c] sm:$0xf]
  %v347 = vld [vmem:[%s1 + $0x750] sm:$0xff]
  %v348 = vld [vmem:[%s1 + $0x758] sm:$0xf]
  %v349 = vld [vmem:[%s1 + $0x75c] sm:$0xff]
  %v350 = vld [vmem:[%s1 + $0x764] sm:$0xf]
  %v351 = vld [vmem:[%s1 + $0x768] sm:$0xff]
  %v352 = vld [vmem:[%s1 + $0x770] sm:$0xf]
  %v353 = vld [vmem:[%s1 + $0x774] sm:$0xff]
  %v354 = vld [vmem:[%s1 + $0x77c] sm:$0xf]
  %v355 = vld [vmem:[%s1 + $0x780] sm:$0xff]
  %v356 = vld [vmem:[%s1 + $0x788] sm:$0xf]
  %v357 = vld [vmem:[%s1 + $0x78c] sm:$0xff]
  %v358 = vld [vmem:[%s1 + $0x794] sm:$0xf]
  %v359 = vld [vmem:[%s1 + $0x798] sm:$0xff]
  %v360 = vld [vmem:[%s1 + $0x7a0] sm:$0xf]
  %v361 = vld [vmem:[%s1 + $0x7a4] sm:$0xff]
  %v362 = vld [vmem:[%s1 + $0x7ac] sm:$0xf]
  %v363 = vld [vmem:[%s1 + $0x7b0] sm:$0xff]
  %v364 = vld [vmem:[%s1 + $0x7b8] sm:$0xf]
  %v365 = vld [vmem:[%s1 + $0x7bc] sm:$0xff]
  %v366 = vld [vmem:[%s1 + $0x7c4] sm:$0xf]
  %v367 = vld [vmem:[%s1 + $0x7c8] sm:$0xff]
  %v368 = vld [vmem:[%s1 + $0x7d0] sm:$0xf]
  %v369 = vld [vmem:[%s1 + $0x7d4] sm:$0xff]
  %v370 = vld [vmem:[%s1 + $0x7dc] sm:$0xf]
  %v371 = vld [vmem:[%s1 + $0x7e0] sm:$0xff]
  %v372 = vld [vmem:[%s1 + $0x7e8] sm:$0xf]
  %v373 = vld [vmem:[%s1 + $0x7ec] sm:$0xff]
  %v374 = vld [vmem:[%s1 + $0x7f4] sm:$0xf]
  %v375 = vld [vmem:[%s1 + $0x7f8] sm:$0xff]
  %v376 = vld [vmem:[%s1 + $0x800] sm:$0xf]
  %v377 = vld [vmem:[%s1 + $0x804] sm:$0xff]
  %v378 = vld [vmem:[%s1 + $0x80c] sm:$0xf]
  %v379 = vld [vmem:[%s1 + $0x810] sm:$0xff]
  %v380 = vld [vmem:[%s1 + $0x818] sm:$0xf]
  %v381 = vld [vmem:[%s1 + $0x81c] sm:$0xff]
  %v382 = vld [vmem:[%s1 + $0x824] sm:$0xf]
  %v383 = vld [vmem:[%s1 + $0x828] sm:$0xff]
  %v384 = vld [vmem:[%s1 + $0x830] sm:$0xf]
  %v385 = vld [vmem:[%s1 + $0x834] sm:$0xff]
  %v386 = vld [vmem:[%s1 + $0x83c] sm:$0xf]
  %v387 = vld [vmem:[%s1 + $0x840] sm:$0xff]
  %v388 = vld [vmem:[%s1 + $0x848] sm:$0xf]
  %v389 = vld [vmem:[%s1 + $0x84c] sm:$0xff]
  %v390 = vld [vmem:[%s1 + $0x854] sm:$0xf]
  %v391 = vld [vmem:[%s1 + $0x858] sm:$0xff]
  %v392 = vld [vmem:[%s1 + $0x860] sm:$0xf]
  %v393 = vld [vmem:[%s1 + $0x864] sm:$0xff]
  %v394 = vld [vmem:[%s1 + $0x86c] sm:$0xf]
  %v395 = vld [vmem:[%s1 + $0x870] sm:$0xff]
  %v396 = vld [vmem:[%s1 + $0x878] sm:$0xf]
  %v397 = vld [vmem:[%s1 + $0x87c] sm:$0xff]
  %v398 = vld [vmem:[%s1 + $0x884] sm:$0xf]
  %v399 = vld [vmem:[%s1 + $0x888] sm:$0xff]
  %v400 = vld [vmem:[%s1 + $0x890] sm:$0xf]
  %v401 = vld [vmem:[%s1 + $0x894] sm:$0xff]
  %v402 = vld [vmem:[%s1 + $0x89c] sm:$0xf]
  %v403 = vld [vmem:[%s1 + $0x8a0] sm:$0xff]
  %v404 = vld [vmem:[%s1 + $0x8a8] sm:$0xf]
  %v405 = vld [vmem:[%s1 + $0x8ac] sm:$0xff]
  %v406 = vld [vmem:[%s1 + $0x8b4] sm:$0xf]
  %v407 = vld [vmem:[%s1 + $0x8b8] sm:$0xff]
  %v408 = vld [vmem:[%s1 + $0x8c0] sm:$0xf]
  %v409 = vld [vmem:[%s1 + $0x8c4] sm:$0xff]
  %v410 = vld [vmem:[%s1 + $0x8cc] sm:$0xf]
  %v411 = vld [vmem:[%s1 + $0x8d0] sm:$0xff]
  %v412 = vld [vmem:[%s1 + $0x8d8] sm:$0xf]
  %v413 = vld [vmem:[%s1 + $0x8dc] sm:$0xff]
  %v414 = vld [vmem:[%s1 + $0x8e4] sm:$0xf]
  %v415 = vld [vmem:[%s1 + $0x8e8] sm:$0xff]
  %v416 = vld [vmem:[%s1 + $0x8f0] sm:$0xf]
  %v417 = vld [vmem:[%s1 + $0x8f4] sm:$0xff]
  %v418 = vld [vmem:[%s1 + $0x8fc] sm:$0xf]
  %v419 = vld [vmem:[%s1 + $0x900] sm:$0xff]
  %v420 = vld [vmem:[%s1 + $0x908] sm:$0xf]
  %v421 = vld [vmem:[%s1 + $0x90c] sm:$0xff]
  %v422 = vld [vmem:[%s1 + $0x914] sm:$0xf]
  %v423 = vld [vmem:[%s1 + $0x918] sm:$0xff]
  %v424 = vld [vmem:[%s1 + $0x920] sm:$0xf]
  %v425 = vld [vmem:[%s1 + $0x924] sm:$0xff]
  %v426 = vld [vmem:[%s1 + $0x92c] sm:$0xf]
  %v427 = vld [vmem:[%s1 + $0x930] sm:$0xff]
  %v428 = vld [vmem:[%s1 + $0x938] sm:$0xf]
  %v429 = vld [vmem:[%s1 + $0x93c] sm:$0xff]
  %v430 = vld [vmem:[%s1 + $0x944] sm:$0xf]
  %v431 = vld [vmem:[%s1 + $0x948] sm:$0xff]
  %v432 = vld [vmem:[%s1 + $0x950] sm:$0xf]
  %v433 = vld [vmem:[%s1 + $0x954] sm:$0xff]
  %v434 = vld [vmem:[%s1 + $0x95c] sm:$0xf]
  %v435 = vld [vmem:[%s1 + $0x960] sm:$0xff]
  %v436 = vld [vmem:[%s1 + $0x968] sm:$0xf]
  %v437 = vld [vmem:[%s1 + $0x96c] sm:$0xff]
  %v438 = vld [vmem:[%s1 + $0x974] sm:$0xf]
  %v439 = vld [vmem:[%s1 + $0x978] sm:$0xff]
  %v440 = vld [vmem:[%s1 + $0x980] sm:$0xf]
  %v441 = vld [vmem:[%s1 + $0x984] sm:$0xff]
  %v442 = vld [vmem:[%s1 + $0x98c] sm:$0xf]
  %v443 = vld [vmem:[%s1 + $0x990] sm:$0xff]
  %v444 = vld [vmem:[%s1 + $0x998] sm:$0xf]
  %v445 = vld [vmem:[%s1 + $0x99c] sm:$0xff]
  %v446 = vld [vmem:[%s1 + $0x9a4] sm:$0xf]
  %v447 = vld [vmem:[%s1 + $0x9a8] sm:$0xff]
  %v448 = vld [vmem:[%s1 + $0x9b0] sm:$0xf]
  %v449 = vld [vmem:[%s1 + $0x9b4] sm:$0xff]
  %v450 = vld [vmem:[%s1 + $0x9bc] sm:$0xf]
  %v451 = vld [vmem:[%s1 + $0x9c0] sm:$0xff]
  %v452 = vld [vmem:[%s1 + $0x9c8] sm:$0xf]
  %v453 = vld [vmem:[%s1 + $0x9cc] sm:$0xff]
  %v454 = vld [vmem:[%s1 + $0x9d4] sm:$0xf]
  %v455 = vld [vmem:[%s1 + $0x9d8] sm:$0xff]
  %v456 = vld [vmem:[%s1 + $0x9e0] sm:$0xf]
  %v457 = vld [vmem:[%s1 + $0x9e4] sm:$0xff]
  %v458 = vld [vmem:[%s1 + $0x9ec] sm:$0xf]
  %v459 = vld [vmem:[%s1 + $0x9f0] sm:$0xff]
  %v460 = vld [vmem:[%s1 + $0x9f8] sm:$0xf]
  %v461 = vld [vmem:[%s1 + $0x9fc] sm:$0xff]
  %v462 = vld [vmem:[%s1 + $0xa04] sm:$0xf]
  %v463 = vld [vmem:[%s1 + $0xa08] sm:$0xff]
  %v464 = vld [vmem:[%s1 + $0xa10] sm:$0xf]
  %v465 = vld [vmem:[%s1 + $0xa14] sm:$0xff]
  %v466 = vld [vmem:[%s1 + $0xa1c] sm:$0xf]
  %v467 = vld [vmem:[%s1 + $0xa20] sm:$0xff]
  %v468 = vld [vmem:[%s1 + $0xa28] sm:$0xf]
  %v469 = vld [vmem:[%s1 + $0xa2c] sm:$0xff]
  %v470 = vld [vmem:[%s1 + $0xa34] sm:$0xf]
  %v471 = vld [vmem:[%s1 + $0xa38] sm:$0xff]
  %v472 = vld [vmem:[%s1 + $0xa40] sm:$0xf]
  %v473 = vld [vmem:[%s1 + $0xa44] sm:$0xff]
  %v474 = vld [vmem:[%s1 + $0xa4c] sm:$0xf]
  %v475 = vld [vmem:[%s1 + $0xa50] sm:$0xff]
  %v476 = vld [vmem:[%s1 + $0xa58] sm:$0xf]
  %v477 = vld [vmem:[%s1 + $0xa5c] sm:$0xff]
  %v478 = vld [vmem:[%s1 + $0xa64] sm:$0xf]
  %v479 = vld [vmem:[%s1 + $0xa68] sm:$0xff]
  %v480 = vld [vmem:[%s1 + $0xa70] sm:$0xf]
  %v481 = vld [vmem:[%s1 + $0xa74] sm:$0xff]
  %v482 = vld [vmem:[%s1 + $0xa7c] sm:$0xf]
  %v483 = vld [vmem:[%s2] sm:$0x7]
  %v485 = vperm.slane %v483, 0
  %v486 = vperm.slane %v483, 1
  %v487 = vperm.slane %v483, 2
  %v512 = vunpack.c.l.b16 %v14
  %v513 = vunpack.c.h.b16 %v14
  %v514 = vunpack.c.l.b16 %v15
  %v515 = vunpack.c.h.b16 %v15
  %v516 = vunpack.c.l.b16 %v16
  %v517 = vunpack.c.h.b16 %v16
  %v518 = vunpack.c.l.b16 %v17
  %v519 = vunpack.c.h.b16 %v17
  %v520 = vunpack.c.l.b16 %v18
  %v521 = vunpack.c.h.b16 %v18
  %v522 = vunpack.c.l.b16 %v19
  %v523 = vunpack.c.h.b16 %v19
  %v524 = vunpack.c.l.b16 %v20
  %v525 = vunpack.c.h.b16 %v20
  %v526 = vunpack.c.l.b16 %v21
  %v527 = vunpack.c.h.b16 %v21
  %v528 = vunpack.c.l.b16 %v22
  %v529 = vunpack.c.h.b16 %v22
  %v530 = vunpack.c.l.b16 %v23
  %v531 = vunpack.c.h.b16 %v23
  %v532 = vunpack.c.l.b16 %v24
  %v533 = vunpack.c.h.b16 %v24
  %v534 = vunpack.c.l.b16 %v25
  %v535 = vunpack.c.h.b16 %v25
  %v536 = vunpack.c.l.b16 %v26
  %v537 = vunpack.c.h.b16 %v26
  %v538 = vunpack.c.l.b16 %v27
  %v539 = vunpack.c.h.b16 %v27
  %v540 = vunpack.c.l.b16 %v28
  %v541 = vunpack.c.h.b16 %v28
  %v542 = vunpack.c.l.b16 %v29
  %v543 = vunpack.c.h.b16 %v29
  %v544 = vunpack.c.l.b16 %v30
  %v545 = vunpack.c.h.b16 %v30
  %v546 = vunpack.c.l.b16 %v31
  %v547 = vunpack.c.h.b16 %v31
  %v548 = vunpack.c.l.b16 %v32
  %v549 = vunpack.c.h.b16 %v32
  %v550 = vunpack.c.l.b16 %v33
  %v551 = vunpack.c.h.b16 %v33
  %v552 = vunpack.c.l.b16 %v34
  %v553 = vunpack.c.h.b16 %v34
  %v554 = vpack.c.b16 %v526, %v512
  %v555 = vpack.c.b16 %v527, %v513
  %v556 = vpack.c.b16 %v528, %v514
  %v557 = vpack.c.b16 %v529, %v515
  %v558 = vpack.c.b16 %v530, %v516
  %v559 = vpack.c.b16 %v531, %v517
  %v560 = vpack.c.b16 %v532, %v518
  %v561 = vpack.c.b16 %v533, %v519
  %v562 = vpack.c.b16 %v534, %v520
  %v563 = vpack.c.b16 %v535, %v521
  %v564 = vpack.c.b16 %v536, %v522
  %v565 = vpack.c.b16 %v537, %v523
  %v566 = vpack.c.b16 %v538, %v524
  %v567 = vpack.c.b16 %v539, %v525
  %v568 = vpack.c.b16 %v540, %v540
  %v569 = vpack.c.b16 %v541, %v541
  %v570 = vpack.c.b16 %v542, %v542
  %v571 = vpack.c.b16 %v543, %v543
  %v572 = vpack.c.b16 %v544, %v544
  %v573 = vpack.c.b16 %v545, %v545
  %v574 = vpack.c.b16 %v546, %v546
  %v575 = vpack.c.b16 %v547, %v547
  %v576 = vpack.c.b16 %v548, %v548
  %v577 = vpack.c.b16 %v549, %v549
  %v578 = vpack.c.b16 %v550, %v550
  %v579 = vpack.c.b16 %v551, %v551
  %v580 = vpack.c.b16 %v552, %v552
  %v581 = vpack.c.b16 %v553, %v553
  %v1058 = vunpack.c.l.b16 %v35
  %v1059 = vunpack.c.h.b16 %v35
  %v1060 = vunpack.c.l.b16 %v36
  %v1061 = vunpack.c.l.b16 %v37
  %v1062 = vunpack.c.h.b16 %v37
  %v1063 = vunpack.c.l.b16 %v38
  %v1064 = vunpack.c.l.b16 %v39
  %v1065 = vunpack.c.h.b16 %v39
  %v1066 = vunpack.c.l.b16 %v40
  %v1067 = vunpack.c.l.b16 %v41
  %v1068 = vunpack.c.h.b16 %v41
  %v1069 = vunpack.c.l.b16 %v42
  %v1070 = vunpack.c.l.b16 %v43
  %v1071 = vunpack.c.h.b16 %v43
  %v1072 = vunpack.c.l.b16 %v44
  %v1073 = vunpack.c.l.b16 %v45
  %v1074 = vunpack.c.h.b16 %v45
  %v1075 = vunpack.c.l.b16 %v46
  %v1076 = vunpack.c.l.b16 %v47
  %v1077 = vunpack.c.h.b16 %v47
  %v1078 = vunpack.c.l.b16 %v48
  %v1079 = vunpack.c.l.b16 %v49
  %v1080 = vunpack.c.h.b16 %v49
  %v1081 = vunpack.c.l.b16 %v50
  %v1082 = vunpack.c.l.b16 %v51
  %v1083 = vunpack.c.h.b16 %v51
  %v1084 = vunpack.c.l.b16 %v52
  %v1085 = vunpack.c.l.b16 %v53
  %v1086 = vunpack.c.h.b16 %v53
  %v1087 = vunpack.c.l.b16 %v54
  %v1088 = vunpack.c.l.b16 %v55
  %v1089 = vunpack.c.h.b16 %v55
  %v1090 = vunpack.c.l.b16 %v56
  %v1091 = vunpack.c.l.b16 %v57
  %v1092 = vunpack.c.h.b16 %v57
  %v1093 = vunpack.c.l.b16 %v58
  %v1094 = vunpack.c.l.b16 %v59
  %v1095 = vunpack.c.h.b16 %v59
  %v1096 = vunpack.c.l.b16 %v60
  %v1097 = vunpack.c.l.b16 %v61
  %v1098 = vunpack.c.h.b16 %v61
  %v1099 = vunpack.c.l.b16 %v62
  %v1100 = vunpack.c.l.b16 %v63
  %v1101 = vunpack.c.h.b16 %v63
  %v1102 = vunpack.c.l.b16 %v64
  %v1103 = vunpack.c.l.b16 %v65
  %v1104 = vunpack.c.h.b16 %v65
  %v1105 = vunpack.c.l.b16 %v66
  %v1106 = vunpack.c.l.b16 %v67
  %v1107 = vunpack.c.h.b16 %v67
  %v1108 = vunpack.c.l.b16 %v68
  %v1109 = vunpack.c.l.b16 %v69
  %v1110 = vunpack.c.h.b16 %v69
  %v1111 = vunpack.c.l.b16 %v70
  %v1112 = vunpack.c.l.b16 %v71
  %v1113 = vunpack.c.h.b16 %v71
  %v1114 = vunpack.c.l.b16 %v72
  %v1115 = vunpack.c.l.b16 %v73
  %v1116 = vunpack.c.h.b16 %v73
  %v1117 = vunpack.c.l.b16 %v74
  %v1118 = vunpack.c.l.b16 %v75
  %v1119 = vunpack.c.h.b16 %v75
  %v1120 = vunpack.c.l.b16 %v76
  %v1121 = vunpack.c.l.b16 %v77
  %v1122 = vunpack.c.h.b16 %v77
  %v1123 = vunpack.c.l.b16 %v78
  %v1124 = vunpack.c.l.b16 %v79
  %v1125 = vunpack.c.h.b16 %v79
  %v1126 = vunpack.c.l.b16 %v80
  %v1127 = vunpack.c.l.b16 %v81
  %v1128 = vunpack.c.h.b16 %v81
  %v1129 = vunpack.c.l.b16 %v82
  %v1130 = vunpack.c.l.b16 %v83
  %v1131 = vunpack.c.h.b16 %v83
  %v1132 = vunpack.c.l.b16 %v84
  %v1133 = vunpack.c.l.b16 %v85
  %v1134 = vunpack.c.h.b16 %v85
  %v1135 = vunpack.c.l.b16 %v86
  %v1136 = vunpack.c.l.b16 %v87
  %v1137 = vunpack.c.h.b16 %v87
  %v1138 = vunpack.c.l.b16 %v88
  %v1139 = vunpack.c.l.b16 %v89
  %v1140 = vunpack.c.h.b16 %v89
  %v1141 = vunpack.c.l.b16 %v90
  %v1142 = vunpack.c.l.b16 %v91
  %v1143 = vunpack.c.h.b16 %v91
  %v1144 = vunpack.c.l.b16 %v92
  %v1145 = vunpack.c.l.b16 %v93
  %v1146 = vunpack.c.h.b16 %v93
  %v1147 = vunpack.c.l.b16 %v94
  %v1148 = vunpack.c.l.b16 %v95
  %v1149 = vunpack.c.h.b16 %v95
  %v1150 = vunpack.c.l.b16 %v96
  %v1151 = vunpack.c.l.b16 %v97
  %v1152 = vunpack.c.h.b16 %v97
  %v1153 = vunpack.c.l.b16 %v98
  %v1154 = vunpack.c.l.b16 %v99
  %v1155 = vunpack.c.h.b16 %v99
  %v1156 = vunpack.c.l.b16 %v100
  %v1157 = vunpack.c.l.b16 %v101
  %v1158 = vunpack.c.h.b16 %v101
  %v1159 = vunpack.c.l.b16 %v102
  %v1160 = vunpack.c.l.b16 %v103
  %v1161 = vunpack.c.h.b16 %v103
  %v1162 = vunpack.c.l.b16 %v104
  %v1163 = vunpack.c.l.b16 %v105
  %v1164 = vunpack.c.h.b16 %v105
  %v1165 = vunpack.c.l.b16 %v106
  %v1166 = vunpack.c.l.b16 %v107
  %v1167 = vunpack.c.h.b16 %v107
  %v1168 = vunpack.c.l.b16 %v108
  %v1169 = vunpack.c.l.b16 %v109
  %v1170 = vunpack.c.h.b16 %v109
  %v1171 = vunpack.c.l.b16 %v110
  %v1172 = vunpack.c.l.b16 %v111
  %v1173 = vunpack.c.h.b16 %v111
  %v1174 = vunpack.c.l.b16 %v112
  %v1175 = vunpack.c.l.b16 %v113
  %v1176 = vunpack.c.h.b16 %v113
  %v1177 = vunpack.c.l.b16 %v114
  %v1178 = vunpack.c.l.b16 %v115
  %v1179 = vunpack.c.h.b16 %v115
  %v1180 = vunpack.c.l.b16 %v116
  %v1181 = vunpack.c.l.b16 %v117
  %v1182 = vunpack.c.h.b16 %v117
  %v1183 = vunpack.c.l.b16 %v118
  %v1184 = vunpack.c.l.b16 %v119
  %v1185 = vunpack.c.h.b16 %v119
  %v1186 = vunpack.c.l.b16 %v120
  %v1187 = vunpack.c.l.b16 %v121
  %v1188 = vunpack.c.h.b16 %v121
  %v1189 = vunpack.c.l.b16 %v122
  %v1190 = vunpack.c.l.b16 %v123
  %v1191 = vunpack.c.h.b16 %v123
  %v1192 = vunpack.c.l.b16 %v124
  %v1193 = vunpack.c.l.b16 %v125
  %v1194 = vunpack.c.h.b16 %v125
  %v1195 = vunpack.c.l.b16 %v126
  %v1196 = vunpack.c.l.b16 %v127
  %v1197 = vunpack.c.h.b16 %v127
  %v1198 = vunpack.c.l.b16 %v128
  %v1199 = vunpack.c.l.b16 %v129
  %v1200 = vunpack.c.h.b16 %v129
  %v1201 = vunpack.c.l.b16 %v130
  %v1202 = vunpack.c.l.b16 %v131
  %v1203 = vunpack.c.h.b16 %v131
  %v1204 = vunpack.c.l.b16 %v132
  %v1205 = vunpack.c.l.b16 %v133
  %v1206 = vunpack.c.h.b16 %v133
  %v1207 = vunpack.c.l.b16 %v134
  %v1208 = vunpack.c.l.b16 %v135
  %v1209 = vunpack.c.h.b16 %v135
  %v1210 = vunpack.c.l.b16 %v136
  %v1211 = vunpack.c.l.b16 %v137
  %v1212 = vunpack.c.h.b16 %v137
  %v1213 = vunpack.c.l.b16 %v138
  %v1214 = vunpack.c.l.b16 %v139
  %v1215 = vunpack.c.h.b16 %v139
  %v1216 = vunpack.c.l.b16 %v140
  %v1217 = vunpack.c.l.b16 %v141
  %v1218 = vunpack.c.h.b16 %v141
  %v1219 = vunpack.c.l.b16 %v142
  %v1220 = vunpack.c.l.b16 %v143
  %v1221 = vunpack.c.h.b16 %v143
  %v1222 = vunpack.c.l.b16 %v144
  %v1223 = vunpack.c.l.b16 %v145
  %v1224 = vunpack.c.h.b16 %v145
  %v1225 = vunpack.c.l.b16 %v146
  %v1226 = vunpack.c.l.b16 %v147
  %v1227 = vunpack.c.h.b16 %v147
  %v1228 = vunpack.c.l.b16 %v148
  %v1229 = vunpack.c.l.b16 %v149
  %v1230 = vunpack.c.h.b16 %v149
  %v1231 = vunpack.c.l.b16 %v150
  %v1232 = vunpack.c.l.b16 %v151
  %v1233 = vunpack.c.h.b16 %v151
  %v1234 = vunpack.c.l.b16 %v152
  %v1235 = vunpack.c.l.b16 %v153
  %v1236 = vunpack.c.h.b16 %v153
  %v1237 = vunpack.c.l.b16 %v154
  %v1238 = vunpack.c.l.b16 %v155
  %v1239 = vunpack.c.h.b16 %v155
  %v1240 = vunpack.c.l.b16 %v156
  %v1241 = vunpack.c.l.b16 %v157
  %v1242 = vunpack.c.h.b16 %v157
  %v1243 = vunpack.c.l.b16 %v158
  %v1244 = vunpack.c.l.b16 %v159
  %v1245 = vunpack.c.h.b16 %v159
  %v1246 = vunpack.c.l.b16 %v160
  %v1247 = vunpack.c.l.b16 %v161
  %v1248 = vunpack.c.h.b16 %v161
  %v1249 = vunpack.c.l.b16 %v162
  %v1250 = vunpack.c.l.b16 %v163
  %v1251 = vunpack.c.h.b16 %v163
  %v1252 = vunpack.c.l.b16 %v164
  %v1253 = vunpack.c.l.b16 %v165
  %v1254 = vunpack.c.h.b16 %v165
  %v1255 = vunpack.c.l.b16 %v166
  %v1256 = vunpack.c.l.b16 %v167
  %v1257 = vunpack.c.h.b16 %v167
  %v1258 = vunpack.c.l.b16 %v168
  %v1259 = vunpack.c.l.b16 %v169
  %v1260 = vunpack.c.h.b16 %v169
  %v1261 = vunpack.c.l.b16 %v170
  %v1262 = vunpack.c.l.b16 %v171
  %v1263 = vunpack.c.h.b16 %v171
  %v1264 = vunpack.c.l.b16 %v172
  %v1265 = vunpack.c.l.b16 %v173
  %v1266 = vunpack.c.h.b16 %v173
  %v1267 = vunpack.c.l.b16 %v174
  %v1268 = vunpack.c.l.b16 %v175
  %v1269 = vunpack.c.h.b16 %v175
  %v1270 = vunpack.c.l.b16 %v176
  %v1271 = vunpack.c.l.b16 %v177
  %v1272 = vunpack.c.h.b16 %v177
  %v1273 = vunpack.c.l.b16 %v178
  %v1274 = vunpack.c.l.b16 %v179
  %v1275 = vunpack.c.h.b16 %v179
  %v1276 = vunpack.c.l.b16 %v180
  %v1277 = vunpack.c.l.b16 %v181
  %v1278 = vunpack.c.h.b16 %v181
  %v1279 = vunpack.c.l.b16 %v182
  %v1280 = vunpack.c.l.b16 %v183
  %v1281 = vunpack.c.h.b16 %v183
  %v1282 = vunpack.c.l.b16 %v184
  %v1283 = vunpack.c.l.b16 %v185
  %v1284 = vunpack.c.h.b16 %v185
  %v1285 = vunpack.c.l.b16 %v186
  %v1286 = vunpack.c.l.b16 %v187
  %v1287 = vunpack.c.h.b16 %v187
  %v1288 = vunpack.c.l.b16 %v188
  %v1289 = vunpack.c.l.b16 %v189
  %v1290 = vunpack.c.h.b16 %v189
  %v1291 = vunpack.c.l.b16 %v190
  %v1292 = vunpack.c.l.b16 %v191
  %v1293 = vunpack.c.h.b16 %v191
  %v1294 = vunpack.c.l.b16 %v192
  %v1295 = vunpack.c.l.b16 %v193
  %v1296 = vunpack.c.h.b16 %v193
  %v1297 = vunpack.c.l.b16 %v194
  %v1298 = vunpack.c.l.b16 %v195
  %v1299 = vunpack.c.h.b16 %v195
  %v1300 = vunpack.c.l.b16 %v196
  %v1301 = vunpack.c.l.b16 %v197
  %v1302 = vunpack.c.h.b16 %v197
  %v1303 = vunpack.c.l.b16 %v198
  %v1304 = vunpack.c.l.b16 %v199
  %v1305 = vunpack.c.h.b16 %v199
  %v1306 = vunpack.c.l.b16 %v200
  %v1307 = vunpack.c.l.b16 %v201
  %v1308 = vunpack.c.h.b16 %v201
  %v1309 = vunpack.c.l.b16 %v202
  %v1310 = vunpack.c.l.b16 %v203
  %v1311 = vunpack.c.h.b16 %v203
  %v1312 = vunpack.c.l.b16 %v204
  %v1313 = vunpack.c.l.b16 %v205
  %v1314 = vunpack.c.h.b16 %v205
  %v1315 = vunpack.c.l.b16 %v206
  %v1316 = vunpack.c.l.b16 %v207
  %v1317 = vunpack.c.h.b16 %v207
  %v1318 = vunpack.c.l.b16 %v208
  %v1319 = vunpack.c.l.b16 %v209
  %v1320 = vunpack.c.h.b16 %v209
  %v1321 = vunpack.c.l.b16 %v210
  %v1322 = vunpack.c.l.b16 %v211
  %v1323 = vunpack.c.h.b16 %v211
  %v1324 = vunpack.c.l.b16 %v212
  %v1325 = vunpack.c.l.b16 %v213
  %v1326 = vunpack.c.h.b16 %v213
  %v1327 = vunpack.c.l.b16 %v214
  %v1328 = vunpack.c.l.b16 %v215
  %v1329 = vunpack.c.h.b16 %v215
  %v1330 = vunpack.c.l.b16 %v216
  %v1331 = vunpack.c.l.b16 %v217
  %v1332 = vunpack.c.h.b16 %v217
  %v1333 = vunpack.c.l.b16 %v218
  %v1334 = vunpack.c.l.b16 %v219
  %v1335 = vunpack.c.h.b16 %v219
  %v1336 = vunpack.c.l.b16 %v220
  %v1337 = vunpack.c.l.b16 %v221
  %v1338 = vunpack.c.h.b16 %v221
  %v1339 = vunpack.c.l.b16 %v222
  %v1340 = vunpack.c.l.b16 %v223
  %v1341 = vunpack.c.h.b16 %v223
  %v1342 = vunpack.c.l.b16 %v224
  %v1343 = vunpack.c.l.b16 %v225
  %v1344 = vunpack.c.h.b16 %v225
  %v1345 = vunpack.c.l.b16 %v226
  %v1346 = vunpack.c.l.b16 %v227
  %v1347 = vunpack.c.h.b16 %v227
  %v1348 = vunpack.c.l.b16 %v228
  %v1349 = vunpack.c.l.b16 %v229
  %v1350 = vunpack.c.h.b16 %v229
  %v1351 = vunpack.c.l.b16 %v230
  %v1352 = vunpack.c.l.b16 %v231
  %v1353 = vunpack.c.h.b16 %v231
  %v1354 = vunpack.c.l.b16 %v232
  %v1355 = vunpack.c.l.b16 %v233
  %v1356 = vunpack.c.h.b16 %v233
  %v1357 = vunpack.c.l.b16 %v234
  %v1358 = vunpack.c.l.b16 %v235
  %v1359 = vunpack.c.h.b16 %v235
  %v1360 = vunpack.c.l.b16 %v236
  %v1361 = vunpack.c.l.b16 %v237
  %v1362 = vunpack.c.h.b16 %v237
  %v1363 = vunpack.c.l.b16 %v238
  %v1364 = vunpack.c.l.b16 %v239
  %v1365 = vunpack.c.h.b16 %v239
  %v1366 = vunpack.c.l.b16 %v240
  %v1367 = vunpack.c.l.b16 %v241
  %v1368 = vunpack.c.h.b16 %v241
  %v1369 = vunpack.c.l.b16 %v242
  %v1370 = vunpack.c.l.b16 %v243
  %v1371 = vunpack.c.h.b16 %v243
  %v1372 = vunpack.c.l.b16 %v244
  %v1373 = vunpack.c.l.b16 %v245
  %v1374 = vunpack.c.h.b16 %v245
  %v1375 = vunpack.c.l.b16 %v246
  %v1376 = vunpack.c.l.b16 %v247
  %v1377 = vunpack.c.h.b16 %v247
  %v1378 = vunpack.c.l.b16 %v248
  %v1379 = vunpack.c.l.b16 %v249
  %v1380 = vunpack.c.h.b16 %v249
  %v1381 = vunpack.c.l.b16 %v250
  %v1382 = vunpack.c.l.b16 %v251
  %v1383 = vunpack.c.h.b16 %v251
  %v1384 = vunpack.c.l.b16 %v252
  %v1385 = vunpack.c.l.b16 %v253
  %v1386 = vunpack.c.h.b16 %v253
  %v1387 = vunpack.c.l.b16 %v254
  %v1388 = vunpack.c.l.b16 %v255
  %v1389 = vunpack.c.h.b16 %v255
  %v1390 = vunpack.c.l.b16 %v256
  %v1391 = vunpack.c.l.b16 %v257
  %v1392 = vunpack.c.h.b16 %v257
  %v1393 = vunpack.c.l.b16 %v258
  %v1394 = vunpack.c.l.b16 %v259
  %v1395 = vunpack.c.h.b16 %v259
  %v1396 = vunpack.c.l.b16 %v260
  %v1397 = vunpack.c.l.b16 %v261
  %v1398 = vunpack.c.h.b16 %v261
  %v1399 = vunpack.c.l.b16 %v262
  %v1400 = vunpack.c.l.b16 %v263
  %v1401 = vunpack.c.h.b16 %v263
  %v1402 = vunpack.c.l.b16 %v264
  %v1403 = vunpack.c.l.b16 %v265
  %v1404 = vunpack.c.h.b16 %v265
  %v1405 = vunpack.c.l.b16 %v266
  %v1406 = vunpack.c.l.b16 %v267
  %v1407 = vunpack.c.h.b16 %v267
  %v1408 = vunpack.c.l.b16 %v268
  %v1409 = vunpack.c.l.b16 %v269
  %v1410 = vunpack.c.h.b16 %v269
  %v1411 = vunpack.c.l.b16 %v270
  %v1412 = vunpack.c.l.b16 %v271
  %v1413 = vunpack.c.h.b16 %v271
  %v1414 = vunpack.c.l.b16 %v272
  %v1415 = vunpack.c.l.b16 %v273
  %v1416 = vunpack.c.h.b16 %v273
  %v1417 = vunpack.c.l.b16 %v274
  %v1418 = vunpack.c.l.b16 %v275
  %v1419 = vunpack.c.h.b16 %v275
  %v1420 = vunpack.c.l.b16 %v276
  %v1421 = vunpack.c.l.b16 %v277
  %v1422 = vunpack.c.h.b16 %v277
  %v1423 = vunpack.c.l.b16 %v278
  %v1424 = vunpack.c.l.b16 %v279
  %v1425 = vunpack.c.h.b16 %v279
  %v1426 = vunpack.c.l.b16 %v280
  %v1427 = vunpack.c.l.b16 %v281
  %v1428 = vunpack.c.h.b16 %v281
  %v1429 = vunpack.c.l.b16 %v282
  %v1430 = vunpack.c.l.b16 %v283
  %v1431 = vunpack.c.h.b16 %v283
  %v1432 = vunpack.c.l.b16 %v284
  %v1433 = vunpack.c.l.b16 %v285
  %v1434 = vunpack.c.h.b16 %v285
  %v1435 = vunpack.c.l.b16 %v286
  %v1436 = vunpack.c.l.b16 %v287
  %v1437 = vunpack.c.h.b16 %v287
  %v1438 = vunpack.c.l.b16 %v288
  %v1439 = vunpack.c.l.b16 %v289
  %v1440 = vunpack.c.h.b16 %v289
  %v1441 = vunpack.c.l.b16 %v290
  %v1442 = vunpack.c.l.b16 %v291
  %v1443 = vunpack.c.h.b16 %v291
  %v1444 = vunpack.c.l.b16 %v292
  %v1445 = vunpack.c.l.b16 %v293
  %v1446 = vunpack.c.h.b16 %v293
  %v1447 = vunpack.c.l.b16 %v294
  %v1448 = vunpack.c.l.b16 %v295
  %v1449 = vunpack.c.h.b16 %v295
  %v1450 = vunpack.c.l.b16 %v296
  %v1451 = vunpack.c.l.b16 %v297
  %v1452 = vunpack.c.h.b16 %v297
  %v1453 = vunpack.c.l.b16 %v298
  %v1454 = vunpack.c.l.b16 %v299
  %v1455 = vunpack.c.h.b16 %v299
  %v1456 = vunpack.c.l.b16 %v300
  %v1457 = vunpack.c.l.b16 %v301
  %v1458 = vunpack.c.h.b16 %v301
  %v1459 = vunpack.c.l.b16 %v302
  %v1460 = vunpack.c.l.b16 %v303
  %v1461 = vunpack.c.h.b16 %v303
  %v1462 = vunpack.c.l.b16 %v304
  %v1463 = vunpack.c.l.b16 %v305
  %v1464 = vunpack.c.h.b16 %v305
  %v1465 = vunpack.c.l.b16 %v306
  %v1466 = vunpack.c.l.b16 %v307
  %v1467 = vunpack.c.h.b16 %v307
  %v1468 = vunpack.c.l.b16 %v308
  %v1469 = vunpack.c.l.b16 %v309
  %v1470 = vunpack.c.h.b16 %v309
  %v1471 = vunpack.c.l.b16 %v310
  %v1472 = vunpack.c.l.b16 %v311
  %v1473 = vunpack.c.h.b16 %v311
  %v1474 = vunpack.c.l.b16 %v312
  %v1475 = vunpack.c.l.b16 %v313
  %v1476 = vunpack.c.h.b16 %v313
  %v1477 = vunpack.c.l.b16 %v314
  %v1478 = vunpack.c.l.b16 %v315
  %v1479 = vunpack.c.h.b16 %v315
  %v1480 = vunpack.c.l.b16 %v316
  %v1481 = vunpack.c.l.b16 %v317
  %v1482 = vunpack.c.h.b16 %v317
  %v1483 = vunpack.c.l.b16 %v318
  %v1484 = vunpack.c.l.b16 %v319
  %v1485 = vunpack.c.h.b16 %v319
  %v1486 = vunpack.c.l.b16 %v320
  %v1487 = vunpack.c.l.b16 %v321
  %v1488 = vunpack.c.h.b16 %v321
  %v1489 = vunpack.c.l.b16 %v322
  %v1490 = vunpack.c.l.b16 %v323
  %v1491 = vunpack.c.h.b16 %v323
  %v1492 = vunpack.c.l.b16 %v324
  %v1493 = vunpack.c.l.b16 %v325
  %v1494 = vunpack.c.h.b16 %v325
  %v1495 = vunpack.c.l.b16 %v326
  %v1496 = vunpack.c.l.b16 %v327
  %v1497 = vunpack.c.h.b16 %v327
  %v1498 = vunpack.c.l.b16 %v328
  %v1499 = vunpack.c.l.b16 %v329
  %v1500 = vunpack.c.h.b16 %v329
  %v1501 = vunpack.c.l.b16 %v330
  %v1502 = vunpack.c.l.b16 %v331
  %v1503 = vunpack.c.h.b16 %v331
  %v1504 = vunpack.c.l.b16 %v332
  %v1505 = vunpack.c.l.b16 %v333
  %v1506 = vunpack.c.h.b16 %v333
  %v1507 = vunpack.c.l.b16 %v334
  %v1508 = vunpack.c.l.b16 %v335
  %v1509 = vunpack.c.h.b16 %v335
  %v1510 = vunpack.c.l.b16 %v336
  %v1511 = vunpack.c.l.b16 %v337
  %v1512 = vunpack.c.h.b16 %v337
  %v1513 = vunpack.c.l.b16 %v338
  %v1514 = vunpack.c.l.b16 %v339
  %v1515 = vunpack.c.h.b16 %v339
  %v1516 = vunpack.c.l.b16 %v340
  %v1517 = vunpack.c.l.b16 %v341
  %v1518 = vunpack.c.h.b16 %v341
  %v1519 = vunpack.c.l.b16 %v342
  %v1520 = vunpack.c.l.b16 %v343
  %v1521 = vunpack.c.h.b16 %v343
  %v1522 = vunpack.c.l.b16 %v344
  %v1523 = vunpack.c.l.b16 %v345
  %v1524 = vunpack.c.h.b16 %v345
  %v1525 = vunpack.c.l.b16 %v346
  %v1526 = vunpack.c.l.b16 %v347
  %v1527 = vunpack.c.h.b16 %v347
  %v1528 = vunpack.c.l.b16 %v348
  %v1529 = vunpack.c.l.b16 %v349
  %v1530 = vunpack.c.h.b16 %v349
  %v1531 = vunpack.c.l.b16 %v350
  %v1532 = vunpack.c.l.b16 %v351
  %v1533 = vunpack.c.h.b16 %v351
  %v1534 = vunpack.c.l.b16 %v352
  %v1535 = vunpack.c.l.b16 %v353
  %v1536 = vunpack.c.h.b16 %v353
  %v1537 = vunpack.c.l.b16 %v354
  %v1538 = vunpack.c.l.b16 %v355
  %v1539 = vunpack.c.h.b16 %v355
  %v1540 = vunpack.c.l.b16 %v356
  %v1541 = vunpack.c.l.b16 %v357
  %v1542 = vunpack.c.h.b16 %v357
  %v1543 = vunpack.c.l.b16 %v358
  %v1544 = vunpack.c.l.b16 %v359
  %v1545 = vunpack.c.h.b16 %v359
  %v1546 = vunpack.c.l.b16 %v360
  %v1547 = vunpack.c.l.b16 %v361
  %v1548 = vunpack.c.h.b16 %v361
  %v1549 = vunpack.c.l.b16 %v362
  %v1550 = vunpack.c.l.b16 %v363
  %v1551 = vunpack.c.h.b16 %v363
  %v1552 = vunpack.c.l.b16 %v364
  %v1553 = vunpack.c.l.b16 %v365
  %v1554 = vunpack.c.h.b16 %v365
  %v1555 = vunpack.c.l.b16 %v366
  %v1556 = vunpack.c.l.b16 %v367
  %v1557 = vunpack.c.h.b16 %v367
  %v1558 = vunpack.c.l.b16 %v368
  %v1559 = vunpack.c.l.b16 %v369
  %v1560 = vunpack.c.h.b16 %v369
  %v1561 = vunpack.c.l.b16 %v370
  %v1562 = vunpack.c.l.b16 %v371
  %v1563 = vunpack.c.h.b16 %v371
  %v1564 = vunpack.c.l.b16 %v372
  %v1565 = vunpack.c.l.b16 %v373
  %v1566 = vunpack.c.h.b16 %v373
  %v1567 = vunpack.c.l.b16 %v374
  %v1568 = vunpack.c.l.b16 %v375
  %v1569 = vunpack.c.h.b16 %v375
  %v1570 = vunpack.c.l.b16 %v376
  %v1571 = vunpack.c.l.b16 %v377
  %v1572 = vunpack.c.h.b16 %v377
  %v1573 = vunpack.c.l.b16 %v378
  %v1574 = vunpack.c.l.b16 %v379
  %v1575 = vunpack.c.h.b16 %v379
  %v1576 = vunpack.c.l.b16 %v380
  %v1577 = vunpack.c.l.b16 %v381
  %v1578 = vunpack.c.h.b16 %v381
  %v1579 = vunpack.c.l.b16 %v382
  %v1580 = vunpack.c.l.b16 %v383
  %v1581 = vunpack.c.h.b16 %v383
  %v1582 = vunpack.c.l.b16 %v384
  %v1583 = vunpack.c.l.b16 %v385
  %v1584 = vunpack.c.h.b16 %v385
  %v1585 = vunpack.c.l.b16 %v386
  %v1586 = vunpack.c.l.b16 %v387
  %v1587 = vunpack.c.h.b16 %v387
  %v1588 = vunpack.c.l.b16 %v388
  %v1589 = vunpack.c.l.b16 %v389
  %v1590 = vunpack.c.h.b16 %v389
  %v1591 = vunpack.c.l.b16 %v390
  %v1592 = vunpack.c.l.b16 %v391
  %v1593 = vunpack.c.h.b16 %v391
  %v1594 = vunpack.c.l.b16 %v392
  %v1595 = vunpack.c.l.b16 %v393
  %v1596 = vunpack.c.h.b16 %v393
  %v1597 = vunpack.c.l.b16 %v394
  %v1598 = vunpack.c.l.b16 %v395
  %v1599 = vunpack.c.h.b16 %v395
  %v1600 = vunpack.c.l.b16 %v396
  %v1601 = vunpack.c.l.b16 %v397
  %v1602 = vunpack.c.h.b16 %v397
  %v1603 = vunpack.c.l.b16 %v398
  %v1604 = vunpack.c.l.b16 %v399
  %v1605 = vunpack.c.h.b16 %v399
  %v1606 = vunpack.c.l.b16 %v400
  %v1607 = vunpack.c.l.b16 %v401
  %v1608 = vunpack.c.h.b16 %v401
  %v1609 = vunpack.c.l.b16 %v402
  %v1610 = vunpack.c.l.b16 %v403
  %v1611 = vunpack.c.h.b16 %v403
  %v1612 = vunpack.c.l.b16 %v404
  %v1613 = vunpack.c.l.b16 %v405
  %v1614 = vunpack.c.h.b16 %v405
  %v1615 = vunpack.c.l.b16 %v406
  %v1616 = vunpack.c.l.b16 %v407
  %v1617 = vunpack.c.h.b16 %v407
  %v1618 = vunpack.c.l.b16 %v408
  %v1619 = vunpack.c.l.b16 %v409
  %v1620 = vunpack.c.h.b16 %v409
  %v1621 = vunpack.c.l.b16 %v410
  %v1622 = vunpack.c.l.b16 %v411
  %v1623 = vunpack.c.h.b16 %v411
  %v1624 = vunpack.c.l.b16 %v412
  %v1625 = vunpack.c.l.b16 %v413
  %v1626 = vunpack.c.h.b16 %v413
  %v1627 = vunpack.c.l.b16 %v414
  %v1628 = vunpack.c.l.b16 %v415
  %v1629 = vunpack.c.h.b16 %v415
  %v1630 = vunpack.c.l.b16 %v416
  %v1631 = vunpack.c.l.b16 %v417
  %v1632 = vunpack.c.h.b16 %v417
  %v1633 = vunpack.c.l.b16 %v418
  %v1634 = vunpack.c.l.b16 %v419
  %v1635 = vunpack.c.h.b16 %v419
  %v1636 = vunpack.c.l.b16 %v420
  %v1637 = vunpack.c.l.b16 %v421
  %v1638 = vunpack.c.h.b16 %v421
  %v1639 = vunpack.c.l.b16 %v422
  %v1640 = vunpack.c.l.b16 %v423
  %v1641 = vunpack.c.h.b16 %v423
  %v1642 = vunpack.c.l.b16 %v424
  %v1643 = vunpack.c.l.b16 %v425
  %v1644 = vunpack.c.h.b16 %v425
  %v1645 = vunpack.c.l.b16 %v426
  %v1646 = vunpack.c.l.b16 %v427
  %v1647 = vunpack.c.h.b16 %v427
  %v1648 = vunpack.c.l.b16 %v428
  %v1649 = vunpack.c.l.b16 %v429
  %v1650 = vunpack.c.h.b16 %v429
  %v1651 = vunpack.c.l.b16 %v430
  %v1652 = vunpack.c.l.b16 %v431
  %v1653 = vunpack.c.h.b16 %v431
  %v1654 = vunpack.c.l.b16 %v432
  %v1655 = vunpack.c.l.b16 %v433
  %v1656 = vunpack.c.h.b16 %v433
  %v1657 = vunpack.c.l.b16 %v434
  %v1658 = vunpack.c.l.b16 %v435
  %v1659 = vunpack.c.h.b16 %v435
  %v1660 = vunpack.c.l.b16 %v436
  %v1661 = vunpack.c.l.b16 %v437
  %v1662 = vunpack.c.h.b16 %v437
  %v1663 = vunpack.c.l.b16 %v438
  %v1664 = vunpack.c.l.b16 %v439
  %v1665 = vunpack.c.h.b16 %v439
  %v1666 = vunpack.c.l.b16 %v440
  %v1667 = vunpack.c.l.b16 %v441
  %v1668 = vunpack.c.h.b16 %v441
  %v1669 = vunpack.c.l.b16 %v442
  %v1670 = vunpack.c.l.b16 %v443
  %v1671 = vunpack.c.h.b16 %v443
  %v1672 = vunpack.c.l.b16 %v444
  %v1673 = vunpack.c.l.b16 %v445
  %v1674 = vunpack.c.h.b16 %v445
  %v1675 = vunpack.c.l.b16 %v446
  %v1676 = vunpack.c.l.b16 %v447
  %v1677 = vunpack.c.h.b16 %v447
  %v1678 = vunpack.c.l.b16 %v448
  %v1679 = vunpack.c.l.b16 %v449
  %v1680 = vunpack.c.h.b16 %v449
  %v1681 = vunpack.c.l.b16 %v450
  %v1682 = vunpack.c.l.b16 %v451
  %v1683 = vunpack.c.h.b16 %v451
  %v1684 = vunpack.c.l.b16 %v452
  %v1685 = vunpack.c.l.b16 %v453
  %v1686 = vunpack.c.h.b16 %v453
  %v1687 = vunpack.c.l.b16 %v454
  %v1688 = vunpack.c.l.b16 %v455
  %v1689 = vunpack.c.h.b16 %v455
  %v1690 = vunpack.c.l.b16 %v456
  %v1691 = vunpack.c.l.b16 %v457
  %v1692 = vunpack.c.h.b16 %v457
  %v1693 = vunpack.c.l.b16 %v458
  %v1694 = vunpack.c.l.b16 %v459
  %v1695 = vunpack.c.h.b16 %v459
  %v1696 = vunpack.c.l.b16 %v460
  %v1697 = vunpack.c.l.b16 %v461
  %v1698 = vunpack.c.h.b16 %v461
  %v1699 = vunpack.c.l.b16 %v462
  %v1700 = vunpack.c.l.b16 %v463
  %v1701 = vunpack.c.h.b16 %v463
  %v1702 = vunpack.c.l.b16 %v464
  %v1703 = vunpack.c.l.b16 %v465
  %v1704 = vunpack.c.h.b16 %v465
  %v1705 = vunpack.c.l.b16 %v466
  %v1706 = vunpack.c.l.b16 %v467
  %v1707 = vunpack.c.h.b16 %v467
  %v1708 = vunpack.c.l.b16 %v468
  %v1709 = vunpack.c.l.b16 %v469
  %v1710 = vunpack.c.h.b16 %v469
  %v1711 = vunpack.c.l.b16 %v470
  %v1712 = vunpack.c.l.b16 %v471
  %v1713 = vunpack.c.h.b16 %v471
  %v1714 = vunpack.c.l.b16 %v472
  %v1715 = vunpack.c.l.b16 %v473
  %v1716 = vunpack.c.h.b16 %v473
  %v1717 = vunpack.c.l.b16 %v474
  %v1718 = vunpack.c.l.b16 %v475
  %v1719 = vunpack.c.h.b16 %v475
  %v1720 = vunpack.c.l.b16 %v476
  %v1721 = vunpack.c.l.b16 %v477
  %v1722 = vunpack.c.h.b16 %v477
  %v1723 = vunpack.c.l.b16 %v478
  %v1724 = vunpack.c.l.b16 %v479
  %v1725 = vunpack.c.h.b16 %v479
  %v1726 = vunpack.c.l.b16 %v480
  %v1727 = vunpack.c.l.b16 %v481
  %v1728 = vunpack.c.h.b16 %v481
  %v1729 = vunpack.c.l.b16 %v482
  %v1730 = vpack.c.b16 %v1061, %v1058
  %v1731 = vpack.c.b16 %v1062, %v1059
  %v1732 = vpack.c.b16 %v1063, %v1060
  %v1733 = vpack.c.b16 %v1067, %v1064
  %v1734 = vpack.c.b16 %v1068, %v1065
  %v1735 = vpack.c.b16 %v1069, %v1066
  %v1736 = vpack.c.b16 %v1073, %v1070
  %v1737 = vpack.c.b16 %v1074, %v1071
  %v1738 = vpack.c.b16 %v1075, %v1072
  %v1739 = vpack.c.b16 %v1079, %v1076
  %v1740 = vpack.c.b16 %v1080, %v1077
  %v1741 = vpack.c.b16 %v1081, %v1078
  %v1742 = vpack.c.b16 %v1085, %v1082
  %v1743 = vpack.c.b16 %v1086, %v1083
  %v1744 = vpack.c.b16 %v1087, %v1084
  %v1745 = vpack.c.b16 %v1091, %v1088
  %v1746 = vpack.c.b16 %v1092, %v1089
  %v1747 = vpack.c.b16 %v1093, %v1090
  %v1748 = vpack.c.b16 %v1097, %v1094
  %v1749 = vpack.c.b16 %v1098, %v1095
  %v1750 = vpack.c.b16 %v1099, %v1096
  %v1751 = vpack.c.b16 %v1103, %v1100
  %v1752 = vpack.c.b16 %v1104, %v1101
  %v1753 = vpack.c.b16 %v1105, %v1102
  %v1754 = vpack.c.b16 %v1109, %v1106
  %v1755 = vpack.c.b16 %v1110, %v1107
  %v1756 = vpack.c.b16 %v1111, %v1108
  %v1757 = vpack.c.b16 %v1115, %v1112
  %v1758 = vpack.c.b16 %v1116, %v1113
  %v1759 = vpack.c.b16 %v1117, %v1114
  %v1760 = vpack.c.b16 %v1121, %v1118
  %v1761 = vpack.c.b16 %v1122, %v1119
  %v1762 = vpack.c.b16 %v1123, %v1120
  %v1763 = vpack.c.b16 %v1127, %v1124
  %v1764 = vpack.c.b16 %v1128, %v1125
  %v1765 = vpack.c.b16 %v1129, %v1126
  %v1766 = vpack.c.b16 %v1133, %v1130
  %v1767 = vpack.c.b16 %v1134, %v1131
  %v1768 = vpack.c.b16 %v1135, %v1132
  %v1769 = vpack.c.b16 %v1139, %v1136
  %v1770 = vpack.c.b16 %v1140, %v1137
  %v1771 = vpack.c.b16 %v1141, %v1138
  %v1772 = vpack.c.b16 %v1145, %v1142
  %v1773 = vpack.c.b16 %v1146, %v1143
  %v1774 = vpack.c.b16 %v1147, %v1144
  %v1775 = vpack.c.b16 %v1151, %v1148
  %v1776 = vpack.c.b16 %v1152, %v1149
  %v1777 = vpack.c.b16 %v1153, %v1150
  %v1778 = vpack.c.b16 %v1157, %v1154
  %v1779 = vpack.c.b16 %v1158, %v1155
  %v1780 = vpack.c.b16 %v1159, %v1156
  %v1781 = vpack.c.b16 %v1163, %v1160
  %v1782 = vpack.c.b16 %v1164, %v1161
  %v1783 = vpack.c.b16 %v1165, %v1162
  %v1784 = vpack.c.b16 %v1169, %v1166
  %v1785 = vpack.c.b16 %v1170, %v1167
  %v1786 = vpack.c.b16 %v1171, %v1168
  %v1787 = vpack.c.b16 %v1175, %v1172
  %v1788 = vpack.c.b16 %v1176, %v1173
  %v1789 = vpack.c.b16 %v1177, %v1174
  %v1790 = vpack.c.b16 %v1181, %v1178
  %v1791 = vpack.c.b16 %v1182, %v1179
  %v1792 = vpack.c.b16 %v1183, %v1180
  %v1793 = vpack.c.b16 %v1187, %v1184
  %v1794 = vpack.c.b16 %v1188, %v1185
  %v1795 = vpack.c.b16 %v1189, %v1186
  %v1796 = vpack.c.b16 %v1193, %v1190
  %v1797 = vpack.c.b16 %v1194, %v1191
  %v1798 = vpack.c.b16 %v1195, %v1192
  %v1799 = vpack.c.b16 %v1199, %v1196
  %v1800 = vpack.c.b16 %v1200, %v1197
  %v1801 = vpack.c.b16 %v1201, %v1198
  %v1802 = vpack.c.b16 %v1205, %v1202
  %v1803 = vpack.c.b16 %v1206, %v1203
  %v1804 = vpack.c.b16 %v1207, %v1204
  %v1805 = vpack.c.b16 %v1211, %v1208
  %v1806 = vpack.c.b16 %v1212, %v1209
  %v1807 = vpack.c.b16 %v1213, %v1210
  %v1808 = vpack.c.b16 %v1217, %v1214
  %v1809 = vpack.c.b16 %v1218, %v1215
  %v1810 = vpack.c.b16 %v1219, %v1216
  %v1811 = vpack.c.b16 %v1223, %v1220
  %v1812 = vpack.c.b16 %v1224, %v1221
  %v1813 = vpack.c.b16 %v1225, %v1222
  %v1814 = vpack.c.b16 %v1229, %v1226
  %v1815 = vpack.c.b16 %v1230, %v1227
  %v1816 = vpack.c.b16 %v1231, %v1228
  %v1817 = vpack.c.b16 %v1235, %v1232
  %v1818 = vpack.c.b16 %v1236, %v1233
  %v1819 = vpack.c.b16 %v1237, %v1234
  %v1820 = vpack.c.b16 %v1241, %v1238
  %v1821 = vpack.c.b16 %v1242, %v1239
  %v1822 = vpack.c.b16 %v1243, %v1240
  %v1823 = vpack.c.b16 %v1247, %v1244
  %v1824 = vpack.c.b16 %v1248, %v1245
  %v1825 = vpack.c.b16 %v1249, %v1246
  %v1826 = vpack.c.b16 %v1253, %v1250
  %v1827 = vpack.c.b16 %v1254, %v1251
  %v1828 = vpack.c.b16 %v1255, %v1252
  %v1829 = vpack.c.b16 %v1259, %v1256
  %v1830 = vpack.c.b16 %v1260, %v1257
  %v1831 = vpack.c.b16 %v1261, %v1258
  %v1832 = vpack.c.b16 %v1265, %v1262
  %v1833 = vpack.c.b16 %v1266, %v1263
  %v1834 = vpack.c.b16 %v1267, %v1264
  %v1835 = vpack.c.b16 %v1271, %v1268
  %v1836 = vpack.c.b16 %v1272, %v1269
  %v1837 = vpack.c.b16 %v1273, %v1270
  %v1838 = vpack.c.b16 %v1277, %v1274
  %v1839 = vpack.c.b16 %v1278, %v1275
  %v1840 = vpack.c.b16 %v1279, %v1276
  %v1841 = vpack.c.b16 %v1283, %v1280
  %v1842 = vpack.c.b16 %v1284, %v1281
  %v1843 = vpack.c.b16 %v1285, %v1282
  %v1844 = vpack.c.b16 %v1289, %v1286
  %v1845 = vpack.c.b16 %v1290, %v1287
  %v1846 = vpack.c.b16 %v1291, %v1288
  %v1847 = vpack.c.b16 %v1295, %v1292
  %v1848 = vpack.c.b16 %v1296, %v1293
  %v1849 = vpack.c.b16 %v1297, %v1294
  %v1850 = vpack.c.b16 %v1301, %v1298
  %v1851 = vpack.c.b16 %v1302, %v1299
  %v1852 = vpack.c.b16 %v1303, %v1300
  %v1853 = vpack.c.b16 %v1307, %v1304
  %v1854 = vpack.c.b16 %v1308, %v1305
  %v1855 = vpack.c.b16 %v1309, %v1306
  %v1856 = vpack.c.b16 %v1313, %v1310
  %v1857 = vpack.c.b16 %v1314, %v1311
  %v1858 = vpack.c.b16 %v1315, %v1312
  %v1859 = vpack.c.b16 %v1319, %v1316
  %v1860 = vpack.c.b16 %v1320, %v1317
  %v1861 = vpack.c.b16 %v1321, %v1318
  %v1862 = vpack.c.b16 %v1325, %v1322
  %v1863 = vpack.c.b16 %v1326, %v1323
  %v1864 = vpack.c.b16 %v1327, %v1324
  %v1865 = vpack.c.b16 %v1331, %v1328
  %v1866 = vpack.c.b16 %v1332, %v1329
  %v1867 = vpack.c.b16 %v1333, %v1330
  %v1868 = vpack.c.b16 %v1337, %v1334
  %v1869 = vpack.c.b16 %v1338, %v1335
  %v1870 = vpack.c.b16 %v1339, %v1336
  %v1871 = vpack.c.b16 %v1343, %v1340
  %v1872 = vpack.c.b16 %v1344, %v1341
  %v1873 = vpack.c.b16 %v1345, %v1342
  %v1874 = vpack.c.b16 %v1349, %v1346
  %v1875 = vpack.c.b16 %v1350, %v1347
  %v1876 = vpack.c.b16 %v1351, %v1348
  %v1877 = vpack.c.b16 %v1355, %v1352
  %v1878 = vpack.c.b16 %v1356, %v1353
  %v1879 = vpack.c.b16 %v1357, %v1354
  %v1880 = vpack.c.b16 %v1361, %v1358
  %v1881 = vpack.c.b16 %v1362, %v1359
  %v1882 = vpack.c.b16 %v1363, %v1360
  %v1883 = vpack.c.b16 %v1367, %v1364
  %v1884 = vpack.c.b16 %v1368, %v1365
  %v1885 = vpack.c.b16 %v1369, %v1366
  %v1886 = vpack.c.b16 %v1373, %v1370
  %v1887 = vpack.c.b16 %v1374, %v1371
  %v1888 = vpack.c.b16 %v1375, %v1372
  %v1889 = vpack.c.b16 %v1379, %v1376
  %v1890 = vpack.c.b16 %v1380, %v1377
  %v1891 = vpack.c.b16 %v1381, %v1378
  %v1892 = vpack.c.b16 %v1385, %v1382
  %v1893 = vpack.c.b16 %v1386, %v1383
  %v1894 = vpack.c.b16 %v1387, %v1384
  %v1895 = vpack.c.b16 %v1391, %v1388
  %v1896 = vpack.c.b16 %v1392, %v1389
  %v1897 = vpack.c.b16 %v1393, %v1390
  %v1898 = vpack.c.b16 %v1397, %v1394
  %v1899 = vpack.c.b16 %v1398, %v1395
  %v1900 = vpack.c.b16 %v1399, %v1396
  %v1901 = vpack.c.b16 %v1403, %v1400
  %v1902 = vpack.c.b16 %v1404, %v1401
  %v1903 = vpack.c.b16 %v1405, %v1402
  %v1904 = vpack.c.b16 %v1409, %v1406
  %v1905 = vpack.c.b16 %v1410, %v1407
  %v1906 = vpack.c.b16 %v1411, %v1408
  %v1907 = vpack.c.b16 %v1415, %v1412
  %v1908 = vpack.c.b16 %v1416, %v1413
  %v1909 = vpack.c.b16 %v1417, %v1414
  %v1910 = vpack.c.b16 %v1421, %v1418
  %v1911 = vpack.c.b16 %v1422, %v1419
  %v1912 = vpack.c.b16 %v1423, %v1420
  %v1913 = vpack.c.b16 %v1427, %v1424
  %v1914 = vpack.c.b16 %v1428, %v1425
  %v1915 = vpack.c.b16 %v1429, %v1426
  %v1916 = vpack.c.b16 %v1433, %v1430
  %v1917 = vpack.c.b16 %v1434, %v1431
  %v1918 = vpack.c.b16 %v1435, %v1432
  %v1919 = vpack.c.b16 %v1439, %v1436
  %v1920 = vpack.c.b16 %v1440, %v1437
  %v1921 = vpack.c.b16 %v1441, %v1438
  %v1922 = vpack.c.b16 %v1445, %v1442
  %v1923 = vpack.c.b16 %v1446, %v1443
  %v1924 = vpack.c.b16 %v1447, %v1444
  %v1925 = vpack.c.b16 %v1451, %v1448
  %v1926 = vpack.c.b16 %v1452, %v1449
  %v1927 = vpack.c.b16 %v1453, %v1450
  %v1928 = vpack.c.b16 %v1457, %v1454
  %v1929 = vpack.c.b16 %v1458, %v1455
  %v1930 = vpack.c.b16 %v1459, %v1456
  %v1931 = vpack.c.b16 %v1463, %v1460
  %v1932 = vpack.c.b16 %v1464, %v1461
  %v1933 = vpack.c.b16 %v1465, %v1462
  %v1934 = vpack.c.b16 %v1469, %v1466
  %v1935 = vpack.c.b16 %v1470, %v1467
  %v1936 = vpack.c.b16 %v1471, %v1468
  %v1937 = vpack.c.b16 %v1475, %v1472
  %v1938 = vpack.c.b16 %v1476, %v1473
  %v1939 = vpack.c.b16 %v1477, %v1474
  %v1940 = vpack.c.b16 %v1481, %v1478
  %v1941 = vpack.c.b16 %v1482, %v1479
  %v1942 = vpack.c.b16 %v1483, %v1480
  %v1943 = vpack.c.b16 %v1487, %v1484
  %v1944 = vpack.c.b16 %v1488, %v1485
  %v1945 = vpack.c.b16 %v1489, %v1486
  %v1946 = vpack.c.b16 %v1493, %v1490
  %v1947 = vpack.c.b16 %v1494, %v1491
  %v1948 = vpack.c.b16 %v1495, %v1492
  %v1949 = vpack.c.b16 %v1499, %v1496
  %v1950 = vpack.c.b16 %v1500, %v1497
  %v1951 = vpack.c.b16 %v1501, %v1498
  %v1952 = vpack.c.b16 %v1505, %v1502
  %v1953 = vpack.c.b16 %v1506, %v1503
  %v1954 = vpack.c.b16 %v1507, %v1504
  %v1955 = vpack.c.b16 %v1511, %v1508
  %v1956 = vpack.c.b16 %v1512, %v1509
  %v1957 = vpack.c.b16 %v1513, %v1510
  %v1958 = vpack.c.b16 %v1517, %v1514
  %v1959 = vpack.c.b16 %v1518, %v1515
  %v1960 = vpack.c.b16 %v1519, %v1516
  %v1961 = vpack.c.b16 %v1523, %v1520
  %v1962 = vpack.c.b16 %v1524, %v1521
  %v1963 = vpack.c.b16 %v1525, %v1522
  %v1964 = vpack.c.b16 %v1529, %v1526
  %v1965 = vpack.c.b16 %v1530, %v1527
  %v1966 = vpack.c.b16 %v1531, %v1528
  %v1967 = vpack.c.b16 %v1535, %v1532
  %v1968 = vpack.c.b16 %v1536, %v1533
  %v1969 = vpack.c.b16 %v1537, %v1534
  %v1970 = vpack.c.b16 %v1541, %v1538
  %v1971 = vpack.c.b16 %v1542, %v1539
  %v1972 = vpack.c.b16 %v1543, %v1540
  %v1973 = vpack.c.b16 %v1547, %v1544
  %v1974 = vpack.c.b16 %v1548, %v1545
  %v1975 = vpack.c.b16 %v1549, %v1546
  %v1976 = vpack.c.b16 %v1553, %v1550
  %v1977 = vpack.c.b16 %v1554, %v1551
  %v1978 = vpack.c.b16 %v1555, %v1552
  %v1979 = vpack.c.b16 %v1559, %v1556
  %v1980 = vpack.c.b16 %v1560, %v1557
  %v1981 = vpack.c.b16 %v1561, %v1558
  %v1982 = vpack.c.b16 %v1565, %v1562
  %v1983 = vpack.c.b16 %v1566, %v1563
  %v1984 = vpack.c.b16 %v1567, %v1564
  %v1985 = vpack.c.b16 %v1571, %v1568
  %v1986 = vpack.c.b16 %v1572, %v1569
  %v1987 = vpack.c.b16 %v1573, %v1570
  %v1988 = vpack.c.b16 %v1577, %v1574
  %v1989 = vpack.c.b16 %v1578, %v1575
  %v1990 = vpack.c.b16 %v1579, %v1576
  %v1991 = vpack.c.b16 %v1583, %v1580
  %v1992 = vpack.c.b16 %v1584, %v1581
  %v1993 = vpack.c.b16 %v1585, %v1582
  %v1994 = vpack.c.b16 %v1589, %v1586
  %v1995 = vpack.c.b16 %v1590, %v1587
  %v1996 = vpack.c.b16 %v1591, %v1588
  %v1997 = vpack.c.b16 %v1595, %v1592
  %v1998 = vpack.c.b16 %v1596, %v1593
  %v1999 = vpack.c.b16 %v1597, %v1594
  %v2000 = vpack.c.b16 %v1601, %v1598
  %v2001 = vpack.c.b16 %v1602, %v1599
  %v2002 = vpack.c.b16 %v1603, %v1600
  %v2003 = vpack.c.b16 %v1607, %v1604
  %v2004 = vpack.c.b16 %v1608, %v1605
  %v2005 = vpack.c.b16 %v1609, %v1606
  %v2006 = vpack.c.b16 %v1613, %v1610
  %v2007 = vpack.c.b16 %v1614, %v1611
  %v2008 = vpack.c.b16 %v1615, %v1612
  %v2009 = vpack.c.b16 %v1619, %v1616
  %v2010 = vpack.c.b16 %v1620, %v1617
  %v2011 = vpack.c.b16 %v1621, %v1618
  %v2012 = vpack.c.b16 %v1625, %v1622
  %v2013 = vpack.c.b16 %v1626, %v1623
  %v2014 = vpack.c.b16 %v1627, %v1624
  %v2015 = vpack.c.b16 %v1631, %v1628
  %v2016 = vpack.c.b16 %v1632, %v1629
  %v2017 = vpack.c.b16 %v1633, %v1630
  %v2018 = vpack.c.b16 %v1637, %v1634
  %v2019 = vpack.c.b16 %v1638, %v1635
  %v2020 = vpack.c.b16 %v1639, %v1636
  %v2021 = vpack.c.b16 %v1643, %v1640
  %v2022 = vpack.c.b16 %v1644, %v1641
  %v2023 = vpack.c.b16 %v1645, %v1642
  %v2024 = vpack.c.b16 %v1649, %v1646
  %v2025 = vpack.c.b16 %v1650, %v1647
  %v2026 = vpack.c.b16 %v1651, %v1648
  %v2027 = vpack.c.b16 %v1655, %v1652
  %v2028 = vpack.c.b16 %v1656, %v1653
  %v2029 = vpack.c.b16 %v1657, %v1654
  %v2030 = vpack.c.b16 %v1661, %v1658
  %v2031 = vpack.c.b16 %v1662, %v1659
  %v2032 = vpack.c.b16 %v1663, %v1660
  %v2033 = vpack.c.b16 %v1667, %v1664
  %v2034 = vpack.c.b16 %v1668, %v1665
  %v2035 = vpack.c.b16 %v1669, %v1666
  %v2036 = vpack.c.b16 %v1673, %v1670
  %v2037 = vpack.c.b16 %v1674, %v1671
  %v2038 = vpack.c.b16 %v1675, %v1672
  %v2039 = vpack.c.b16 %v1679, %v1676
  %v2040 = vpack.c.b16 %v1680, %v1677
  %v2041 = vpack.c.b16 %v1681, %v1678
  %v2042 = vpack.c.b16 %v1685, %v1682
  %v2043 = vpack.c.b16 %v1686, %v1683
  %v2044 = vpack.c.b16 %v1687, %v1684
  %v2045 = vpack.c.b16 %v1691, %v1688
  %v2046 = vpack.c.b16 %v1692, %v1689
  %v2047 = vpack.c.b16 %v1693, %v1690
  %v2048 = vpack.c.b16 %v1697, %v1694
  %v2049 = vpack.c.b16 %v1698, %v1695
  %v2050 = vpack.c.b16 %v1699, %v1696
  %v2051 = vpack.c.b16 %v1703, %v1700
  %v2052 = vpack.c.b16 %v1704, %v1701
  %v2053 = vpack.c.b16 %v1705, %v1702
  %v2054 = vpack.c.b16 %v1709, %v1706
  %v2055 = vpack.c.b16 %v1710, %v1707
  %v2056 = vpack.c.b16 %v1711, %v1708
  %v2057 = vpack.c.b16 %v1715, %v1712
  %v2058 = vpack.c.b16 %v1716, %v1713
  %v2059 = vpack.c.b16 %v1717, %v1714
  %v2060 = vpack.c.b16 %v1721, %v1718
  %v2061 = vpack.c.b16 %v1722, %v1719
  %v2062 = vpack.c.b16 %v1723, %v1720
  %v2063 = vpack.c.b16 %v1727, %v1724
  %v2064 = vpack.c.b16 %v1728, %v1725
  %v2065 = vpack.c.b16 %v1729, %v1726
  %2402 = vmatpush.bf16.msra.mxu0 %v1751
  %2403 = vmatpush.bf16.msra.mxu0 %v1748
  %2404 = vmatpush.bf16.msra.mxu0 %v1745
  %2405 = vmatpush.bf16.msra.mxu0 %v1742
  %2406 = vmatpush.bf16.msra.mxu0 %v1739
  %2407 = vmatpush.bf16.msra.mxu0 %v1736
  %2408 = vmatpush.bf16.msra.mxu0 %v1733
  %2409 = vmatpush.bf16.msra.mxu0 %v1730
  %2410 = vmatmul.bf16.gmra.mxu0 %v554
  %v2411 = vpop.f32.mrf.mxu0
  %v2412 = vadd.f32 %v485, %v2411
  %v2413 = vpop.f32.mrf.mxu0
  %v2414 = vadd.f32 %v485, %v2413
  %2415 = vmatmul.bf16.gmra.mxu0 %v568
  %v2416 = vpop.f32.mrf.mxu0
  %v2417 = vadd.f32 %v485, %v2416
  %v2418 = vpop.f32.mrf.mxu0
  %2419 = vdwg.mxu0
  %2420 = vmatpush.bf16.msra.mxu0 %v1775
  %2421 = vmatpush.bf16.msra.mxu0 %v1772
  %2422 = vmatpush.bf16.msra.mxu0 %v1769
  %2423 = vmatpush.bf16.msra.mxu0 %v1766
  %2424 = vmatpush.bf16.msra.mxu0 %v1763
  %2425 = vmatpush.bf16.msra.mxu0 %v1760
  %2426 = vmatpush.bf16.msra.mxu0 %v1757
  %2427 = vmatpush.bf16.msra.mxu0 %v1754
  %2428 = vmatmul.bf16.gmra.mxu0 %v555
  %v2429 = vpop.f32.mrf.mxu0
  %v2430 = vadd.f32 %v2412, %v2429
  %v2431 = vpop.f32.mrf.mxu0
  %v2432 = vadd.f32 %v2414, %v2431
  %2433 = vmatmul.bf16.gmra.mxu0 %v569
  %v2434 = vpop.f32.mrf.mxu0
  %v2435 = vadd.f32 %v2417, %v2434
  %v2436 = vpop.f32.mrf.mxu0
  %2437 = vdwg.mxu0
  %2438 = vmatpush.bf16.msra.mxu0 %v1799
  %2439 = vmatpush.bf16.msra.mxu0 %v1796
  %2440 = vmatpush.bf16.msra.mxu0 %v1793
  %2441 = vmatpush.bf16.msra.mxu0 %v1790
  %2442 = vmatpush.bf16.msra.mxu0 %v1787
  %2443 = vmatpush.bf16.msra.mxu0 %v1784
  %2444 = vmatpush.bf16.msra.mxu0 %v1781
  %2445 = vmatpush.bf16.msra.mxu0 %v1778
  %2446 = vmatmul.bf16.gmra.mxu0 %v556
  %v2447 = vpop.f32.mrf.mxu0
  %v2448 = vadd.f32 %v2430, %v2447
  %v2449 = vpop.f32.mrf.mxu0
  %v2450 = vadd.f32 %v2432, %v2449
  %2451 = vmatmul.bf16.gmra.mxu0 %v570
  %v2452 = vpop.f32.mrf.mxu0
  %v2453 = vadd.f32 %v2435, %v2452
  %v2454 = vpop.f32.mrf.mxu0
  %2455 = vdwg.mxu0
  %2456 = vmatpush.bf16.msra.mxu0 %v1823
  %2457 = vmatpush.bf16.msra.mxu0 %v1820
  %2458 = vmatpush.bf16.msra.mxu0 %v1817
  %2459 = vmatpush.bf16.msra.mxu0 %v1814
  %2460 = vmatpush.bf16.msra.mxu0 %v1811
  %2461 = vmatpush.bf16.msra.mxu0 %v1808
  %2462 = vmatpush.bf16.msra.mxu0 %v1805
  %2463 = vmatpush.bf16.msra.mxu0 %v1802
  %2464 = vmatmul.bf16.gmra.mxu0 %v557
  %v2465 = vpop.f32.mrf.mxu0
  %v2466 = vadd.f32 %v2448, %v2465
  %v2467 = vpop.f32.mrf.mxu0
  %v2468 = vadd.f32 %v2450, %v2467
  %2469 = vmatmul.bf16.gmra.mxu0 %v571
  %v2470 = vpop.f32.mrf.mxu0
  %v2471 = vadd.f32 %v2453, %v2470
  %v2472 = vpop.f32.mrf.mxu0
  %2473 = vdwg.mxu0
  %2474 = vmatpush.bf16.msra.mxu0 %v1847
  %2475 = vmatpush.bf16.msra.mxu0 %v1844
  %2476 = vmatpush.bf16.msra.mxu0 %v1841
  %2477 = vmatpush.bf16.msra.mxu0 %v1838
  %2478 = vmatpush.bf16.msra.mxu0 %v1835
  %2479 = vmatpush.bf16.msra.mxu0 %v1832
  %2480 = vmatpush.bf16.msra.mxu0 %v1829
  %2481 = vmatpush.bf16.msra.mxu0 %v1826
  %2482 = vmatmul.bf16.gmra.mxu0 %v558
  %v2483 = vpop.f32.mrf.mxu0
  %v2484 = vadd.f32 %v2466, %v2483
  %v2485 = vpop.f32.mrf.mxu0
  %v2486 = vadd.f32 %v2468, %v2485
  %2487 = vmatmul.bf16.gmra.mxu0 %v572
  %v2488 = vpop.f32.mrf.mxu0
  %v2489 = vadd.f32 %v2471, %v2488
  %v2490 = vpop.f32.mrf.mxu0
  %2491 = vdwg.mxu0
  %2492 = vmatpush.bf16.msra.mxu0 %v1871
  %2493 = vmatpush.bf16.msra.mxu0 %v1868
  %2494 = vmatpush.bf16.msra.mxu0 %v1865
  %2495 = vmatpush.bf16.msra.mxu0 %v1862
  %2496 = vmatpush.bf16.msra.mxu0 %v1859
  %2497 = vmatpush.bf16.msra.mxu0 %v1856
  %2498 = vmatpush.bf16.msra.mxu0 %v1853
  %2499 = vmatpush.bf16.msra.mxu0 %v1850
  %2500 = vmatmul.bf16.gmra.mxu0 %v559
  %v2501 = vpop.f32.mrf.mxu0
  %v2502 = vadd.f32 %v2484, %v2501
  %v2503 = vpop.f32.mrf.mxu0
  %v2504 = vadd.f32 %v2486, %v2503
  %2505 = vmatmul.bf16.gmra.mxu0 %v573
  %v2506 = vpop.f32.mrf.mxu0
  %v2507 = vadd.f32 %v2489, %v2506
  %v2508 = vpop.f32.mrf.mxu0
  %2509 = vdwg.mxu0
  %2510 = vmatpush.bf16.msra.mxu0 %v1895
  %2511 = vmatpush.bf16.msra.mxu0 %v1892
  %2512 = vmatpush.bf16.msra.mxu0 %v1889
  %2513 = vmatpush.bf16.msra.mxu0 %v1886
  %2514 = vmatpush.bf16.msra.mxu0 %v1883
  %2515 = vmatpush.bf16.msra.mxu0 %v1880
  %2516 = vmatpush.bf16.msra.mxu0 %v1877
  %2517 = vmatpush.bf16.msra.mxu0 %v1874
  %2518 = vmatmul.bf16.gmra.mxu0 %v560
  %v2519 = vpop.f32.mrf.mxu0
  %v2520 = vadd.f32 %v2502, %v2519
  %v2521 = vpop.f32.mrf.mxu0
  %v2522 = vadd.f32 %v2504, %v2521
  %2523 = vmatmul.bf16.gmra.mxu0 %v574
  %v2524 = vpop.f32.mrf.mxu0
  %v2525 = vadd.f32 %v2507, %v2524
  %v2526 = vpop.f32.mrf.mxu0
  %2527 = vdwg.mxu0
  %2528 = vmatpush.bf16.msra.mxu0 %v1919
  %2529 = vmatpush.bf16.msra.mxu0 %v1916
  %2530 = vmatpush.bf16.msra.mxu0 %v1913
  %2531 = vmatpush.bf16.msra.mxu0 %v1910
  %2532 = vmatpush.bf16.msra.mxu0 %v1907
  %2533 = vmatpush.bf16.msra.mxu0 %v1904
  %2534 = vmatpush.bf16.msra.mxu0 %v1901
  %2535 = vmatpush.bf16.msra.mxu0 %v1898
  %2536 = vmatmul.bf16.gmra.mxu0 %v561
  %v2537 = vpop.f32.mrf.mxu0
  %v2538 = vadd.f32 %v2520, %v2537
  %v2539 = vpop.f32.mrf.mxu0
  %v2540 = vadd.f32 %v2522, %v2539
  %2541 = vmatmul.bf16.gmra.mxu0 %v575
  %v2542 = vpop.f32.mrf.mxu0
  %v2543 = vadd.f32 %v2525, %v2542
  %v2544 = vpop.f32.mrf.mxu0
  %2545 = vdwg.mxu0
  %2546 = vmatpush.bf16.msra.mxu0 %v1943
  %2547 = vmatpush.bf16.msra.mxu0 %v1940
  %2548 = vmatpush.bf16.msra.mxu0 %v1937
  %2549 = vmatpush.bf16.msra.mxu0 %v1934
  %2550 = vmatpush.bf16.msra.mxu0 %v1931
  %2551 = vmatpush.bf16.msra.mxu0 %v1928
  %2552 = vmatpush.bf16.msra.mxu0 %v1925
  %2553 = vmatpush.bf16.msra.mxu0 %v1922
  %2554 = vmatmul.bf16.gmra.mxu0 %v562
  %v2555 = vpop.f32.mrf.mxu0
  %v2556 = vadd.f32 %v2538, %v2555
  %v2557 = vpop.f32.mrf.mxu0
  %v2558 = vadd.f32 %v2540, %v2557
  %2559 = vmatmul.bf16.gmra.mxu0 %v576
  %v2560 = vpop.f32.mrf.mxu0
  %v2561 = vadd.f32 %v2543, %v2560
  %v2562 = vpop.f32.mrf.mxu0
  %2563 = vdwg.mxu0
  %2564 = vmatpush.bf16.msra.mxu0 %v1967
  %2565 = vmatpush.bf16.msra.mxu0 %v1964
  %2566 = vmatpush.bf16.msra.mxu0 %v1961
  %2567 = vmatpush.bf16.msra.mxu0 %v1958
  %2568 = vmatpush.bf16.msra.mxu0 %v1955
  %2569 = vmatpush.bf16.msra.mxu0 %v1952
  %2570 = vmatpush.bf16.msra.mxu0 %v1949
  %2571 = vmatpush.bf16.msra.mxu0 %v1946
  %2572 = vmatmul.bf16.gmra.mxu0 %v563
  %v2573 = vpop.f32.mrf.mxu0
  %v2574 = vadd.f32 %v2556, %v2573
  %v2575 = vpop.f32.mrf.mxu0
  %v2576 = vadd.f32 %v2558, %v2575
  %2577 = vmatmul.bf16.gmra.mxu0 %v577
  %v2578 = vpop.f32.mrf.mxu0
  %v2579 = vadd.f32 %v2561, %v2578
  %v2580 = vpop.f32.mrf.mxu0
  %2581 = vdwg.mxu0
  %2582 = vmatpush.bf16.msra.mxu0 %v1991
  %2583 = vmatpush.bf16.msra.mxu0 %v1988
  %2584 = vmatpush.bf16.msra.mxu0 %v1985
  %2585 = vmatpush.bf16.msra.mxu0 %v1982
  %2586 = vmatpush.bf16.msra.mxu0 %v1979
  %2587 = vmatpush.bf16.msra.mxu0 %v1976
  %2588 = vmatpush.bf16.msra.mxu0 %v1973
  %2589 = vmatpush.bf16.msra.mxu0 %v1970
  %2590 = vmatmul.bf16.gmra.mxu0 %v564
  %v2591 = vpop.f32.mrf.mxu0
  %v2592 = vadd.f32 %v2574, %v2591
  %v2593 = vpop.f32.mrf.mxu0
  %v2594 = vadd.f32 %v2576, %v2593
  %2595 = vmatmul.bf16.gmra.mxu0 %v578
  %v2596 = vpop.f32.mrf.mxu0
  %v2597 = vadd.f32 %v2579, %v2596
  %v2598 = vpop.f32.mrf.mxu0
  %2599 = vdwg.mxu0
  %2600 = vmatpush.bf16.msra.mxu0 %v2015
  %2601 = vmatpush.bf16.msra.mxu0 %v2012
  %2602 = vmatpush.bf16.msra.mxu0 %v2009
  %2603 = vmatpush.bf16.msra.mxu0 %v2006
  %2604 = vmatpush.bf16.msra.mxu0 %v2003
  %2605 = vmatpush.bf16.msra.mxu0 %v2000
  %2606 = vmatpush.bf16.msra.mxu0 %v1997
  %2607 = vmatpush.bf16.msra.mxu0 %v1994
  %2608 = vmatmul.bf16.gmra.mxu0 %v565
  %v2609 = vpop.f32.mrf.mxu0
  %v2610 = vadd.f32 %v2592, %v2609
  %v2611 = vpop.f32.mrf.mxu0
  %v2612 = vadd.f32 %v2594, %v2611
  %2613 = vmatmul.bf16.gmra.mxu0 %v579
  %v2614 = vpop.f32.mrf.mxu0
  %v2615 = vadd.f32 %v2597, %v2614
  %v2616 = vpop.f32.mrf.mxu0
  %2617 = vdwg.mxu0
  %2618 = vmatpush.bf16.msra.mxu0 %v2039
  %2619 = vmatpush.bf16.msra.mxu0 %v2036
  %2620 = vmatpush.bf16.msra.mxu0 %v2033
  %2621 = vmatpush.bf16.msra.mxu0 %v2030
  %2622 = vmatpush.bf16.msra.mxu0 %v2027
  %2623 = vmatpush.bf16.msra.mxu0 %v2024
  %2624 = vmatpush.bf16.msra.mxu0 %v2021
  %2625 = vmatpush.bf16.msra.mxu0 %v2018
  %2626 = vmatmul.bf16.gmra.mxu0 %v566
  %v2627 = vpop.f32.mrf.mxu0
  %v2628 = vadd.f32 %v2610, %v2627
  %v2629 = vpop.f32.mrf.mxu0
  %v2630 = vadd.f32 %v2612, %v2629
  %2631 = vmatmul.bf16.gmra.mxu0 %v580
  %v2632 = vpop.f32.mrf.mxu0
  %v2633 = vadd.f32 %v2615, %v2632
  %v2634 = vpop.f32.mrf.mxu0
  %2635 = vdwg.mxu0
  %2636 = vmatpush.bf16.msra.mxu0 %v2063
  %2637 = vmatpush.bf16.msra.mxu0 %v2060
  %2638 = vmatpush.bf16.msra.mxu0 %v2057
  %2639 = vmatpush.bf16.msra.mxu0 %v2054
  %2640 = vmatpush.bf16.msra.mxu0 %v2051
  %2641 = vmatpush.bf16.msra.mxu0 %v2048
  %2642 = vmatpush.bf16.msra.mxu0 %v2045
  %2643 = vmatpush.bf16.msra.mxu0 %v2042
  %2644 = vmatmul.bf16.gmra.mxu0 %v567
  %v2645 = vpop.f32.mrf.mxu0
  %v2646 = vadd.f32 %v2628, %v2645
  %v2647 = vpop.f32.mrf.mxu0
  %v2648 = vadd.f32 %v2630, %v2647
  %2649 = vmatmul.bf16.gmra.mxu0 %v581
  %v2650 = vpop.f32.mrf.mxu0
  %v2651 = vadd.f32 %v2633, %v2650
  %v2652 = vpop.f32.mrf.mxu0
  %2653 = vdwg.mxu0
  %2654 = vmatpush.bf16.msra.mxu0 %v1752
  %2655 = vmatpush.bf16.msra.mxu0 %v1749
  %2656 = vmatpush.bf16.msra.mxu0 %v1746
  %2657 = vmatpush.bf16.msra.mxu0 %v1743
  %2658 = vmatpush.bf16.msra.mxu0 %v1740
  %2659 = vmatpush.bf16.msra.mxu0 %v1737
  %2660 = vmatpush.bf16.msra.mxu0 %v1734
  %2661 = vmatpush.bf16.msra.mxu0 %v1731
  %2662 = vmatmul.bf16.gmra.mxu0 %v554
  %v2663 = vpop.f32.mrf.mxu0
  %v2664 = vadd.f32 %v486, %v2663
  %v2665 = vpop.f32.mrf.mxu0
  %v2666 = vadd.f32 %v486, %v2665
  %2667 = vmatmul.bf16.gmra.mxu0 %v568
  %v2668 = vpop.f32.mrf.mxu0
  %v2669 = vadd.f32 %v486, %v2668
  %v2670 = vpop.f32.mrf.mxu0
  %2671 = vdwg.mxu0
  %2672 = vmatpush.bf16.msra.mxu0 %v1776
  %2673 = vmatpush.bf16.msra.mxu0 %v1773
  %2674 = vmatpush.bf16.msra.mxu0 %v1770
  %2675 = vmatpush.bf16.msra.mxu0 %v1767
  %2676 = vmatpush.bf16.msra.mxu0 %v1764
  %2677 = vmatpush.bf16.msra.mxu0 %v1761
  %2678 = vmatpush.bf16.msra.mxu0 %v1758
  %2679 = vmatpush.bf16.msra.mxu0 %v1755
  %2680 = vmatmul.bf16.gmra.mxu0 %v555
  %v2681 = vpop.f32.mrf.mxu0
  %v2682 = vadd.f32 %v2664, %v2681
  %v2683 = vpop.f32.mrf.mxu0
  %v2684 = vadd.f32 %v2666, %v2683
  %2685 = vmatmul.bf16.gmra.mxu0 %v569
  %v2686 = vpop.f32.mrf.mxu0
  %v2687 = vadd.f32 %v2669, %v2686
  %v2688 = vpop.f32.mrf.mxu0
  %2689 = vdwg.mxu0
  %2690 = vmatpush.bf16.msra.mxu0 %v1800
  %2691 = vmatpush.bf16.msra.mxu0 %v1797
  %2692 = vmatpush.bf16.msra.mxu0 %v1794
  %2693 = vmatpush.bf16.msra.mxu0 %v1791
  %2694 = vmatpush.bf16.msra.mxu0 %v1788
  %2695 = vmatpush.bf16.msra.mxu0 %v1785
  %2696 = vmatpush.bf16.msra.mxu0 %v1782
  %2697 = vmatpush.bf16.msra.mxu0 %v1779
  %2698 = vmatmul.bf16.gmra.mxu0 %v556
  %v2699 = vpop.f32.mrf.mxu0
  %v2700 = vadd.f32 %v2682, %v2699
  %v2701 = vpop.f32.mrf.mxu0
  %v2702 = vadd.f32 %v2684, %v2701
  %2703 = vmatmul.bf16.gmra.mxu0 %v570
  %v2704 = vpop.f32.mrf.mxu0
  %v2705 = vadd.f32 %v2687, %v2704
  %v2706 = vpop.f32.mrf.mxu0
  %2707 = vdwg.mxu0
  %2708 = vmatpush.bf16.msra.mxu0 %v1824
  %2709 = vmatpush.bf16.msra.mxu0 %v1821
  %2710 = vmatpush.bf16.msra.mxu0 %v1818
  %2711 = vmatpush.bf16.msra.mxu0 %v1815
  %2712 = vmatpush.bf16.msra.mxu0 %v1812
  %2713 = vmatpush.bf16.msra.mxu0 %v1809
  %2714 = vmatpush.bf16.msra.mxu0 %v1806
  %2715 = vmatpush.bf16.msra.mxu0 %v1803
  %2716 = vmatmul.bf16.gmra.mxu0 %v557
  %v2717 = vpop.f32.mrf.mxu0
  %v2718 = vadd.f32 %v2700, %v2717
  %v2719 = vpop.f32.mrf.mxu0
  %v2720 = vadd.f32 %v2702, %v2719
  %2721 = vmatmul.bf16.gmra.mxu0 %v571
  %v2722 = vpop.f32.mrf.mxu0
  %v2723 = vadd.f32 %v2705, %v2722
  %v2724 = vpop.f32.mrf.mxu0
  %2725 = vdwg.mxu0
  %2726 = vmatpush.bf16.msra.mxu0 %v1848
  %2727 = vmatpush.bf16.msra.mxu0 %v1845
  %2728 = vmatpush.bf16.msra.mxu0 %v1842
  %2729 = vmatpush.bf16.msra.mxu0 %v1839
  %2730 = vmatpush.bf16.msra.mxu0 %v1836
  %2731 = vmatpush.bf16.msra.mxu0 %v1833
  %2732 = vmatpush.bf16.msra.mxu0 %v1830
  %2733 = vmatpush.bf16.msra.mxu0 %v1827
  %2734 = vmatmul.bf16.gmra.mxu0 %v558
  %v2735 = vpop.f32.mrf.mxu0
  %v2736 = vadd.f32 %v2718, %v2735
  %v2737 = vpop.f32.mrf.mxu0
  %v2738 = vadd.f32 %v2720, %v2737
  %2739 = vmatmul.bf16.gmra.mxu0 %v572
  %v2740 = vpop.f32.mrf.mxu0
  %v2741 = vadd.f32 %v2723, %v2740
  %v2742 = vpop.f32.mrf.mxu0
  %2743 = vdwg.mxu0
  %2744 = vmatpush.bf16.msra.mxu0 %v1872
  %2745 = vmatpush.bf16.msra.mxu0 %v1869
  %2746 = vmatpush.bf16.msra.mxu0 %v1866
  %2747 = vmatpush.bf16.msra.mxu0 %v1863
  %2748 = vmatpush.bf16.msra.mxu0 %v1860
  %2749 = vmatpush.bf16.msra.mxu0 %v1857
  %2750 = vmatpush.bf16.msra.mxu0 %v1854
  %2751 = vmatpush.bf16.msra.mxu0 %v1851
  %2752 = vmatmul.bf16.gmra.mxu0 %v559
  %v2753 = vpop.f32.mrf.mxu0
  %v2754 = vadd.f32 %v2736, %v2753
  %v2755 = vpop.f32.mrf.mxu0
  %v2756 = vadd.f32 %v2738, %v2755
  %2757 = vmatmul.bf16.gmra.mxu0 %v573
  %v2758 = vpop.f32.mrf.mxu0
  %v2759 = vadd.f32 %v2741, %v2758
  %v2760 = vpop.f32.mrf.mxu0
  %2761 = vdwg.mxu0
  %2762 = vmatpush.bf16.msra.mxu0 %v1896
  %2763 = vmatpush.bf16.msra.mxu0 %v1893
  %2764 = vmatpush.bf16.msra.mxu0 %v1890
  %2765 = vmatpush.bf16.msra.mxu0 %v1887
  %2766 = vmatpush.bf16.msra.mxu0 %v1884
  %2767 = vmatpush.bf16.msra.mxu0 %v1881
  %2768 = vmatpush.bf16.msra.mxu0 %v1878
  %2769 = vmatpush.bf16.msra.mxu0 %v1875
  %2770 = vmatmul.bf16.gmra.mxu0 %v560
  %v2771 = vpop.f32.mrf.mxu0
  %v2772 = vadd.f32 %v2754, %v2771
  %v2773 = vpop.f32.mrf.mxu0
  %v2774 = vadd.f32 %v2756, %v2773
  %2775 = vmatmul.bf16.gmra.mxu0 %v574
  %v2776 = vpop.f32.mrf.mxu0
  %v2777 = vadd.f32 %v2759, %v2776
  %v2778 = vpop.f32.mrf.mxu0
  %2779 = vdwg.mxu0
  %2780 = vmatpush.bf16.msra.mxu0 %v1920
  %2781 = vmatpush.bf16.msra.mxu0 %v1917
  %2782 = vmatpush.bf16.msra.mxu0 %v1914
  %2783 = vmatpush.bf16.msra.mxu0 %v1911
  %2784 = vmatpush.bf16.msra.mxu0 %v1908
  %2785 = vmatpush.bf16.msra.mxu0 %v1905
  %2786 = vmatpush.bf16.msra.mxu0 %v1902
  %2787 = vmatpush.bf16.msra.mxu0 %v1899
  %2788 = vmatmul.bf16.gmra.mxu0 %v561
  %v2789 = vpop.f32.mrf.mxu0
  %v2790 = vadd.f32 %v2772, %v2789
  %v2791 = vpop.f32.mrf.mxu0
  %v2792 = vadd.f32 %v2774, %v2791
  %2793 = vmatmul.bf16.gmra.mxu0 %v575
  %v2794 = vpop.f32.mrf.mxu0
  %v2795 = vadd.f32 %v2777, %v2794
  %v2796 = vpop.f32.mrf.mxu0
  %2797 = vdwg.mxu0
  %2798 = vmatpush.bf16.msra.mxu0 %v1944
  %2799 = vmatpush.bf16.msra.mxu0 %v1941
  %2800 = vmatpush.bf16.msra.mxu0 %v1938
  %2801 = vmatpush.bf16.msra.mxu0 %v1935
  %2802 = vmatpush.bf16.msra.mxu0 %v1932
  %2803 = vmatpush.bf16.msra.mxu0 %v1929
  %2804 = vmatpush.bf16.msra.mxu0 %v1926
  %2805 = vmatpush.bf16.msra.mxu0 %v1923
  %2806 = vmatmul.bf16.gmra.mxu0 %v562
  %v2807 = vpop.f32.mrf.mxu0
  %v2808 = vadd.f32 %v2790, %v2807
  %v2809 = vpop.f32.mrf.mxu0
  %v2810 = vadd.f32 %v2792, %v2809
  %2811 = vmatmul.bf16.gmra.mxu0 %v576
  %v2812 = vpop.f32.mrf.mxu0
  %v2813 = vadd.f32 %v2795, %v2812
  %v2814 = vpop.f32.mrf.mxu0
  %2815 = vdwg.mxu0
  %2816 = vmatpush.bf16.msra.mxu0 %v1968
  %2817 = vmatpush.bf16.msra.mxu0 %v1965
  %2818 = vmatpush.bf16.msra.mxu0 %v1962
  %2819 = vmatpush.bf16.msra.mxu0 %v1959
  %2820 = vmatpush.bf16.msra.mxu0 %v1956
  %2821 = vmatpush.bf16.msra.mxu0 %v1953
  %2822 = vmatpush.bf16.msra.mxu0 %v1950
  %2823 = vmatpush.bf16.msra.mxu0 %v1947
  %2824 = vmatmul.bf16.gmra.mxu0 %v563
  %v2825 = vpop.f32.mrf.mxu0
  %v2826 = vadd.f32 %v2808, %v2825
  %v2827 = vpop.f32.mrf.mxu0
  %v2828 = vadd.f32 %v2810, %v2827
  %2829 = vmatmul.bf16.gmra.mxu0 %v577
  %v2830 = vpop.f32.mrf.mxu0
  %v2831 = vadd.f32 %v2813, %v2830
  %v2832 = vpop.f32.mrf.mxu0
  %2833 = vdwg.mxu0
  %2834 = vmatpush.bf16.msra.mxu0 %v1992
  %2835 = vmatpush.bf16.msra.mxu0 %v1989
  %2836 = vmatpush.bf16.msra.mxu0 %v1986
  %2837 = vmatpush.bf16.msra.mxu0 %v1983
  %2838 = vmatpush.bf16.msra.mxu0 %v1980
  %2839 = vmatpush.bf16.msra.mxu0 %v1977
  %2840 = vmatpush.bf16.msra.mxu0 %v1974
  %2841 = vmatpush.bf16.msra.mxu0 %v1971
  %2842 = vmatmul.bf16.gmra.mxu0 %v564
  %v2843 = vpop.f32.mrf.mxu0
  %v2844 = vadd.f32 %v2826, %v2843
  %v2845 = vpop.f32.mrf.mxu0
  %v2846 = vadd.f32 %v2828, %v2845
  %2847 = vmatmul.bf16.gmra.mxu0 %v578
  %v2848 = vpop.f32.mrf.mxu0
  %v2849 = vadd.f32 %v2831, %v2848
  %v2850 = vpop.f32.mrf.mxu0
  %2851 = vdwg.mxu0
  %2852 = vmatpush.bf16.msra.mxu0 %v2016
  %2853 = vmatpush.bf16.msra.mxu0 %v2013
  %2854 = vmatpush.bf16.msra.mxu0 %v2010
  %2855 = vmatpush.bf16.msra.mxu0 %v2007
  %2856 = vmatpush.bf16.msra.mxu0 %v2004
  %2857 = vmatpush.bf16.msra.mxu0 %v2001
  %2858 = vmatpush.bf16.msra.mxu0 %v1998
  %2859 = vmatpush.bf16.msra.mxu0 %v1995
  %2860 = vmatmul.bf16.gmra.mxu0 %v565
  %v2861 = vpop.f32.mrf.mxu0
  %v2862 = vadd.f32 %v2844, %v2861
  %v2863 = vpop.f32.mrf.mxu0
  %v2864 = vadd.f32 %v2846, %v2863
  %2865 = vmatmul.bf16.gmra.mxu0 %v579
  %v2866 = vpop.f32.mrf.mxu0
  %v2867 = vadd.f32 %v2849, %v2866
  %v2868 = vpop.f32.mrf.mxu0
  %2869 = vdwg.mxu0
  %2870 = vmatpush.bf16.msra.mxu0 %v2040
  %2871 = vmatpush.bf16.msra.mxu0 %v2037
  %2872 = vmatpush.bf16.msra.mxu0 %v2034
  %2873 = vmatpush.bf16.msra.mxu0 %v2031
  %2874 = vmatpush.bf16.msra.mxu0 %v2028
  %2875 = vmatpush.bf16.msra.mxu0 %v2025
  %2876 = vmatpush.bf16.msra.mxu0 %v2022
  %2877 = vmatpush.bf16.msra.mxu0 %v2019
  %2878 = vmatmul.bf16.gmra.mxu0 %v566
  %v2879 = vpop.f32.mrf.mxu0
  %v2880 = vadd.f32 %v2862, %v2879
  %v2881 = vpop.f32.mrf.mxu0
  %v2882 = vadd.f32 %v2864, %v2881
  %2883 = vmatmul.bf16.gmra.mxu0 %v580
  %v2884 = vpop.f32.mrf.mxu0
  %v2885 = vadd.f32 %v2867, %v2884
  %v2886 = vpop.f32.mrf.mxu0
  %2887 = vdwg.mxu0
  %2888 = vmatpush.bf16.msra.mxu0 %v2064
  %2889 = vmatpush.bf16.msra.mxu0 %v2061
  %2890 = vmatpush.bf16.msra.mxu0 %v2058
  %2891 = vmatpush.bf16.msra.mxu0 %v2055
  %2892 = vmatpush.bf16.msra.mxu0 %v2052
  %2893 = vmatpush.bf16.msra.mxu0 %v2049
  %2894 = vmatpush.bf16.msra.mxu0 %v2046
  %2895 = vmatpush.bf16.msra.mxu0 %v2043
  %2896 = vmatmul.bf16.gmra.mxu0 %v567
  %v2897 = vpop.f32.mrf.mxu0
  %v2898 = vadd.f32 %v2880, %v2897
  %v2899 = vpop.f32.mrf.mxu0
  %v2900 = vadd.f32 %v2882, %v2899
  %2901 = vmatmul.bf16.gmra.mxu0 %v581
  %v2902 = vpop.f32.mrf.mxu0
  %v2903 = vadd.f32 %v2885, %v2902
  %v2904 = vpop.f32.mrf.mxu0
  %2905 = vdwg.mxu0
  %2906 = vmatpush.bf16.msra.mxu0 %v1753
  %2907 = vmatpush.bf16.msra.mxu0 %v1750
  %2908 = vmatpush.bf16.msra.mxu0 %v1747
  %2909 = vmatpush.bf16.msra.mxu0 %v1744
  %2910 = vmatpush.bf16.msra.mxu0 %v1741
  %2911 = vmatpush.bf16.msra.mxu0 %v1738
  %2912 = vmatpush.bf16.msra.mxu0 %v1735
  %2913 = vmatpush.bf16.msra.mxu0 %v1732
  %2914 = vmatmul.bf16.gmra.mxu0 %v554
  %v2915 = vpop.f32.mrf.mxu0
  %v2916 = vadd.f32 %v487, %v2915
  %v2917 = vpop.f32.mrf.mxu0
  %v2918 = vadd.f32 %v487, %v2917
  %2919 = vmatmul.bf16.gmra.mxu0 %v568
  %v2920 = vpop.f32.mrf.mxu0
  %v2921 = vadd.f32 %v487, %v2920
  %v2922 = vpop.f32.mrf.mxu0
  %2923 = vdwg.mxu0
  %2924 = vmatpush.bf16.msra.mxu0 %v1777
  %2925 = vmatpush.bf16.msra.mxu0 %v1774
  %2926 = vmatpush.bf16.msra.mxu0 %v1771
  %2927 = vmatpush.bf16.msra.mxu0 %v1768
  %2928 = vmatpush.bf16.msra.mxu0 %v1765
  %2929 = vmatpush.bf16.msra.mxu0 %v1762
  %2930 = vmatpush.bf16.msra.mxu0 %v1759
  %2931 = vmatpush.bf16.msra.mxu0 %v1756
  %2932 = vmatmul.bf16.gmra.mxu0 %v555
  %v2933 = vpop.f32.mrf.mxu0
  %v2934 = vadd.f32 %v2916, %v2933
  %v2935 = vpop.f32.mrf.mxu0
  %v2936 = vadd.f32 %v2918, %v2935
  %2937 = vmatmul.bf16.gmra.mxu0 %v569
  %v2938 = vpop.f32.mrf.mxu0
  %v2939 = vadd.f32 %v2921, %v2938
  %v2940 = vpop.f32.mrf.mxu0
  %2941 = vdwg.mxu0
  %2942 = vmatpush.bf16.msra.mxu0 %v1801
  %2943 = vmatpush.bf16.msra.mxu0 %v1798
  %2944 = vmatpush.bf16.msra.mxu0 %v1795
  %2945 = vmatpush.bf16.msra.mxu0 %v1792
  %2946 = vmatpush.bf16.msra.mxu0 %v1789
  %2947 = vmatpush.bf16.msra.mxu0 %v1786
  %2948 = vmatpush.bf16.msra.mxu0 %v1783
  %2949 = vmatpush.bf16.msra.mxu0 %v1780
  %2950 = vmatmul.bf16.gmra.mxu0 %v556
  %v2951 = vpop.f32.mrf.mxu0
  %v2952 = vadd.f32 %v2934, %v2951
  %v2953 = vpop.f32.mrf.mxu0
  %v2954 = vadd.f32 %v2936, %v2953
  %2955 = vmatmul.bf16.gmra.mxu0 %v570
  %v2956 = vpop.f32.mrf.mxu0
  %v2957 = vadd.f32 %v2939, %v2956
  %v2958 = vpop.f32.mrf.mxu0
  %2959 = vdwg.mxu0
  %2960 = vmatpush.bf16.msra.mxu0 %v1825
  %2961 = vmatpush.bf16.msra.mxu0 %v1822
  %2962 = vmatpush.bf16.msra.mxu0 %v1819
  %2963 = vmatpush.bf16.msra.mxu0 %v1816
  %2964 = vmatpush.bf16.msra.mxu0 %v1813
  %2965 = vmatpush.bf16.msra.mxu0 %v1810
  %2966 = vmatpush.bf16.msra.mxu0 %v1807
  %2967 = vmatpush.bf16.msra.mxu0 %v1804
  %2968 = vmatmul.bf16.gmra.mxu0 %v557
  %v2969 = vpop.f32.mrf.mxu0
  %v2970 = vadd.f32 %v2952, %v2969
  %v2971 = vpop.f32.mrf.mxu0
  %v2972 = vadd.f32 %v2954, %v2971
  %2973 = vmatmul.bf16.gmra.mxu0 %v571
  %v2974 = vpop.f32.mrf.mxu0
  %v2975 = vadd.f32 %v2957, %v2974
  %v2976 = vpop.f32.mrf.mxu0
  %2977 = vdwg.mxu0
  %2978 = vmatpush.bf16.msra.mxu0 %v1849
  %2979 = vmatpush.bf16.msra.mxu0 %v1846
  %2980 = vmatpush.bf16.msra.mxu0 %v1843
  %2981 = vmatpush.bf16.msra.mxu0 %v1840
  %2982 = vmatpush.bf16.msra.mxu0 %v1837
  %2983 = vmatpush.bf16.msra.mxu0 %v1834
  %2984 = vmatpush.bf16.msra.mxu0 %v1831
  %2985 = vmatpush.bf16.msra.mxu0 %v1828
  %2986 = vmatmul.bf16.gmra.mxu0 %v558
  %v2987 = vpop.f32.mrf.mxu0
  %v2988 = vadd.f32 %v2970, %v2987
  %v2989 = vpop.f32.mrf.mxu0
  %v2990 = vadd.f32 %v2972, %v2989
  %2991 = vmatmul.bf16.gmra.mxu0 %v572
  %v2992 = vpop.f32.mrf.mxu0
  %v2993 = vadd.f32 %v2975, %v2992
  %v2994 = vpop.f32.mrf.mxu0
  %2995 = vdwg.mxu0
  %2996 = vmatpush.bf16.msra.mxu0 %v1873
  %2997 = vmatpush.bf16.msra.mxu0 %v1870
  %2998 = vmatpush.bf16.msra.mxu0 %v1867
  %2999 = vmatpush.bf16.msra.mxu0 %v1864
  %3000 = vmatpush.bf16.msra.mxu0 %v1861
  %3001 = vmatpush.bf16.msra.mxu0 %v1858
  %3002 = vmatpush.bf16.msra.mxu0 %v1855
  %3003 = vmatpush.bf16.msra.mxu0 %v1852
  %3004 = vmatmul.bf16.gmra.mxu0 %v559
  %v3005 = vpop.f32.mrf.mxu0
  %v3006 = vadd.f32 %v2988, %v3005
  %v3007 = vpop.f32.mrf.mxu0
  %v3008 = vadd.f32 %v2990, %v3007
  %3009 = vmatmul.bf16.gmra.mxu0 %v573
  %v3010 = vpop.f32.mrf.mxu0
  %v3011 = vadd.f32 %v2993, %v3010
  %v3012 = vpop.f32.mrf.mxu0
  %3013 = vdwg.mxu0
  %3014 = vmatpush.bf16.msra.mxu0 %v1897
  %3015 = vmatpush.bf16.msra.mxu0 %v1894
  %3016 = vmatpush.bf16.msra.mxu0 %v1891
  %3017 = vmatpush.bf16.msra.mxu0 %v1888
  %3018 = vmatpush.bf16.msra.mxu0 %v1885
  %3019 = vmatpush.bf16.msra.mxu0 %v1882
  %3020 = vmatpush.bf16.msra.mxu0 %v1879
  %3021 = vmatpush.bf16.msra.mxu0 %v1876
  %3022 = vmatmul.bf16.gmra.mxu0 %v560
  %v3023 = vpop.f32.mrf.mxu0
  %v3024 = vadd.f32 %v3006, %v3023
  %v3025 = vpop.f32.mrf.mxu0
  %v3026 = vadd.f32 %v3008, %v3025
  %3027 = vmatmul.bf16.gmra.mxu0 %v574
  %v3028 = vpop.f32.mrf.mxu0
  %v3029 = vadd.f32 %v3011, %v3028
  %v3030 = vpop.f32.mrf.mxu0
  %3031 = vdwg.mxu0
  %3032 = vmatpush.bf16.msra.mxu0 %v1921
  %3033 = vmatpush.bf16.msra.mxu0 %v1918
  %3034 = vmatpush.bf16.msra.mxu0 %v1915
  %3035 = vmatpush.bf16.msra.mxu0 %v1912
  %3036 = vmatpush.bf16.msra.mxu0 %v1909
  %3037 = vmatpush.bf16.msra.mxu0 %v1906
  %3038 = vmatpush.bf16.msra.mxu0 %v1903
  %3039 = vmatpush.bf16.msra.mxu0 %v1900
  %3040 = vmatmul.bf16.gmra.mxu0 %v561
  %v3041 = vpop.f32.mrf.mxu0
  %v3042 = vadd.f32 %v3024, %v3041
  %v3043 = vpop.f32.mrf.mxu0
  %v3044 = vadd.f32 %v3026, %v3043
  %3045 = vmatmul.bf16.gmra.mxu0 %v575
  %v3046 = vpop.f32.mrf.mxu0
  %v3047 = vadd.f32 %v3029, %v3046
  %v3048 = vpop.f32.mrf.mxu0
  %3049 = vdwg.mxu0
  %3050 = vmatpush.bf16.msra.mxu0 %v1945
  %3051 = vmatpush.bf16.msra.mxu0 %v1942
  %3052 = vmatpush.bf16.msra.mxu0 %v1939
  %3053 = vmatpush.bf16.msra.mxu0 %v1936
  %3054 = vmatpush.bf16.msra.mxu0 %v1933
  %3055 = vmatpush.bf16.msra.mxu0 %v1930
  %3056 = vmatpush.bf16.msra.mxu0 %v1927
  %3057 = vmatpush.bf16.msra.mxu0 %v1924
  %3058 = vmatmul.bf16.gmra.mxu0 %v562
  %v3059 = vpop.f32.mrf.mxu0
  %v3060 = vadd.f32 %v3042, %v3059
  %v3061 = vpop.f32.mrf.mxu0
  %v3062 = vadd.f32 %v3044, %v3061
  %3063 = vmatmul.bf16.gmra.mxu0 %v576
  %v3064 = vpop.f32.mrf.mxu0
  %v3065 = vadd.f32 %v3047, %v3064
  %v3066 = vpop.f32.mrf.mxu0
  %3067 = vdwg.mxu0
  %3068 = vmatpush.bf16.msra.mxu0 %v1969
  %3069 = vmatpush.bf16.msra.mxu0 %v1966
  %3070 = vmatpush.bf16.msra.mxu0 %v1963
  %3071 = vmatpush.bf16.msra.mxu0 %v1960
  %3072 = vmatpush.bf16.msra.mxu0 %v1957
  %3073 = vmatpush.bf16.msra.mxu0 %v1954
  %3074 = vmatpush.bf16.msra.mxu0 %v1951
  %3075 = vmatpush.bf16.msra.mxu0 %v1948
  %3076 = vmatmul.bf16.gmra.mxu0 %v563
  %v3077 = vpop.f32.mrf.mxu0
  %v3078 = vadd.f32 %v3060, %v3077
  %v3079 = vpop.f32.mrf.mxu0
  %v3080 = vadd.f32 %v3062, %v3079
  %3081 = vmatmul.bf16.gmra.mxu0 %v577
  %v3082 = vpop.f32.mrf.mxu0
  %v3083 = vadd.f32 %v3065, %v3082
  %v3084 = vpop.f32.mrf.mxu0
  %3085 = vdwg.mxu0
  %3086 = vmatpush.bf16.msra.mxu0 %v1993
  %3087 = vmatpush.bf16.msra.mxu0 %v1990
  %3088 = vmatpush.bf16.msra.mxu0 %v1987
  %3089 = vmatpush.bf16.msra.mxu0 %v1984
  %3090 = vmatpush.bf16.msra.mxu0 %v1981
  %3091 = vmatpush.bf16.msra.mxu0 %v1978
  %3092 = vmatpush.bf16.msra.mxu0 %v1975
  %3093 = vmatpush.bf16.msra.mxu0 %v1972
  %3094 = vmatmul.bf16.gmra.mxu0 %v564
  %v3095 = vpop.f32.mrf.mxu0
  %v3096 = vadd.f32 %v3078, %v3095
  %v3097 = vpop.f32.mrf.mxu0
  %v3098 = vadd.f32 %v3080, %v3097
  %3099 = vmatmul.bf16.gmra.mxu0 %v578
  %v3100 = vpop.f32.mrf.mxu0
  %v3101 = vadd.f32 %v3083, %v3100
  %v3102 = vpop.f32.mrf.mxu0
  %3103 = vdwg.mxu0
  %3104 = vmatpush.bf16.msra.mxu0 %v2017
  %3105 = vmatpush.bf16.msra.mxu0 %v2014
  %3106 = vmatpush.bf16.msra.mxu0 %v2011
  %3107 = vmatpush.bf16.msra.mxu0 %v2008
  %3108 = vmatpush.bf16.msra.mxu0 %v2005
  %3109 = vmatpush.bf16.msra.mxu0 %v2002
  %3110 = vmatpush.bf16.msra.mxu0 %v1999
  %3111 = vmatpush.bf16.msra.mxu0 %v1996
  %3112 = vmatmul.bf16.gmra.mxu0 %v565
  %v3113 = vpop.f32.mrf.mxu0
  %v3114 = vadd.f32 %v3096, %v3113
  %v3115 = vpop.f32.mrf.mxu0
  %v3116 = vadd.f32 %v3098, %v3115
  %3117 = vmatmul.bf16.gmra.mxu0 %v579
  %v3118 = vpop.f32.mrf.mxu0
  %v3119 = vadd.f32 %v3101, %v3118
  %v3120 = vpop.f32.mrf.mxu0
  %3121 = vdwg.mxu0
  %3122 = vmatpush.bf16.msra.mxu0 %v2041
  %3123 = vmatpush.bf16.msra.mxu0 %v2038
  %3124 = vmatpush.bf16.msra.mxu0 %v2035
  %3125 = vmatpush.bf16.msra.mxu0 %v2032
  %3126 = vmatpush.bf16.msra.mxu0 %v2029
  %3127 = vmatpush.bf16.msra.mxu0 %v2026
  %3128 = vmatpush.bf16.msra.mxu0 %v2023
  %3129 = vmatpush.bf16.msra.mxu0 %v2020
  %3130 = vmatmul.bf16.gmra.mxu0 %v566
  %v3131 = vpop.f32.mrf.mxu0
  %v3132 = vadd.f32 %v3114, %v3131
  %v3133 = vpop.f32.mrf.mxu0
  %v3134 = vadd.f32 %v3116, %v3133
  %3135 = vmatmul.bf16.gmra.mxu0 %v580
  %v3136 = vpop.f32.mrf.mxu0
  %v3137 = vadd.f32 %v3119, %v3136
  %v3138 = vpop.f32.mrf.mxu0
  %3139 = vdwg.mxu0
  %3140 = vmatpush.bf16.msra.mxu0 %v2065
  %3141 = vmatpush.bf16.msra.mxu0 %v2062
  %3142 = vmatpush.bf16.msra.mxu0 %v2059
  %3143 = vmatpush.bf16.msra.mxu0 %v2056
  %3144 = vmatpush.bf16.msra.mxu0 %v2053
  %3145 = vmatpush.bf16.msra.mxu0 %v2050
  %3146 = vmatpush.bf16.msra.mxu0 %v2047
  %3147 = vmatpush.bf16.msra.mxu0 %v2044
  %3148 = vmatmul.bf16.gmra.mxu0 %v567
  %v3149 = vpop.f32.mrf.mxu0
  %v3150 = vadd.f32 %v3132, %v3149
  %v3151 = vpop.f32.mrf.mxu0
  %v3152 = vadd.f32 %v3134, %v3151
  %3153 = vmatmul.bf16.gmra.mxu0 %v581
  %v3154 = vpop.f32.mrf.mxu0
  %v3155 = vadd.f32 %v3137, %v3154
  %v3156 = vpop.f32.mrf.mxu0
  %3157 = vdwg.mxu0
  %v3158 = vmax.f32 %v2646, 0.0
  %v3159 = vmax.f32 %v2898, 0.0
  %v3160 = vmax.f32 %v3150, 0.0
  %v3161 = vmax.f32 %v2648, 0.0
  %v3162 = vmax.f32 %v2900, 0.0
  %v3163 = vmax.f32 %v3152, 0.0
  %v3164 = vmax.f32 %v2651, 0.0
  %v3165 = vmax.f32 %v2903, 0.0
  %v3166 = vmax.f32 %v3155, 0.0
  %v3167 = vpack.c.bf16 %v3159, %v3158
  %v3168 = vpack.c.bf16 %v3160, %v3160
  %v3169 = vpack.c.bf16 %v3162, %v3161
  %v3170 = vpack.c.bf16 %v3163, %v3163
  %v3171 = vpack.c.bf16 %v3165, %v3164
  %v3172 = vpack.c.bf16 %v3166, %v3166
  %3173 = vst [vmem:[%s3] sm:$0xff] %v3167
  %3174 = vst [vmem:[%s3 + $0x8] sm:$0xf] %v3168
  %3175 = vst [vmem:[%s3 + $0xc] sm:$0xff] %v3169
  %3176 = vst [vmem:[%s3 + $0x14] sm:$0xf] %v3170
  %3177 = vst [vmem:[%s3 + $0x18] sm:$0x11] %v3171
  %3178 = vst [vmem:[%s3 + $0x20] sm:$0x1] %v3172
  // Predicated region
  $region14: #{feature_forward.7} parent=0 // pred_check
    _
  $region15: #{feature_forward.7} parent=0 // pred_check_branch
    %3180 = sbr.rel (0) target = $region17
  $region16: #{feature_forward.7} parent=0 // pred_region
    _
  $region17: #{feature_forward.7} parent=0 // pred_fallthru
    _
  // Predicated region
  $region18: #{feature_forward.7} parent=0 // pred_check
    _
  $region19: #{feature_forward.7} parent=0 // pred_check_branch
    %3182 = sbr.rel (0) target = $region21
  $region20: #{feature_forward.7} parent=0 // pred_region
    _
  $region21: #{feature_forward.7} parent=0 // pred_fallthru
    _

// kernel: feature_forward.9
$region0: #{feature_forward.9}
  #allocation0 [shape = 'u32[]', space=smem, size = 0x4, offset = 0x4, fixed_abs, tag = 'smem constant byte address 0x4 - core index']
  #allocation1 [shape = 'u32[72,128]{1,0:T(1,128)}', space=vmem, size = 0x9000, scoped, tag = 'internal scratch']
  %s0 = inlined_call_operand.vmem [shape: bf16[18,2304], index: 0, kind: input, shape index: {}]
  %s1 = inlined_call_operand.vmem [shape: bf16[2304,256], index: 1, kind: input, shape index: {}]
  %s2 = inlined_call_operand.vmem [shape: f32[1,256], index: 2, kind: input, shape index: {}]
  %s3 = inlined_call_operand.vmem [shape: bf16[18,256], index: 3, kind: output, shape index: {}]
  %s4 = sld [smem:[#allocation0]]
  $region22: #{feature_forward.9} parent=0
    _
  %s6 = ssub.s32 1, %s4
  %s7 = scalar_select 0, %s6, %s4
  // Predicated region
  $region2: #{feature_forward.9} parent=0 // pred_check
    _
  $region3: #{feature_forward.9} parent=0 // pred_check_branch
    %9 = sbr.rel (0) target = $region5
  $region4: #{feature_forward.9} parent=0 // pred_region
    _
  $region5: #{feature_forward.9} parent=0 // pred_fallthru
    _
  // Predicated region
  $region6: #{feature_forward.9} parent=0 // pred_check
    _
  $region7: #{feature_forward.9} parent=0 // pred_check_branch
    %11 = sbr.rel (0) target = $region9
  $region8: #{feature_forward.9} parent=0 // pred_region
    _
  $region9: #{feature_forward.9} parent=0 // pred_fallthru
    _
  // Predicated region
  $region10: #{feature_forward.9} parent=0 // pred_check
    _
  $region11: #{feature_forward.9} parent=0 // pred_check_branch
    %13 = sbr.rel (0) target = $region13
  $region12: #{feature_forward.9} parent=0 // pred_region
    _
  $region13: #{feature_forward.9} parent=0 // pred_fallthru
    _
  %v14 = vld [vmem:[%s0] sm:$0xff]
  %v15 = vld [vmem:[%s0 + $0x8] sm:$0xff]
  %v16 = vld [vmem:[%s0 + $0x10] sm:$0xff]
  %v17 = vld [vmem:[%s0 + $0x18] sm:$0xff]
  %v18 = vld [vmem:[%s0 + $0x20] sm:$0xff]
  %v19 = vld [vmem:[%s0 + $0x28] sm:$0xff]
  %v20 = vld [vmem:[%s0 + $0x30] sm:$0xff]
  %v21 = vld [vmem:[%s0 + $0x38] sm:$0xff]
  %v22 = vld [vmem:[%s0 + $0x40] sm:$0xff]
  %v23 = vld [vmem:[%s0 + $0x48] sm:$0xff]
  %v24 = vld [vmem:[%s0 + $0x50] sm:$0xff]
  %v25 = vld [vmem:[%s0 + $0x58] sm:$0xff]
  %v26 = vld [vmem:[%s0 + $0x60] sm:$0xff]
  %v27 = vld [vmem:[%s0 + $0x68] sm:$0xff]
  %v28 = vld [vmem:[%s0 + $0x70] sm:$0xff]
  %v29 = vld [vmem:[%s0 + $0x78] sm:$0xff]
  %v30 = vld [vmem:[%s0 + $0x80] sm:$0xff]
  %v31 = vld [vmem:[%s0 + $0x88] sm:$0xff]
  %v32 = vld [vmem:[%s0 + $0x90] sm:$0x11]
  %v33 = vld [vmem:[%s0 + $0x98] sm:$0x11]
  %v34 = vld [vmem:[%s0 + $0xa0] sm:$0x11]
  %v35 = vld [vmem:[%s0 + $0xa8] sm:$0x11]
  %v36 = vld [vmem:[%s0 + $0xb0] sm:$0x11]
  %v37 = vld [vmem:[%s0 + $0xb8] sm:$0x11]
  %v38 = vld [vmem:[%s0 + $0xc0] sm:$0x11]
  %v39 = vld [vmem:[%s0 + $0xc8] sm:$0x11]
  %v40 = vld [vmem:[%s0 + $0xd0] sm:$0x11]
  %v41 = vld [vmem:[%s1] sm:$0xff]
  %v42 = vld [vmem:[%s1 + $0x8] sm:$0xff]
  %v43 = vld [vmem:[%s1 + $0x10] sm:$0xff]
  %v44 = vld [vmem:[%s1 + $0x18] sm:$0xff]
  %v45 = vld [vmem:[%s1 + $0x20] sm:$0xff]
  %v46 = vld [vmem:[%s1 + $0x28] sm:$0xff]
  %v47 = vld [vmem:[%s1 + $0x30] sm:$0xff]
  %v48 = vld [vmem:[%s1 + $0x38] sm:$0xff]
  %v49 = vld [vmem:[%s1 + $0x40] sm:$0xff]
  %v50 = vld [vmem:[%s1 + $0x48] sm:$0xff]
  %v51 = vld [vmem:[%s1 + $0x50] sm:$0xff]
  %v52 = vld [vmem:[%s1 + $0x58] sm:$0xff]
  %v53 = vld [vmem:[%s1 + $0x60] sm:$0xff]
  %v54 = vld [vmem:[%s1 + $0x68] sm:$0xff]
  %v55 = vld [vmem:[%s1 + $0x70] sm:$0xff]
  %v56 = vld [vmem:[%s1 + $0x78] sm:$0xff]
  %v57 = vld [vmem:[%s1 + $0x80] sm:$0xff]
  %v58 = vld [vmem:[%s1 + $0x88] sm:$0xff]
  %v59 = vld [vmem:[%s1 + $0x90] sm:$0xff]
  %v60 = vld [vmem:[%s1 + $0x98] sm:$0xff]
  %v61 = vld [vmem:[%s1 + $0xa0] sm:$0xff]
  %v62 = vld [vmem:[%s1 + $0xa8] sm:$0xff]
  %v63 = vld [vmem:[%s1 + $0xb0] sm:$0xff]
  %v64 = vld [vmem:[%s1 + $0xb8] sm:$0xff]
  %v65 = vld [vmem:[%s1 + $0xc0] sm:$0xff]
  %v66 = vld [vmem:[%s1 + $0xc8] sm:$0xff]
  %v67 = vld [vmem:[%s1 + $0xd0] sm:$0xff]
  %v68 = vld [vmem:[%s1 + $0xd8] sm:$0xff]
  %v69 = vld [vmem:[%s1 + $0xe0] sm:$0xff]
  %v70 = vld [vmem:[%s1 + $0xe8] sm:$0xff]
  %v71 = vld [vmem:[%s1 + $0xf0] sm:$0xff]
  %v72 = vld [vmem:[%s1 + $0xf8] sm:$0xff]
  %v73 = vld [vmem:[%s1 + $0x100] sm:$0xff]
  %v74 = vld [vmem:[%s1 + $0x108] sm:$0xff]
  %v75 = vld [vmem:[%s1 + $0x110] sm:$0xff]
  %v76 = vld [vmem:[%s1 + $0x118] sm:$0xff]
  %v77 = vld [vmem:[%s1 + $0x120] sm:$0xff]
  %v78 = vld [vmem:[%s1 + $0x128] sm:$0xff]
  %v79 = vld [vmem:[%s1 + $0x130] sm:$0xff]
  %v80 = vld [vmem:[%s1 + $0x138] sm:$0xff]
  %v81 = vld [vmem:[%s1 + $0x140] sm:$0xff]
  %v82 = vld [vmem:[%s1 + $0x148] sm:$0xff]
  %v83 = vld [vmem:[%s1 + $0x150] sm:$0xff]
  %v84 = vld [vmem:[%s1 + $0x158] sm:$0xff]
  %v85 = vld [vmem:[%s1 + $0x160] sm:$0xff]
  %v86 = vld [vmem:[%s1 + $0x168] sm:$0xff]
  %v87 = vld [vmem:[%s1 + $0x170] sm:$0xff]
  %v88 = vld [vmem:[%s1 + $0x178] sm:$0xff]
  %v89 = vld [vmem:[%s1 + $0x180] sm:$0xff]
  %v90 = vld [vmem:[%s1 + $0x188] sm:$0xff]
  %v91 = vld [vmem:[%s1 + $0x190] sm:$0xff]
  %v92 = vld [vmem:[%s1 + $0x198] sm:$0xff]
  %v93 = vld [vmem:[%s1 + $0x1a0] sm:$0xff]
  %v94 = vld [vmem:[%s1 + $0x1a8] sm:$0xff]
  %v95 = vld [vmem:[%s1 + $0x1b0] sm:$0xff]
  %v96 = vld [vmem:[%s1 + $0x1b8] sm:$0xff]
  %v97 = vld [vmem:[%s1 + $0x1c0] sm:$0xff]
  %v98 = vld [vmem:[%s1 + $0x1c8] sm:$0xff]
  %v99 = vld [vmem:[%s1 + $0x1d0] sm:$0xff]
  %v100 = vld [vmem:[%s1 + $0x1d8] sm:$0xff]
  %v101 = vld [vmem:[%s1 + $0x1e0] sm:$0xff]
  %v102 = vld [vmem:[%s1 + $0x1e8] sm:$0xff]
  %v103 = vld [vmem:[%s1 + $0x1f0] sm:$0xff]
  %v104 = vld [vmem:[%s1 + $0x1f8] sm:$0xff]
  %v105 = vld [vmem:[%s1 + $0x200] sm:$0xff]
  %v106 = vld [vmem:[%s1 + $0x208] sm:$0xff]
  %v107 = vld [vmem:[%s1 + $0x210] sm:$0xff]
  %v108 = vld [vmem:[%s1 + $0x218] sm:$0xff]
  %v109 = vld [vmem:[%s1 + $0x220] sm:$0xff]
  %v110 = vld [vmem:[%s1 + $0x228] sm:$0xff]
  %v111 = vld [vmem:[%s1 + $0x230] sm:$0xff]
  %v112 = vld [vmem:[%s1 + $0x238] sm:$0xff]
  %v113 = vld [vmem:[%s1 + $0x240] sm:$0xff]
  %v114 = vld [vmem:[%s1 + $0x248] sm:$0xff]
  %v115 = vld [vmem:[%s1 + $0x250] sm:$0xff]
  %v116 = vld [vmem:[%s1 + $0x258] sm:$0xff]
  %v117 = vld [vmem:[%s1 + $0x260] sm:$0xff]
  %v118 = vld [vmem:[%s1 + $0x268] sm:$0xff]
  %v119 = vld [vmem:[%s1 + $0x270] sm:$0xff]
  %v120 = vld [vmem:[%s1 + $0x278] sm:$0xff]
  %v121 = vld [vmem:[%s1 + $0x280] sm:$0xff]
  %v122 = vld [vmem:[%s1 + $0x288] sm:$0xff]
  %v123 = vld [vmem:[%s1 + $0x290] sm:$0xff]
  %v124 = vld [vmem:[%s1 + $0x298] sm:$0xff]
  %v125 = vld [vmem:[%s1 + $0x2a0] sm:$0xff]
  %v126 = vld [vmem:[%s1 + $0x2a8] sm:$0xff]
  %v127 = vld [vmem:[%s1 + $0x2b0] sm:$0xff]
  %v128 = vld [vmem:[%s1 + $0x2b8] sm:$0xff]
  %v129 = vld [vmem:[%s1 + $0x2c0] sm:$0xff]
  %v130 = vld [vmem:[%s1 + $0x2c8] sm:$0xff]
  %v131 = vld [vmem:[%s1 + $0x2d0] sm:$0xff]
  %v132 = vld [vmem:[%s1 + $0x2d8] sm:$0xff]
  %v133 = vld [vmem:[%s1 + $0x2e0] sm:$0xff]
  %v134 = vld [vmem:[%s1 + $0x2e8] sm:$0xff]
  %v135 = vld [vmem:[%s1 + $0x2f0] sm:$0xff]
  %v136 = vld [vmem:[%s1 + $0x2f8] sm:$0xff]
  %v137 = vld [vmem:[%s1 + $0x300] sm:$0xff]
  %v138 = vld [vmem:[%s1 + $0x308] sm:$0xff]
  %v139 = vld [vmem:[%s1 + $0x310] sm:$0xff]
  %v140 = vld [vmem:[%s1 + $0x318] sm:$0xff]
  %v141 = vld [vmem:[%s1 + $0x320] sm:$0xff]
  %v142 = vld [vmem:[%s1 + $0x328] sm:$0xff]
  %v143 = vld [vmem:[%s1 + $0x330] sm:$0xff]
  %v144 = vld [vmem:[%s1 + $0x338] sm:$0xff]
  %v145 = vld [vmem:[%s1 + $0x340] sm:$0xff]
  %v146 = vld [vmem:[%s1 + $0x348] sm:$0xff]
  %v147 = vld [vmem:[%s1 + $0x350] sm:$0xff]
  %v148 = vld [vmem:[%s1 + $0x358] sm:$0xff]
  %v149 = vld [vmem:[%s1 + $0x360] sm:$0xff]
  %v150 = vld [vmem:[%s1 + $0x368] sm:$0xff]
  %v151 = vld [vmem:[%s1 + $0x370] sm:$0xff]
  %v152 = vld [vmem:[%s1 + $0x378] sm:$0xff]
  %v153 = vld [vmem:[%s1 + $0x380] sm:$0xff]
  %v154 = vld [vmem:[%s1 + $0x388] sm:$0xff]
  %v155 = vld [vmem:[%s1 + $0x390] sm:$0xff]
  %v156 = vld [vmem:[%s1 + $0x398] sm:$0xff]
  %v157 = vld [vmem:[%s1 + $0x3a0] sm:$0xff]
  %v158 = vld [vmem:[%s1 + $0x3a8] sm:$0xff]
  %v159 = vld [vmem:[%s1 + $0x3b0] sm:$0xff]
  %v160 = vld [vmem:[%s1 + $0x3b8] sm:$0xff]
  %v161 = vld [vmem:[%s1 + $0x3c0] sm:$0xff]
  %v162 = vld [vmem:[%s1 + $0x3c8] sm:$0xff]
  %v163 = vld [vmem:[%s1 + $0x3d0] sm:$0xff]
  %v164 = vld [vmem:[%s1 + $0x3d8] sm:$0xff]
  %v165 = vld [vmem:[%s1 + $0x3e0] sm:$0xff]
  %v166 = vld [vmem:[%s1 + $0x3e8] sm:$0xff]
  %v167 = vld [vmem:[%s1 + $0x3f0] sm:$0xff]
  %v168 = vld [vmem:[%s1 + $0x3f8] sm:$0xff]
  %v169 = vld [vmem:[%s1 + $0x400] sm:$0xff]
  %v170 = vld [vmem:[%s1 + $0x408] sm:$0xff]
  %v171 = vld [vmem:[%s1 + $0x410] sm:$0xff]
  %v172 = vld [vmem:[%s1 + $0x418] sm:$0xff]
  %v173 = vld [vmem:[%s1 + $0x420] sm:$0xff]
  %v174 = vld [vmem:[%s1 + $0x428] sm:$0xff]
  %v175 = vld [vmem:[%s1 + $0x430] sm:$0xff]
  %v176 = vld [vmem:[%s1 + $0x438] sm:$0xff]
  %v177 = vld [vmem:[%s1 + $0x440] sm:$0xff]
  %v178 = vld [vmem:[%s1 + $0x448] sm:$0xff]
  %v179 = vld [vmem:[%s1 + $0x450] sm:$0xff]
  %v180 = vld [vmem:[%s1 + $0x458] sm:$0xff]
  %v181 = vld [vmem:[%s1 + $0x460] sm:$0xff]
  %v182 = vld [vmem:[%s1 + $0x468] sm:$0xff]
  %v183 = vld [vmem:[%s1 + $0x470] sm:$0xff]
  %v184 = vld [vmem:[%s1 + $0x478] sm:$0xff]
  %v185 = vld [vmem:[%s1 + $0x480] sm:$0xff]
  %v186 = vld [vmem:[%s1 + $0x488] sm:$0xff]
  %v187 = vld [vmem:[%s1 + $0x490] sm:$0xff]
  %v188 = vld [vmem:[%s1 + $0x498] sm:$0xff]
  %v189 = vld [vmem:[%s1 + $0x4a0] sm:$0xff]
  %v190 = vld [vmem:[%s1 + $0x4a8] sm:$0xff]
  %v191 = vld [vmem:[%s1 + $0x4b0] sm:$0xff]
  %v192 = vld [vmem:[%s1 + $0x4b8] sm:$0xff]
  %v193 = vld [vmem:[%s1 + $0x4c0] sm:$0xff]
  %v194 = vld [vmem:[%s1 + $0x4c8] sm:$0xff]
  %v195 = vld [vmem:[%s1 + $0x4d0] sm:$0xff]
  %v196 = vld [vmem:[%s1 + $0x4d8] sm:$0xff]
  %v197 = vld [vmem:[%s1 + $0x4e0] sm:$0xff]
  %v198 = vld [vmem:[%s1 + $0x4e8] sm:$0xff]
  %v199 = vld [vmem:[%s1 + $0x4f0] sm:$0xff]
  %v200 = vld [vmem:[%s1 + $0x4f8] sm:$0xff]
  %v201 = vld [vmem:[%s1 + $0x500] sm:$0xff]
  %v202 = vld [vmem:[%s1 + $0x508] sm:$0xff]
  %v203 = vld [vmem:[%s1 + $0x510] sm:$0xff]
  %v204 = vld [vmem:[%s1 + $0x518] sm:$0xff]
  %v205 = vld [vmem:[%s1 + $0x520] sm:$0xff]
  %v206 = vld [vmem:[%s1 + $0x528] sm:$0xff]
  %v207 = vld [vmem:[%s1 + $0x530] sm:$0xff]
  %v208 = vld [vmem:[%s1 + $0x538] sm:$0xff]
  %v209 = vld [vmem:[%s1 + $0x540] sm:$0xff]
  %v210 = vld [vmem:[%s1 + $0x548] sm:$0xff]
  %v211 = vld [vmem:[%s1 + $0x550] sm:$0xff]
  %v212 = vld [vmem:[%s1 + $0x558] sm:$0xff]
  %v213 = vld [vmem:[%s1 + $0x560] sm:$0xff]
  %v214 = vld [vmem:[%s1 + $0x568] sm:$0xff]
  %v215 = vld [vmem:[%s1 + $0x570] sm:$0xff]
  %v216 = vld [vmem:[%s1 + $0x578] sm:$0xff]
  %v217 = vld [vmem:[%s1 + $0x580] sm:$0xff]
  %v218 = vld [vmem:[%s1 + $0x588] sm:$0xff]
  %v219 = vld [vmem:[%s1 + $0x590] sm:$0xff]
  %v220 = vld [vmem:[%s1 + $0x598] sm:$0xff]
  %v221 = vld [vmem:[%s1 + $0x5a0] sm:$0xff]
  %v222 = vld [vmem:[%s1 + $0x5a8] sm:$0xff]
  %v223 = vld [vmem:[%s1 + $0x5b0] sm:$0xff]
  %v224 = vld [vmem:[%s1 + $0x5b8] sm:$0xff]
  %v225 = vld [vmem:[%s1 + $0x5c0] sm:$0xff]
  %v226 = vld [vmem:[%s1 + $0x5c8] sm:$0xff]
  %v227 = vld [vmem:[%s1 + $0x5d0] sm:$0xff]
  %v228 = vld [vmem:[%s1 + $0x5d8] sm:$0xff]
  %v229 = vld [vmem:[%s1 + $0x5e0] sm:$0xff]
  %v230 = vld [vmem:[%s1 + $0x5e8] sm:$0xff]
  %v231 = vld [vmem:[%s1 + $0x5f0] sm:$0xff]
  %v232 = vld [vmem:[%s1 + $0x5f8] sm:$0xff]
  %v233 = vld [vmem:[%s1 + $0x600] sm:$0xff]
  %v234 = vld [vmem:[%s1 + $0x608] sm:$0xff]
  %v235 = vld [vmem:[%s1 + $0x610] sm:$0xff]
  %v236 = vld [vmem:[%s1 + $0x618] sm:$0xff]
  %v237 = vld [vmem:[%s1 + $0x620] sm:$0xff]
  %v238 = vld [vmem:[%s1 + $0x628] sm:$0xff]
  %v239 = vld [vmem:[%s1 + $0x630] sm:$0xff]
  %v240 = vld [vmem:[%s1 + $0x638] sm:$0xff]
  %v241 = vld [vmem:[%s1 + $0x640] sm:$0xff]
  %v242 = vld [vmem:[%s1 + $0x648] sm:$0xff]
  %v243 = vld [vmem:[%s1 + $0x650] sm:$0xff]
  %v244 = vld [vmem:[%s1 + $0x658] sm:$0xff]
  %v245 = vld [vmem:[%s1 + $0x660] sm:$0xff]
  %v246 = vld [vmem:[%s1 + $0x668] sm:$0xff]
  %v247 = vld [vmem:[%s1 + $0x670] sm:$0xff]
  %v248 = vld [vmem:[%s1 + $0x678] sm:$0xff]
  %v249 = vld [vmem:[%s1 + $0x680] sm:$0xff]
  %v250 = vld [vmem:[%s1 + $0x688] sm:$0xff]
  %v251 = vld [vmem:[%s1 + $0x690] sm:$0xff]
  %v252 = vld [vmem:[%s1 + $0x698] sm:$0xff]
  %v253 = vld [vmem:[%s1 + $0x6a0] sm:$0xff]
  %v254 = vld [vmem:[%s1 + $0x6a8] sm:$0xff]
  %v255 = vld [vmem:[%s1 + $0x6b0] sm:$0xff]
  %v256 = vld [vmem:[%s1 + $0x6b8] sm:$0xff]
  %v257 = vld [vmem:[%s1 + $0x6c0] sm:$0xff]
  %v258 = vld [vmem:[%s1 + $0x6c8] sm:$0xff]
  %v259 = vld [vmem:[%s1 + $0x6d0] sm:$0xff]
  %v260 = vld [vmem:[%s1 + $0x6d8] sm:$0xff]
  %v261 = vld [vmem:[%s1 + $0x6e0] sm:$0xff]
  %v262 = vld [vmem:[%s1 + $0x6e8] sm:$0xff]
  %v263 = vld [vmem:[%s1 + $0x6f0] sm:$0xff]
  %v264 = vld [vmem:[%s1 + $0x6f8] sm:$0xff]
  %v265 = vld [vmem:[%s1 + $0x700] sm:$0xff]
  %v266 = vld [vmem:[%s1 + $0x708] sm:$0xff]
  %v267 = vld [vmem:[%s1 + $0x710] sm:$0xff]
  %v268 = vld [vmem:[%s1 + $0x718] sm:$0xff]
  %v269 = vld [vmem:[%s1 + $0x720] sm:$0xff]
  %v270 = vld [vmem:[%s1 + $0x728] sm:$0xff]
  %v271 = vld [vmem:[%s1 + $0x730] sm:$0xff]
  %v272 = vld [vmem:[%s1 + $0x738] sm:$0xff]
  %v273 = vld [vmem:[%s1 + $0x740] sm:$0xff]
  %v274 = vld [vmem:[%s1 + $0x748] sm:$0xff]
  %v275 = vld [vmem:[%s1 + $0x750] sm:$0xff]
  %v276 = vld [vmem:[%s1 + $0x758] sm:$0xff]
  %v277 = vld [vmem:[%s1 + $0x760] sm:$0xff]
  %v278 = vld [vmem:[%s1 + $0x768] sm:$0xff]
  %v279 = vld [vmem:[%s1 + $0x770] sm:$0xff]
  %v280 = vld [vmem:[%s1 + $0x778] sm:$0xff]
  %v281 = vld [vmem:[%s1 + $0x780] sm:$0xff]
  %v282 = vld [vmem:[%s1 + $0x788] sm:$0xff]
  %v283 = vld [vmem:[%s1 + $0x790] sm:$0xff]
  %v284 = vld [vmem:[%s1 + $0x798] sm:$0xff]
  %v285 = vld [vmem:[%s1 + $0x7a0] sm:$0xff]
  %v286 = vld [vmem:[%s1 + $0x7a8] sm:$0xff]
  %v287 = vld [vmem:[%s1 + $0x7b0] sm:$0xff]
  %v288 = vld [vmem:[%s1 + $0x7b8] sm:$0xff]
  %v289 = vld [vmem:[%s1 + $0x7c0] sm:$0xff]
  %v290 = vld [vmem:[%s1 + $0x7c8] sm:$0xff]
  %v291 = vld [vmem:[%s1 + $0x7d0] sm:$0xff]
  %v292 = vld [vmem:[%s1 + $0x7d8] sm:$0xff]
  %v293 = vld [vmem:[%s1 + $0x7e0] sm:$0xff]
  %v294 = vld [vmem:[%s1 + $0x7e8] sm:$0xff]
  %v295 = vld [vmem:[%s1 + $0x7f0] sm:$0xff]
  %v296 = vld [vmem:[%s1 + $0x7f8] sm:$0xff]
  %v297 = vld [vmem:[%s1 + $0x800] sm:$0xff]
  %v298 = vld [vmem:[%s1 + $0x808] sm:$0xff]
  %v299 = vld [vmem:[%s1 + $0x810] sm:$0xff]
  %v300 = vld [vmem:[%s1 + $0x818] sm:$0xff]
  %v301 = vld [vmem:[%s1 + $0x820] sm:$0xff]
  %v302 = vld [vmem:[%s1 + $0x828] sm:$0xff]
  %v303 = vld [vmem:[%s1 + $0x830] sm:$0xff]
  %v304 = vld [vmem:[%s1 + $0x838] sm:$0xff]
  %v305 = vld [vmem:[%s1 + $0x840] sm:$0xff]
  %v306 = vld [vmem:[%s1 + $0x848] sm:$0xff]
  %v307 = vld [vmem:[%s1 + $0x850] sm:$0xff]
  %v308 = vld [vmem:[%s1 + $0x858] sm:$0xff]
  %v309 = vld [vmem:[%s1 + $0x860] sm:$0xff]
  %v310 = vld [vmem:[%s1 + $0x868] sm:$0xff]
  %v311 = vld [vmem:[%s1 + $0x870] sm:$0xff]
  %v312 = vld [vmem:[%s1 + $0x878] sm:$0xff]
  %v313 = vld [vmem:[%s1 + $0x880] sm:$0xff]
  %v314 = vld [vmem:[%s1 + $0x888] sm:$0xff]
  %v315 = vld [vmem:[%s1 + $0x890] sm:$0xff]
  %v316 = vld [vmem:[%s1 + $0x898] sm:$0xff]
  %v317 = vld [vmem:[%s1 + $0x8a0] sm:$0xff]
  %v318 = vld [vmem:[%s1 + $0x8a8] sm:$0xff]
  %v319 = vld [vmem:[%s1 + $0x8b0] sm:$0xff]
  %v320 = vld [vmem:[%s1 + $0x8b8] sm:$0xff]
  %v321 = vld [vmem:[%s1 + $0x8c0] sm:$0xff]
  %v322 = vld [vmem:[%s1 + $0x8c8] sm:$0xff]
  %v323 = vld [vmem:[%s1 + $0x8d0] sm:$0xff]
  %v324 = vld [vmem:[%s1 + $0x8d8] sm:$0xff]
  %v325 = vld [vmem:[%s1 + $0x8e0] sm:$0xff]
  %v326 = vld [vmem:[%s1 + $0x8e8] sm:$0xff]
  %v327 = vld [vmem:[%s1 + $0x8f0] sm:$0xff]
  %v328 = vld [vmem:[%s1 + $0x8f8] sm:$0xff]
  %v329 = vld [vmem:[%s2] sm:$0x3]
  %v331 = vperm.slane %v329, 0
  %v332 = vperm.slane %v329, 1
  %v362 = vunpack.c.l.b16 %v14
  %v363 = vunpack.c.h.b16 %v14
  %v364 = vunpack.c.l.b16 %v15
  %v365 = vunpack.c.h.b16 %v15
  %v366 = vunpack.c.l.b16 %v16
  %v367 = vunpack.c.h.b16 %v16
  %v368 = vunpack.c.l.b16 %v17
  %v369 = vunpack.c.h.b16 %v17
  %v370 = vunpack.c.l.b16 %v18
  %v371 = vunpack.c.h.b16 %v18
  %v372 = vunpack.c.l.b16 %v19
  %v373 = vunpack.c.h.b16 %v19
  %v374 = vunpack.c.l.b16 %v20
  %v375 = vunpack.c.h.b16 %v20
  %v376 = vunpack.c.l.b16 %v21
  %v377 = vunpack.c.h.b16 %v21
  %v378 = vunpack.c.l.b16 %v22
  %v379 = vunpack.c.h.b16 %v22
  %v380 = vunpack.c.l.b16 %v23
  %v381 = vunpack.c.h.b16 %v23
  %v382 = vunpack.c.l.b16 %v24
  %v383 = vunpack.c.h.b16 %v24
  %v384 = vunpack.c.l.b16 %v25
  %v385 = vunpack.c.h.b16 %v25
  %v386 = vunpack.c.l.b16 %v26
  %v387 = vunpack.c.h.b16 %v26
  %v388 = vunpack.c.l.b16 %v27
  %v389 = vunpack.c.h.b16 %v27
  %v390 = vunpack.c.l.b16 %v28
  %v391 = vunpack.c.h.b16 %v28
  %v392 = vunpack.c.l.b16 %v29
  %v393 = vunpack.c.h.b16 %v29
  %v394 = vunpack.c.l.b16 %v30
  %v395 = vunpack.c.h.b16 %v30
  %v396 = vunpack.c.l.b16 %v31
  %v397 = vunpack.c.h.b16 %v31
  %v398 = vunpack.c.l.b16 %v32
  %v399 = vunpack.c.h.b16 %v32
  %v400 = vunpack.c.l.b16 %v33
  %v401 = vunpack.c.h.b16 %v33
  %v402 = vunpack.c.l.b16 %v34
  %v403 = vunpack.c.h.b16 %v34
  %v404 = vunpack.c.l.b16 %v35
  %v405 = vunpack.c.h.b16 %v35
  %v406 = vunpack.c.l.b16 %v36
  %v407 = vunpack.c.h.b16 %v36
  %v408 = vunpack.c.l.b16 %v37
  %v409 = vunpack.c.h.b16 %v37
  %v410 = vunpack.c.l.b16 %v38
  %v411 = vunpack.c.h.b16 %v38
  %v412 = vunpack.c.l.b16 %v39
  %v413 = vunpack.c.h.b16 %v39
  %v414 = vunpack.c.l.b16 %v40
  %v415 = vunpack.c.h.b16 %v40
  %v416 = vpack.c.b16 %v380, %v362
  %v417 = vpack.c.b16 %v381, %v363
  %v418 = vpack.c.b16 %v382, %v364
  %v419 = vpack.c.b16 %v383, %v365
  %v420 = vpack.c.b16 %v384, %v366
  %v421 = vpack.c.b16 %v385, %v367
  %v422 = vpack.c.b16 %v386, %v368
  %v423 = vpack.c.b16 %v387, %v369
  %v424 = vpack.c.b16 %v388, %v370
  %v425 = vpack.c.b16 %v389, %v371
  %v426 = vpack.c.b16 %v390, %v372
  %v427 = vpack.c.b16 %v391, %v373
  %v428 = vpack.c.b16 %v392, %v374
  %v429 = vpack.c.b16 %v393, %v375
  %v430 = vpack.c.b16 %v394, %v376
  %v431 = vpack.c.b16 %v395, %v377
  %v432 = vpack.c.b16 %v396, %v378
  %v433 = vpack.c.b16 %v397, %v379
  %v434 = vpack.c.b16 %v398, %v398
  %v435 = vpack.c.b16 %v399, %v399
  %v436 = vpack.c.b16 %v400, %v400
  %v437 = vpack.c.b16 %v401, %v401
  %v438 = vpack.c.b16 %v402, %v402
  %v439 = vpack.c.b16 %v403, %v403
  %v440 = vpack.c.b16 %v404, %v404
  %v441 = vpack.c.b16 %v405, %v405
  %v442 = vpack.c.b16 %v406, %v406
  %v443 = vpack.c.b16 %v407, %v407
  %v444 = vpack.c.b16 %v408, %v408
  %v445 = vpack.c.b16 %v409, %v409
  %v446 = vpack.c.b16 %v410, %v410
  %v447 = vpack.c.b16 %v411, %v411
  %v448 = vpack.c.b16 %v412, %v412
  %v449 = vpack.c.b16 %v413, %v413
  %v450 = vpack.c.b16 %v414, %v414
  %v451 = vpack.c.b16 %v415, %v415
  %v776 = vunpack.c.l.b16 %v41
  %v777 = vunpack.c.h.b16 %v41
  %v778 = vunpack.c.l.b16 %v42
  %v779 = vunpack.c.h.b16 %v42
  %v780 = vunpack.c.l.b16 %v43
  %v781 = vunpack.c.h.b16 %v43
  %v782 = vunpack.c.l.b16 %v44
  %v783 = vunpack.c.h.b16 %v44
  %v784 = vunpack.c.l.b16 %v45
  %v785 = vunpack.c.h.b16 %v45
  %v786 = vunpack.c.l.b16 %v46
  %v787 = vunpack.c.h.b16 %v46
  %v788 = vunpack.c.l.b16 %v47
  %v789 = vunpack.c.h.b16 %v47
  %v790 = vunpack.c.l.b16 %v48
  %v791 = vunpack.c.h.b16 %v48
  %v792 = vunpack.c.l.b16 %v49
  %v793 = vunpack.c.h.b16 %v49
  %v794 = vunpack.c.l.b16 %v50
  %v795 = vunpack.c.h.b16 %v50
  %v796 = vunpack.c.l.b16 %v51
  %v797 = vunpack.c.h.b16 %v51
  %v798 = vunpack.c.l.b16 %v52
  %v799 = vunpack.c.h.b16 %v52
  %v800 = vunpack.c.l.b16 %v53
  %v801 = vunpack.c.h.b16 %v53
  %v802 = vunpack.c.l.b16 %v54
  %v803 = vunpack.c.h.b16 %v54
  %v804 = vunpack.c.l.b16 %v55
  %v805 = vunpack.c.h.b16 %v55
  %v806 = vunpack.c.l.b16 %v56
  %v807 = vunpack.c.h.b16 %v56
  %v808 = vunpack.c.l.b16 %v57
  %v809 = vunpack.c.h.b16 %v57
  %v810 = vunpack.c.l.b16 %v58
  %v811 = vunpack.c.h.b16 %v58
  %v812 = vunpack.c.l.b16 %v59
  %v813 = vunpack.c.h.b16 %v59
  %v814 = vunpack.c.l.b16 %v60
  %v815 = vunpack.c.h.b16 %v60
  %v816 = vunpack.c.l.b16 %v61
  %v817 = vunpack.c.h.b16 %v61
  %v818 = vunpack.c.l.b16 %v62
  %v819 = vunpack.c.h.b16 %v62
  %v820 = vunpack.c.l.b16 %v63
  %v821 = vunpack.c.h.b16 %v63
  %v822 = vunpack.c.l.b16 %v64
  %v823 = vunpack.c.h.b16 %v64
  %v824 = vunpack.c.l.b16 %v65
  %v825 = vunpack.c.h.b16 %v65
  %v826 = vunpack.c.l.b16 %v66
  %v827 = vunpack.c.h.b16 %v66
  %v828 = vunpack.c.l.b16 %v67
  %v829 = vunpack.c.h.b16 %v67
  %v830 = vunpack.c.l.b16 %v68
  %v831 = vunpack.c.h.b16 %v68
  %v832 = vunpack.c.l.b16 %v69
  %v833 = vunpack.c.h.b16 %v69
  %v834 = vunpack.c.l.b16 %v70
  %v835 = vunpack.c.h.b16 %v70
  %v836 = vunpack.c.l.b16 %v71
  %v837 = vunpack.c.h.b16 %v71
  %v838 = vunpack.c.l.b16 %v72
  %v839 = vunpack.c.h.b16 %v72
  %v840 = vunpack.c.l.b16 %v73
  %v841 = vunpack.c.h.b16 %v73
  %v842 = vunpack.c.l.b16 %v74
  %v843 = vunpack.c.h.b16 %v74
  %v844 = vunpack.c.l.b16 %v75
  %v845 = vunpack.c.h.b16 %v75
  %v846 = vunpack.c.l.b16 %v76
  %v847 = vunpack.c.h.b16 %v76
  %v848 = vunpack.c.l.b16 %v77
  %v849 = vunpack.c.h.b16 %v77
  %v850 = vunpack.c.l.b16 %v78
  %v851 = vunpack.c.h.b16 %v78
  %v852 = vunpack.c.l.b16 %v79
  %v853 = vunpack.c.h.b16 %v79
  %v854 = vunpack.c.l.b16 %v80
  %v855 = vunpack.c.h.b16 %v80
  %v856 = vunpack.c.l.b16 %v81
  %v857 = vunpack.c.h.b16 %v81
  %v858 = vunpack.c.l.b16 %v82
  %v859 = vunpack.c.h.b16 %v82
  %v860 = vunpack.c.l.b16 %v83
  %v861 = vunpack.c.h.b16 %v83
  %v862 = vunpack.c.l.b16 %v84
  %v863 = vunpack.c.h.b16 %v84
  %v864 = vunpack.c.l.b16 %v85
  %v865 = vunpack.c.h.b16 %v85
  %v866 = vunpack.c.l.b16 %v86
  %v867 = vunpack.c.h.b16 %v86
  %v868 = vunpack.c.l.b16 %v87
  %v869 = vunpack.c.h.b16 %v87
  %v870 = vunpack.c.l.b16 %v88
  %v871 = vunpack.c.h.b16 %v88
  %v872 = vunpack.c.l.b16 %v89
  %v873 = vunpack.c.h.b16 %v89
  %v874 = vunpack.c.l.b16 %v90
  %v875 = vunpack.c.h.b16 %v90
  %v876 = vunpack.c.l.b16 %v91
  %v877 = vunpack.c.h.b16 %v91
  %v878 = vunpack.c.l.b16 %v92
  %v879 = vunpack.c.h.b16 %v92
  %v880 = vunpack.c.l.b16 %v93
  %v881 = vunpack.c.h.b16 %v93
  %v882 = vunpack.c.l.b16 %v94
  %v883 = vunpack.c.h.b16 %v94
  %v884 = vunpack.c.l.b16 %v95
  %v885 = vunpack.c.h.b16 %v95
  %v886 = vunpack.c.l.b16 %v96
  %v887 = vunpack.c.h.b16 %v96
  %v888 = vunpack.c.l.b16 %v97
  %v889 = vunpack.c.h.b16 %v97
  %v890 = vunpack.c.l.b16 %v98
  %v891 = vunpack.c.h.b16 %v98
  %v892 = vunpack.c.l.b16 %v99
  %v893 = vunpack.c.h.b16 %v99
  %v894 = vunpack.c.l.b16 %v100
  %v895 = vunpack.c.h.b16 %v100
  %v896 = vunpack.c.l.b16 %v101
  %v897 = vunpack.c.h.b16 %v101
  %v898 = vunpack.c.l.b16 %v102
  %v899 = vunpack.c.h.b16 %v102
  %v900 = vunpack.c.l.b16 %v103
  %v901 = vunpack.c.h.b16 %v103
  %v902 = vunpack.c.l.b16 %v104
  %v903 = vunpack.c.h.b16 %v104
  %v904 = vunpack.c.l.b16 %v105
  %v905 = vunpack.c.h.b16 %v105
  %v906 = vunpack.c.l.b16 %v106
  %v907 = vunpack.c.h.b16 %v106
  %v908 = vunpack.c.l.b16 %v107
  %v909 = vunpack.c.h.b16 %v107
  %v910 = vunpack.c.l.b16 %v108
  %v911 = vunpack.c.h.b16 %v108
  %v912 = vunpack.c.l.b16 %v109
  %v913 = vunpack.c.h.b16 %v109
  %v914 = vunpack.c.l.b16 %v110
  %v915 = vunpack.c.h.b16 %v110
  %v916 = vunpack.c.l.b16 %v111
  %v917 = vunpack.c.h.b16 %v111
  %v918 = vunpack.c.l.b16 %v112
  %v919 = vunpack.c.h.b16 %v112
  %v920 = vunpack.c.l.b16 %v113
  %v921 = vunpack.c.h.b16 %v113
  %v922 = vunpack.c.l.b16 %v114
  %v923 = vunpack.c.h.b16 %v114
  %v924 = vunpack.c.l.b16 %v115
  %v925 = vunpack.c.h.b16 %v115
  %v926 = vunpack.c.l.b16 %v116
  %v927 = vunpack.c.h.b16 %v116
  %v928 = vunpack.c.l.b16 %v117
  %v929 = vunpack.c.h.b16 %v117
  %v930 = vunpack.c.l.b16 %v118
  %v931 = vunpack.c.h.b16 %v118
  %v932 = vunpack.c.l.b16 %v119
  %v933 = vunpack.c.h.b16 %v119
  %v934 = vunpack.c.l.b16 %v120
  %v935 = vunpack.c.h.b16 %v120
  %v936 = vunpack.c.l.b16 %v121
  %v937 = vunpack.c.h.b16 %v121
  %v938 = vunpack.c.l.b16 %v122
  %v939 = vunpack.c.h.b16 %v122
  %v940 = vunpack.c.l.b16 %v123
  %v941 = vunpack.c.h.b16 %v123
  %v942 = vunpack.c.l.b16 %v124
  %v943 = vunpack.c.h.b16 %v124
  %v944 = vunpack.c.l.b16 %v125
  %v945 = vunpack.c.h.b16 %v125
  %v946 = vunpack.c.l.b16 %v126
  %v947 = vunpack.c.h.b16 %v126
  %v948 = vunpack.c.l.b16 %v127
  %v949 = vunpack.c.h.b16 %v127
  %v950 = vunpack.c.l.b16 %v128
  %v951 = vunpack.c.h.b16 %v128
  %v952 = vunpack.c.l.b16 %v129
  %v953 = vunpack.c.h.b16 %v129
  %v954 = vunpack.c.l.b16 %v130
  %v955 = vunpack.c.h.b16 %v130
  %v956 = vunpack.c.l.b16 %v131
  %v957 = vunpack.c.h.b16 %v131
  %v958 = vunpack.c.l.b16 %v132
  %v959 = vunpack.c.h.b16 %v132
  %v960 = vunpack.c.l.b16 %v133
  %v961 = vunpack.c.h.b16 %v133
  %v962 = vunpack.c.l.b16 %v134
  %v963 = vunpack.c.h.b16 %v134
  %v964 = vunpack.c.l.b16 %v135
  %v965 = vunpack.c.h.b16 %v135
  %v966 = vunpack.c.l.b16 %v136
  %v967 = vunpack.c.h.b16 %v136
  %v968 = vunpack.c.l.b16 %v137
  %v969 = vunpack.c.h.b16 %v137
  %v970 = vunpack.c.l.b16 %v138
  %v971 = vunpack.c.h.b16 %v138
  %v972 = vunpack.c.l.b16 %v139
  %v973 = vunpack.c.h.b16 %v139
  %v974 = vunpack.c.l.b16 %v140
  %v975 = vunpack.c.h.b16 %v140
  %v976 = vunpack.c.l.b16 %v141
  %v977 = vunpack.c.h.b16 %v141
  %v978 = vunpack.c.l.b16 %v142
  %v979 = vunpack.c.h.b16 %v142
  %v980 = vunpack.c.l.b16 %v143
  %v981 = vunpack.c.h.b16 %v143
  %v982 = vunpack.c.l.b16 %v144
  %v983 = vunpack.c.h.b16 %v144
  %v984 = vunpack.c.l.b16 %v145
  %v985 = vunpack.c.h.b16 %v145
  %v986 = vunpack.c.l.b16 %v146
  %v987 = vunpack.c.h.b16 %v146
  %v988 = vunpack.c.l.b16 %v147
  %v989 = vunpack.c.h.b16 %v147
  %v990 = vunpack.c.l.b16 %v148
  %v991 = vunpack.c.h.b16 %v148
  %v992 = vunpack.c.l.b16 %v149
  %v993 = vunpack.c.h.b16 %v149
  %v994 = vunpack.c.l.b16 %v150
  %v995 = vunpack.c.h.b16 %v150
  %v996 = vunpack.c.l.b16 %v151
  %v997 = vunpack.c.h.b16 %v151
  %v998 = vunpack.c.l.b16 %v152
  %v999 = vunpack.c.h.b16 %v152
  %v1000 = vunpack.c.l.b16 %v153
  %v1001 = vunpack.c.h.b16 %v153
  %v1002 = vunpack.c.l.b16 %v154
  %v1003 = vunpack.c.h.b16 %v154
  %v1004 = vunpack.c.l.b16 %v155
  %v1005 = vunpack.c.h.b16 %v155
  %v1006 = vunpack.c.l.b16 %v156
  %v1007 = vunpack.c.h.b16 %v156
  %v1008 = vunpack.c.l.b16 %v157
  %v1009 = vunpack.c.h.b16 %v157
  %v1010 = vunpack.c.l.b16 %v158
  %v1011 = vunpack.c.h.b16 %v158
  %v1012 = vunpack.c.l.b16 %v159
  %v1013 = vunpack.c.h.b16 %v159
  %v1014 = vunpack.c.l.b16 %v160
  %v1015 = vunpack.c.h.b16 %v160
  %v1016 = vunpack.c.l.b16 %v161
  %v1017 = vunpack.c.h.b16 %v161
  %v1018 = vunpack.c.l.b16 %v162
  %v1019 = vunpack.c.h.b16 %v162
  %v1020 = vunpack.c.l.b16 %v163
  %v1021 = vunpack.c.h.b16 %v163
  %v1022 = vunpack.c.l.b16 %v164
  %v1023 = vunpack.c.h.b16 %v164
  %v1024 = vunpack.c.l.b16 %v165
  %v1025 = vunpack.c.h.b16 %v165
  %v1026 = vunpack.c.l.b16 %v166
  %v1027 = vunpack.c.h.b16 %v166
  %v1028 = vunpack.c.l.b16 %v167
  %v1029 = vunpack.c.h.b16 %v167
  %v1030 = vunpack.c.l.b16 %v168
  %v1031 = vunpack.c.h.b16 %v168
  %v1032 = vunpack.c.l.b16 %v169
  %v1033 = vunpack.c.h.b16 %v169
  %v1034 = vunpack.c.l.b16 %v170
  %v1035 = vunpack.c.h.b16 %v170
  %v1036 = vunpack.c.l.b16 %v171
  %v1037 = vunpack.c.h.b16 %v171
  %v1038 = vunpack.c.l.b16 %v172
  %v1039 = vunpack.c.h.b16 %v172
  %v1040 = vunpack.c.l.b16 %v173
  %v1041 = vunpack.c.h.b16 %v173
  %v1042 = vunpack.c.l.b16 %v174
  %v1043 = vunpack.c.h.b16 %v174
  %v1044 = vunpack.c.l.b16 %v175
  %v1045 = vunpack.c.h.b16 %v175
  %v1046 = vunpack.c.l.b16 %v176
  %v1047 = vunpack.c.h.b16 %v176
  %v1048 = vunpack.c.l.b16 %v177
  %v1049 = vunpack.c.h.b16 %v177
  %v1050 = vunpack.c.l.b16 %v178
  %v1051 = vunpack.c.h.b16 %v178
  %v1052 = vunpack.c.l.b16 %v179
  %v1053 = vunpack.c.h.b16 %v179
  %v1054 = vunpack.c.l.b16 %v180
  %v1055 = vunpack.c.h.b16 %v180
  %v1056 = vunpack.c.l.b16 %v181
  %v1057 = vunpack.c.h.b16 %v181
  %v1058 = vunpack.c.l.b16 %v182
  %v1059 = vunpack.c.h.b16 %v182
  %v1060 = vunpack.c.l.b16 %v183
  %v1061 = vunpack.c.h.b16 %v183
  %v1062 = vunpack.c.l.b16 %v184
  %v1063 = vunpack.c.h.b16 %v184
  %v1064 = vunpack.c.l.b16 %v185
  %v1065 = vunpack.c.h.b16 %v185
  %v1066 = vunpack.c.l.b16 %v186
  %v1067 = vunpack.c.h.b16 %v186
  %v1068 = vunpack.c.l.b16 %v187
  %v1069 = vunpack.c.h.b16 %v187
  %v1070 = vunpack.c.l.b16 %v188
  %v1071 = vunpack.c.h.b16 %v188
  %v1072 = vunpack.c.l.b16 %v189
  %v1073 = vunpack.c.h.b16 %v189
  %v1074 = vunpack.c.l.b16 %v190
  %v1075 = vunpack.c.h.b16 %v190
  %v1076 = vunpack.c.l.b16 %v191
  %v1077 = vunpack.c.h.b16 %v191
  %v1078 = vunpack.c.l.b16 %v192
  %v1079 = vunpack.c.h.b16 %v192
  %v1080 = vunpack.c.l.b16 %v193
  %v1081 = vunpack.c.h.b16 %v193
  %v1082 = vunpack.c.l.b16 %v194
  %v1083 = vunpack.c.h.b16 %v194
  %v1084 = vunpack.c.l.b16 %v195
  %v1085 = vunpack.c.h.b16 %v195
  %v1086 = vunpack.c.l.b16 %v196
  %v1087 = vunpack.c.h.b16 %v196
  %v1088 = vunpack.c.l.b16 %v197
  %v1089 = vunpack.c.h.b16 %v197
  %v1090 = vunpack.c.l.b16 %v198
  %v1091 = vunpack.c.h.b16 %v198
  %v1092 = vunpack.c.l.b16 %v199
  %v1093 = vunpack.c.h.b16 %v199
  %v1094 = vunpack.c.l.b16 %v200
  %v1095 = vunpack.c.h.b16 %v200
  %v1096 = vunpack.c.l.b16 %v201
  %v1097 = vunpack.c.h.b16 %v201
  %v1098 = vunpack.c.l.b16 %v202
  %v1099 = vunpack.c.h.b16 %v202
  %v1100 = vunpack.c.l.b16 %v203
  %v1101 = vunpack.c.h.b16 %v203
  %v1102 = vunpack.c.l.b16 %v204
  %v1103 = vunpack.c.h.b16 %v204
  %v1104 = vunpack.c.l.b16 %v205
  %v1105 = vunpack.c.h.b16 %v205
  %v1106 = vunpack.c.l.b16 %v206
  %v1107 = vunpack.c.h.b16 %v206
  %v1108 = vunpack.c.l.b16 %v207
  %v1109 = vunpack.c.h.b16 %v207
  %v1110 = vunpack.c.l.b16 %v208
  %v1111 = vunpack.c.h.b16 %v208
  %v1112 = vunpack.c.l.b16 %v209
  %v1113 = vunpack.c.h.b16 %v209
  %v1114 = vunpack.c.l.b16 %v210
  %v1115 = vunpack.c.h.b16 %v210
  %v1116 = vunpack.c.l.b16 %v211
  %v1117 = vunpack.c.h.b16 %v211
  %v1118 = vunpack.c.l.b16 %v212
  %v1119 = vunpack.c.h.b16 %v212
  %v1120 = vunpack.c.l.b16 %v213
  %v1121 = vunpack.c.h.b16 %v213
  %v1122 = vunpack.c.l.b16 %v214
  %v1123 = vunpack.c.h.b16 %v214
  %v1124 = vunpack.c.l.b16 %v215
  %v1125 = vunpack.c.h.b16 %v215
  %v1126 = vunpack.c.l.b16 %v216
  %v1127 = vunpack.c.h.b16 %v216
  %v1128 = vunpack.c.l.b16 %v217
  %v1129 = vunpack.c.h.b16 %v217
  %v1130 = vunpack.c.l.b16 %v218
  %v1131 = vunpack.c.h.b16 %v218
  %v1132 = vunpack.c.l.b16 %v219
  %v1133 = vunpack.c.h.b16 %v219
  %v1134 = vunpack.c.l.b16 %v220
  %v1135 = vunpack.c.h.b16 %v220
  %v1136 = vunpack.c.l.b16 %v221
  %v1137 = vunpack.c.h.b16 %v221
  %v1138 = vunpack.c.l.b16 %v222
  %v1139 = vunpack.c.h.b16 %v222
  %v1140 = vunpack.c.l.b16 %v223
  %v1141 = vunpack.c.h.b16 %v223
  %v1142 = vunpack.c.l.b16 %v224
  %v1143 = vunpack.c.h.b16 %v224
  %v1144 = vunpack.c.l.b16 %v225
  %v1145 = vunpack.c.h.b16 %v225
  %v1146 = vunpack.c.l.b16 %v226
  %v1147 = vunpack.c.h.b16 %v226
  %v1148 = vunpack.c.l.b16 %v227
  %v1149 = vunpack.c.h.b16 %v227
  %v1150 = vunpack.c.l.b16 %v228
  %v1151 = vunpack.c.h.b16 %v228
  %v1152 = vunpack.c.l.b16 %v229
  %v1153 = vunpack.c.h.b16 %v229
  %v1154 = vunpack.c.l.b16 %v230
  %v1155 = vunpack.c.h.b16 %v230
  %v1156 = vunpack.c.l.b16 %v231
  %v1157 = vunpack.c.h.b16 %v231
  %v1158 = vunpack.c.l.b16 %v232
  %v1159 = vunpack.c.h.b16 %v232
  %v1160 = vunpack.c.l.b16 %v233
  %v1161 = vunpack.c.h.b16 %v233
  %v1162 = vunpack.c.l.b16 %v234
  %v1163 = vunpack.c.h.b16 %v234
  %v1164 = vunpack.c.l.b16 %v235
  %v1165 = vunpack.c.h.b16 %v235
  %v1166 = vunpack.c.l.b16 %v236
  %v1167 = vunpack.c.h.b16 %v236
  %v1168 = vunpack.c.l.b16 %v237
  %v1169 = vunpack.c.h.b16 %v237
  %v1170 = vunpack.c.l.b16 %v238
  %v1171 = vunpack.c.h.b16 %v238
  %v1172 = vunpack.c.l.b16 %v239
  %v1173 = vunpack.c.h.b16 %v239
  %v1174 = vunpack.c.l.b16 %v240
  %v1175 = vunpack.c.h.b16 %v240
  %v1176 = vunpack.c.l.b16 %v241
  %v1177 = vunpack.c.h.b16 %v241
  %v1178 = vunpack.c.l.b16 %v242
  %v1179 = vunpack.c.h.b16 %v242
  %v1180 = vunpack.c.l.b16 %v243
  %v1181 = vunpack.c.h.b16 %v243
  %v1182 = vunpack.c.l.b16 %v244
  %v1183 = vunpack.c.h.b16 %v244
  %v1184 = vunpack.c.l.b16 %v245
  %v1185 = vunpack.c.h.b16 %v245
  %v1186 = vunpack.c.l.b16 %v246
  %v1187 = vunpack.c.h.b16 %v246
  %v1188 = vunpack.c.l.b16 %v247
  %v1189 = vunpack.c.h.b16 %v247
  %v1190 = vunpack.c.l.b16 %v248
  %v1191 = vunpack.c.h.b16 %v248
  %v1192 = vunpack.c.l.b16 %v249
  %v1193 = vunpack.c.h.b16 %v249
  %v1194 = vunpack.c.l.b16 %v250
  %v1195 = vunpack.c.h.b16 %v250
  %v1196 = vunpack.c.l.b16 %v251
  %v1197 = vunpack.c.h.b16 %v251
  %v1198 = vunpack.c.l.b16 %v252
  %v1199 = vunpack.c.h.b16 %v252
  %v1200 = vunpack.c.l.b16 %v253
  %v1201 = vunpack.c.h.b16 %v253
  %v1202 = vunpack.c.l.b16 %v254
  %v1203 = vunpack.c.h.b16 %v254
  %v1204 = vunpack.c.l.b16 %v255
  %v1205 = vunpack.c.h.b16 %v255
  %v1206 = vunpack.c.l.b16 %v256
  %v1207 = vunpack.c.h.b16 %v256
  %v1208 = vunpack.c.l.b16 %v257
  %v1209 = vunpack.c.h.b16 %v257
  %v1210 = vunpack.c.l.b16 %v258
  %v1211 = vunpack.c.h.b16 %v258
  %v1212 = vunpack.c.l.b16 %v259
  %v1213 = vunpack.c.h.b16 %v259
  %v1214 = vunpack.c.l.b16 %v260
  %v1215 = vunpack.c.h.b16 %v260
  %v1216 = vunpack.c.l.b16 %v261
  %v1217 = vunpack.c.h.b16 %v261
  %v1218 = vunpack.c.l.b16 %v262
  %v1219 = vunpack.c.h.b16 %v262
  %v1220 = vunpack.c.l.b16 %v263
  %v1221 = vunpack.c.h.b16 %v263
  %v1222 = vunpack.c.l.b16 %v264
  %v1223 = vunpack.c.h.b16 %v264
  %v1224 = vunpack.c.l.b16 %v265
  %v1225 = vunpack.c.h.b16 %v265
  %v1226 = vunpack.c.l.b16 %v266
  %v1227 = vunpack.c.h.b16 %v266
  %v1228 = vunpack.c.l.b16 %v267
  %v1229 = vunpack.c.h.b16 %v267
  %v1230 = vunpack.c.l.b16 %v268
  %v1231 = vunpack.c.h.b16 %v268
  %v1232 = vunpack.c.l.b16 %v269
  %v1233 = vunpack.c.h.b16 %v269
  %v1234 = vunpack.c.l.b16 %v270
  %v1235 = vunpack.c.h.b16 %v270
  %v1236 = vunpack.c.l.b16 %v271
  %v1237 = vunpack.c.h.b16 %v271
  %v1238 = vunpack.c.l.b16 %v272
  %v1239 = vunpack.c.h.b16 %v272
  %v1240 = vunpack.c.l.b16 %v273
  %v1241 = vunpack.c.h.b16 %v273
  %v1242 = vunpack.c.l.b16 %v274
  %v1243 = vunpack.c.h.b16 %v274
  %v1244 = vunpack.c.l.b16 %v275
  %v1245 = vunpack.c.h.b16 %v275
  %v1246 = vunpack.c.l.b16 %v276
  %v1247 = vunpack.c.h.b16 %v276
  %v1248 = vunpack.c.l.b16 %v277
  %v1249 = vunpack.c.h.b16 %v277
  %v1250 = vunpack.c.l.b16 %v278
  %v1251 = vunpack.c.h.b16 %v278
  %v1252 = vunpack.c.l.b16 %v279
  %v1253 = vunpack.c.h.b16 %v279
  %v1254 = vunpack.c.l.b16 %v280
  %v1255 = vunpack.c.h.b16 %v280
  %v1256 = vunpack.c.l.b16 %v281
  %v1257 = vunpack.c.h.b16 %v281
  %v1258 = vunpack.c.l.b16 %v282
  %v1259 = vunpack.c.h.b16 %v282
  %v1260 = vunpack.c.l.b16 %v283
  %v1261 = vunpack.c.h.b16 %v283
  %v1262 = vunpack.c.l.b16 %v284
  %v1263 = vunpack.c.h.b16 %v284
  %v1264 = vunpack.c.l.b16 %v285
  %v1265 = vunpack.c.h.b16 %v285
  %v1266 = vunpack.c.l.b16 %v286
  %v1267 = vunpack.c.h.b16 %v286
  %v1268 = vunpack.c.l.b16 %v287
  %v1269 = vunpack.c.h.b16 %v287
  %v1270 = vunpack.c.l.b16 %v288
  %v1271 = vunpack.c.h.b16 %v288
  %v1272 = vunpack.c.l.b16 %v289
  %v1273 = vunpack.c.h.b16 %v289
  %v1274 = vunpack.c.l.b16 %v290
  %v1275 = vunpack.c.h.b16 %v290
  %v1276 = vunpack.c.l.b16 %v291
  %v1277 = vunpack.c.h.b16 %v291
  %v1278 = vunpack.c.l.b16 %v292
  %v1279 = vunpack.c.h.b16 %v292
  %v1280 = vunpack.c.l.b16 %v293
  %v1281 = vunpack.c.h.b16 %v293
  %v1282 = vunpack.c.l.b16 %v294
  %v1283 = vunpack.c.h.b16 %v294
  %v1284 = vunpack.c.l.b16 %v295
  %v1285 = vunpack.c.h.b16 %v295
  %v1286 = vunpack.c.l.b16 %v296
  %v1287 = vunpack.c.h.b16 %v296
  %v1288 = vunpack.c.l.b16 %v297
  %v1289 = vunpack.c.h.b16 %v297
  %v1290 = vunpack.c.l.b16 %v298
  %v1291 = vunpack.c.h.b16 %v298
  %v1292 = vunpack.c.l.b16 %v299
  %v1293 = vunpack.c.h.b16 %v299
  %v1294 = vunpack.c.l.b16 %v300
  %v1295 = vunpack.c.h.b16 %v300
  %v1296 = vunpack.c.l.b16 %v301
  %v1297 = vunpack.c.h.b16 %v301
  %v1298 = vunpack.c.l.b16 %v302
  %v1299 = vunpack.c.h.b16 %v302
  %v1300 = vunpack.c.l.b16 %v303
  %v1301 = vunpack.c.h.b16 %v303
  %v1302 = vunpack.c.l.b16 %v304
  %v1303 = vunpack.c.h.b16 %v304
  %v1304 = vunpack.c.l.b16 %v305
  %v1305 = vunpack.c.h.b16 %v305
  %v1306 = vunpack.c.l.b16 %v306
  %v1307 = vunpack.c.h.b16 %v306
  %v1308 = vunpack.c.l.b16 %v307
  %v1309 = vunpack.c.h.b16 %v307
  %v1310 = vunpack.c.l.b16 %v308
  %v1311 = vunpack.c.h.b16 %v308
  %v1312 = vunpack.c.l.b16 %v309
  %v1313 = vunpack.c.h.b16 %v309
  %v1314 = vunpack.c.l.b16 %v310
  %v1315 = vunpack.c.h.b16 %v310
  %v1316 = vunpack.c.l.b16 %v311
  %v1317 = vunpack.c.h.b16 %v311
  %v1318 = vunpack.c.l.b16 %v312
  %v1319 = vunpack.c.h.b16 %v312
  %v1320 = vunpack.c.l.b16 %v313
  %v1321 = vunpack.c.h.b16 %v313
  %v1322 = vunpack.c.l.b16 %v314
  %v1323 = vunpack.c.h.b16 %v314
  %v1324 = vunpack.c.l.b16 %v315
  %v1325 = vunpack.c.h.b16 %v315
  %v1326 = vunpack.c.l.b16 %v316
  %v1327 = vunpack.c.h.b16 %v316
  %v1328 = vunpack.c.l.b16 %v317
  %v1329 = vunpack.c.h.b16 %v317
  %v1330 = vunpack.c.l.b16 %v318
  %v1331 = vunpack.c.h.b16 %v318
  %v1332 = vunpack.c.l.b16 %v319
  %v1333 = vunpack.c.h.b16 %v319
  %v1334 = vunpack.c.l.b16 %v320
  %v1335 = vunpack.c.h.b16 %v320
  %v1336 = vunpack.c.l.b16 %v321
  %v1337 = vunpack.c.h.b16 %v321
  %v1338 = vunpack.c.l.b16 %v322
  %v1339 = vunpack.c.h.b16 %v322
  %v1340 = vunpack.c.l.b16 %v323
  %v1341 = vunpack.c.h.b16 %v323
  %v1342 = vunpack.c.l.b16 %v324
  %v1343 = vunpack.c.h.b16 %v324
  %v1344 = vunpack.c.l.b16 %v325
  %v1345 = vunpack.c.h.b16 %v325
  %v1346 = vunpack.c.l.b16 %v326
  %v1347 = vunpack.c.h.b16 %v326
  %v1348 = vunpack.c.l.b16 %v327
  %v1349 = vunpack.c.h.b16 %v327
  %v1350 = vunpack.c.l.b16 %v328
  %v1351 = vunpack.c.h.b16 %v328
  %v1352 = vpack.c.b16 %v778, %v776
  %v1353 = vpack.c.b16 %v779, %v777
  %v1354 = vpack.c.b16 %v782, %v780
  %v1355 = vpack.c.b16 %v783, %v781
  %v1356 = vpack.c.b16 %v786, %v784
  %v1357 = vpack.c.b16 %v787, %v785
  %v1358 = vpack.c.b16 %v790, %v788
  %v1359 = vpack.c.b16 %v791, %v789
  %v1360 = vpack.c.b16 %v794, %v792
  %v1361 = vpack.c.b16 %v795, %v793
  %v1362 = vpack.c.b16 %v798, %v796
  %v1363 = vpack.c.b16 %v799, %v797
  %v1364 = vpack.c.b16 %v802, %v800
  %v1365 = vpack.c.b16 %v803, %v801
  %v1366 = vpack.c.b16 %v806, %v804
  %v1367 = vpack.c.b16 %v807, %v805
  %v1368 = vpack.c.b16 %v810, %v808
  %v1369 = vpack.c.b16 %v811, %v809
  %v1370 = vpack.c.b16 %v814, %v812
  %v1371 = vpack.c.b16 %v815, %v813
  %v1372 = vpack.c.b16 %v818, %v816
  %v1373 = vpack.c.b16 %v819, %v817
  %v1374 = vpack.c.b16 %v822, %v820
  %v1375 = vpack.c.b16 %v823, %v821
  %v1376 = vpack.c.b16 %v826, %v824
  %v1377 = vpack.c.b16 %v827, %v825
  %v1378 = vpack.c.b16 %v830, %v828
  %v1379 = vpack.c.b16 %v831, %v829
  %v1380 = vpack.c.b16 %v834, %v832
  %v1381 = vpack.c.b16 %v835, %v833
  %v1382 = vpack.c.b16 %v838, %v836
  %v1383 = vpack.c.b16 %v839, %v837
  %v1384 = vpack.c.b16 %v842, %v840
  %v1385 = vpack.c.b16 %v843, %v841
  %v1386 = vpack.c.b16 %v846, %v844
  %v1387 = vpack.c.b16 %v847, %v845
  %v1388 = vpack.c.b16 %v850, %v848
  %v1389 = vpack.c.b16 %v851, %v849
  %v1390 = vpack.c.b16 %v854, %v852
  %v1391 = vpack.c.b16 %v855, %v853
  %v1392 = vpack.c.b16 %v858, %v856
  %v1393 = vpack.c.b16 %v859, %v857
  %v1394 = vpack.c.b16 %v862, %v860
  %v1395 = vpack.c.b16 %v863, %v861
  %v1396 = vpack.c.b16 %v866, %v864
  %v1397 = vpack.c.b16 %v867, %v865
  %v1398 = vpack.c.b16 %v870, %v868
  %v1399 = vpack.c.b16 %v871, %v869
  %v1400 = vpack.c.b16 %v874, %v872
  %v1401 = vpack.c.b16 %v875, %v873
  %v1402 = vpack.c.b16 %v878, %v876
  %v1403 = vpack.c.b16 %v879, %v877
  %v1404 = vpack.c.b16 %v882, %v880
  %v1405 = vpack.c.b16 %v883, %v881
  %v1406 = vpack.c.b16 %v886, %v884
  %v1407 = vpack.c.b16 %v887, %v885
  %v1408 = vpack.c.b16 %v890, %v888
  %v1409 = vpack.c.b16 %v891, %v889
  %v1410 = vpack.c.b16 %v894, %v892
  %v1411 = vpack.c.b16 %v895, %v893
  %v1412 = vpack.c.b16 %v898, %v896
  %v1413 = vpack.c.b16 %v899, %v897
  %v1414 = vpack.c.b16 %v902, %v900
  %v1415 = vpack.c.b16 %v903, %v901
  %v1416 = vpack.c.b16 %v906, %v904
  %v1417 = vpack.c.b16 %v907, %v905
  %v1418 = vpack.c.b16 %v910, %v908
  %v1419 = vpack.c.b16 %v911, %v909
  %v1420 = vpack.c.b16 %v914, %v912
  %v1421 = vpack.c.b16 %v915, %v913
  %v1422 = vpack.c.b16 %v918, %v916
  %v1423 = vpack.c.b16 %v919, %v917
  %v1424 = vpack.c.b16 %v922, %v920
  %v1425 = vpack.c.b16 %v923, %v921
  %v1426 = vpack.c.b16 %v926, %v924
  %v1427 = vpack.c.b16 %v927, %v925
  %v1428 = vpack.c.b16 %v930, %v928
  %v1429 = vpack.c.b16 %v931, %v929
  %v1430 = vpack.c.b16 %v934, %v932
  %v1431 = vpack.c.b16 %v935, %v933
  %v1432 = vpack.c.b16 %v938, %v936
  %v1433 = vpack.c.b16 %v939, %v937
  %v1434 = vpack.c.b16 %v942, %v940
  %v1435 = vpack.c.b16 %v943, %v941
  %v1436 = vpack.c.b16 %v946, %v944
  %v1437 = vpack.c.b16 %v947, %v945
  %v1438 = vpack.c.b16 %v950, %v948
  %v1439 = vpack.c.b16 %v951, %v949
  %v1440 = vpack.c.b16 %v954, %v952
  %v1441 = vpack.c.b16 %v955, %v953
  %v1442 = vpack.c.b16 %v958, %v956
  %v1443 = vpack.c.b16 %v959, %v957
  %v1444 = vpack.c.b16 %v962, %v960
  %v1445 = vpack.c.b16 %v963, %v961
  %v1446 = vpack.c.b16 %v966, %v964
  %v1447 = vpack.c.b16 %v967, %v965
  %v1448 = vpack.c.b16 %v970, %v968
  %v1449 = vpack.c.b16 %v971, %v969
  %v1450 = vpack.c.b16 %v974, %v972
  %v1451 = vpack.c.b16 %v975, %v973
  %v1452 = vpack.c.b16 %v978, %v976
  %v1453 = vpack.c.b16 %v979, %v977
  %v1454 = vpack.c.b16 %v982, %v980
  %v1455 = vpack.c.b16 %v983, %v981
  %v1456 = vpack.c.b16 %v986, %v984
  %v1457 = vpack.c.b16 %v987, %v985
  %v1458 = vpack.c.b16 %v990, %v988
  %v1459 = vpack.c.b16 %v991, %v989
  %v1460 = vpack.c.b16 %v994, %v992
  %v1461 = vpack.c.b16 %v995, %v993
  %v1462 = vpack.c.b16 %v998, %v996
  %v1463 = vpack.c.b16 %v999, %v997
  %v1464 = vpack.c.b16 %v1002, %v1000
  %v1465 = vpack.c.b16 %v1003, %v1001
  %v1466 = vpack.c.b16 %v1006, %v1004
  %v1467 = vpack.c.b16 %v1007, %v1005
  %v1468 = vpack.c.b16 %v1010, %v1008
  %v1469 = vpack.c.b16 %v1011, %v1009
  %v1470 = vpack.c.b16 %v1014, %v1012
  %v1471 = vpack.c.b16 %v1015, %v1013
  %v1472 = vpack.c.b16 %v1018, %v1016
  %v1473 = vpack.c.b16 %v1019, %v1017
  %v1474 = vpack.c.b16 %v1022, %v1020
  %v1475 = vpack.c.b16 %v1023, %v1021
  %v1476 = vpack.c.b16 %v1026, %v1024
  %v1477 = vpack.c.b16 %v1027, %v1025
  %v1478 = vpack.c.b16 %v1030, %v1028
  %v1479 = vpack.c.b16 %v1031, %v1029
  %v1480 = vpack.c.b16 %v1034, %v1032
  %v1481 = vpack.c.b16 %v1035, %v1033
  %v1482 = vpack.c.b16 %v1038, %v1036
  %v1483 = vpack.c.b16 %v1039, %v1037
  %v1484 = vpack.c.b16 %v1042, %v1040
  %v1485 = vpack.c.b16 %v1043, %v1041
  %v1486 = vpack.c.b16 %v1046, %v1044
  %v1487 = vpack.c.b16 %v1047, %v1045
  %v1488 = vpack.c.b16 %v1050, %v1048
  %v1489 = vpack.c.b16 %v1051, %v1049
  %v1490 = vpack.c.b16 %v1054, %v1052
  %v1491 = vpack.c.b16 %v1055, %v1053
  %v1492 = vpack.c.b16 %v1058, %v1056
  %v1493 = vpack.c.b16 %v1059, %v1057
  %v1494 = vpack.c.b16 %v1062, %v1060
  %v1495 = vpack.c.b16 %v1063, %v1061
  %v1496 = vpack.c.b16 %v1066, %v1064
  %v1497 = vpack.c.b16 %v1067, %v1065
  %v1498 = vpack.c.b16 %v1070, %v1068
  %v1499 = vpack.c.b16 %v1071, %v1069
  %v1500 = vpack.c.b16 %v1074, %v1072
  %v1501 = vpack.c.b16 %v1075, %v1073
  %v1502 = vpack.c.b16 %v1078, %v1076
  %v1503 = vpack.c.b16 %v1079, %v1077
  %v1504 = vpack.c.b16 %v1082, %v1080
  %v1505 = vpack.c.b16 %v1083, %v1081
  %v1506 = vpack.c.b16 %v1086, %v1084
  %v1507 = vpack.c.b16 %v1087, %v1085
  %v1508 = vpack.c.b16 %v1090, %v1088
  %v1509 = vpack.c.b16 %v1091, %v1089
  %v1510 = vpack.c.b16 %v1094, %v1092
  %v1511 = vpack.c.b16 %v1095, %v1093
  %v1512 = vpack.c.b16 %v1098, %v1096
  %v1513 = vpack.c.b16 %v1099, %v1097
  %v1514 = vpack.c.b16 %v1102, %v1100
  %v1515 = vpack.c.b16 %v1103, %v1101
  %v1516 = vpack.c.b16 %v1106, %v1104
  %v1517 = vpack.c.b16 %v1107, %v1105
  %v1518 = vpack.c.b16 %v1110, %v1108
  %v1519 = vpack.c.b16 %v1111, %v1109
  %v1520 = vpack.c.b16 %v1114, %v1112
  %v1521 = vpack.c.b16 %v1115, %v1113
  %v1522 = vpack.c.b16 %v1118, %v1116
  %v1523 = vpack.c.b16 %v1119, %v1117
  %v1524 = vpack.c.b16 %v1122, %v1120
  %v1525 = vpack.c.b16 %v1123, %v1121
  %v1526 = vpack.c.b16 %v1126, %v1124
  %v1527 = vpack.c.b16 %v1127, %v1125
  %v1528 = vpack.c.b16 %v1130, %v1128
  %v1529 = vpack.c.b16 %v1131, %v1129
  %v1530 = vpack.c.b16 %v1134, %v1132
  %v1531 = vpack.c.b16 %v1135, %v1133
  %v1532 = vpack.c.b16 %v1138, %v1136
  %v1533 = vpack.c.b16 %v1139, %v1137
  %v1534 = vpack.c.b16 %v1142, %v1140
  %v1535 = vpack.c.b16 %v1143, %v1141
  %v1536 = vpack.c.b16 %v1146, %v1144
  %v1537 = vpack.c.b16 %v1147, %v1145
  %v1538 = vpack.c.b16 %v1150, %v1148
  %v1539 = vpack.c.b16 %v1151, %v1149
  %v1540 = vpack.c.b16 %v1154, %v1152
  %v1541 = vpack.c.b16 %v1155, %v1153
  %v1542 = vpack.c.b16 %v1158, %v1156
  %v1543 = vpack.c.b16 %v1159, %v1157
  %v1544 = vpack.c.b16 %v1162, %v1160
  %v1545 = vpack.c.b16 %v1163, %v1161
  %v1546 = vpack.c.b16 %v1166, %v1164
  %v1547 = vpack.c.b16 %v1167, %v1165
  %v1548 = vpack.c.b16 %v1170, %v1168
  %v1549 = vpack.c.b16 %v1171, %v1169
  %v1550 = vpack.c.b16 %v1174, %v1172
  %v1551 = vpack.c.b16 %v1175, %v1173
  %v1552 = vpack.c.b16 %v1178, %v1176
  %v1553 = vpack.c.b16 %v1179, %v1177
  %v1554 = vpack.c.b16 %v1182, %v1180
  %v1555 = vpack.c.b16 %v1183, %v1181
  %v1556 = vpack.c.b16 %v1186, %v1184
  %v1557 = vpack.c.b16 %v1187, %v1185
  %v1558 = vpack.c.b16 %v1190, %v1188
  %v1559 = vpack.c.b16 %v1191, %v1189
  %v1560 = vpack.c.b16 %v1194, %v1192
  %v1561 = vpack.c.b16 %v1195, %v1193
  %v1562 = vpack.c.b16 %v1198, %v1196
  %v1563 = vpack.c.b16 %v1199, %v1197
  %v1564 = vpack.c.b16 %v1202, %v1200
  %v1565 = vpack.c.b16 %v1203, %v1201
  %v1566 = vpack.c.b16 %v1206, %v1204
  %v1567 = vpack.c.b16 %v1207, %v1205
  %v1568 = vpack.c.b16 %v1210, %v1208
  %v1569 = vpack.c.b16 %v1211, %v1209
  %v1570 = vpack.c.b16 %v1214, %v1212
  %v1571 = vpack.c.b16 %v1215, %v1213
  %v1572 = vpack.c.b16 %v1218, %v1216
  %v1573 = vpack.c.b16 %v1219, %v1217
  %v1574 = vpack.c.b16 %v1222, %v1220
  %v1575 = vpack.c.b16 %v1223, %v1221
  %v1576 = vpack.c.b16 %v1226, %v1224
  %v1577 = vpack.c.b16 %v1227, %v1225
  %v1578 = vpack.c.b16 %v1230, %v1228
  %v1579 = vpack.c.b16 %v1231, %v1229
  %v1580 = vpack.c.b16 %v1234, %v1232
  %v1581 = vpack.c.b16 %v1235, %v1233
  %v1582 = vpack.c.b16 %v1238, %v1236
  %v1583 = vpack.c.b16 %v1239, %v1237
  %v1584 = vpack.c.b16 %v1242, %v1240
  %v1585 = vpack.c.b16 %v1243, %v1241
  %v1586 = vpack.c.b16 %v1246, %v1244
  %v1587 = vpack.c.b16 %v1247, %v1245
  %v1588 = vpack.c.b16 %v1250, %v1248
  %v1589 = vpack.c.b16 %v1251, %v1249
  %v1590 = vpack.c.b16 %v1254, %v1252
  %v1591 = vpack.c.b16 %v1255, %v1253
  %v1592 = vpack.c.b16 %v1258, %v1256
  %v1593 = vpack.c.b16 %v1259, %v1257
  %v1594 = vpack.c.b16 %v1262, %v1260
  %v1595 = vpack.c.b16 %v1263, %v1261
  %v1596 = vpack.c.b16 %v1266, %v1264
  %v1597 = vpack.c.b16 %v1267, %v1265
  %v1598 = vpack.c.b16 %v1270, %v1268
  %v1599 = vpack.c.b16 %v1271, %v1269
  %v1600 = vpack.c.b16 %v1274, %v1272
  %v1601 = vpack.c.b16 %v1275, %v1273
  %v1602 = vpack.c.b16 %v1278, %v1276
  %v1603 = vpack.c.b16 %v1279, %v1277
  %v1604 = vpack.c.b16 %v1282, %v1280
  %v1605 = vpack.c.b16 %v1283, %v1281
  %v1606 = vpack.c.b16 %v1286, %v1284
  %v1607 = vpack.c.b16 %v1287, %v1285
  %v1608 = vpack.c.b16 %v1290, %v1288
  %v1609 = vpack.c.b16 %v1291, %v1289
  %v1610 = vpack.c.b16 %v1294, %v1292
  %v1611 = vpack.c.b16 %v1295, %v1293
  %v1612 = vpack.c.b16 %v1298, %v1296
  %v1613 = vpack.c.b16 %v1299, %v1297
  %v1614 = vpack.c.b16 %v1302, %v1300
  %v1615 = vpack.c.b16 %v1303, %v1301
  %v1616 = vpack.c.b16 %v1306, %v1304
  %v1617 = vpack.c.b16 %v1307, %v1305
  %v1618 = vpack.c.b16 %v1310, %v1308
  %v1619 = vpack.c.b16 %v1311, %v1309
  %v1620 = vpack.c.b16 %v1314, %v1312
  %v1621 = vpack.c.b16 %v1315, %v1313
  %v1622 = vpack.c.b16 %v1318, %v1316
  %v1623 = vpack.c.b16 %v1319, %v1317
  %v1624 = vpack.c.b16 %v1322, %v1320
  %v1625 = vpack.c.b16 %v1323, %v1321
  %v1626 = vpack.c.b16 %v1326, %v1324
  %v1627 = vpack.c.b16 %v1327, %v1325
  %v1628 = vpack.c.b16 %v1330, %v1328
  %v1629 = vpack.c.b16 %v1331, %v1329
  %v1630 = vpack.c.b16 %v1334, %v1332
  %v1631 = vpack.c.b16 %v1335, %v1333
  %v1632 = vpack.c.b16 %v1338, %v1336
  %v1633 = vpack.c.b16 %v1339, %v1337
  %v1634 = vpack.c.b16 %v1342, %v1340
  %v1635 = vpack.c.b16 %v1343, %v1341
  %v1636 = vpack.c.b16 %v1346, %v1344
  %v1637 = vpack.c.b16 %v1347, %v1345
  %v1638 = vpack.c.b16 %v1350, %v1348
  %v1639 = vpack.c.b16 %v1351, %v1349
  %1928 = vmatpush.bf16.msra.mxu0 %v1366
  %1929 = vmatpush.bf16.msra.mxu0 %v1364
  %1930 = vmatpush.bf16.msra.mxu0 %v1362
  %1931 = vmatpush.bf16.msra.mxu0 %v1360
  %1932 = vmatpush.bf16.msra.mxu0 %v1358
  %1933 = vmatpush.bf16.msra.mxu0 %v1356
  %1934 = vmatpush.bf16.msra.mxu0 %v1354
  %1935 = vmatpush.bf16.msra.mxu0 %v1352
  %1936 = vmatmul.bf16.gmra.mxu0 %v416
  %v1937 = vpop.f32.mrf.mxu0
  %v1938 = vadd.f32 %v331, %v1937
  %v1939 = vpop.f32.mrf.mxu0
  %v1940 = vadd.f32 %v331, %v1939
  %1941 = vmatmul.bf16.gmra.mxu0 %v434
  %v1942 = vpop.f32.mrf.mxu0
  %v1943 = vadd.f32 %v331, %v1942
  %v1944 = vpop.f32.mrf.mxu0
  %1945 = vdwg.mxu0
  %1946 = vmatpush.bf16.msra.mxu0 %v1382
  %1947 = vmatpush.bf16.msra.mxu0 %v1380
  %1948 = vmatpush.bf16.msra.mxu0 %v1378
  %1949 = vmatpush.bf16.msra.mxu0 %v1376
  %1950 = vmatpush.bf16.msra.mxu0 %v1374
  %1951 = vmatpush.bf16.msra.mxu0 %v1372
  %1952 = vmatpush.bf16.msra.mxu0 %v1370
  %1953 = vmatpush.bf16.msra.mxu0 %v1368
  %1954 = vmatmul.bf16.gmra.mxu0 %v417
  %v1955 = vpop.f32.mrf.mxu0
  %v1956 = vadd.f32 %v1938, %v1955
  %v1957 = vpop.f32.mrf.mxu0
  %v1958 = vadd.f32 %v1940, %v1957
  %1959 = vmatmul.bf16.gmra.mxu0 %v435
  %v1960 = vpop.f32.mrf.mxu0
  %v1961 = vadd.f32 %v1943, %v1960
  %v1962 = vpop.f32.mrf.mxu0
  %1963 = vdwg.mxu0
  %1964 = vmatpush.bf16.msra.mxu0 %v1398
  %1965 = vmatpush.bf16.msra.mxu0 %v1396
  %1966 = vmatpush.bf16.msra.mxu0 %v1394
  %1967 = vmatpush.bf16.msra.mxu0 %v1392
  %1968 = vmatpush.bf16.msra.mxu0 %v1390
  %1969 = vmatpush.bf16.msra.mxu0 %v1388
  %1970 = vmatpush.bf16.msra.mxu0 %v1386
  %1971 = vmatpush.bf16.msra.mxu0 %v1384
  %1972 = vmatmul.bf16.gmra.mxu0 %v418
  %v1973 = vpop.f32.mrf.mxu0
  %v1974 = vadd.f32 %v1956, %v1973
  %v1975 = vpop.f32.mrf.mxu0
  %v1976 = vadd.f32 %v1958, %v1975
  %1977 = vmatmul.bf16.gmra.mxu0 %v436
  %v1978 = vpop.f32.mrf.mxu0
  %v1979 = vadd.f32 %v1961, %v1978
  %v1980 = vpop.f32.mrf.mxu0
  %1981 = vdwg.mxu0
  %1982 = vmatpush.bf16.msra.mxu0 %v1414
  %1983 = vmatpush.bf16.msra.mxu0 %v1412
  %1984 = vmatpush.bf16.msra.mxu0 %v1410
  %1985 = vmatpush.bf16.msra.mxu0 %v1408
  %1986 = vmatpush.bf16.msra.mxu0 %v1406
  %1987 = vmatpush.bf16.msra.mxu0 %v1404
  %1988 = vmatpush.bf16.msra.mxu0 %v1402
  %1989 = vmatpush.bf16.msra.mxu0 %v1400
  %1990 = vmatmul.bf16.gmra.mxu0 %v419
  %v1991 = vpop.f32.mrf.mxu0
  %v1992 = vadd.f32 %v1974, %v1991
  %v1993 = vpop.f32.mrf.mxu0
  %v1994 = vadd.f32 %v1976, %v1993
  %1995 = vmatmul.bf16.gmra.mxu0 %v437
  %v1996 = vpop.f32.mrf.mxu0
  %v1997 = vadd.f32 %v1979, %v1996
  %v1998 = vpop.f32.mrf.mxu0
  %1999 = vdwg.mxu0
  %2000 = vmatpush.bf16.msra.mxu0 %v1430
  %2001 = vmatpush.bf16.msra.mxu0 %v1428
  %2002 = vmatpush.bf16.msra.mxu0 %v1426
  %2003 = vmatpush.bf16.msra.mxu0 %v1424
  %2004 = vmatpush.bf16.msra.mxu0 %v1422
  %2005 = vmatpush.bf16.msra.mxu0 %v1420
  %2006 = vmatpush.bf16.msra.mxu0 %v1418
  %2007 = vmatpush.bf16.msra.mxu0 %v1416
  %2008 = vmatmul.bf16.gmra.mxu0 %v420
  %v2009 = vpop.f32.mrf.mxu0
  %v2010 = vadd.f32 %v1992, %v2009
  %v2011 = vpop.f32.mrf.mxu0
  %v2012 = vadd.f32 %v1994, %v2011
  %2013 = vmatmul.bf16.gmra.mxu0 %v438
  %v2014 = vpop.f32.mrf.mxu0
  %v2015 = vadd.f32 %v1997, %v2014
  %v2016 = vpop.f32.mrf.mxu0
  %2017 = vdwg.mxu0
  %2018 = vmatpush.bf16.msra.mxu0 %v1446
  %2019 = vmatpush.bf16.msra.mxu0 %v1444
  %2020 = vmatpush.bf16.msra.mxu0 %v1442
  %2021 = vmatpush.bf16.msra.mxu0 %v1440
  %2022 = vmatpush.bf16.msra.mxu0 %v1438
  %2023 = vmatpush.bf16.msra.mxu0 %v1436
  %2024 = vmatpush.bf16.msra.mxu0 %v1434
  %2025 = vmatpush.bf16.msra.mxu0 %v1432
  %2026 = vmatmul.bf16.gmra.mxu0 %v421
  %v2027 = vpop.f32.mrf.mxu0
  %v2028 = vadd.f32 %v2010, %v2027
  %v2029 = vpop.f32.mrf.mxu0
  %v2030 = vadd.f32 %v2012, %v2029
  %2031 = vmatmul.bf16.gmra.mxu0 %v439
  %v2032 = vpop.f32.mrf.mxu0
  %v2033 = vadd.f32 %v2015, %v2032
  %v2034 = vpop.f32.mrf.mxu0
  %2035 = vdwg.mxu0
  %2036 = vmatpush.bf16.msra.mxu0 %v1462
  %2037 = vmatpush.bf16.msra.mxu0 %v1460
  %2038 = vmatpush.bf16.msra.mxu0 %v1458
  %2039 = vmatpush.bf16.msra.mxu0 %v1456
  %2040 = vmatpush.bf16.msra.mxu0 %v1454
  %2041 = vmatpush.bf16.msra.mxu0 %v1452
  %2042 = vmatpush.bf16.msra.mxu0 %v1450
  %2043 = vmatpush.bf16.msra.mxu0 %v1448
  %2044 = vmatmul.bf16.gmra.mxu0 %v422
  %v2045 = vpop.f32.mrf.mxu0
  %v2046 = vadd.f32 %v2028, %v2045
  %v2047 = vpop.f32.mrf.mxu0
  %v2048 = vadd.f32 %v2030, %v2047
  %2049 = vmatmul.bf16.gmra.mxu0 %v440
  %v2050 = vpop.f32.mrf.mxu0
  %v2051 = vadd.f32 %v2033, %v2050
  %v2052 = vpop.f32.mrf.mxu0
  %2053 = vdwg.mxu0
  %2054 = vmatpush.bf16.msra.mxu0 %v1478
  %2055 = vmatpush.bf16.msra.mxu0 %v1476
  %2056 = vmatpush.bf16.msra.mxu0 %v1474
  %2057 = vmatpush.bf16.msra.mxu0 %v1472
  %2058 = vmatpush.bf16.msra.mxu0 %v1470
  %2059 = vmatpush.bf16.msra.mxu0 %v1468
  %2060 = vmatpush.bf16.msra.mxu0 %v1466
  %2061 = vmatpush.bf16.msra.mxu0 %v1464
  %2062 = vmatmul.bf16.gmra.mxu0 %v423
  %v2063 = vpop.f32.mrf.mxu0
  %v2064 = vadd.f32 %v2046, %v2063
  %v2065 = vpop.f32.mrf.mxu0
  %v2066 = vadd.f32 %v2048, %v2065
  %2067 = vmatmul.bf16.gmra.mxu0 %v441
  %v2068 = vpop.f32.mrf.mxu0
  %v2069 = vadd.f32 %v2051, %v2068
  %v2070 = vpop.f32.mrf.mxu0
  %2071 = vdwg.mxu0
  %2072 = vmatpush.bf16.msra.mxu0 %v1494
  %2073 = vmatpush.bf16.msra.mxu0 %v1492
  %2074 = vmatpush.bf16.msra.mxu0 %v1490
  %2075 = vmatpush.bf16.msra.mxu0 %v1488
  %2076 = vmatpush.bf16.msra.mxu0 %v1486
  %2077 = vmatpush.bf16.msra.mxu0 %v1484
  %2078 = vmatpush.bf16.msra.mxu0 %v1482
  %2079 = vmatpush.bf16.msra.mxu0 %v1480
  %2080 = vmatmul.bf16.gmra.mxu0 %v424
  %v2081 = vpop.f32.mrf.mxu0
  %v2082 = vadd.f32 %v2064, %v2081
  %v2083 = vpop.f32.mrf.mxu0
  %v2084 = vadd.f32 %v2066, %v2083
  %2085 = vmatmul.bf16.gmra.mxu0 %v442
  %v2086 = vpop.f32.mrf.mxu0
  %v2087 = vadd.f32 %v2069, %v2086
  %v2088 = vpop.f32.mrf.mxu0
  %2089 = vdwg.mxu0
  %2090 = vmatpush.bf16.msra.mxu0 %v1510
  %2091 = vmatpush.bf16.msra.mxu0 %v1508
  %2092 = vmatpush.bf16.msra.mxu0 %v1506
  %2093 = vmatpush.bf16.msra.mxu0 %v1504
  %2094 = vmatpush.bf16.msra.mxu0 %v1502
  %2095 = vmatpush.bf16.msra.mxu0 %v1500
  %2096 = vmatpush.bf16.msra.mxu0 %v1498
  %2097 = vmatpush.bf16.msra.mxu0 %v1496
  %2098 = vmatmul.bf16.gmra.mxu0 %v425
  %v2099 = vpop.f32.mrf.mxu0
  %v2100 = vadd.f32 %v2082, %v2099
  %v2101 = vpop.f32.mrf.mxu0
  %v2102 = vadd.f32 %v2084, %v2101
  %2103 = vmatmul.bf16.gmra.mxu0 %v443
  %v2104 = vpop.f32.mrf.mxu0
  %v2105 = vadd.f32 %v2087, %v2104
  %v2106 = vpop.f32.mrf.mxu0
  %2107 = vdwg.mxu0
  %2108 = vmatpush.bf16.msra.mxu0 %v1526
  %2109 = vmatpush.bf16.msra.mxu0 %v1524
  %2110 = vmatpush.bf16.msra.mxu0 %v1522
  %2111 = vmatpush.bf16.msra.mxu0 %v1520
  %2112 = vmatpush.bf16.msra.mxu0 %v1518
  %2113 = vmatpush.bf16.msra.mxu0 %v1516
  %2114 = vmatpush.bf16.msra.mxu0 %v1514
  %2115 = vmatpush.bf16.msra.mxu0 %v1512
  %2116 = vmatmul.bf16.gmra.mxu0 %v426
  %v2117 = vpop.f32.mrf.mxu0
  %v2118 = vadd.f32 %v2100, %v2117
  %v2119 = vpop.f32.mrf.mxu0
  %v2120 = vadd.f32 %v2102, %v2119
  %2121 = vmatmul.bf16.gmra.mxu0 %v444
  %v2122 = vpop.f32.mrf.mxu0
  %v2123 = vadd.f32 %v2105, %v2122
  %v2124 = vpop.f32.mrf.mxu0
  %2125 = vdwg.mxu0
  %2126 = vmatpush.bf16.msra.mxu0 %v1542
  %2127 = vmatpush.bf16.msra.mxu0 %v1540
  %2128 = vmatpush.bf16.msra.mxu0 %v1538
  %2129 = vmatpush.bf16.msra.mxu0 %v1536
  %2130 = vmatpush.bf16.msra.mxu0 %v1534
  %2131 = vmatpush.bf16.msra.mxu0 %v1532
  %2132 = vmatpush.bf16.msra.mxu0 %v1530
  %2133 = vmatpush.bf16.msra.mxu0 %v1528
  %2134 = vmatmul.bf16.gmra.mxu0 %v427
  %v2135 = vpop.f32.mrf.mxu0
  %v2136 = vadd.f32 %v2118, %v2135
  %v2137 = vpop.f32.mrf.mxu0
  %v2138 = vadd.f32 %v2120, %v2137
  %2139 = vmatmul.bf16.gmra.mxu0 %v445
  %v2140 = vpop.f32.mrf.mxu0
  %v2141 = vadd.f32 %v2123, %v2140
  %v2142 = vpop.f32.mrf.mxu0
  %2143 = vdwg.mxu0
  %2144 = vmatpush.bf16.msra.mxu0 %v1558
  %2145 = vmatpush.bf16.msra.mxu0 %v1556
  %2146 = vmatpush.bf16.msra.mxu0 %v1554
  %2147 = vmatpush.bf16.msra.mxu0 %v1552
  %2148 = vmatpush.bf16.msra.mxu0 %v1550
  %2149 = vmatpush.bf16.msra.mxu0 %v1548
  %2150 = vmatpush.bf16.msra.mxu0 %v1546
  %2151 = vmatpush.bf16.msra.mxu0 %v1544
  %2152 = vmatmul.bf16.gmra.mxu0 %v428
  %v2153 = vpop.f32.mrf.mxu0
  %v2154 = vadd.f32 %v2136, %v2153
  %v2155 = vpop.f32.mrf.mxu0
  %v2156 = vadd.f32 %v2138, %v2155
  %2157 = vmatmul.bf16.gmra.mxu0 %v446
  %v2158 = vpop.f32.mrf.mxu0
  %v2159 = vadd.f32 %v2141, %v2158
  %v2160 = vpop.f32.mrf.mxu0
  %2161 = vdwg.mxu0
  %2162 = vmatpush.bf16.msra.mxu0 %v1574
  %2163 = vmatpush.bf16.msra.mxu0 %v1572
  %2164 = vmatpush.bf16.msra.mxu0 %v1570
  %2165 = vmatpush.bf16.msra.mxu0 %v1568
  %2166 = vmatpush.bf16.msra.mxu0 %v1566
  %2167 = vmatpush.bf16.msra.mxu0 %v1564
  %2168 = vmatpush.bf16.msra.mxu0 %v1562
  %2169 = vmatpush.bf16.msra.mxu0 %v1560
  %2170 = vmatmul.bf16.gmra.mxu0 %v429
  %v2171 = vpop.f32.mrf.mxu0
  %v2172 = vadd.f32 %v2154, %v2171
  %v2173 = vpop.f32.mrf.mxu0
  %v2174 = vadd.f32 %v2156, %v2173
  %2175 = vmatmul.bf16.gmra.mxu0 %v447
  %v2176 = vpop.f32.mrf.mxu0
  %v2177 = vadd.f32 %v2159, %v2176
  %v2178 = vpop.f32.mrf.mxu0
  %2179 = vdwg.mxu0
  %2180 = vmatpush.bf16.msra.mxu0 %v1590
  %2181 = vmatpush.bf16.msra.mxu0 %v1588
  %2182 = vmatpush.bf16.msra.mxu0 %v1586
  %2183 = vmatpush.bf16.msra.mxu0 %v1584
  %2184 = vmatpush.bf16.msra.mxu0 %v1582
  %2185 = vmatpush.bf16.msra.mxu0 %v1580
  %2186 = vmatpush.bf16.msra.mxu0 %v1578
  %2187 = vmatpush.bf16.msra.mxu0 %v1576
  %2188 = vmatmul.bf16.gmra.mxu0 %v430
  %v2189 = vpop.f32.mrf.mxu0
  %v2190 = vadd.f32 %v2172, %v2189
  %v2191 = vpop.f32.mrf.mxu0
  %v2192 = vadd.f32 %v2174, %v2191
  %2193 = vmatmul.bf16.gmra.mxu0 %v448
  %v2194 = vpop.f32.mrf.mxu0
  %v2195 = vadd.f32 %v2177, %v2194
  %v2196 = vpop.f32.mrf.mxu0
  %2197 = vdwg.mxu0
  %2198 = vmatpush.bf16.msra.mxu0 %v1606
  %2199 = vmatpush.bf16.msra.mxu0 %v1604
  %2200 = vmatpush.bf16.msra.mxu0 %v1602
  %2201 = vmatpush.bf16.msra.mxu0 %v1600
  %2202 = vmatpush.bf16.msra.mxu0 %v1598
  %2203 = vmatpush.bf16.msra.mxu0 %v1596
  %2204 = vmatpush.bf16.msra.mxu0 %v1594
  %2205 = vmatpush.bf16.msra.mxu0 %v1592
  %2206 = vmatmul.bf16.gmra.mxu0 %v431
  %v2207 = vpop.f32.mrf.mxu0
  %v2208 = vadd.f32 %v2190, %v2207
  %v2209 = vpop.f32.mrf.mxu0
  %v2210 = vadd.f32 %v2192, %v2209
  %2211 = vmatmul.bf16.gmra.mxu0 %v449
  %v2212 = vpop.f32.mrf.mxu0
  %v2213 = vadd.f32 %v2195, %v2212
  %v2214 = vpop.f32.mrf.mxu0
  %2215 = vdwg.mxu0
  %2216 = vmatpush.bf16.msra.mxu0 %v1622
  %2217 = vmatpush.bf16.msra.mxu0 %v1620
  %2218 = vmatpush.bf16.msra.mxu0 %v1618
  %2219 = vmatpush.bf16.msra.mxu0 %v1616
  %2220 = vmatpush.bf16.msra.mxu0 %v1614
  %2221 = vmatpush.bf16.msra.mxu0 %v1612
  %2222 = vmatpush.bf16.msra.mxu0 %v1610
  %2223 = vmatpush.bf16.msra.mxu0 %v1608
  %2224 = vmatmul.bf16.gmra.mxu0 %v432
  %v2225 = vpop.f32.mrf.mxu0
  %v2226 = vadd.f32 %v2208, %v2225
  %v2227 = vpop.f32.mrf.mxu0
  %v2228 = vadd.f32 %v2210, %v2227
  %2229 = vmatmul.bf16.gmra.mxu0 %v450
  %v2230 = vpop.f32.mrf.mxu0
  %v2231 = vadd.f32 %v2213, %v2230
  %v2232 = vpop.f32.mrf.mxu0
  %2233 = vdwg.mxu0
  %2234 = vmatpush.bf16.msra.mxu0 %v1638
  %2235 = vmatpush.bf16.msra.mxu0 %v1636
  %2236 = vmatpush.bf16.msra.mxu0 %v1634
  %2237 = vmatpush.bf16.msra.mxu0 %v1632
  %2238 = vmatpush.bf16.msra.mxu0 %v1630
  %2239 = vmatpush.bf16.msra.mxu0 %v1628
  %2240 = vmatpush.bf16.msra.mxu0 %v1626
  %2241 = vmatpush.bf16.msra.mxu0 %v1624
  %2242 = vmatmul.bf16.gmra.mxu0 %v433
  %v2243 = vpop.f32.mrf.mxu0
  %v2244 = vadd.f32 %v2226, %v2243
  %v2245 = vpop.f32.mrf.mxu0
  %v2246 = vadd.f32 %v2228, %v2245
  %2247 = vmatmul.bf16.gmra.mxu0 %v451
  %v2248 = vpop.f32.mrf.mxu0
  %v2249 = vadd.f32 %v2231, %v2248
  %v2250 = vpop.f32.mrf.mxu0
  %2251 = vdwg.mxu0
  %2252 = vmatpush.bf16.msra.mxu0 %v1367
  %2253 = vmatpush.bf16.msra.mxu0 %v1365
  %2254 = vmatpush.bf16.msra.mxu0 %v1363
  %2255 = vmatpush.bf16.msra.mxu0 %v1361
  %2256 = vmatpush.bf16.msra.mxu0 %v1359
  %2257 = vmatpush.bf16.msra.mxu0 %v1357
  %2258 = vmatpush.bf16.msra.mxu0 %v1355
  %2259 = vmatpush.bf16.msra.mxu0 %v1353
  %2260 = vmatmul.bf16.gmra.mxu0 %v416
  %v2261 = vpop.f32.mrf.mxu0
  %v2262 = vadd.f32 %v332, %v2261
  %v2263 = vpop.f32.mrf.mxu0
  %v2264 = vadd.f32 %v332, %v2263
  %2265 = vmatmul.bf16.gmra.mxu0 %v434
  %v2266 = vpop.f32.mrf.mxu0
  %v2267 = vadd.f32 %v332, %v2266
  %v2268 = vpop.f32.mrf.mxu0
  %2269 = vdwg.mxu0
  %2270 = vmatpush.bf16.msra.mxu0 %v1383
  %2271 = vmatpush.bf16.msra.mxu0 %v1381
  %2272 = vmatpush.bf16.msra.mxu0 %v1379
  %2273 = vmatpush.bf16.msra.mxu0 %v1377
  %2274 = vmatpush.bf16.msra.mxu0 %v1375
  %2275 = vmatpush.bf16.msra.mxu0 %v1373
  %2276 = vmatpush.bf16.msra.mxu0 %v1371
  %2277 = vmatpush.bf16.msra.mxu0 %v1369
  %2278 = vmatmul.bf16.gmra.mxu0 %v417
  %v2279 = vpop.f32.mrf.mxu0
  %v2280 = vadd.f32 %v2262, %v2279
  %v2281 = vpop.f32.mrf.mxu0
  %v2282 = vadd.f32 %v2264, %v2281
  %2283 = vmatmul.bf16.gmra.mxu0 %v435
  %v2284 = vpop.f32.mrf.mxu0
  %v2285 = vadd.f32 %v2267, %v2284
  %v2286 = vpop.f32.mrf.mxu0
  %2287 = vdwg.mxu0
  %2288 = vmatpush.bf16.msra.mxu0 %v1399
  %2289 = vmatpush.bf16.msra.mxu0 %v1397
  %2290 = vmatpush.bf16.msra.mxu0 %v1395
  %2291 = vmatpush.bf16.msra.mxu0 %v1393
  %2292 = vmatpush.bf16.msra.mxu0 %v1391
  %2293 = vmatpush.bf16.msra.mxu0 %v1389
  %2294 = vmatpush.bf16.msra.mxu0 %v1387
  %2295 = vmatpush.bf16.msra.mxu0 %v1385
  %2296 = vmatmul.bf16.gmra.mxu0 %v418
  %v2297 = vpop.f32.mrf.mxu0
  %v2298 = vadd.f32 %v2280, %v2297
  %v2299 = vpop.f32.mrf.mxu0
  %v2300 = vadd.f32 %v2282, %v2299
  %2301 = vmatmul.bf16.gmra.mxu0 %v436
  %v2302 = vpop.f32.mrf.mxu0
  %v2303 = vadd.f32 %v2285, %v2302
  %v2304 = vpop.f32.mrf.mxu0
  %2305 = vdwg.mxu0
  %2306 = vmatpush.bf16.msra.mxu0 %v1415
  %2307 = vmatpush.bf16.msra.mxu0 %v1413
  %2308 = vmatpush.bf16.msra.mxu0 %v1411
  %2309 = vmatpush.bf16.msra.mxu0 %v1409
  %2310 = vmatpush.bf16.msra.mxu0 %v1407
  %2311 = vmatpush.bf16.msra.mxu0 %v1405
  %2312 = vmatpush.bf16.msra.mxu0 %v1403
  %2313 = vmatpush.bf16.msra.mxu0 %v1401
  %2314 = vmatmul.bf16.gmra.mxu0 %v419
  %v2315 = vpop.f32.mrf.mxu0
  %v2316 = vadd.f32 %v2298, %v2315
  %v2317 = vpop.f32.mrf.mxu0
  %v2318 = vadd.f32 %v2300, %v2317
  %2319 = vmatmul.bf16.gmra.mxu0 %v437
  %v2320 = vpop.f32.mrf.mxu0
  %v2321 = vadd.f32 %v2303, %v2320
  %v2322 = vpop.f32.mrf.mxu0
  %2323 = vdwg.mxu0
  %2324 = vmatpush.bf16.msra.mxu0 %v1431
  %2325 = vmatpush.bf16.msra.mxu0 %v1429
  %2326 = vmatpush.bf16.msra.mxu0 %v1427
  %2327 = vmatpush.bf16.msra.mxu0 %v1425
  %2328 = vmatpush.bf16.msra.mxu0 %v1423
  %2329 = vmatpush.bf16.msra.mxu0 %v1421
  %2330 = vmatpush.bf16.msra.mxu0 %v1419
  %2331 = vmatpush.bf16.msra.mxu0 %v1417
  %2332 = vmatmul.bf16.gmra.mxu0 %v420
  %v2333 = vpop.f32.mrf.mxu0
  %v2334 = vadd.f32 %v2316, %v2333
  %v2335 = vpop.f32.mrf.mxu0
  %v2336 = vadd.f32 %v2318, %v2335
  %2337 = vmatmul.bf16.gmra.mxu0 %v438
  %v2338 = vpop.f32.mrf.mxu0
  %v2339 = vadd.f32 %v2321, %v2338
  %v2340 = vpop.f32.mrf.mxu0
  %2341 = vdwg.mxu0
  %2342 = vmatpush.bf16.msra.mxu0 %v1447
  %2343 = vmatpush.bf16.msra.mxu0 %v1445
  %2344 = vmatpush.bf16.msra.mxu0 %v1443
  %2345 = vmatpush.bf16.msra.mxu0 %v1441
  %2346 = vmatpush.bf16.msra.mxu0 %v1439
  %2347 = vmatpush.bf16.msra.mxu0 %v1437
  %2348 = vmatpush.bf16.msra.mxu0 %v1435
  %2349 = vmatpush.bf16.msra.mxu0 %v1433
  %2350 = vmatmul.bf16.gmra.mxu0 %v421
  %v2351 = vpop.f32.mrf.mxu0
  %v2352 = vadd.f32 %v2334, %v2351
  %v2353 = vpop.f32.mrf.mxu0
  %v2354 = vadd.f32 %v2336, %v2353
  %2355 = vmatmul.bf16.gmra.mxu0 %v439
  %v2356 = vpop.f32.mrf.mxu0
  %v2357 = vadd.f32 %v2339, %v2356
  %v2358 = vpop.f32.mrf.mxu0
  %2359 = vdwg.mxu0
  %2360 = vmatpush.bf16.msra.mxu0 %v1463
  %2361 = vmatpush.bf16.msra.mxu0 %v1461
  %2362 = vmatpush.bf16.msra.mxu0 %v1459
  %2363 = vmatpush.bf16.msra.mxu0 %v1457
  %2364 = vmatpush.bf16.msra.mxu0 %v1455
  %2365 = vmatpush.bf16.msra.mxu0 %v1453
  %2366 = vmatpush.bf16.msra.mxu0 %v1451
  %2367 = vmatpush.bf16.msra.mxu0 %v1449
  %2368 = vmatmul.bf16.gmra.mxu0 %v422
  %v2369 = vpop.f32.mrf.mxu0
  %v2370 = vadd.f32 %v2352, %v2369
  %v2371 = vpop.f32.mrf.mxu0
  %v2372 = vadd.f32 %v2354, %v2371
  %2373 = vmatmul.bf16.gmra.mxu0 %v440
  %v2374 = vpop.f32.mrf.mxu0
  %v2375 = vadd.f32 %v2357, %v2374
  %v2376 = vpop.f32.mrf.mxu0
  %2377 = vdwg.mxu0
  %2378 = vmatpush.bf16.msra.mxu0 %v1479
  %2379 = vmatpush.bf16.msra.mxu0 %v1477
  %2380 = vmatpush.bf16.msra.mxu0 %v1475
  %2381 = vmatpush.bf16.msra.mxu0 %v1473
  %2382 = vmatpush.bf16.msra.mxu0 %v1471
  %2383 = vmatpush.bf16.msra.mxu0 %v1469
  %2384 = vmatpush.bf16.msra.mxu0 %v1467
  %2385 = vmatpush.bf16.msra.mxu0 %v1465
  %2386 = vmatmul.bf16.gmra.mxu0 %v423
  %v2387 = vpop.f32.mrf.mxu0
  %v2388 = vadd.f32 %v2370, %v2387
  %v2389 = vpop.f32.mrf.mxu0
  %v2390 = vadd.f32 %v2372, %v2389
  %2391 = vmatmul.bf16.gmra.mxu0 %v441
  %v2392 = vpop.f32.mrf.mxu0
  %v2393 = vadd.f32 %v2375, %v2392
  %v2394 = vpop.f32.mrf.mxu0
  %2395 = vdwg.mxu0
  %2396 = vmatpush.bf16.msra.mxu0 %v1495
  %2397 = vmatpush.bf16.msra.mxu0 %v1493
  %2398 = vmatpush.bf16.msra.mxu0 %v1491
  %2399 = vmatpush.bf16.msra.mxu0 %v1489
  %2400 = vmatpush.bf16.msra.mxu0 %v1487
  %2401 = vmatpush.bf16.msra.mxu0 %v1485
  %2402 = vmatpush.bf16.msra.mxu0 %v1483
  %2403 = vmatpush.bf16.msra.mxu0 %v1481
  %2404 = vmatmul.bf16.gmra.mxu0 %v424
  %v2405 = vpop.f32.mrf.mxu0
  %v2406 = vadd.f32 %v2388, %v2405
  %v2407 = vpop.f32.mrf.mxu0
  %v2408 = vadd.f32 %v2390, %v2407
  %2409 = vmatmul.bf16.gmra.mxu0 %v442
  %v2410 = vpop.f32.mrf.mxu0
  %v2411 = vadd.f32 %v2393, %v2410
  %v2412 = vpop.f32.mrf.mxu0
  %2413 = vdwg.mxu0
  %2414 = vmatpush.bf16.msra.mxu0 %v1511
  %2415 = vmatpush.bf16.msra.mxu0 %v1509
  %2416 = vmatpush.bf16.msra.mxu0 %v1507
  %2417 = vmatpush.bf16.msra.mxu0 %v1505
  %2418 = vmatpush.bf16.msra.mxu0 %v1503
  %2419 = vmatpush.bf16.msra.mxu0 %v1501
  %2420 = vmatpush.bf16.msra.mxu0 %v1499
  %2421 = vmatpush.bf16.msra.mxu0 %v1497
  %2422 = vmatmul.bf16.gmra.mxu0 %v425
  %v2423 = vpop.f32.mrf.mxu0
  %v2424 = vadd.f32 %v2406, %v2423
  %v2425 = vpop.f32.mrf.mxu0
  %v2426 = vadd.f32 %v2408, %v2425
  %2427 = vmatmul.bf16.gmra.mxu0 %v443
  %v2428 = vpop.f32.mrf.mxu0
  %v2429 = vadd.f32 %v2411, %v2428
  %v2430 = vpop.f32.mrf.mxu0
  %2431 = vdwg.mxu0
  %2432 = vmatpush.bf16.msra.mxu0 %v1527
  %2433 = vmatpush.bf16.msra.mxu0 %v1525
  %2434 = vmatpush.bf16.msra.mxu0 %v1523
  %2435 = vmatpush.bf16.msra.mxu0 %v1521
  %2436 = vmatpush.bf16.msra.mxu0 %v1519
  %2437 = vmatpush.bf16.msra.mxu0 %v1517
  %2438 = vmatpush.bf16.msra.mxu0 %v1515
  %2439 = vmatpush.bf16.msra.mxu0 %v1513
  %2440 = vmatmul.bf16.gmra.mxu0 %v426
  %v2441 = vpop.f32.mrf.mxu0
  %v2442 = vadd.f32 %v2424, %v2441
  %v2443 = vpop.f32.mrf.mxu0
  %v2444 = vadd.f32 %v2426, %v2443
  %2445 = vmatmul.bf16.gmra.mxu0 %v444
  %v2446 = vpop.f32.mrf.mxu0
  %v2447 = vadd.f32 %v2429, %v2446
  %v2448 = vpop.f32.mrf.mxu0
  %2449 = vdwg.mxu0
  %2450 = vmatpush.bf16.msra.mxu0 %v1543
  %2451 = vmatpush.bf16.msra.mxu0 %v1541
  %2452 = vmatpush.bf16.msra.mxu0 %v1539
  %2453 = vmatpush.bf16.msra.mxu0 %v1537
  %2454 = vmatpush.bf16.msra.mxu0 %v1535
  %2455 = vmatpush.bf16.msra.mxu0 %v1533
  %2456 = vmatpush.bf16.msra.mxu0 %v1531
  %2457 = vmatpush.bf16.msra.mxu0 %v1529
  %2458 = vmatmul.bf16.gmra.mxu0 %v427
  %v2459 = vpop.f32.mrf.mxu0
  %v2460 = vadd.f32 %v2442, %v2459
  %v2461 = vpop.f32.mrf.mxu0
  %v2462 = vadd.f32 %v2444, %v2461
  %2463 = vmatmul.bf16.gmra.mxu0 %v445
  %v2464 = vpop.f32.mrf.mxu0
  %v2465 = vadd.f32 %v2447, %v2464
  %v2466 = vpop.f32.mrf.mxu0
  %2467 = vdwg.mxu0
  %2468 = vmatpush.bf16.msra.mxu0 %v1559
  %2469 = vmatpush.bf16.msra.mxu0 %v1557
  %2470 = vmatpush.bf16.msra.mxu0 %v1555
  %2471 = vmatpush.bf16.msra.mxu0 %v1553
  %2472 = vmatpush.bf16.msra.mxu0 %v1551
  %2473 = vmatpush.bf16.msra.mxu0 %v1549
  %2474 = vmatpush.bf16.msra.mxu0 %v1547
  %2475 = vmatpush.bf16.msra.mxu0 %v1545
  %2476 = vmatmul.bf16.gmra.mxu0 %v428
  %v2477 = vpop.f32.mrf.mxu0
  %v2478 = vadd.f32 %v2460, %v2477
  %v2479 = vpop.f32.mrf.mxu0
  %v2480 = vadd.f32 %v2462, %v2479
  %2481 = vmatmul.bf16.gmra.mxu0 %v446
  %v2482 = vpop.f32.mrf.mxu0
  %v2483 = vadd.f32 %v2465, %v2482
  %v2484 = vpop.f32.mrf.mxu0
  %2485 = vdwg.mxu0
  %2486 = vmatpush.bf16.msra.mxu0 %v1575
  %2487 = vmatpush.bf16.msra.mxu0 %v1573
  %2488 = vmatpush.bf16.msra.mxu0 %v1571
  %2489 = vmatpush.bf16.msra.mxu0 %v1569
  %2490 = vmatpush.bf16.msra.mxu0 %v1567
  %2491 = vmatpush.bf16.msra.mxu0 %v1565
  %2492 = vmatpush.bf16.msra.mxu0 %v1563
  %2493 = vmatpush.bf16.msra.mxu0 %v1561
  %2494 = vmatmul.bf16.gmra.mxu0 %v429
  %v2495 = vpop.f32.mrf.mxu0
  %v2496 = vadd.f32 %v2478, %v2495
  %v2497 = vpop.f32.mrf.mxu0
  %v2498 = vadd.f32 %v2480, %v2497
  %2499 = vmatmul.bf16.gmra.mxu0 %v447
  %v2500 = vpop.f32.mrf.mxu0
  %v2501 = vadd.f32 %v2483, %v2500
  %v2502 = vpop.f32.mrf.mxu0
  %2503 = vdwg.mxu0
  %2504 = vmatpush.bf16.msra.mxu0 %v1591
  %2505 = vmatpush.bf16.msra.mxu0 %v1589
  %2506 = vmatpush.bf16.msra.mxu0 %v1587
  %2507 = vmatpush.bf16.msra.mxu0 %v1585
  %2508 = vmatpush.bf16.msra.mxu0 %v1583
  %2509 = vmatpush.bf16.msra.mxu0 %v1581
  %2510 = vmatpush.bf16.msra.mxu0 %v1579
  %2511 = vmatpush.bf16.msra.mxu0 %v1577
  %2512 = vmatmul.bf16.gmra.mxu0 %v430
  %v2513 = vpop.f32.mrf.mxu0
  %v2514 = vadd.f32 %v2496, %v2513
  %v2515 = vpop.f32.mrf.mxu0
  %v2516 = vadd.f32 %v2498, %v2515
  %2517 = vmatmul.bf16.gmra.mxu0 %v448
  %v2518 = vpop.f32.mrf.mxu0
  %v2519 = vadd.f32 %v2501, %v2518
  %v2520 = vpop.f32.mrf.mxu0
  %2521 = vdwg.mxu0
  %2522 = vmatpush.bf16.msra.mxu0 %v1607
  %2523 = vmatpush.bf16.msra.mxu0 %v1605
  %2524 = vmatpush.bf16.msra.mxu0 %v1603
  %2525 = vmatpush.bf16.msra.mxu0 %v1601
  %2526 = vmatpush.bf16.msra.mxu0 %v1599
  %2527 = vmatpush.bf16.msra.mxu0 %v1597
  %2528 = vmatpush.bf16.msra.mxu0 %v1595
  %2529 = vmatpush.bf16.msra.mxu0 %v1593
  %2530 = vmatmul.bf16.gmra.mxu0 %v431
  %v2531 = vpop.f32.mrf.mxu0
  %v2532 = vadd.f32 %v2514, %v2531
  %v2533 = vpop.f32.mrf.mxu0
  %v2534 = vadd.f32 %v2516, %v2533
  %2535 = vmatmul.bf16.gmra.mxu0 %v449
  %v2536 = vpop.f32.mrf.mxu0
  %v2537 = vadd.f32 %v2519, %v2536
  %v2538 = vpop.f32.mrf.mxu0
  %2539 = vdwg.mxu0
  %2540 = vmatpush.bf16.msra.mxu0 %v1623
  %2541 = vmatpush.bf16.msra.mxu0 %v1621
  %2542 = vmatpush.bf16.msra.mxu0 %v1619
  %2543 = vmatpush.bf16.msra.mxu0 %v1617
  %2544 = vmatpush.bf16.msra.mxu0 %v1615
  %2545 = vmatpush.bf16.msra.mxu0 %v1613
  %2546 = vmatpush.bf16.msra.mxu0 %v1611
  %2547 = vmatpush.bf16.msra.mxu0 %v1609
  %2548 = vmatmul.bf16.gmra.mxu0 %v432
  %v2549 = vpop.f32.mrf.mxu0
  %v2550 = vadd.f32 %v2532, %v2549
  %v2551 = vpop.f32.mrf.mxu0
  %v2552 = vadd.f32 %v2534, %v2551
  %2553 = vmatmul.bf16.gmra.mxu0 %v450
  %v2554 = vpop.f32.mrf.mxu0
  %v2555 = vadd.f32 %v2537, %v2554
  %v2556 = vpop.f32.mrf.mxu0
  %2557 = vdwg.mxu0
  %2558 = vmatpush.bf16.msra.mxu0 %v1639
  %2559 = vmatpush.bf16.msra.mxu0 %v1637
  %2560 = vmatpush.bf16.msra.mxu0 %v1635
  %2561 = vmatpush.bf16.msra.mxu0 %v1633
  %2562 = vmatpush.bf16.msra.mxu0 %v1631
  %2563 = vmatpush.bf16.msra.mxu0 %v1629
  %2564 = vmatpush.bf16.msra.mxu0 %v1627
  %2565 = vmatpush.bf16.msra.mxu0 %v1625
  %2566 = vmatmul.bf16.gmra.mxu0 %v433
  %v2567 = vpop.f32.mrf.mxu0
  %v2568 = vadd.f32 %v2550, %v2567
  %v2569 = vpop.f32.mrf.mxu0
  %v2570 = vadd.f32 %v2552, %v2569
  %2571 = vmatmul.bf16.gmra.mxu0 %v451
  %v2572 = vpop.f32.mrf.mxu0
  %v2573 = vadd.f32 %v2555, %v2572
  %v2574 = vpop.f32.mrf.mxu0
  %2575 = vdwg.mxu0
  %v2576 = vmax.f32 %v2244, 0.0
  %v2577 = vmax.f32 %v2568, 0.0
  %v2578 = vmax.f32 %v2246, 0.0
  %v2579 = vmax.f32 %v2570, 0.0
  %v2580 = vmax.f32 %v2249, 0.0
  %v2581 = vmax.f32 %v2573, 0.0
  %v2582 = vpack.c.bf16 %v2577, %v2576
  %v2583 = vpack.c.bf16 %v2579, %v2578
  %v2584 = vpack.c.bf16 %v2581, %v2580
  %2585 = vst [vmem:[%s3] sm:$0xff] %v2582
  %2586 = vst [vmem:[%s3 + $0x8] sm:$0xff] %v2583
  %2587 = vst [vmem:[%s3 + $0x10] sm:$0x11] %v2584
  // Predicated region
  $region14: #{feature_forward.9} parent=0 // pred_check
    _
  $region15: #{feature_forward.9} parent=0 // pred_check_branch
    %2589 = sbr.rel (0) target = $region17
  $region16: #{feature_forward.9} parent=0 // pred_region
    _
  $region17: #{feature_forward.9} parent=0 // pred_fallthru
    _
  // Predicated region
  $region18: #{feature_forward.9} parent=0 // pred_check
    _
  $region19: #{feature_forward.9} parent=0 // pred_check_branch
    %2591 = sbr.rel (0) target = $region21
  $region20: #{feature_forward.9} parent=0 // pred_region
    _
  $region21: #{feature_forward.9} parent=0 // pred_fallthru
    _

// kernel: feature_forward.8
$region0: #{feature_forward.8}
  #allocation0 [shape = 'u32[]', space=smem, size = 0x4, offset = 0x4, fixed_abs, tag = 'smem constant byte address 0x4 - core index']
  #allocation1 [shape = 'u32[72,128]{1,0:T(1,128)}', space=vmem, size = 0x9000, scoped, tag = 'internal scratch']
  %s0 = inlined_call_operand.vmem [shape: bf16[18,3456], index: 0, kind: input, shape index: {}]
  %s1 = inlined_call_operand.vmem [shape: bf16[3456,256], index: 1, kind: input, shape index: {}]
  %s2 = inlined_call_operand.vmem [shape: f32[1,256], index: 2, kind: input, shape index: {}]
  %s3 = inlined_call_operand.vmem [shape: bf16[18,256], index: 3, kind: output, shape index: {}]
  %s4 = sld [smem:[#allocation0]]
  $region22: #{feature_forward.8} parent=0
    _
  %s6 = ssub.s32 1, %s4
  %s7 = scalar_select 0, %s6, %s4
  // Predicated region
  $region2: #{feature_forward.8} parent=0 // pred_check
    _
  $region3: #{feature_forward.8} parent=0 // pred_check_branch
    %9 = sbr.rel (0) target = $region5
  $region4: #{feature_forward.8} parent=0 // pred_region
    _
  $region5: #{feature_forward.8} parent=0 // pred_fallthru
    _
  // Predicated region
  $region6: #{feature_forward.8} parent=0 // pred_check
    _
  $region7: #{feature_forward.8} parent=0 // pred_check_branch
    %11 = sbr.rel (0) target = $region9
  $region8: #{feature_forward.8} parent=0 // pred_region
    _
  $region9: #{feature_forward.8} parent=0 // pred_fallthru
    _
  // Predicated region
  $region10: #{feature_forward.8} parent=0 // pred_check
    _
  $region11: #{feature_forward.8} parent=0 // pred_check_branch
    %13 = sbr.rel (0) target = $region13
  $region12: #{feature_forward.8} parent=0 // pred_region
    _
  $region13: #{feature_forward.8} parent=0 // pred_fallthru
    _
  %v14 = vld [vmem:[%s0] sm:$0xff]
  %v15 = vld [vmem:[%s0 + $0x8] sm:$0xff]
  %v16 = vld [vmem:[%s0 + $0x10] sm:$0xff]
  %v17 = vld [vmem:[%s0 + $0x18] sm:$0xff]
  %v18 = vld [vmem:[%s0 + $0x20] sm:$0xff]
  %v19 = vld [vmem:[%s0 + $0x28] sm:$0xff]
  %v20 = vld [vmem:[%s0 + $0x30] sm:$0xff]
  %v21 = vld [vmem:[%s0 + $0x38] sm:$0xff]
  %v22 = vld [vmem:[%s0 + $0x40] sm:$0xff]
  %v23 = vld [vmem:[%s0 + $0x48] sm:$0xff]
  %v24 = vld [vmem:[%s0 + $0x50] sm:$0xff]
  %v25 = vld [vmem:[%s0 + $0x58] sm:$0xff]
  %v26 = vld [vmem:[%s0 + $0x60] sm:$0xff]
  %v27 = vld [vmem:[%s0 + $0x68] sm:$0xf]
  %v28 = vld [vmem:[%s0 + $0x6c] sm:$0xff]
  %v29 = vld [vmem:[%s0 + $0x74] sm:$0xff]
  %v30 = vld [vmem:[%s0 + $0x7c] sm:$0xff]
  %v31 = vld [vmem:[%s0 + $0x84] sm:$0xff]
  %v32 = vld [vmem:[%s0 + $0x8c] sm:$0xff]
  %v33 = vld [vmem:[%s0 + $0x94] sm:$0xff]
  %v34 = vld [vmem:[%s0 + $0x9c] sm:$0xff]
  %v35 = vld [vmem:[%s0 + $0xa4] sm:$0xff]
  %v36 = vld [vmem:[%s0 + $0xac] sm:$0xff]
  %v37 = vld [vmem:[%s0 + $0xb4] sm:$0xff]
  %v38 = vld [vmem:[%s0 + $0xbc] sm:$0xff]
  %v39 = vld [vmem:[%s0 + $0xc4] sm:$0xff]
  %v40 = vld [vmem:[%s0 + $0xcc] sm:$0xff]
  %v41 = vld [vmem:[%s0 + $0xd4] sm:$0xf]
  %v42 = vld [vmem:[%s0 + $0xd8] sm:$0x11]
  %v43 = vld [vmem:[%s0 + $0xe0] sm:$0x11]
  %v44 = vld [vmem:[%s0 + $0xe8] sm:$0x11]
  %v45 = vld [vmem:[%s0 + $0xf0] sm:$0x11]
  %v46 = vld [vmem:[%s0 + $0xf8] sm:$0x11]
  %v47 = vld [vmem:[%s0 + $0x100] sm:$0x11]
  %v48 = vld [vmem:[%s0 + $0x108] sm:$0x11]
  %v49 = vld [vmem:[%s0 + $0x110] sm:$0x11]
  %v50 = vld [vmem:[%s0 + $0x118] sm:$0x11]
  %v51 = vld [vmem:[%s0 + $0x120] sm:$0x11]
  %v52 = vld [vmem:[%s0 + $0x128] sm:$0x11]
  %v53 = vld [vmem:[%s0 + $0x130] sm:$0x11]
  %v54 = vld [vmem:[%s0 + $0x138] sm:$0x11]
  %v55 = vld [vmem:[%s0 + $0x140] sm:$0x1]
  %v56 = vld [vmem:[%s1] sm:$0xff]
  %v57 = vld [vmem:[%s1 + $0x8] sm:$0xff]
  %v58 = vld [vmem:[%s1 + $0x10] sm:$0xff]
  %v59 = vld [vmem:[%s1 + $0x18] sm:$0xff]
  %v60 = vld [vmem:[%s1 + $0x20] sm:$0xff]
  %v61 = vld [vmem:[%s1 + $0x28] sm:$0xff]
  %v62 = vld [vmem:[%s1 + $0x30] sm:$0xff]
  %v63 = vld [vmem:[%s1 + $0x38] sm:$0xff]
  %v64 = vld [vmem:[%s1 + $0x40] sm:$0xff]
  %v65 = vld [vmem:[%s1 + $0x48] sm:$0xff]
  %v66 = vld [vmem:[%s1 + $0x50] sm:$0xff]
  %v67 = vld [vmem:[%s1 + $0x58] sm:$0xff]
  %v68 = vld [vmem:[%s1 + $0x60] sm:$0xff]
  %v69 = vld [vmem:[%s1 + $0x68] sm:$0xff]
  %v70 = vld [vmem:[%s1 + $0x70] sm:$0xff]
  %v71 = vld [vmem:[%s1 + $0x78] sm:$0xff]
  %v72 = vld [vmem:[%s1 + $0x80] sm:$0xff]
  %v73 = vld [vmem:[%s1 + $0x88] sm:$0xff]
  %v74 = vld [vmem:[%s1 + $0x90] sm:$0xff]
  %v75 = vld [vmem:[%s1 + $0x98] sm:$0xff]
  %v76 = vld [vmem:[%s1 + $0xa0] sm:$0xff]
  %v77 = vld [vmem:[%s1 + $0xa8] sm:$0xff]
  %v78 = vld [vmem:[%s1 + $0xb0] sm:$0xff]
  %v79 = vld [vmem:[%s1 + $0xb8] sm:$0xff]
  %v80 = vld [vmem:[%s1 + $0xc0] sm:$0xff]
  %v81 = vld [vmem:[%s1 + $0xc8] sm:$0xff]
  %v82 = vld [vmem:[%s1 + $0xd0] sm:$0xff]
  %v83 = vld [vmem:[%s1 + $0xd8] sm:$0xff]
  %v84 = vld [vmem:[%s1 + $0xe0] sm:$0xff]
  %v85 = vld [vmem:[%s1 + $0xe8] sm:$0xff]
  %v86 = vld [vmem:[%s1 + $0xf0] sm:$0xff]
  %v87 = vld [vmem:[%s1 + $0xf8] sm:$0xff]
  %v88 = vld [vmem:[%s1 + $0x100] sm:$0xff]
  %v89 = vld [vmem:[%s1 + $0x108] sm:$0xff]
  %v90 = vld [vmem:[%s1 + $0x110] sm:$0xff]
  %v91 = vld [vmem:[%s1 + $0x118] sm:$0xff]
  %v92 = vld [vmem:[%s1 + $0x120] sm:$0xff]
  %v93 = vld [vmem:[%s1 + $0x128] sm:$0xff]
  %v94 = vld [vmem:[%s1 + $0x130] sm:$0xff]
  %v95 = vld [vmem:[%s1 + $0x138] sm:$0xff]
  %v96 = vld [vmem:[%s1 + $0x140] sm:$0xff]
  %v97 = vld [vmem:[%s1 + $0x148] sm:$0xff]
  %v98 = vld [vmem:[%s1 + $0x150] sm:$0xff]
  %v99 = vld [vmem:[%s1 + $0x158] sm:$0xff]
  %v100 = vld [vmem:[%s1 + $0x160] sm:$0xff]
  %v101 = vld [vmem:[%s1 + $0x168] sm:$0xff]
  %v102 = vld [vmem:[%s1 + $0x170] sm:$0xff]
  %v103 = vld [vmem:[%s1 + $0x178] sm:$0xff]
  %v104 = vld [vmem:[%s1 + $0x180] sm:$0xff]
  %v105 = vld [vmem:[%s1 + $0x188] sm:$0xff]
  %v106 = vld [vmem:[%s1 + $0x190] sm:$0xff]
  %v107 = vld [vmem:[%s1 + $0x198] sm:$0xff]
  %v108 = vld [vmem:[%s1 + $0x1a0] sm:$0xff]
  %v109 = vld [vmem:[%s1 + $0x1a8] sm:$0xff]
  %v110 = vld [vmem:[%s1 + $0x1b0] sm:$0xff]
  %v111 = vld [vmem:[%s1 + $0x1b8] sm:$0xff]
  %v112 = vld [vmem:[%s1 + $0x1c0] sm:$0xff]
  %v113 = vld [vmem:[%s1 + $0x1c8] sm:$0xff]
  %v114 = vld [vmem:[%s1 + $0x1d0] sm:$0xff]
  %v115 = vld [vmem:[%s1 + $0x1d8] sm:$0xff]
  %v116 = vld [vmem:[%s1 + $0x1e0] sm:$0xff]
  %v117 = vld [vmem:[%s1 + $0x1e8] sm:$0xff]
  %v118 = vld [vmem:[%s1 + $0x1f0] sm:$0xff]
  %v119 = vld [vmem:[%s1 + $0x1f8] sm:$0xff]
  %v120 = vld [vmem:[%s1 + $0x200] sm:$0xff]
  %v121 = vld [vmem:[%s1 + $0x208] sm:$0xff]
  %v122 = vld [vmem:[%s1 + $0x210] sm:$0xff]
  %v123 = vld [vmem:[%s1 + $0x218] sm:$0xff]
  %v124 = vld [vmem:[%s1 + $0x220] sm:$0xff]
  %v125 = vld [vmem:[%s1 + $0x228] sm:$0xff]
  %v126 = vld [vmem:[%s1 + $0x230] sm:$0xff]
  %v127 = vld [vmem:[%s1 + $0x238] sm:$0xff]
  %v128 = vld [vmem:[%s1 + $0x240] sm:$0xff]
  %v129 = vld [vmem:[%s1 + $0x248] sm:$0xff]
  %v130 = vld [vmem:[%s1 + $0x250] sm:$0xff]
  %v131 = vld [vmem:[%s1 + $0x258] sm:$0xff]
  %v132 = vld [vmem:[%s1 + $0x260] sm:$0xff]
  %v133 = vld [vmem:[%s1 + $0x268] sm:$0xff]
  %v134 = vld [vmem:[%s1 + $0x270] sm:$0xff]
  %v135 = vld [vmem:[%s1 + $0x278] sm:$0xff]
  %v136 = vld [vmem:[%s1 + $0x280] sm:$0xff]
  %v137 = vld [vmem:[%s1 + $0x288] sm:$0xff]
  %v138 = vld [vmem:[%s1 + $0x290] sm:$0xff]
  %v139 = vld [vmem:[%s1 + $0x298] sm:$0xff]
  %v140 = vld [vmem:[%s1 + $0x2a0] sm:$0xff]
  %v141 = vld [vmem:[%s1 + $0x2a8] sm:$0xff]
  %v142 = vld [vmem:[%s1 + $0x2b0] sm:$0xff]
  %v143 = vld [vmem:[%s1 + $0x2b8] sm:$0xff]
  %v144 = vld [vmem:[%s1 + $0x2c0] sm:$0xff]
  %v145 = vld [vmem:[%s1 + $0x2c8] sm:$0xff]
  %v146 = vld [vmem:[%s1 + $0x2d0] sm:$0xff]
  %v147 = vld [vmem:[%s1 + $0x2d8] sm:$0xff]
  %v148 = vld [vmem:[%s1 + $0x2e0] sm:$0xff]
  %v149 = vld [vmem:[%s1 + $0x2e8] sm:$0xff]
  %v150 = vld [vmem:[%s1 + $0x2f0] sm:$0xff]
  %v151 = vld [vmem:[%s1 + $0x2f8] sm:$0xff]
  %v152 = vld [vmem:[%s1 + $0x300] sm:$0xff]
  %v153 = vld [vmem:[%s1 + $0x308] sm:$0xff]
  %v154 = vld [vmem:[%s1 + $0x310] sm:$0xff]
  %v155 = vld [vmem:[%s1 + $0x318] sm:$0xff]
  %v156 = vld [vmem:[%s1 + $0x320] sm:$0xff]
  %v157 = vld [vmem:[%s1 + $0x328] sm:$0xff]
  %v158 = vld [vmem:[%s1 + $0x330] sm:$0xff]
  %v159 = vld [vmem:[%s1 + $0x338] sm:$0xff]
  %v160 = vld [vmem:[%s1 + $0x340] sm:$0xff]
  %v161 = vld [vmem:[%s1 + $0x348] sm:$0xff]
  %v162 = vld [vmem:[%s1 + $0x350] sm:$0xff]
  %v163 = vld [vmem:[%s1 + $0x358] sm:$0xff]
  %v164 = vld [vmem:[%s1 + $0x360] sm:$0xff]
  %v165 = vld [vmem:[%s1 + $0x368] sm:$0xff]
  %v166 = vld [vmem:[%s1 + $0x370] sm:$0xff]
  %v167 = vld [vmem:[%s1 + $0x378] sm:$0xff]
  %v168 = vld [vmem:[%s1 + $0x380] sm:$0xff]
  %v169 = vld [vmem:[%s1 + $0x388] sm:$0xff]
  %v170 = vld [vmem:[%s1 + $0x390] sm:$0xff]
  %v171 = vld [vmem:[%s1 + $0x398] sm:$0xff]
  %v172 = vld [vmem:[%s1 + $0x3a0] sm:$0xff]
  %v173 = vld [vmem:[%s1 + $0x3a8] sm:$0xff]
  %v174 = vld [vmem:[%s1 + $0x3b0] sm:$0xff]
  %v175 = vld [vmem:[%s1 + $0x3b8] sm:$0xff]
  %v176 = vld [vmem:[%s1 + $0x3c0] sm:$0xff]
  %v177 = vld [vmem:[%s1 + $0x3c8] sm:$0xff]
  %v178 = vld [vmem:[%s1 + $0x3d0] sm:$0xff]
  %v179 = vld [vmem:[%s1 + $0x3d8] sm:$0xff]
  %v180 = vld [vmem:[%s1 + $0x3e0] sm:$0xff]
  %v181 = vld [vmem:[%s1 + $0x3e8] sm:$0xff]
  %v182 = vld [vmem:[%s1 + $0x3f0] sm:$0xff]
  %v183 = vld [vmem:[%s1 + $0x3f8] sm:$0xff]
  %v184 = vld [vmem:[%s1 + $0x400] sm:$0xff]
  %v185 = vld [vmem:[%s1 + $0x408] sm:$0xff]
  %v186 = vld [vmem:[%s1 + $0x410] sm:$0xff]
  %v187 = vld [vmem:[%s1 + $0x418] sm:$0xff]
  %v188 = vld [vmem:[%s1 + $0x420] sm:$0xff]
  %v189 = vld [vmem:[%s1 + $0x428] sm:$0xff]
  %v190 = vld [vmem:[%s1 + $0x430] sm:$0xff]
  %v191 = vld [vmem:[%s1 + $0x438] sm:$0xff]
  %v192 = vld [vmem:[%s1 + $0x440] sm:$0xff]
  %v193 = vld [vmem:[%s1 + $0x448] sm:$0xff]
  %v194 = vld [vmem:[%s1 + $0x450] sm:$0xff]
  %v195 = vld [vmem:[%s1 + $0x458] sm:$0xff]
  %v196 = vld [vmem:[%s1 + $0x460] sm:$0xff]
  %v197 = vld [vmem:[%s1 + $0x468] sm:$0xff]
  %v198 = vld [vmem:[%s1 + $0x470] sm:$0xff]
  %v199 = vld [vmem:[%s1 + $0x478] sm:$0xff]
  %v200 = vld [vmem:[%s1 + $0x480] sm:$0xff]
  %v201 = vld [vmem:[%s1 + $0x488] sm:$0xff]
  %v202 = vld [vmem:[%s1 + $0x490] sm:$0xff]
  %v203 = vld [vmem:[%s1 + $0x498] sm:$0xff]
  %v204 = vld [vmem:[%s1 + $0x4a0] sm:$0xff]
  %v205 = vld [vmem:[%s1 + $0x4a8] sm:$0xff]
  %v206 = vld [vmem:[%s1 + $0x4b0] sm:$0xff]
  %v207 = vld [vmem:[%s1 + $0x4b8] sm:$0xff]
  %v208 = vld [vmem:[%s1 + $0x4c0] sm:$0xff]
  %v209 = vld [vmem:[%s1 + $0x4c8] sm:$0xff]
  %v210 = vld [vmem:[%s1 + $0x4d0] sm:$0xff]
  %v211 = vld [vmem:[%s1 + $0x4d8] sm:$0xff]
  %v212 = vld [vmem:[%s1 + $0x4e0] sm:$0xff]
  %v213 = vld [vmem:[%s1 + $0x4e8] sm:$0xff]
  %v214 = vld [vmem:[%s1 + $0x4f0] sm:$0xff]
  %v215 = vld [vmem:[%s1 + $0x4f8] sm:$0xff]
  %v216 = vld [vmem:[%s1 + $0x500] sm:$0xff]
  %v217 = vld [vmem:[%s1 + $0x508] sm:$0xff]
  %v218 = vld [vmem:[%s1 + $0x510] sm:$0xff]
  %v219 = vld [vmem:[%s1 + $0x518] sm:$0xff]
  %v220 = vld [vmem:[%s1 + $0x520] sm:$0xff]
  %v221 = vld [vmem:[%s1 + $0x528] sm:$0xff]
  %v222 = vld [vmem:[%s1 + $0x530] sm:$0xff]
  %v223 = vld [vmem:[%s1 + $0x538] sm:$0xff]
  %v224 = vld [vmem:[%s1 + $0x540] sm:$0xff]
  %v225 = vld [vmem:[%s1 + $0x548] sm:$0xff]
  %v226 = vld [vmem:[%s1 + $0x550] sm:$0xff]
  %v227 = vld [vmem:[%s1 + $0x558] sm:$0xff]
  %v228 = vld [vmem:[%s1 + $0x560] sm:$0xff]
  %v229 = vld [vmem:[%s1 + $0x568] sm:$0xff]
  %v230 = vld [vmem:[%s1 + $0x570] sm:$0xff]
  %v231 = vld [vmem:[%s1 + $0x578] sm:$0xff]
  %v232 = vld [vmem:[%s1 + $0x580] sm:$0xff]
  %v233 = vld [vmem:[%s1 + $0x588] sm:$0xff]
  %v234 = vld [vmem:[%s1 + $0x590] sm:$0xff]
  %v235 = vld [vmem:[%s1 + $0x598] sm:$0xff]
  %v236 = vld [vmem:[%s1 + $0x5a0] sm:$0xff]
  %v237 = vld [vmem:[%s1 + $0x5a8] sm:$0xff]
  %v238 = vld [vmem:[%s1 + $0x5b0] sm:$0xff]
  %v239 = vld [vmem:[%s1 + $0x5b8] sm:$0xff]
  %v240 = vld [vmem:[%s1 + $0x5c0] sm:$0xff]
  %v241 = vld [vmem:[%s1 + $0x5c8] sm:$0xff]
  %v242 = vld [vmem:[%s1 + $0x5d0] sm:$0xff]
  %v243 = vld [vmem:[%s1 + $0x5d8] sm:$0xff]
  %v244 = vld [vmem:[%s1 + $0x5e0] sm:$0xff]
  %v245 = vld [vmem:[%s1 + $0x5e8] sm:$0xff]
  %v246 = vld [vmem:[%s1 + $0x5f0] sm:$0xff]
  %v247 = vld [vmem:[%s1 + $0x5f8] sm:$0xff]
  %v248 = vld [vmem:[%s1 + $0x600] sm:$0xff]
  %v249 = vld [vmem:[%s1 + $0x608] sm:$0xff]
  %v250 = vld [vmem:[%s1 + $0x610] sm:$0xff]
  %v251 = vld [vmem:[%s1 + $0x618] sm:$0xff]
  %v252 = vld [vmem:[%s1 + $0x620] sm:$0xff]
  %v253 = vld [vmem:[%s1 + $0x628] sm:$0xff]
  %v254 = vld [vmem:[%s1 + $0x630] sm:$0xff]
  %v255 = vld [vmem:[%s1 + $0x638] sm:$0xff]
  %v256 = vld [vmem:[%s1 + $0x640] sm:$0xff]
  %v257 = vld [vmem:[%s1 + $0x648] sm:$0xff]
  %v258 = vld [vmem:[%s1 + $0x650] sm:$0xff]
  %v259 = vld [vmem:[%s1 + $0x658] sm:$0xff]
  %v260 = vld [vmem:[%s1 + $0x660] sm:$0xff]
  %v261 = vld [vmem:[%s1 + $0x668] sm:$0xff]
  %v262 = vld [vmem:[%s1 + $0x670] sm:$0xff]
  %v263 = vld [vmem:[%s1 + $0x678] sm:$0xff]
  %v264 = vld [vmem:[%s1 + $0x680] sm:$0xff]
  %v265 = vld [vmem:[%s1 + $0x688] sm:$0xff]
  %v266 = vld [vmem:[%s1 + $0x690] sm:$0xff]
  %v267 = vld [vmem:[%s1 + $0x698] sm:$0xff]
  %v268 = vld [vmem:[%s1 + $0x6a0] sm:$0xff]
  %v269 = vld [vmem:[%s1 + $0x6a8] sm:$0xff]
  %v270 = vld [vmem:[%s1 + $0x6b0] sm:$0xff]
  %v271 = vld [vmem:[%s1 + $0x6b8] sm:$0xff]
  %v272 = vld [vmem:[%s1 + $0x6c0] sm:$0xff]
  %v273 = vld [vmem:[%s1 + $0x6c8] sm:$0xff]
  %v274 = vld [vmem:[%s1 + $0x6d0] sm:$0xff]
  %v275 = vld [vmem:[%s1 + $0x6d8] sm:$0xff]
  %v276 = vld [vmem:[%s1 + $0x6e0] sm:$0xff]
  %v277 = vld [vmem:[%s1 + $0x6e8] sm:$0xff]
  %v278 = vld [vmem:[%s1 + $0x6f0] sm:$0xff]
  %v279 = vld [vmem:[%s1 + $0x6f8] sm:$0xff]
  %v280 = vld [vmem:[%s1 + $0x700] sm:$0xff]
  %v281 = vld [vmem:[%s1 + $0x708] sm:$0xff]
  %v282 = vld [vmem:[%s1 + $0x710] sm:$0xff]
  %v283 = vld [vmem:[%s1 + $0x718] sm:$0xff]
  %v284 = vld [vmem:[%s1 + $0x720] sm:$0xff]
  %v285 = vld [vmem:[%s1 + $0x728] sm:$0xff]
  %v286 = vld [vmem:[%s1 + $0x730] sm:$0xff]
  %v287 = vld [vmem:[%s1 + $0x738] sm:$0xff]
  %v288 = vld [vmem:[%s1 + $0x740] sm:$0xff]
  %v289 = vld [vmem:[%s1 + $0x748] sm:$0xff]
  %v290 = vld [vmem:[%s1 + $0x750] sm:$0xff]
  %v291 = vld [vmem:[%s1 + $0x758] sm:$0xff]
  %v292 = vld [vmem:[%s1 + $0x760] sm:$0xff]
  %v293 = vld [vmem:[%s1 + $0x768] sm:$0xff]
  %v294 = vld [vmem:[%s1 + $0x770] sm:$0xff]
  %v295 = vld [vmem:[%s1 + $0x778] sm:$0xff]
  %v296 = vld [vmem:[%s1 + $0x780] sm:$0xff]
  %v297 = vld [vmem:[%s1 + $0x788] sm:$0xff]
  %v298 = vld [vmem:[%s1 + $0x790] sm:$0xff]
  %v299 = vld [vmem:[%s1 + $0x798] sm:$0xff]
  %v300 = vld [vmem:[%s1 + $0x7a0] sm:$0xff]
  %v301 = vld [vmem:[%s1 + $0x7a8] sm:$0xff]
  %v302 = vld [vmem:[%s1 + $0x7b0] sm:$0xff]
  %v303 = vld [vmem:[%s1 + $0x7b8] sm:$0xff]
  %v304 = vld [vmem:[%s1 + $0x7c0] sm:$0xff]
  %v305 = vld [vmem:[%s1 + $0x7c8] sm:$0xff]
  %v306 = vld [vmem:[%s1 + $0x7d0] sm:$0xff]
  %v307 = vld [vmem:[%s1 + $0x7d8] sm:$0xff]
  %v308 = vld [vmem:[%s1 + $0x7e0] sm:$0xff]
  %v309 = vld [vmem:[%s1 + $0x7e8] sm:$0xff]
  %v310 = vld [vmem:[%s1 + $0x7f0] sm:$0xff]
  %v311 = vld [vmem:[%s1 + $0x7f8] sm:$0xff]
  %v312 = vld [vmem:[%s1 + $0x800] sm:$0xff]
  %v313 = vld [vmem:[%s1 + $0x808] sm:$0xff]
  %v314 = vld [vmem:[%s1 + $0x810] sm:$0xff]
  %v315 = vld [vmem:[%s1 + $0x818] sm:$0xff]
  %v316 = vld [vmem:[%s1 + $0x820] sm:$0xff]
  %v317 = vld [vmem:[%s1 + $0x828] sm:$0xff]
  %v318 = vld [vmem:[%s1 + $0x830] sm:$0xff]
  %v319 = vld [vmem:[%s1 + $0x838] sm:$0xff]
  %v320 = vld [vmem:[%s1 + $0x840] sm:$0xff]
  %v321 = vld [vmem:[%s1 + $0x848] sm:$0xff]
  %v322 = vld [vmem:[%s1 + $0x850] sm:$0xff]
  %v323 = vld [vmem:[%s1 + $0x858] sm:$0xff]
  %v324 = vld [vmem:[%s1 + $0x860] sm:$0xff]
  %v325 = vld [vmem:[%s1 + $0x868] sm:$0xff]
  %v326 = vld [vmem:[%s1 + $0x870] sm:$0xff]
  %v327 = vld [vmem:[%s1 + $0x878] sm:$0xff]
  %v328 = vld [vmem:[%s1 + $0x880] sm:$0xff]
  %v329 = vld [vmem:[%s1 + $0x888] sm:$0xff]
  %v330 = vld [vmem:[%s1 + $0x890] sm:$0xff]
  %v331 = vld [vmem:[%s1 + $0x898] sm:$0xff]
  %v332 = vld [vmem:[%s1 + $0x8a0] sm:$0xff]
  %v333 = vld [vmem:[%s1 + $0x8a8] sm:$0xff]
  %v334 = vld [vmem:[%s1 + $0x8b0] sm:$0xff]
  %v335 = vld [vmem:[%s1 + $0x8b8] sm:$0xff]
  %v336 = vld [vmem:[%s1 + $0x8c0] sm:$0xff]
  %v337 = vld [vmem:[%s1 + $0x8c8] sm:$0xff]
  %v338 = vld [vmem:[%s1 + $0x8d0] sm:$0xff]
  %v339 = vld [vmem:[%s1 + $0x8d8] sm:$0xff]
  %v340 = vld [vmem:[%s1 + $0x8e0] sm:$0xff]
  %v341 = vld [vmem:[%s1 + $0x8e8] sm:$0xff]
  %v342 = vld [vmem:[%s1 + $0x8f0] sm:$0xff]
  %v343 = vld [vmem:[%s1 + $0x8f8] sm:$0xff]
  %v344 = vld [vmem:[%s1 + $0x900] sm:$0xff]
  %v345 = vld [vmem:[%s1 + $0x908] sm:$0xff]
  %v346 = vld [vmem:[%s1 + $0x910] sm:$0xff]
  %v347 = vld [vmem:[%s1 + $0x918] sm:$0xff]
  %v348 = vld [vmem:[%s1 + $0x920] sm:$0xff]
  %v349 = vld [vmem:[%s1 + $0x928] sm:$0xff]
  %v350 = vld [vmem:[%s1 + $0x930] sm:$0xff]
  %v351 = vld [vmem:[%s1 + $0x938] sm:$0xff]
  %v352 = vld [vmem:[%s1 + $0x940] sm:$0xff]
  %v353 = vld [vmem:[%s1 + $0x948] sm:$0xff]
  %v354 = vld [vmem:[%s1 + $0x950] sm:$0xff]
  %v355 = vld [vmem:[%s1 + $0x958] sm:$0xff]
  %v356 = vld [vmem:[%s1 + $0x960] sm:$0xff]
  %v357 = vld [vmem:[%s1 + $0x968] sm:$0xff]
  %v358 = vld [vmem:[%s1 + $0x970] sm:$0xff]
  %v359 = vld [vmem:[%s1 + $0x978] sm:$0xff]
  %v360 = vld [vmem:[%s1 + $0x980] sm:$0xff]
  %v361 = vld [vmem:[%s1 + $0x988] sm:$0xff]
  %v362 = vld [vmem:[%s1 + $0x990] sm:$0xff]
  %v363 = vld [vmem:[%s1 + $0x998] sm:$0xff]
  %v364 = vld [vmem:[%s1 + $0x9a0] sm:$0xff]
  %v365 = vld [vmem:[%s1 + $0x9a8] sm:$0xff]
  %v366 = vld [vmem:[%s1 + $0x9b0] sm:$0xff]
  %v367 = vld [vmem:[%s1 + $0x9b8] sm:$0xff]
  %v368 = vld [vmem:[%s1 + $0x9c0] sm:$0xff]
  %v369 = vld [vmem:[%s1 + $0x9c8] sm:$0xff]
  %v370 = vld [vmem:[%s1 + $0x9d0] sm:$0xff]
  %v371 = vld [vmem:[%s1 + $0x9d8] sm:$0xff]
  %v372 = vld [vmem:[%s1 + $0x9e0] sm:$0xff]
  %v373 = vld [vmem:[%s1 + $0x9e8] sm:$0xff]
  %v374 = vld [vmem:[%s1 + $0x9f0] sm:$0xff]
  %v375 = vld [vmem:[%s1 + $0x9f8] sm:$0xff]
  %v376 = vld [vmem:[%s1 + $0xa00] sm:$0xff]
  %v377 = vld [vmem:[%s1 + $0xa08] sm:$0xff]
  %v378 = vld [vmem:[%s1 + $0xa10] sm:$0xff]
  %v379 = vld [vmem:[%s1 + $0xa18] sm:$0xff]
  %v380 = vld [vmem:[%s1 + $0xa20] sm:$0xff]
  %v381 = vld [vmem:[%s1 + $0xa28] sm:$0xff]
  %v382 = vld [vmem:[%s1 + $0xa30] sm:$0xff]
  %v383 = vld [vmem:[%s1 + $0xa38] sm:$0xff]
  %v384 = vld [vmem:[%s1 + $0xa40] sm:$0xff]
  %v385 = vld [vmem:[%s1 + $0xa48] sm:$0xff]
  %v386 = vld [vmem:[%s1 + $0xa50] sm:$0xff]
  %v387 = vld [vmem:[%s1 + $0xa58] sm:$0xff]
  %v388 = vld [vmem:[%s1 + $0xa60] sm:$0xff]
  %v389 = vld [vmem:[%s1 + $0xa68] sm:$0xff]
  %v390 = vld [vmem:[%s1 + $0xa70] sm:$0xff]
  %v391 = vld [vmem:[%s1 + $0xa78] sm:$0xff]
  %v392 = vld [vmem:[%s1 + $0xa80] sm:$0xff]
  %v393 = vld [vmem:[%s1 + $0xa88] sm:$0xff]
  %v394 = vld [vmem:[%s1 + $0xa90] sm:$0xff]
  %v395 = vld [vmem:[%s1 + $0xa98] sm:$0xff]
  %v396 = vld [vmem:[%s1 + $0xaa0] sm:$0xff]
  %v397 = vld [vmem:[%s1 + $0xaa8] sm:$0xff]
  %v398 = vld [vmem:[%s1 + $0xab0] sm:$0xff]
  %v399 = vld [vmem:[%s1 + $0xab8] sm:$0xff]
  %v400 = vld [vmem:[%s1 + $0xac0] sm:$0xff]
  %v401 = vld [vmem:[%s1 + $0xac8] sm:$0xff]
  %v402 = vld [vmem:[%s1 + $0xad0] sm:$0xff]
  %v403 = vld [vmem:[%s1 + $0xad8] sm:$0xff]
  %v404 = vld [vmem:[%s1 + $0xae0] sm:$0xff]
  %v405 = vld [vmem:[%s1 + $0xae8] sm:$0xff]
  %v406 = vld [vmem:[%s1 + $0xaf0] sm:$0xff]
  %v407 = vld [vmem:[%s1 + $0xaf8] sm:$0xff]
  %v408 = vld [vmem:[%s1 + $0xb00] sm:$0xff]
  %v409 = vld [vmem:[%s1 + $0xb08] sm:$0xff]
  %v410 = vld [vmem:[%s1 + $0xb10] sm:$0xff]
  %v411 = vld [vmem:[%s1 + $0xb18] sm:$0xff]
  %v412 = vld [vmem:[%s1 + $0xb20] sm:$0xff]
  %v413 = vld [vmem:[%s1 + $0xb28] sm:$0xff]
  %v414 = vld [vmem:[%s1 + $0xb30] sm:$0xff]
  %v415 = vld [vmem:[%s1 + $0xb38] sm:$0xff]
  %v416 = vld [vmem:[%s1 + $0xb40] sm:$0xff]
  %v417 = vld [vmem:[%s1 + $0xb48] sm:$0xff]
  %v418 = vld [vmem:[%s1 + $0xb50] sm:$0xff]
  %v419 = vld [vmem:[%s1 + $0xb58] sm:$0xff]
  %v420 = vld [vmem:[%s1 + $0xb60] sm:$0xff]
  %v421 = vld [vmem:[%s1 + $0xb68] sm:$0xff]
  %v422 = vld [vmem:[%s1 + $0xb70] sm:$0xff]
  %v423 = vld [vmem:[%s1 + $0xb78] sm:$0xff]
  %v424 = vld [vmem:[%s1 + $0xb80] sm:$0xff]
  %v425 = vld [vmem:[%s1 + $0xb88] sm:$0xff]
  %v426 = vld [vmem:[%s1 + $0xb90] sm:$0xff]
  %v427 = vld [vmem:[%s1 + $0xb98] sm:$0xff]
  %v428 = vld [vmem:[%s1 + $0xba0] sm:$0xff]
  %v429 = vld [vmem:[%s1 + $0xba8] sm:$0xff]
  %v430 = vld [vmem:[%s1 + $0xbb0] sm:$0xff]
  %v431 = vld [vmem:[%s1 + $0xbb8] sm:$0xff]
  %v432 = vld [vmem:[%s1 + $0xbc0] sm:$0xff]
  %v433 = vld [vmem:[%s1 + $0xbc8] sm:$0xff]
  %v434 = vld [vmem:[%s1 + $0xbd0] sm:$0xff]
  %v435 = vld [vmem:[%s1 + $0xbd8] sm:$0xff]
  %v436 = vld [vmem:[%s1 + $0xbe0] sm:$0xff]
  %v437 = vld [vmem:[%s1 + $0xbe8] sm:$0xff]
  %v438 = vld [vmem:[%s1 + $0xbf0] sm:$0xff]
  %v439 = vld [vmem:[%s1 + $0xbf8] sm:$0xff]
  %v440 = vld [vmem:[%s1 + $0xc00] sm:$0xff]
  %v441 = vld [vmem:[%s1 + $0xc08] sm:$0xff]
  %v442 = vld [vmem:[%s1 + $0xc10] sm:$0xff]
  %v443 = vld [vmem:[%s1 + $0xc18] sm:$0xff]
  %v444 = vld [vmem:[%s1 + $0xc20] sm:$0xff]
  %v445 = vld [vmem:[%s1 + $0xc28] sm:$0xff]
  %v446 = vld [vmem:[%s1 + $0xc30] sm:$0xff]
  %v447 = vld [vmem:[%s1 + $0xc38] sm:$0xff]
  %v448 = vld [vmem:[%s1 + $0xc40] sm:$0xff]
  %v449 = vld [vmem:[%s1 + $0xc48] sm:$0xff]
  %v450 = vld [vmem:[%s1 + $0xc50] sm:$0xff]
  %v451 = vld [vmem:[%s1 + $0xc58] sm:$0xff]
  %v452 = vld [vmem:[%s1 + $0xc60] sm:$0xff]
  %v453 = vld [vmem:[%s1 + $0xc68] sm:$0xff]
  %v454 = vld [vmem:[%s1 + $0xc70] sm:$0xff]
  %v455 = vld [vmem:[%s1 + $0xc78] sm:$0xff]
  %v456 = vld [vmem:[%s1 + $0xc80] sm:$0xff]
  %v457 = vld [vmem:[%s1 + $0xc88] sm:$0xff]
  %v458 = vld [vmem:[%s1 + $0xc90] sm:$0xff]
  %v459 = vld [vmem:[%s1 + $0xc98] sm:$0xff]
  %v460 = vld [vmem:[%s1 + $0xca0] sm:$0xff]
  %v461 = vld [vmem:[%s1 + $0xca8] sm:$0xff]
  %v462 = vld [vmem:[%s1 + $0xcb0] sm:$0xff]
  %v463 = vld [vmem:[%s1 + $0xcb8] sm:$0xff]
  %v464 = vld [vmem:[%s1 + $0xcc0] sm:$0xff]
  %v465 = vld [vmem:[%s1 + $0xcc8] sm:$0xff]
  %v466 = vld [vmem:[%s1 + $0xcd0] sm:$0xff]
  %v467 = vld [vmem:[%s1 + $0xcd8] sm:$0xff]
  %v468 = vld [vmem:[%s1 + $0xce0] sm:$0xff]
  %v469 = vld [vmem:[%s1 + $0xce8] sm:$0xff]
  %v470 = vld [vmem:[%s1 + $0xcf0] sm:$0xff]
  %v471 = vld [vmem:[%s1 + $0xcf8] sm:$0xff]
  %v472 = vld [vmem:[%s1 + $0xd00] sm:$0xff]
  %v473 = vld [vmem:[%s1 + $0xd08] sm:$0xff]
  %v474 = vld [vmem:[%s1 + $0xd10] sm:$0xff]
  %v475 = vld [vmem:[%s1 + $0xd18] sm:$0xff]
  %v476 = vld [vmem:[%s1 + $0xd20] sm:$0xff]
  %v477 = vld [vmem:[%s1 + $0xd28] sm:$0xff]
  %v478 = vld [vmem:[%s1 + $0xd30] sm:$0xff]
  %v479 = vld [vmem:[%s1 + $0xd38] sm:$0xff]
  %v480 = vld [vmem:[%s1 + $0xd40] sm:$0xff]
  %v481 = vld [vmem:[%s1 + $0xd48] sm:$0xff]
  %v482 = vld [vmem:[%s1 + $0xd50] sm:$0xff]
  %v483 = vld [vmem:[%s1 + $0xd58] sm:$0xff]
  %v484 = vld [vmem:[%s1 + $0xd60] sm:$0xff]
  %v485 = vld [vmem:[%s1 + $0xd68] sm:$0xff]
  %v486 = vld [vmem:[%s1 + $0xd70] sm:$0xff]
  %v487 = vld [vmem:[%s1 + $0xd78] sm:$0xff]
  %v488 = vld [vmem:[%s2] sm:$0x3]
  %v490 = vperm.slane %v488, 0
  %v491 = vperm.slane %v488, 1
  %v536 = vunpack.c.l.b16 %v14
  %v537 = vunpack.c.h.b16 %v14
  %v538 = vunpack.c.l.b16 %v15
  %v539 = vunpack.c.h.b16 %v15
  %v540 = vunpack.c.l.b16 %v16
  %v541 = vunpack.c.h.b16 %v16
  %v542 = vunpack.c.l.b16 %v17
  %v543 = vunpack.c.h.b16 %v17
  %v544 = vunpack.c.l.b16 %v18
  %v545 = vunpack.c.h.b16 %v18
  %v546 = vunpack.c.l.b16 %v19
  %v547 = vunpack.c.h.b16 %v19
  %v548 = vunpack.c.l.b16 %v20
  %v549 = vunpack.c.h.b16 %v20
  %v550 = vunpack.c.l.b16 %v21
  %v551 = vunpack.c.h.b16 %v21
  %v552 = vunpack.c.l.b16 %v22
  %v553 = vunpack.c.h.b16 %v22
  %v554 = vunpack.c.l.b16 %v23
  %v555 = vunpack.c.h.b16 %v23
  %v556 = vunpack.c.l.b16 %v24
  %v557 = vunpack.c.h.b16 %v24
  %v558 = vunpack.c.l.b16 %v25
  %v559 = vunpack.c.h.b16 %v25
  %v560 = vunpack.c.l.b16 %v26
  %v561 = vunpack.c.h.b16 %v26
  %v562 = vunpack.c.l.b16 %v27
  %v563 = vunpack.c.l.b16 %v28
  %v564 = vunpack.c.h.b16 %v28
  %v565 = vunpack.c.l.b16 %v29
  %v566 = vunpack.c.h.b16 %v29
  %v567 = vunpack.c.l.b16 %v30
  %v568 = vunpack.c.h.b16 %v30
  %v569 = vunpack.c.l.b16 %v31
  %v570 = vunpack.c.h.b16 %v31
  %v571 = vunpack.c.l.b16 %v32
  %v572 = vunpack.c.h.b16 %v32
  %v573 = vunpack.c.l.b16 %v33
  %v574 = vunpack.c.h.b16 %v33
  %v575 = vunpack.c.l.b16 %v34
  %v576 = vunpack.c.h.b16 %v34
  %v577 = vunpack.c.l.b16 %v35
  %v578 = vunpack.c.h.b16 %v35
  %v579 = vunpack.c.l.b16 %v36
  %v580 = vunpack.c.h.b16 %v36
  %v581 = vunpack.c.l.b16 %v37
  %v582 = vunpack.c.h.b16 %v37
  %v583 = vunpack.c.l.b16 %v38
  %v584 = vunpack.c.h.b16 %v38
  %v585 = vunpack.c.l.b16 %v39
  %v586 = vunpack.c.h.b16 %v39
  %v587 = vunpack.c.l.b16 %v40
  %v588 = vunpack.c.h.b16 %v40
  %v589 = vunpack.c.l.b16 %v41
  %v590 = vunpack.c.l.b16 %v42
  %v591 = vunpack.c.h.b16 %v42
  %v592 = vunpack.c.l.b16 %v43
  %v593 = vunpack.c.h.b16 %v43
  %v594 = vunpack.c.l.b16 %v44
  %v595 = vunpack.c.h.b16 %v44
  %v596 = vunpack.c.l.b16 %v45
  %v597 = vunpack.c.h.b16 %v45
  %v598 = vunpack.c.l.b16 %v46
  %v599 = vunpack.c.h.b16 %v46
  %v600 = vunpack.c.l.b16 %v47
  %v601 = vunpack.c.h.b16 %v47
  %v602 = vunpack.c.l.b16 %v48
  %v603 = vunpack.c.h.b16 %v48
  %v604 = vunpack.c.l.b16 %v49
  %v605 = vunpack.c.h.b16 %v49
  %v606 = vunpack.c.l.b16 %v50
  %v607 = vunpack.c.h.b16 %v50
  %v608 = vunpack.c.l.b16 %v51
  %v609 = vunpack.c.h.b16 %v51
  %v610 = vunpack.c.l.b16 %v52
  %v611 = vunpack.c.h.b16 %v52
  %v612 = vunpack.c.l.b16 %v53
  %v613 = vunpack.c.h.b16 %v53
  %v614 = vunpack.c.l.b16 %v54
  %v615 = vunpack.c.h.b16 %v54
  %v616 = vunpack.c.l.b16 %v55
  %v617 = vpack.c.b16 %v563, %v536
  %v618 = vpack.c.b16 %v564, %v537
  %v619 = vpack.c.b16 %v565, %v538
  %v620 = vpack.c.b16 %v566, %v539
  %v621 = vpack.c.b16 %v567, %v540
  %v622 = vpack.c.b16 %v568, %v541
  %v623 = vpack.c.b16 %v569, %v542
  %v624 = vpack.c.b16 %v570, %v543
  %v625 = vpack.c.b16 %v571, %v544
  %v626 = vpack.c.b16 %v572, %v545
  %v627 = vpack.c.b16 %v573, %v546
  %v628 = vpack.c.b16 %v574, %v547
  %v629 = vpack.c.b16 %v575, %v548
  %v630 = vpack.c.b16 %v576, %v549
  %v631 = vpack.c.b16 %v577, %v550
  %v632 = vpack.c.b16 %v578, %v551
  %v633 = vpack.c.b16 %v579, %v552
  %v634 = vpack.c.b16 %v580, %v553
  %v635 = vpack.c.b16 %v581, %v554
  %v636 = vpack.c.b16 %v582, %v555
  %v637 = vpack.c.b16 %v583, %v556
  %v638 = vpack.c.b16 %v584, %v557
  %v639 = vpack.c.b16 %v585, %v558
  %v640 = vpack.c.b16 %v586, %v559
  %v641 = vpack.c.b16 %v587, %v560
  %v642 = vpack.c.b16 %v588, %v561
  %v643 = vpack.c.b16 %v589, %v562
  %v644 = vpack.c.b16 %v590, %v590
  %v645 = vpack.c.b16 %v591, %v591
  %v646 = vpack.c.b16 %v592, %v592
  %v647 = vpack.c.b16 %v593, %v593
  %v648 = vpack.c.b16 %v594, %v594
  %v649 = vpack.c.b16 %v595, %v595
  %v650 = vpack.c.b16 %v596, %v596
  %v651 = vpack.c.b16 %v597, %v597
  %v652 = vpack.c.b16 %v598, %v598
  %v653 = vpack.c.b16 %v599, %v599
  %v654 = vpack.c.b16 %v600, %v600
  %v655 = vpack.c.b16 %v601, %v601
  %v656 = vpack.c.b16 %v602, %v602
  %v657 = vpack.c.b16 %v603, %v603
  %v658 = vpack.c.b16 %v604, %v604
  %v659 = vpack.c.b16 %v605, %v605
  %v660 = vpack.c.b16 %v606, %v606
  %v661 = vpack.c.b16 %v607, %v607
  %v662 = vpack.c.b16 %v608, %v608
  %v663 = vpack.c.b16 %v609, %v609
  %v664 = vpack.c.b16 %v610, %v610
  %v665 = vpack.c.b16 %v611, %v611
  %v666 = vpack.c.b16 %v612, %v612
  %v667 = vpack.c.b16 %v613, %v613
  %v668 = vpack.c.b16 %v614, %v614
  %v669 = vpack.c.b16 %v615, %v615
  %v670 = vpack.c.b16 %v616, %v616
  %v1157 = vunpack.c.l.b16 %v56
  %v1158 = vunpack.c.h.b16 %v56
  %v1159 = vunpack.c.l.b16 %v57
  %v1160 = vunpack.c.h.b16 %v57
  %v1161 = vunpack.c.l.b16 %v58
  %v1162 = vunpack.c.h.b16 %v58
  %v1163 = vunpack.c.l.b16 %v59
  %v1164 = vunpack.c.h.b16 %v59
  %v1165 = vunpack.c.l.b16 %v60
  %v1166 = vunpack.c.h.b16 %v60
  %v1167 = vunpack.c.l.b16 %v61
  %v1168 = vunpack.c.h.b16 %v61
  %v1169 = vunpack.c.l.b16 %v62
  %v1170 = vunpack.c.h.b16 %v62
  %v1171 = vunpack.c.l.b16 %v63
  %v1172 = vunpack.c.h.b16 %v63
  %v1173 = vunpack.c.l.b16 %v64
  %v1174 = vunpack.c.h.b16 %v64
  %v1175 = vunpack.c.l.b16 %v65
  %v1176 = vunpack.c.h.b16 %v65
  %v1177 = vunpack.c.l.b16 %v66
  %v1178 = vunpack.c.h.b16 %v66
  %v1179 = vunpack.c.l.b16 %v67
  %v1180 = vunpack.c.h.b16 %v67
  %v1181 = vunpack.c.l.b16 %v68
  %v1182 = vunpack.c.h.b16 %v68
  %v1183 = vunpack.c.l.b16 %v69
  %v1184 = vunpack.c.h.b16 %v69
  %v1185 = vunpack.c.l.b16 %v70
  %v1186 = vunpack.c.h.b16 %v70
  %v1187 = vunpack.c.l.b16 %v71
  %v1188 = vunpack.c.h.b16 %v71
  %v1189 = vunpack.c.l.b16 %v72
  %v1190 = vunpack.c.h.b16 %v72
  %v1191 = vunpack.c.l.b16 %v73
  %v1192 = vunpack.c.h.b16 %v73
  %v1193 = vunpack.c.l.b16 %v74
  %v1194 = vunpack.c.h.b16 %v74
  %v1195 = vunpack.c.l.b16 %v75
  %v1196 = vunpack.c.h.b16 %v75
  %v1197 = vunpack.c.l.b16 %v76
  %v1198 = vunpack.c.h.b16 %v76
  %v1199 = vunpack.c.l.b16 %v77
  %v1200 = vunpack.c.h.b16 %v77
  %v1201 = vunpack.c.l.b16 %v78
  %v1202 = vunpack.c.h.b16 %v78
  %v1203 = vunpack.c.l.b16 %v79
  %v1204 = vunpack.c.h.b16 %v79
  %v1205 = vunpack.c.l.b16 %v80
  %v1206 = vunpack.c.h.b16 %v80
  %v1207 = vunpack.c.l.b16 %v81
  %v1208 = vunpack.c.h.b16 %v81
  %v1209 = vunpack.c.l.b16 %v82
  %v1210 = vunpack.c.h.b16 %v82
  %v1211 = vunpack.c.l.b16 %v83
  %v1212 = vunpack.c.h.b16 %v83
  %v1213 = vunpack.c.l.b16 %v84
  %v1214 = vunpack.c.h.b16 %v84
  %v1215 = vunpack.c.l.b16 %v85
  %v1216 = vunpack.c.h.b16 %v85
  %v1217 = vunpack.c.l.b16 %v86
  %v1218 = vunpack.c.h.b16 %v86
  %v1219 = vunpack.c.l.b16 %v87
  %v1220 = vunpack.c.h.b16 %v87
  %v1221 = vunpack.c.l.b16 %v88
  %v1222 = vunpack.c.h.b16 %v88
  %v1223 = vunpack.c.l.b16 %v89
  %v1224 = vunpack.c.h.b16 %v89
  %v1225 = vunpack.c.l.b16 %v90
  %v1226 = vunpack.c.h.b16 %v90
  %v1227 = vunpack.c.l.b16 %v91
  %v1228 = vunpack.c.h.b16 %v91
  %v1229 = vunpack.c.l.b16 %v92
  %v1230 = vunpack.c.h.b16 %v92
  %v1231 = vunpack.c.l.b16 %v93
  %v1232 = vunpack.c.h.b16 %v93
  %v1233 = vunpack.c.l.b16 %v94
  %v1234 = vunpack.c.h.b16 %v94
  %v1235 = vunpack.c.l.b16 %v95
  %v1236 = vunpack.c.h.b16 %v95
  %v1237 = vunpack.c.l.b16 %v96
  %v1238 = vunpack.c.h.b16 %v96
  %v1239 = vunpack.c.l.b16 %v97
  %v1240 = vunpack.c.h.b16 %v97
  %v1241 = vunpack.c.l.b16 %v98
  %v1242 = vunpack.c.h.b16 %v98
  %v1243 = vunpack.c.l.b16 %v99
  %v1244 = vunpack.c.h.b16 %v99
  %v1245 = vunpack.c.l.b16 %v100
  %v1246 = vunpack.c.h.b16 %v100
  %v1247 = vunpack.c.l.b16 %v101
  %v1248 = vunpack.c.h.b16 %v101
  %v1249 = vunpack.c.l.b16 %v102
  %v1250 = vunpack.c.h.b16 %v102
  %v1251 = vunpack.c.l.b16 %v103
  %v1252 = vunpack.c.h.b16 %v103
  %v1253 = vunpack.c.l.b16 %v104
  %v1254 = vunpack.c.h.b16 %v104
  %v1255 = vunpack.c.l.b16 %v105
  %v1256 = vunpack.c.h.b16 %v105
  %v1257 = vunpack.c.l.b16 %v106
  %v1258 = vunpack.c.h.b16 %v106
  %v1259 = vunpack.c.l.b16 %v107
  %v1260 = vunpack.c.h.b16 %v107
  %v1261 = vunpack.c.l.b16 %v108
  %v1262 = vunpack.c.h.b16 %v108
  %v1263 = vunpack.c.l.b16 %v109
  %v1264 = vunpack.c.h.b16 %v109
  %v1265 = vunpack.c.l.b16 %v110
  %v1266 = vunpack.c.h.b16 %v110
  %v1267 = vunpack.c.l.b16 %v111
  %v1268 = vunpack.c.h.b16 %v111
  %v1269 = vunpack.c.l.b16 %v112
  %v1270 = vunpack.c.h.b16 %v112
  %v1271 = vunpack.c.l.b16 %v113
  %v1272 = vunpack.c.h.b16 %v113
  %v1273 = vunpack.c.l.b16 %v114
  %v1274 = vunpack.c.h.b16 %v114
  %v1275 = vunpack.c.l.b16 %v115
  %v1276 = vunpack.c.h.b16 %v115
  %v1277 = vunpack.c.l.b16 %v116
  %v1278 = vunpack.c.h.b16 %v116
  %v1279 = vunpack.c.l.b16 %v117
  %v1280 = vunpack.c.h.b16 %v117
  %v1281 = vunpack.c.l.b16 %v118
  %v1282 = vunpack.c.h.b16 %v118
  %v1283 = vunpack.c.l.b16 %v119
  %v1284 = vunpack.c.h.b16 %v119
  %v1285 = vunpack.c.l.b16 %v120
  %v1286 = vunpack.c.h.b16 %v120
  %v1287 = vunpack.c.l.b16 %v121
  %v1288 = vunpack.c.h.b16 %v121
  %v1289 = vunpack.c.l.b16 %v122
  %v1290 = vunpack.c.h.b16 %v122
  %v1291 = vunpack.c.l.b16 %v123
  %v1292 = vunpack.c.h.b16 %v123
  %v1293 = vunpack.c.l.b16 %v124
  %v1294 = vunpack.c.h.b16 %v124
  %v1295 = vunpack.c.l.b16 %v125
  %v1296 = vunpack.c.h.b16 %v125
  %v1297 = vunpack.c.l.b16 %v126
  %v1298 = vunpack.c.h.b16 %v126
  %v1299 = vunpack.c.l.b16 %v127
  %v1300 = vunpack.c.h.b16 %v127
  %v1301 = vunpack.c.l.b16 %v128
  %v1302 = vunpack.c.h.b16 %v128
  %v1303 = vunpack.c.l.b16 %v129
  %v1304 = vunpack.c.h.b16 %v129
  %v1305 = vunpack.c.l.b16 %v130
  %v1306 = vunpack.c.h.b16 %v130
  %v1307 = vunpack.c.l.b16 %v131
  %v1308 = vunpack.c.h.b16 %v131
  %v1309 = vunpack.c.l.b16 %v132
  %v1310 = vunpack.c.h.b16 %v132
  %v1311 = vunpack.c.l.b16 %v133
  %v1312 = vunpack.c.h.b16 %v133
  %v1313 = vunpack.c.l.b16 %v134
  %v1314 = vunpack.c.h.b16 %v134
  %v1315 = vunpack.c.l.b16 %v135
  %v1316 = vunpack.c.h.b16 %v135
  %v1317 = vunpack.c.l.b16 %v136
  %v1318 = vunpack.c.h.b16 %v136
  %v1319 = vunpack.c.l.b16 %v137
  %v1320 = vunpack.c.h.b16 %v137
  %v1321 = vunpack.c.l.b16 %v138
  %v1322 = vunpack.c.h.b16 %v138
  %v1323 = vunpack.c.l.b16 %v139
  %v1324 = vunpack.c.h.b16 %v139
  %v1325 = vunpack.c.l.b16 %v140
  %v1326 = vunpack.c.h.b16 %v140
  %v1327 = vunpack.c.l.b16 %v141
  %v1328 = vunpack.c.h.b16 %v141
  %v1329 = vunpack.c.l.b16 %v142
  %v1330 = vunpack.c.h.b16 %v142
  %v1331 = vunpack.c.l.b16 %v143
  %v1332 = vunpack.c.h.b16 %v143
  %v1333 = vunpack.c.l.b16 %v144
  %v1334 = vunpack.c.h.b16 %v144
  %v1335 = vunpack.c.l.b16 %v145
  %v1336 = vunpack.c.h.b16 %v145
  %v1337 = vunpack.c.l.b16 %v146
  %v1338 = vunpack.c.h.b16 %v146
  %v1339 = vunpack.c.l.b16 %v147
  %v1340 = vunpack.c.h.b16 %v147
  %v1341 = vunpack.c.l.b16 %v148
  %v1342 = vunpack.c.h.b16 %v148
  %v1343 = vunpack.c.l.b16 %v149
  %v1344 = vunpack.c.h.b16 %v149
  %v1345 = vunpack.c.l.b16 %v150
  %v1346 = vunpack.c.h.b16 %v150
  %v1347 = vunpack.c.l.b16 %v151
  %v1348 = vunpack.c.h.b16 %v151
  %v1349 = vunpack.c.l.b16 %v152
  %v1350 = vunpack.c.h.b16 %v152
  %v1351 = vunpack.c.l.b16 %v153
  %v1352 = vunpack.c.h.b16 %v153
  %v1353 = vunpack.c.l.b16 %v154
  %v1354 = vunpack.c.h.b16 %v154
  %v1355 = vunpack.c.l.b16 %v155
  %v1356 = vunpack.c.h.b16 %v155
  %v1357 = vunpack.c.l.b16 %v156
  %v1358 = vunpack.c.h.b16 %v156
  %v1359 = vunpack.c.l.b16 %v157
  %v1360 = vunpack.c.h.b16 %v157
  %v1361 = vunpack.c.l.b16 %v158
  %v1362 = vunpack.c.h.b16 %v158
  %v1363 = vunpack.c.l.b16 %v159
  %v1364 = vunpack.c.h.b16 %v159
  %v1365 = vunpack.c.l.b16 %v160
  %v1366 = vunpack.c.h.b16 %v160
  %v1367 = vunpack.c.l.b16 %v161
  %v1368 = vunpack.c.h.b16 %v161
  %v1369 = vunpack.c.l.b16 %v162
  %v1370 = vunpack.c.h.b16 %v162
  %v1371 = vunpack.c.l.b16 %v163
  %v1372 = vunpack.c.h.b16 %v163
  %v1373 = vunpack.c.l.b16 %v164
  %v1374 = vunpack.c.h.b16 %v164
  %v1375 = vunpack.c.l.b16 %v165
  %v1376 = vunpack.c.h.b16 %v165
  %v1377 = vunpack.c.l.b16 %v166
  %v1378 = vunpack.c.h.b16 %v166
  %v1379 = vunpack.c.l.b16 %v167
  %v1380 = vunpack.c.h.b16 %v167
  %v1381 = vunpack.c.l.b16 %v168
  %v1382 = vunpack.c.h.b16 %v168
  %v1383 = vunpack.c.l.b16 %v169
  %v1384 = vunpack.c.h.b16 %v169
  %v1385 = vunpack.c.l.b16 %v170
  %v1386 = vunpack.c.h.b16 %v170
  %v1387 = vunpack.c.l.b16 %v171
  %v1388 = vunpack.c.h.b16 %v171
  %v1389 = vunpack.c.l.b16 %v172
  %v1390 = vunpack.c.h.b16 %v172
  %v1391 = vunpack.c.l.b16 %v173
  %v1392 = vunpack.c.h.b16 %v173
  %v1393 = vunpack.c.l.b16 %v174
  %v1394 = vunpack.c.h.b16 %v174
  %v1395 = vunpack.c.l.b16 %v175
  %v1396 = vunpack.c.h.b16 %v175
  %v1397 = vunpack.c.l.b16 %v176
  %v1398 = vunpack.c.h.b16 %v176
  %v1399 = vunpack.c.l.b16 %v177
  %v1400 = vunpack.c.h.b16 %v177
  %v1401 = vunpack.c.l.b16 %v178
  %v1402 = vunpack.c.h.b16 %v178
  %v1403 = vunpack.c.l.b16 %v179
  %v1404 = vunpack.c.h.b16 %v179
  %v1405 = vunpack.c.l.b16 %v180
  %v1406 = vunpack.c.h.b16 %v180
  %v1407 = vunpack.c.l.b16 %v181
  %v1408 = vunpack.c.h.b16 %v181
  %v1409 = vunpack.c.l.b16 %v182
  %v1410 = vunpack.c.h.b16 %v182
  %v1411 = vunpack.c.l.b16 %v183
  %v1412 = vunpack.c.h.b16 %v183
  %v1413 = vunpack.c.l.b16 %v184
  %v1414 = vunpack.c.h.b16 %v184
  %v1415 = vunpack.c.l.b16 %v185
  %v1416 = vunpack.c.h.b16 %v185
  %v1417 = vunpack.c.l.b16 %v186
  %v1418 = vunpack.c.h.b16 %v186
  %v1419 = vunpack.c.l.b16 %v187
  %v1420 = vunpack.c.h.b16 %v187
  %v1421 = vunpack.c.l.b16 %v188
  %v1422 = vunpack.c.h.b16 %v188
  %v1423 = vunpack.c.l.b16 %v189
  %v1424 = vunpack.c.h.b16 %v189
  %v1425 = vunpack.c.l.b16 %v190
  %v1426 = vunpack.c.h.b16 %v190
  %v1427 = vunpack.c.l.b16 %v191
  %v1428 = vunpack.c.h.b16 %v191
  %v1429 = vunpack.c.l.b16 %v192
  %v1430 = vunpack.c.h.b16 %v192
  %v1431 = vunpack.c.l.b16 %v193
  %v1432 = vunpack.c.h.b16 %v193
  %v1433 = vunpack.c.l.b16 %v194
  %v1434 = vunpack.c.h.b16 %v194
  %v1435 = vunpack.c.l.b16 %v195
  %v1436 = vunpack.c.h.b16 %v195
  %v1437 = vunpack.c.l.b16 %v196
  %v1438 = vunpack.c.h.b16 %v196
  %v1439 = vunpack.c.l.b16 %v197
  %v1440 = vunpack.c.h.b16 %v197
  %v1441 = vunpack.c.l.b16 %v198
  %v1442 = vunpack.c.h.b16 %v198
  %v1443 = vunpack.c.l.b16 %v199
  %v1444 = vunpack.c.h.b16 %v199
  %v1445 = vunpack.c.l.b16 %v200
  %v1446 = vunpack.c.h.b16 %v200
  %v1447 = vunpack.c.l.b16 %v201
  %v1448 = vunpack.c.h.b16 %v201
  %v1449 = vunpack.c.l.b16 %v202
  %v1450 = vunpack.c.h.b16 %v202
  %v1451 = vunpack.c.l.b16 %v203
  %v1452 = vunpack.c.h.b16 %v203
  %v1453 = vunpack.c.l.b16 %v204
  %v1454 = vunpack.c.h.b16 %v204
  %v1455 = vunpack.c.l.b16 %v205
  %v1456 = vunpack.c.h.b16 %v205
  %v1457 = vunpack.c.l.b16 %v206
  %v1458 = vunpack.c.h.b16 %v206
  %v1459 = vunpack.c.l.b16 %v207
  %v1460 = vunpack.c.h.b16 %v207
  %v1461 = vunpack.c.l.b16 %v208
  %v1462 = vunpack.c.h.b16 %v208
  %v1463 = vunpack.c.l.b16 %v209
  %v1464 = vunpack.c.h.b16 %v209
  %v1465 = vunpack.c.l.b16 %v210
  %v1466 = vunpack.c.h.b16 %v210
  %v1467 = vunpack.c.l.b16 %v211
  %v1468 = vunpack.c.h.b16 %v211
  %v1469 = vunpack.c.l.b16 %v212
  %v1470 = vunpack.c.h.b16 %v212
  %v1471 = vunpack.c.l.b16 %v213
  %v1472 = vunpack.c.h.b16 %v213
  %v1473 = vunpack.c.l.b16 %v214
  %v1474 = vunpack.c.h.b16 %v214
  %v1475 = vunpack.c.l.b16 %v215
  %v1476 = vunpack.c.h.b16 %v215
  %v1477 = vunpack.c.l.b16 %v216
  %v1478 = vunpack.c.h.b16 %v216
  %v1479 = vunpack.c.l.b16 %v217
  %v1480 = vunpack.c.h.b16 %v217
  %v1481 = vunpack.c.l.b16 %v218
  %v1482 = vunpack.c.h.b16 %v218
  %v1483 = vunpack.c.l.b16 %v219
  %v1484 = vunpack.c.h.b16 %v219
  %v1485 = vunpack.c.l.b16 %v220
  %v1486 = vunpack.c.h.b16 %v220
  %v1487 = vunpack.c.l.b16 %v221
  %v1488 = vunpack.c.h.b16 %v221
  %v1489 = vunpack.c.l.b16 %v222
  %v1490 = vunpack.c.h.b16 %v222
  %v1491 = vunpack.c.l.b16 %v223
  %v1492 = vunpack.c.h.b16 %v223
  %v1493 = vunpack.c.l.b16 %v224
  %v1494 = vunpack.c.h.b16 %v224
  %v1495 = vunpack.c.l.b16 %v225
  %v1496 = vunpack.c.h.b16 %v225
  %v1497 = vunpack.c.l.b16 %v226
  %v1498 = vunpack.c.h.b16 %v226
  %v1499 = vunpack.c.l.b16 %v227
  %v1500 = vunpack.c.h.b16 %v227
  %v1501 = vunpack.c.l.b16 %v228
  %v1502 = vunpack.c.h.b16 %v228
  %v1503 = vunpack.c.l.b16 %v229
  %v1504 = vunpack.c.h.b16 %v229
  %v1505 = vunpack.c.l.b16 %v230
  %v1506 = vunpack.c.h.b16 %v230
  %v1507 = vunpack.c.l.b16 %v231
  %v1508 = vunpack.c.h.b16 %v231
  %v1509 = vunpack.c.l.b16 %v232
  %v1510 = vunpack.c.h.b16 %v232
  %v1511 = vunpack.c.l.b16 %v233
  %v1512 = vunpack.c.h.b16 %v233
  %v1513 = vunpack.c.l.b16 %v234
  %v1514 = vunpack.c.h.b16 %v234
  %v1515 = vunpack.c.l.b16 %v235
  %v1516 = vunpack.c.h.b16 %v235
  %v1517 = vunpack.c.l.b16 %v236
  %v1518 = vunpack.c.h.b16 %v236
  %v1519 = vunpack.c.l.b16 %v237
  %v1520 = vunpack.c.h.b16 %v237
  %v1521 = vunpack.c.l.b16 %v238
  %v1522 = vunpack.c.h.b16 %v238
  %v1523 = vunpack.c.l.b16 %v239
  %v1524 = vunpack.c.h.b16 %v239
  %v1525 = vunpack.c.l.b16 %v240
  %v1526 = vunpack.c.h.b16 %v240
  %v1527 = vunpack.c.l.b16 %v241
  %v1528 = vunpack.c.h.b16 %v241
  %v1529 = vunpack.c.l.b16 %v242
  %v1530 = vunpack.c.h.b16 %v242
  %v1531 = vunpack.c.l.b16 %v243
  %v1532 = vunpack.c.h.b16 %v243
  %v1533 = vunpack.c.l.b16 %v244
  %v1534 = vunpack.c.h.b16 %v244
  %v1535 = vunpack.c.l.b16 %v245
  %v1536 = vunpack.c.h.b16 %v245
  %v1537 = vunpack.c.l.b16 %v246
  %v1538 = vunpack.c.h.b16 %v246
  %v1539 = vunpack.c.l.b16 %v247
  %v1540 = vunpack.c.h.b16 %v247
  %v1541 = vunpack.c.l.b16 %v248
  %v1542 = vunpack.c.h.b16 %v248
  %v1543 = vunpack.c.l.b16 %v249
  %v1544 = vunpack.c.h.b16 %v249
  %v1545 = vunpack.c.l.b16 %v250
  %v1546 = vunpack.c.h.b16 %v250
  %v1547 = vunpack.c.l.b16 %v251
  %v1548 = vunpack.c.h.b16 %v251
  %v1549 = vunpack.c.l.b16 %v252
  %v1550 = vunpack.c.h.b16 %v252
  %v1551 = vunpack.c.l.b16 %v253
  %v1552 = vunpack.c.h.b16 %v253
  %v1553 = vunpack.c.l.b16 %v254
  %v1554 = vunpack.c.h.b16 %v254
  %v1555 = vunpack.c.l.b16 %v255
  %v1556 = vunpack.c.h.b16 %v255
  %v1557 = vunpack.c.l.b16 %v256
  %v1558 = vunpack.c.h.b16 %v256
  %v1559 = vunpack.c.l.b16 %v257
  %v1560 = vunpack.c.h.b16 %v257
  %v1561 = vunpack.c.l.b16 %v258
  %v1562 = vunpack.c.h.b16 %v258
  %v1563 = vunpack.c.l.b16 %v259
  %v1564 = vunpack.c.h.b16 %v259
  %v1565 = vunpack.c.l.b16 %v260
  %v1566 = vunpack.c.h.b16 %v260
  %v1567 = vunpack.c.l.b16 %v261
  %v1568 = vunpack.c.h.b16 %v261
  %v1569 = vunpack.c.l.b16 %v262
  %v1570 = vunpack.c.h.b16 %v262
  %v1571 = vunpack.c.l.b16 %v263
  %v1572 = vunpack.c.h.b16 %v263
  %v1573 = vunpack.c.l.b16 %v264
  %v1574 = vunpack.c.h.b16 %v264
  %v1575 = vunpack.c.l.b16 %v265
  %v1576 = vunpack.c.h.b16 %v265
  %v1577 = vunpack.c.l.b16 %v266
  %v1578 = vunpack.c.h.b16 %v266
  %v1579 = vunpack.c.l.b16 %v267
  %v1580 = vunpack.c.h.b16 %v267
  %v1581 = vunpack.c.l.b16 %v268
  %v1582 = vunpack.c.h.b16 %v268
  %v1583 = vunpack.c.l.b16 %v269
  %v1584 = vunpack.c.h.b16 %v269
  %v1585 = vunpack.c.l.b16 %v270
  %v1586 = vunpack.c.h.b16 %v270
  %v1587 = vunpack.c.l.b16 %v271
  %v1588 = vunpack.c.h.b16 %v271
  %v1589 = vunpack.c.l.b16 %v272
  %v1590 = vunpack.c.h.b16 %v272
  %v1591 = vunpack.c.l.b16 %v273
  %v1592 = vunpack.c.h.b16 %v273
  %v1593 = vunpack.c.l.b16 %v274
  %v1594 = vunpack.c.h.b16 %v274
  %v1595 = vunpack.c.l.b16 %v275
  %v1596 = vunpack.c.h.b16 %v275
  %v1597 = vunpack.c.l.b16 %v276
  %v1598 = vunpack.c.h.b16 %v276
  %v1599 = vunpack.c.l.b16 %v277
  %v1600 = vunpack.c.h.b16 %v277
  %v1601 = vunpack.c.l.b16 %v278
  %v1602 = vunpack.c.h.b16 %v278
  %v1603 = vunpack.c.l.b16 %v279
  %v1604 = vunpack.c.h.b16 %v279
  %v1605 = vunpack.c.l.b16 %v280
  %v1606 = vunpack.c.h.b16 %v280
  %v1607 = vunpack.c.l.b16 %v281
  %v1608 = vunpack.c.h.b16 %v281
  %v1609 = vunpack.c.l.b16 %v282
  %v1610 = vunpack.c.h.b16 %v282
  %v1611 = vunpack.c.l.b16 %v283
  %v1612 = vunpack.c.h.b16 %v283
  %v1613 = vunpack.c.l.b16 %v284
  %v1614 = vunpack.c.h.b16 %v284
  %v1615 = vunpack.c.l.b16 %v285
  %v1616 = vunpack.c.h.b16 %v285
  %v1617 = vunpack.c.l.b16 %v286
  %v1618 = vunpack.c.h.b16 %v286
  %v1619 = vunpack.c.l.b16 %v287
  %v1620 = vunpack.c.h.b16 %v287
  %v1621 = vunpack.c.l.b16 %v288
  %v1622 = vunpack.c.h.b16 %v288
  %v1623 = vunpack.c.l.b16 %v289
  %v1624 = vunpack.c.h.b16 %v289
  %v1625 = vunpack.c.l.b16 %v290
  %v1626 = vunpack.c.h.b16 %v290
  %v1627 = vunpack.c.l.b16 %v291
  %v1628 = vunpack.c.h.b16 %v291
  %v1629 = vunpack.c.l.b16 %v292
  %v1630 = vunpack.c.h.b16 %v292
  %v1631 = vunpack.c.l.b16 %v293
  %v1632 = vunpack.c.h.b16 %v293
  %v1633 = vunpack.c.l.b16 %v294
  %v1634 = vunpack.c.h.b16 %v294
  %v1635 = vunpack.c.l.b16 %v295
  %v1636 = vunpack.c.h.b16 %v295
  %v1637 = vunpack.c.l.b16 %v296
  %v1638 = vunpack.c.h.b16 %v296
  %v1639 = vunpack.c.l.b16 %v297
  %v1640 = vunpack.c.h.b16 %v297
  %v1641 = vunpack.c.l.b16 %v298
  %v1642 = vunpack.c.h.b16 %v298
  %v1643 = vunpack.c.l.b16 %v299
  %v1644 = vunpack.c.h.b16 %v299
  %v1645 = vunpack.c.l.b16 %v300
  %v1646 = vunpack.c.h.b16 %v300
  %v1647 = vunpack.c.l.b16 %v301
  %v1648 = vunpack.c.h.b16 %v301
  %v1649 = vunpack.c.l.b16 %v302
  %v1650 = vunpack.c.h.b16 %v302
  %v1651 = vunpack.c.l.b16 %v303
  %v1652 = vunpack.c.h.b16 %v303
  %v1653 = vunpack.c.l.b16 %v304
  %v1654 = vunpack.c.h.b16 %v304
  %v1655 = vunpack.c.l.b16 %v305
  %v1656 = vunpack.c.h.b16 %v305
  %v1657 = vunpack.c.l.b16 %v306
  %v1658 = vunpack.c.h.b16 %v306
  %v1659 = vunpack.c.l.b16 %v307
  %v1660 = vunpack.c.h.b16 %v307
  %v1661 = vunpack.c.l.b16 %v308
  %v1662 = vunpack.c.h.b16 %v308
  %v1663 = vunpack.c.l.b16 %v309
  %v1664 = vunpack.c.h.b16 %v309
  %v1665 = vunpack.c.l.b16 %v310
  %v1666 = vunpack.c.h.b16 %v310
  %v1667 = vunpack.c.l.b16 %v311
  %v1668 = vunpack.c.h.b16 %v311
  %v1669 = vunpack.c.l.b16 %v312
  %v1670 = vunpack.c.h.b16 %v312
  %v1671 = vunpack.c.l.b16 %v313
  %v1672 = vunpack.c.h.b16 %v313
  %v1673 = vunpack.c.l.b16 %v314
  %v1674 = vunpack.c.h.b16 %v314
  %v1675 = vunpack.c.l.b16 %v315
  %v1676 = vunpack.c.h.b16 %v315
  %v1677 = vunpack.c.l.b16 %v316
  %v1678 = vunpack.c.h.b16 %v316
  %v1679 = vunpack.c.l.b16 %v317
  %v1680 = vunpack.c.h.b16 %v317
  %v1681 = vunpack.c.l.b16 %v318
  %v1682 = vunpack.c.h.b16 %v318
  %v1683 = vunpack.c.l.b16 %v319
  %v1684 = vunpack.c.h.b16 %v319
  %v1685 = vunpack.c.l.b16 %v320
  %v1686 = vunpack.c.h.b16 %v320
  %v1687 = vunpack.c.l.b16 %v321
  %v1688 = vunpack.c.h.b16 %v321
  %v1689 = vunpack.c.l.b16 %v322
  %v1690 = vunpack.c.h.b16 %v322
  %v1691 = vunpack.c.l.b16 %v323
  %v1692 = vunpack.c.h.b16 %v323
  %v1693 = vunpack.c.l.b16 %v324
  %v1694 = vunpack.c.h.b16 %v324
  %v1695 = vunpack.c.l.b16 %v325
  %v1696 = vunpack.c.h.b16 %v325
  %v1697 = vunpack.c.l.b16 %v326
  %v1698 = vunpack.c.h.b16 %v326
  %v1699 = vunpack.c.l.b16 %v327
  %v1700 = vunpack.c.h.b16 %v327
  %v1701 = vunpack.c.l.b16 %v328
  %v1702 = vunpack.c.h.b16 %v328
  %v1703 = vunpack.c.l.b16 %v329
  %v1704 = vunpack.c.h.b16 %v329
  %v1705 = vunpack.c.l.b16 %v330
  %v1706 = vunpack.c.h.b16 %v330
  %v1707 = vunpack.c.l.b16 %v331
  %v1708 = vunpack.c.h.b16 %v331
  %v1709 = vunpack.c.l.b16 %v332
  %v1710 = vunpack.c.h.b16 %v332
  %v1711 = vunpack.c.l.b16 %v333
  %v1712 = vunpack.c.h.b16 %v333
  %v1713 = vunpack.c.l.b16 %v334
  %v1714 = vunpack.c.h.b16 %v334
  %v1715 = vunpack.c.l.b16 %v335
  %v1716 = vunpack.c.h.b16 %v335
  %v1717 = vunpack.c.l.b16 %v336
  %v1718 = vunpack.c.h.b16 %v336
  %v1719 = vunpack.c.l.b16 %v337
  %v1720 = vunpack.c.h.b16 %v337
  %v1721 = vunpack.c.l.b16 %v338
  %v1722 = vunpack.c.h.b16 %v338
  %v1723 = vunpack.c.l.b16 %v339
  %v1724 = vunpack.c.h.b16 %v339
  %v1725 = vunpack.c.l.b16 %v340
  %v1726 = vunpack.c.h.b16 %v340
  %v1727 = vunpack.c.l.b16 %v341
  %v1728 = vunpack.c.h.b16 %v341
  %v1729 = vunpack.c.l.b16 %v342
  %v1730 = vunpack.c.h.b16 %v342
  %v1731 = vunpack.c.l.b16 %v343
  %v1732 = vunpack.c.h.b16 %v343
  %v1733 = vunpack.c.l.b16 %v344
  %v1734 = vunpack.c.h.b16 %v344
  %v1735 = vunpack.c.l.b16 %v345
  %v1736 = vunpack.c.h.b16 %v345
  %v1737 = vunpack.c.l.b16 %v346
  %v1738 = vunpack.c.h.b16 %v346
  %v1739 = vunpack.c.l.b16 %v347
  %v1740 = vunpack.c.h.b16 %v347
  %v1741 = vunpack.c.l.b16 %v348
  %v1742 = vunpack.c.h.b16 %v348
  %v1743 = vunpack.c.l.b16 %v349
  %v1744 = vunpack.c.h.b16 %v349
  %v1745 = vunpack.c.l.b16 %v350
  %v1746 = vunpack.c.h.b16 %v350
  %v1747 = vunpack.c.l.b16 %v351
  %v1748 = vunpack.c.h.b16 %v351
  %v1749 = vunpack.c.l.b16 %v352
  %v1750 = vunpack.c.h.b16 %v352
  %v1751 = vunpack.c.l.b16 %v353
  %v1752 = vunpack.c.h.b16 %v353
  %v1753 = vunpack.c.l.b16 %v354
  %v1754 = vunpack.c.h.b16 %v354
  %v1755 = vunpack.c.l.b16 %v355
  %v1756 = vunpack.c.h.b16 %v355
  %v1757 = vunpack.c.l.b16 %v356
  %v1758 = vunpack.c.h.b16 %v356
  %v1759 = vunpack.c.l.b16 %v357
  %v1760 = vunpack.c.h.b16 %v357
  %v1761 = vunpack.c.l.b16 %v358
  %v1762 = vunpack.c.h.b16 %v358
  %v1763 = vunpack.c.l.b16 %v359
  %v1764 = vunpack.c.h.b16 %v359
  %v1765 = vunpack.c.l.b16 %v360
  %v1766 = vunpack.c.h.b16 %v360
  %v1767 = vunpack.c.l.b16 %v361
  %v1768 = vunpack.c.h.b16 %v361
  %v1769 = vunpack.c.l.b16 %v362
  %v1770 = vunpack.c.h.b16 %v362
  %v1771 = vunpack.c.l.b16 %v363
  %v1772 = vunpack.c.h.b16 %v363
  %v1773 = vunpack.c.l.b16 %v364
  %v1774 = vunpack.c.h.b16 %v364
  %v1775 = vunpack.c.l.b16 %v365
  %v1776 = vunpack.c.h.b16 %v365
  %v1777 = vunpack.c.l.b16 %v366
  %v1778 = vunpack.c.h.b16 %v366
  %v1779 = vunpack.c.l.b16 %v367
  %v1780 = vunpack.c.h.b16 %v367
  %v1781 = vunpack.c.l.b16 %v368
  %v1782 = vunpack.c.h.b16 %v368
  %v1783 = vunpack.c.l.b16 %v369
  %v1784 = vunpack.c.h.b16 %v369
  %v1785 = vunpack.c.l.b16 %v370
  %v1786 = vunpack.c.h.b16 %v370
  %v1787 = vunpack.c.l.b16 %v371
  %v1788 = vunpack.c.h.b16 %v371
  %v1789 = vunpack.c.l.b16 %v372
  %v1790 = vunpack.c.h.b16 %v372
  %v1791 = vunpack.c.l.b16 %v373
  %v1792 = vunpack.c.h.b16 %v373
  %v1793 = vunpack.c.l.b16 %v374
  %v1794 = vunpack.c.h.b16 %v374
  %v1795 = vunpack.c.l.b16 %v375
  %v1796 = vunpack.c.h.b16 %v375
  %v1797 = vunpack.c.l.b16 %v376
  %v1798 = vunpack.c.h.b16 %v376
  %v1799 = vunpack.c.l.b16 %v377
  %v1800 = vunpack.c.h.b16 %v377
  %v1801 = vunpack.c.l.b16 %v378
  %v1802 = vunpack.c.h.b16 %v378
  %v1803 = vunpack.c.l.b16 %v379
  %v1804 = vunpack.c.h.b16 %v379
  %v1805 = vunpack.c.l.b16 %v380
  %v1806 = vunpack.c.h.b16 %v380
  %v1807 = vunpack.c.l.b16 %v381
  %v1808 = vunpack.c.h.b16 %v381
  %v1809 = vunpack.c.l.b16 %v382
  %v1810 = vunpack.c.h.b16 %v382
  %v1811 = vunpack.c.l.b16 %v383
  %v1812 = vunpack.c.h.b16 %v383
  %v1813 = vunpack.c.l.b16 %v384
  %v1814 = vunpack.c.h.b16 %v384
  %v1815 = vunpack.c.l.b16 %v385
  %v1816 = vunpack.c.h.b16 %v385
  %v1817 = vunpack.c.l.b16 %v386
  %v1818 = vunpack.c.h.b16 %v386
  %v1819 = vunpack.c.l.b16 %v387
  %v1820 = vunpack.c.h.b16 %v387
  %v1821 = vunpack.c.l.b16 %v388
  %v1822 = vunpack.c.h.b16 %v388
  %v1823 = vunpack.c.l.b16 %v389
  %v1824 = vunpack.c.h.b16 %v389
  %v1825 = vunpack.c.l.b16 %v390
  %v1826 = vunpack.c.h.b16 %v390
  %v1827 = vunpack.c.l.b16 %v391
  %v1828 = vunpack.c.h.b16 %v391
  %v1829 = vunpack.c.l.b16 %v392
  %v1830 = vunpack.c.h.b16 %v392
  %v1831 = vunpack.c.l.b16 %v393
  %v1832 = vunpack.c.h.b16 %v393
  %v1833 = vunpack.c.l.b16 %v394
  %v1834 = vunpack.c.h.b16 %v394
  %v1835 = vunpack.c.l.b16 %v395
  %v1836 = vunpack.c.h.b16 %v395
  %v1837 = vunpack.c.l.b16 %v396
  %v1838 = vunpack.c.h.b16 %v396
  %v1839 = vunpack.c.l.b16 %v397
  %v1840 = vunpack.c.h.b16 %v397
  %v1841 = vunpack.c.l.b16 %v398
  %v1842 = vunpack.c.h.b16 %v398
  %v1843 = vunpack.c.l.b16 %v399
  %v1844 = vunpack.c.h.b16 %v399
  %v1845 = vunpack.c.l.b16 %v400
  %v1846 = vunpack.c.h.b16 %v400
  %v1847 = vunpack.c.l.b16 %v401
  %v1848 = vunpack.c.h.b16 %v401
  %v1849 = vunpack.c.l.b16 %v402
  %v1850 = vunpack.c.h.b16 %v402
  %v1851 = vunpack.c.l.b16 %v403
  %v1852 = vunpack.c.h.b16 %v403
  %v1853 = vunpack.c.l.b16 %v404
  %v1854 = vunpack.c.h.b16 %v404
  %v1855 = vunpack.c.l.b16 %v405
  %v1856 = vunpack.c.h.b16 %v405
  %v1857 = vunpack.c.l.b16 %v406
  %v1858 = vunpack.c.h.b16 %v406
  %v1859 = vunpack.c.l.b16 %v407
  %v1860 = vunpack.c.h.b16 %v407
  %v1861 = vunpack.c.l.b16 %v408
  %v1862 = vunpack.c.h.b16 %v408
  %v1863 = vunpack.c.l.b16 %v409
  %v1864 = vunpack.c.h.b16 %v409
  %v1865 = vunpack.c.l.b16 %v410
  %v1866 = vunpack.c.h.b16 %v410
  %v1867 = vunpack.c.l.b16 %v411
  %v1868 = vunpack.c.h.b16 %v411
  %v1869 = vunpack.c.l.b16 %v412
  %v1870 = vunpack.c.h.b16 %v412
  %v1871 = vunpack.c.l.b16 %v413
  %v1872 = vunpack.c.h.b16 %v413
  %v1873 = vunpack.c.l.b16 %v414
  %v1874 = vunpack.c.h.b16 %v414
  %v1875 = vunpack.c.l.b16 %v415
  %v1876 = vunpack.c.h.b16 %v415
  %v1877 = vunpack.c.l.b16 %v416
  %v1878 = vunpack.c.h.b16 %v416
  %v1879 = vunpack.c.l.b16 %v417
  %v1880 = vunpack.c.h.b16 %v417
  %v1881 = vunpack.c.l.b16 %v418
  %v1882 = vunpack.c.h.b16 %v418
  %v1883 = vunpack.c.l.b16 %v419
  %v1884 = vunpack.c.h.b16 %v419
  %v1885 = vunpack.c.l.b16 %v420
  %v1886 = vunpack.c.h.b16 %v420
  %v1887 = vunpack.c.l.b16 %v421
  %v1888 = vunpack.c.h.b16 %v421
  %v1889 = vunpack.c.l.b16 %v422
  %v1890 = vunpack.c.h.b16 %v422
  %v1891 = vunpack.c.l.b16 %v423
  %v1892 = vunpack.c.h.b16 %v423
  %v1893 = vunpack.c.l.b16 %v424
  %v1894 = vunpack.c.h.b16 %v424
  %v1895 = vunpack.c.l.b16 %v425
  %v1896 = vunpack.c.h.b16 %v425
  %v1897 = vunpack.c.l.b16 %v426
  %v1898 = vunpack.c.h.b16 %v426
  %v1899 = vunpack.c.l.b16 %v427
  %v1900 = vunpack.c.h.b16 %v427
  %v1901 = vunpack.c.l.b16 %v428
  %v1902 = vunpack.c.h.b16 %v428
  %v1903 = vunpack.c.l.b16 %v429
  %v1904 = vunpack.c.h.b16 %v429
  %v1905 = vunpack.c.l.b16 %v430
  %v1906 = vunpack.c.h.b16 %v430
  %v1907 = vunpack.c.l.b16 %v431
  %v1908 = vunpack.c.h.b16 %v431
  %v1909 = vunpack.c.l.b16 %v432
  %v1910 = vunpack.c.h.b16 %v432
  %v1911 = vunpack.c.l.b16 %v433
  %v1912 = vunpack.c.h.b16 %v433
  %v1913 = vunpack.c.l.b16 %v434
  %v1914 = vunpack.c.h.b16 %v434
  %v1915 = vunpack.c.l.b16 %v435
  %v1916 = vunpack.c.h.b16 %v435
  %v1917 = vunpack.c.l.b16 %v436
  %v1918 = vunpack.c.h.b16 %v436
  %v1919 = vunpack.c.l.b16 %v437
  %v1920 = vunpack.c.h.b16 %v437
  %v1921 = vunpack.c.l.b16 %v438
  %v1922 = vunpack.c.h.b16 %v438
  %v1923 = vunpack.c.l.b16 %v439
  %v1924 = vunpack.c.h.b16 %v439
  %v1925 = vunpack.c.l.b16 %v440
  %v1926 = vunpack.c.h.b16 %v440
  %v1927 = vunpack.c.l.b16 %v441
  %v1928 = vunpack.c.h.b16 %v441
  %v1929 = vunpack.c.l.b16 %v442
  %v1930 = vunpack.c.h.b16 %v442
  %v1931 = vunpack.c.l.b16 %v443
  %v1932 = vunpack.c.h.b16 %v443
  %v1933 = vunpack.c.l.b16 %v444
  %v1934 = vunpack.c.h.b16 %v444
  %v1935 = vunpack.c.l.b16 %v445
  %v1936 = vunpack.c.h.b16 %v445
  %v1937 = vunpack.c.l.b16 %v446
  %v1938 = vunpack.c.h.b16 %v446
  %v1939 = vunpack.c.l.b16 %v447
  %v1940 = vunpack.c.h.b16 %v447
  %v1941 = vunpack.c.l.b16 %v448
  %v1942 = vunpack.c.h.b16 %v448
  %v1943 = vunpack.c.l.b16 %v449
  %v1944 = vunpack.c.h.b16 %v449
  %v1945 = vunpack.c.l.b16 %v450
  %v1946 = vunpack.c.h.b16 %v450
  %v1947 = vunpack.c.l.b16 %v451
  %v1948 = vunpack.c.h.b16 %v451
  %v1949 = vunpack.c.l.b16 %v452
  %v1950 = vunpack.c.h.b16 %v452
  %v1951 = vunpack.c.l.b16 %v453
  %v1952 = vunpack.c.h.b16 %v453
  %v1953 = vunpack.c.l.b16 %v454
  %v1954 = vunpack.c.h.b16 %v454
  %v1955 = vunpack.c.l.b16 %v455
  %v1956 = vunpack.c.h.b16 %v455
  %v1957 = vunpack.c.l.b16 %v456
  %v1958 = vunpack.c.h.b16 %v456
  %v1959 = vunpack.c.l.b16 %v457
  %v1960 = vunpack.c.h.b16 %v457
  %v1961 = vunpack.c.l.b16 %v458
  %v1962 = vunpack.c.h.b16 %v458
  %v1963 = vunpack.c.l.b16 %v459
  %v1964 = vunpack.c.h.b16 %v459
  %v1965 = vunpack.c.l.b16 %v460
  %v1966 = vunpack.c.h.b16 %v460
  %v1967 = vunpack.c.l.b16 %v461
  %v1968 = vunpack.c.h.b16 %v461
  %v1969 = vunpack.c.l.b16 %v462
  %v1970 = vunpack.c.h.b16 %v462
  %v1971 = vunpack.c.l.b16 %v463
  %v1972 = vunpack.c.h.b16 %v463
  %v1973 = vunpack.c.l.b16 %v464
  %v1974 = vunpack.c.h.b16 %v464
  %v1975 = vunpack.c.l.b16 %v465
  %v1976 = vunpack.c.h.b16 %v465
  %v1977 = vunpack.c.l.b16 %v466
  %v1978 = vunpack.c.h.b16 %v466
  %v1979 = vunpack.c.l.b16 %v467
  %v1980 = vunpack.c.h.b16 %v467
  %v1981 = vunpack.c.l.b16 %v468
  %v1982 = vunpack.c.h.b16 %v468
  %v1983 = vunpack.c.l.b16 %v469
  %v1984 = vunpack.c.h.b16 %v469
  %v1985 = vunpack.c.l.b16 %v470
  %v1986 = vunpack.c.h.b16 %v470
  %v1987 = vunpack.c.l.b16 %v471
  %v1988 = vunpack.c.h.b16 %v471
  %v1989 = vunpack.c.l.b16 %v472
  %v1990 = vunpack.c.h.b16 %v472
  %v1991 = vunpack.c.l.b16 %v473
  %v1992 = vunpack.c.h.b16 %v473
  %v1993 = vunpack.c.l.b16 %v474
  %v1994 = vunpack.c.h.b16 %v474
  %v1995 = vunpack.c.l.b16 %v475
  %v1996 = vunpack.c.h.b16 %v475
  %v1997 = vunpack.c.l.b16 %v476
  %v1998 = vunpack.c.h.b16 %v476
  %v1999 = vunpack.c.l.b16 %v477
  %v2000 = vunpack.c.h.b16 %v477
  %v2001 = vunpack.c.l.b16 %v478
  %v2002 = vunpack.c.h.b16 %v478
  %v2003 = vunpack.c.l.b16 %v479
  %v2004 = vunpack.c.h.b16 %v479
  %v2005 = vunpack.c.l.b16 %v480
  %v2006 = vunpack.c.h.b16 %v480
  %v2007 = vunpack.c.l.b16 %v481
  %v2008 = vunpack.c.h.b16 %v481
  %v2009 = vunpack.c.l.b16 %v482
  %v2010 = vunpack.c.h.b16 %v482
  %v2011 = vunpack.c.l.b16 %v483
  %v2012 = vunpack.c.h.b16 %v483
  %v2013 = vunpack.c.l.b16 %v484
  %v2014 = vunpack.c.h.b16 %v484
  %v2015 = vunpack.c.l.b16 %v485
  %v2016 = vunpack.c.h.b16 %v485
  %v2017 = vunpack.c.l.b16 %v486
  %v2018 = vunpack.c.h.b16 %v486
  %v2019 = vunpack.c.l.b16 %v487
  %v2020 = vunpack.c.h.b16 %v487
  %v2021 = vpack.c.b16 %v1159, %v1157
  %v2022 = vpack.c.b16 %v1160, %v1158
  %v2023 = vpack.c.b16 %v1163, %v1161
  %v2024 = vpack.c.b16 %v1164, %v1162
  %v2025 = vpack.c.b16 %v1167, %v1165
  %v2026 = vpack.c.b16 %v1168, %v1166
  %v2027 = vpack.c.b16 %v1171, %v1169
  %v2028 = vpack.c.b16 %v1172, %v1170
  %v2029 = vpack.c.b16 %v1175, %v1173
  %v2030 = vpack.c.b16 %v1176, %v1174
  %v2031 = vpack.c.b16 %v1179, %v1177
  %v2032 = vpack.c.b16 %v1180, %v1178
  %v2033 = vpack.c.b16 %v1183, %v1181
  %v2034 = vpack.c.b16 %v1184, %v1182
  %v2035 = vpack.c.b16 %v1187, %v1185
  %v2036 = vpack.c.b16 %v1188, %v1186
  %v2037 = vpack.c.b16 %v1191, %v1189
  %v2038 = vpack.c.b16 %v1192, %v1190
  %v2039 = vpack.c.b16 %v1195, %v1193
  %v2040 = vpack.c.b16 %v1196, %v1194
  %v2041 = vpack.c.b16 %v1199, %v1197
  %v2042 = vpack.c.b16 %v1200, %v1198
  %v2043 = vpack.c.b16 %v1203, %v1201
  %v2044 = vpack.c.b16 %v1204, %v1202
  %v2045 = vpack.c.b16 %v1207, %v1205
  %v2046 = vpack.c.b16 %v1208, %v1206
  %v2047 = vpack.c.b16 %v1211, %v1209
  %v2048 = vpack.c.b16 %v1212, %v1210
  %v2049 = vpack.c.b16 %v1215, %v1213
  %v2050 = vpack.c.b16 %v1216, %v1214
  %v2051 = vpack.c.b16 %v1219, %v1217
  %v2052 = vpack.c.b16 %v1220, %v1218
  %v2053 = vpack.c.b16 %v1223, %v1221
  %v2054 = vpack.c.b16 %v1224, %v1222
  %v2055 = vpack.c.b16 %v1227, %v1225
  %v2056 = vpack.c.b16 %v1228, %v1226
  %v2057 = vpack.c.b16 %v1231, %v1229
  %v2058 = vpack.c.b16 %v1232, %v1230
  %v2059 = vpack.c.b16 %v1235, %v1233
  %v2060 = vpack.c.b16 %v1236, %v1234
  %v2061 = vpack.c.b16 %v1239, %v1237
  %v2062 = vpack.c.b16 %v1240, %v1238
  %v2063 = vpack.c.b16 %v1243, %v1241
  %v2064 = vpack.c.b16 %v1244, %v1242
  %v2065 = vpack.c.b16 %v1247, %v1245
  %v2066 = vpack.c.b16 %v1248, %v1246
  %v2067 = vpack.c.b16 %v1251, %v1249
  %v2068 = vpack.c.b16 %v1252, %v1250
  %v2069 = vpack.c.b16 %v1255, %v1253
  %v2070 = vpack.c.b16 %v1256, %v1254
  %v2071 = vpack.c.b16 %v1259, %v1257
  %v2072 = vpack.c.b16 %v1260, %v1258
  %v2073 = vpack.c.b16 %v1263, %v1261
  %v2074 = vpack.c.b16 %v1264, %v1262
  %v2075 = vpack.c.b16 %v1267, %v1265
  %v2076 = vpack.c.b16 %v1268, %v1266
  %v2077 = vpack.c.b16 %v1271, %v1269
  %v2078 = vpack.c.b16 %v1272, %v1270
  %v2079 = vpack.c.b16 %v1275, %v1273
  %v2080 = vpack.c.b16 %v1276, %v1274
  %v2081 = vpack.c.b16 %v1279, %v1277
  %v2082 = vpack.c.b16 %v1280, %v1278
  %v2083 = vpack.c.b16 %v1283, %v1281
  %v2084 = vpack.c.b16 %v1284, %v1282
  %v2085 = vpack.c.b16 %v1287, %v1285
  %v2086 = vpack.c.b16 %v1288, %v1286
  %v2087 = vpack.c.b16 %v1291, %v1289
  %v2088 = vpack.c.b16 %v1292, %v1290
  %v2089 = vpack.c.b16 %v1295, %v1293
  %v2090 = vpack.c.b16 %v1296, %v1294
  %v2091 = vpack.c.b16 %v1299, %v1297
  %v2092 = vpack.c.b16 %v1300, %v1298
  %v2093 = vpack.c.b16 %v1303, %v1301
  %v2094 = vpack.c.b16 %v1304, %v1302
  %v2095 = vpack.c.b16 %v1307, %v1305
  %v2096 = vpack.c.b16 %v1308, %v1306
  %v2097 = vpack.c.b16 %v1311, %v1309
  %v2098 = vpack.c.b16 %v1312, %v1310
  %v2099 = vpack.c.b16 %v1315, %v1313
  %v2100 = vpack.c.b16 %v1316, %v1314
  %v2101 = vpack.c.b16 %v1319, %v1317
  %v2102 = vpack.c.b16 %v1320, %v1318
  %v2103 = vpack.c.b16 %v1323, %v1321
  %v2104 = vpack.c.b16 %v1324, %v1322
  %v2105 = vpack.c.b16 %v1327, %v1325
  %v2106 = vpack.c.b16 %v1328, %v1326
  %v2107 = vpack.c.b16 %v1331, %v1329
  %v2108 = vpack.c.b16 %v1332, %v1330
  %v2109 = vpack.c.b16 %v1335, %v1333
  %v2110 = vpack.c.b16 %v1336, %v1334
  %v2111 = vpack.c.b16 %v1339, %v1337
  %v2112 = vpack.c.b16 %v1340, %v1338
  %v2113 = vpack.c.b16 %v1343, %v1341
  %v2114 = vpack.c.b16 %v1344, %v1342
  %v2115 = vpack.c.b16 %v1347, %v1345
  %v2116 = vpack.c.b16 %v1348, %v1346
  %v2117 = vpack.c.b16 %v1351, %v1349
  %v2118 = vpack.c.b16 %v1352, %v1350
  %v2119 = vpack.c.b16 %v1355, %v1353
  %v2120 = vpack.c.b16 %v1356, %v1354
  %v2121 = vpack.c.b16 %v1359, %v1357
  %v2122 = vpack.c.b16 %v1360, %v1358
  %v2123 = vpack.c.b16 %v1363, %v1361
  %v2124 = vpack.c.b16 %v1364, %v1362
  %v2125 = vpack.c.b16 %v1367, %v1365
  %v2126 = vpack.c.b16 %v1368, %v1366
  %v2127 = vpack.c.b16 %v1371, %v1369
  %v2128 = vpack.c.b16 %v1372, %v1370
  %v2129 = vpack.c.b16 %v1375, %v1373
  %v2130 = vpack.c.b16 %v1376, %v1374
  %v2131 = vpack.c.b16 %v1379, %v1377
  %v2132 = vpack.c.b16 %v1380, %v1378
  %v2133 = vpack.c.b16 %v1383, %v1381
  %v2134 = vpack.c.b16 %v1384, %v1382
  %v2135 = vpack.c.b16 %v1387, %v1385
  %v2136 = vpack.c.b16 %v1388, %v1386
  %v2137 = vpack.c.b16 %v1391, %v1389
  %v2138 = vpack.c.b16 %v1392, %v1390
  %v2139 = vpack.c.b16 %v1395, %v1393
  %v2140 = vpack.c.b16 %v1396, %v1394
  %v2141 = vpack.c.b16 %v1399, %v1397
  %v2142 = vpack.c.b16 %v1400, %v1398
  %v2143 = vpack.c.b16 %v1403, %v1401
  %v2144 = vpack.c.b16 %v1404, %v1402
  %v2145 = vpack.c.b16 %v1407, %v1405
  %v2146 = vpack.c.b16 %v1408, %v1406
  %v2147 = vpack.c.b16 %v1411, %v1409
  %v2148 = vpack.c.b16 %v1412, %v1410
  %v2149 = vpack.c.b16 %v1415, %v1413
  %v2150 = vpack.c.b16 %v1416, %v1414
  %v2151 = vpack.c.b16 %v1419, %v1417
  %v2152 = vpack.c.b16 %v1420, %v1418
  %v2153 = vpack.c.b16 %v1423, %v1421
  %v2154 = vpack.c.b16 %v1424, %v1422
  %v2155 = vpack.c.b16 %v1427, %v1425
  %v2156 = vpack.c.b16 %v1428, %v1426
  %v2157 = vpack.c.b16 %v1431, %v1429
  %v2158 = vpack.c.b16 %v1432, %v1430
  %v2159 = vpack.c.b16 %v1435, %v1433
  %v2160 = vpack.c.b16 %v1436, %v1434
  %v2161 = vpack.c.b16 %v1439, %v1437
  %v2162 = vpack.c.b16 %v1440, %v1438
  %v2163 = vpack.c.b16 %v1443, %v1441
  %v2164 = vpack.c.b16 %v1444, %v1442
  %v2165 = vpack.c.b16 %v1447, %v1445
  %v2166 = vpack.c.b16 %v1448, %v1446
  %v2167 = vpack.c.b16 %v1451, %v1449
  %v2168 = vpack.c.b16 %v1452, %v1450
  %v2169 = vpack.c.b16 %v1455, %v1453
  %v2170 = vpack.c.b16 %v1456, %v1454
  %v2171 = vpack.c.b16 %v1459, %v1457
  %v2172 = vpack.c.b16 %v1460, %v1458
  %v2173 = vpack.c.b16 %v1463, %v1461
  %v2174 = vpack.c.b16 %v1464, %v1462
  %v2175 = vpack.c.b16 %v1467, %v1465
  %v2176 = vpack.c.b16 %v1468, %v1466
  %v2177 = vpack.c.b16 %v1471, %v1469
  %v2178 = vpack.c.b16 %v1472, %v1470
  %v2179 = vpack.c.b16 %v1475, %v1473
  %v2180 = vpack.c.b16 %v1476, %v1474
  %v2181 = vpack.c.b16 %v1479, %v1477
  %v2182 = vpack.c.b16 %v1480, %v1478
  %v2183 = vpack.c.b16 %v1483, %v1481
  %v2184 = vpack.c.b16 %v1484, %v1482
  %v2185 = vpack.c.b16 %v1487, %v1485
  %v2186 = vpack.c.b16 %v1488, %v1486
  %v2187 = vpack.c.b16 %v1491, %v1489
  %v2188 = vpack.c.b16 %v1492, %v1490
  %v2189 = vpack.c.b16 %v1495, %v1493
  %v2190 = vpack.c.b16 %v1496, %v1494
  %v2191 = vpack.c.b16 %v1499, %v1497
  %v2192 = vpack.c.b16 %v1500, %v1498
  %v2193 = vpack.c.b16 %v1503, %v1501
  %v2194 = vpack.c.b16 %v1504, %v1502
  %v2195 = vpack.c.b16 %v1507, %v1505
  %v2196 = vpack.c.b16 %v1508, %v1506
  %v2197 = vpack.c.b16 %v1511, %v1509
  %v2198 = vpack.c.b16 %v1512, %v1510
  %v2199 = vpack.c.b16 %v1515, %v1513
  %v2200 = vpack.c.b16 %v1516, %v1514
  %v2201 = vpack.c.b16 %v1519, %v1517
  %v2202 = vpack.c.b16 %v1520, %v1518
  %v2203 = vpack.c.b16 %v1523, %v1521
  %v2204 = vpack.c.b16 %v1524, %v1522
  %v2205 = vpack.c.b16 %v1527, %v1525
  %v2206 = vpack.c.b16 %v1528, %v1526
  %v2207 = vpack.c.b16 %v1531, %v1529
  %v2208 = vpack.c.b16 %v1532, %v1530
  %v2209 = vpack.c.b16 %v1535, %v1533
  %v2210 = vpack.c.b16 %v1536, %v1534
  %v2211 = vpack.c.b16 %v1539, %v1537
  %v2212 = vpack.c.b16 %v1540, %v1538
  %v2213 = vpack.c.b16 %v1543, %v1541
  %v2214 = vpack.c.b16 %v1544, %v1542
  %v2215 = vpack.c.b16 %v1547, %v1545
  %v2216 = vpack.c.b16 %v1548, %v1546
  %v2217 = vpack.c.b16 %v1551, %v1549
  %v2218 = vpack.c.b16 %v1552, %v1550
  %v2219 = vpack.c.b16 %v1555, %v1553
  %v2220 = vpack.c.b16 %v1556, %v1554
  %v2221 = vpack.c.b16 %v1559, %v1557
  %v2222 = vpack.c.b16 %v1560, %v1558
  %v2223 = vpack.c.b16 %v1563, %v1561
  %v2224 = vpack.c.b16 %v1564, %v1562
  %v2225 = vpack.c.b16 %v1567, %v1565
  %v2226 = vpack.c.b16 %v1568, %v1566
  %v2227 = vpack.c.b16 %v1571, %v1569
  %v2228 = vpack.c.b16 %v1572, %v1570
  %v2229 = vpack.c.b16 %v1575, %v1573
  %v2230 = vpack.c.b16 %v1576, %v1574
  %v2231 = vpack.c.b16 %v1579, %v1577
  %v2232 = vpack.c.b16 %v1580, %v1578
  %v2233 = vpack.c.b16 %v1583, %v1581
  %v2234 = vpack.c.b16 %v1584, %v1582
  %v2235 = vpack.c.b16 %v1587, %v1585
  %v2236 = vpack.c.b16 %v1588, %v1586
  %v2237 = vpack.c.b16 %v1591, %v1589
  %v2238 = vpack.c.b16 %v1592, %v1590
  %v2239 = vpack.c.b16 %v1595, %v1593
  %v2240 = vpack.c.b16 %v1596, %v1594
  %v2241 = vpack.c.b16 %v1599, %v1597
  %v2242 = vpack.c.b16 %v1600, %v1598
  %v2243 = vpack.c.b16 %v1603, %v1601
  %v2244 = vpack.c.b16 %v1604, %v1602
  %v2245 = vpack.c.b16 %v1607, %v1605
  %v2246 = vpack.c.b16 %v1608, %v1606
  %v2247 = vpack.c.b16 %v1611, %v1609
  %v2248 = vpack.c.b16 %v1612, %v1610
  %v2249 = vpack.c.b16 %v1615, %v1613
  %v2250 = vpack.c.b16 %v1616, %v1614
  %v2251 = vpack.c.b16 %v1619, %v1617
  %v2252 = vpack.c.b16 %v1620, %v1618
  %v2253 = vpack.c.b16 %v1623, %v1621
  %v2254 = vpack.c.b16 %v1624, %v1622
  %v2255 = vpack.c.b16 %v1627, %v1625
  %v2256 = vpack.c.b16 %v1628, %v1626
  %v2257 = vpack.c.b16 %v1631, %v1629
  %v2258 = vpack.c.b16 %v1632, %v1630
  %v2259 = vpack.c.b16 %v1635, %v1633
  %v2260 = vpack.c.b16 %v1636, %v1634
  %v2261 = vpack.c.b16 %v1639, %v1637
  %v2262 = vpack.c.b16 %v1640, %v1638
  %v2263 = vpack.c.b16 %v1643, %v1641
  %v2264 = vpack.c.b16 %v1644, %v1642
  %v2265 = vpack.c.b16 %v1647, %v1645
  %v2266 = vpack.c.b16 %v1648, %v1646
  %v2267 = vpack.c.b16 %v1651, %v1649
  %v2268 = vpack.c.b16 %v1652, %v1650
  %v2269 = vpack.c.b16 %v1655, %v1653
  %v2270 = vpack.c.b16 %v1656, %v1654
  %v2271 = vpack.c.b16 %v1659, %v1657
  %v2272 = vpack.c.b16 %v1660, %v1658
  %v2273 = vpack.c.b16 %v1663, %v1661
  %v2274 = vpack.c.b16 %v1664, %v1662
  %v2275 = vpack.c.b16 %v1667, %v1665
  %v2276 = vpack.c.b16 %v1668, %v1666
  %v2277 = vpack.c.b16 %v1671, %v1669
  %v2278 = vpack.c.b16 %v1672, %v1670
  %v2279 = vpack.c.b16 %v1675, %v1673
  %v2280 = vpack.c.b16 %v1676, %v1674
  %v2281 = vpack.c.b16 %v1679, %v1677
  %v2282 = vpack.c.b16 %v1680, %v1678
  %v2283 = vpack.c.b16 %v1683, %v1681
  %v2284 = vpack.c.b16 %v1684, %v1682
  %v2285 = vpack.c.b16 %v1687, %v1685
  %v2286 = vpack.c.b16 %v1688, %v1686
  %v2287 = vpack.c.b16 %v1691, %v1689
  %v2288 = vpack.c.b16 %v1692, %v1690
  %v2289 = vpack.c.b16 %v1695, %v1693
  %v2290 = vpack.c.b16 %v1696, %v1694
  %v2291 = vpack.c.b16 %v1699, %v1697
  %v2292 = vpack.c.b16 %v1700, %v1698
  %v2293 = vpack.c.b16 %v1703, %v1701
  %v2294 = vpack.c.b16 %v1704, %v1702
  %v2295 = vpack.c.b16 %v1707, %v1705
  %v2296 = vpack.c.b16 %v1708, %v1706
  %v2297 = vpack.c.b16 %v1711, %v1709
  %v2298 = vpack.c.b16 %v1712, %v1710
  %v2299 = vpack.c.b16 %v1715, %v1713
  %v2300 = vpack.c.b16 %v1716, %v1714
  %v2301 = vpack.c.b16 %v1719, %v1717
  %v2302 = vpack.c.b16 %v1720, %v1718
  %v2303 = vpack.c.b16 %v1723, %v1721
  %v2304 = vpack.c.b16 %v1724, %v1722
  %v2305 = vpack.c.b16 %v1727, %v1725
  %v2306 = vpack.c.b16 %v1728, %v1726
  %v2307 = vpack.c.b16 %v1731, %v1729
  %v2308 = vpack.c.b16 %v1732, %v1730
  %v2309 = vpack.c.b16 %v1735, %v1733
  %v2310 = vpack.c.b16 %v1736, %v1734
  %v2311 = vpack.c.b16 %v1739, %v1737
  %v2312 = vpack.c.b16 %v1740, %v1738
  %v2313 = vpack.c.b16 %v1743, %v1741
  %v2314 = vpack.c.b16 %v1744, %v1742
  %v2315 = vpack.c.b16 %v1747, %v1745
  %v2316 = vpack.c.b16 %v1748, %v1746
  %v2317 = vpack.c.b16 %v1751, %v1749
  %v2318 = vpack.c.b16 %v1752, %v1750
  %v2319 = vpack.c.b16 %v1755, %v1753
  %v2320 = vpack.c.b16 %v1756, %v1754
  %v2321 = vpack.c.b16 %v1759, %v1757
  %v2322 = vpack.c.b16 %v1760, %v1758
  %v2323 = vpack.c.b16 %v1763, %v1761
  %v2324 = vpack.c.b16 %v1764, %v1762
  %v2325 = vpack.c.b16 %v1767, %v1765
  %v2326 = vpack.c.b16 %v1768, %v1766
  %v2327 = vpack.c.b16 %v1771, %v1769
  %v2328 = vpack.c.b16 %v1772, %v1770
  %v2329 = vpack.c.b16 %v1775, %v1773
  %v2330 = vpack.c.b16 %v1776, %v1774
  %v2331 = vpack.c.b16 %v1779, %v1777
  %v2332 = vpack.c.b16 %v1780, %v1778
  %v2333 = vpack.c.b16 %v1783, %v1781
  %v2334 = vpack.c.b16 %v1784, %v1782
  %v2335 = vpack.c.b16 %v1787, %v1785
  %v2336 = vpack.c.b16 %v1788, %v1786
  %v2337 = vpack.c.b16 %v1791, %v1789
  %v2338 = vpack.c.b16 %v1792, %v1790
  %v2339 = vpack.c.b16 %v1795, %v1793
  %v2340 = vpack.c.b16 %v1796, %v1794
  %v2341 = vpack.c.b16 %v1799, %v1797
  %v2342 = vpack.c.b16 %v1800, %v1798
  %v2343 = vpack.c.b16 %v1803, %v1801
  %v2344 = vpack.c.b16 %v1804, %v1802
  %v2345 = vpack.c.b16 %v1807, %v1805
  %v2346 = vpack.c.b16 %v1808, %v1806
  %v2347 = vpack.c.b16 %v1811, %v1809
  %v2348 = vpack.c.b16 %v1812, %v1810
  %v2349 = vpack.c.b16 %v1815, %v1813
  %v2350 = vpack.c.b16 %v1816, %v1814
  %v2351 = vpack.c.b16 %v1819, %v1817
  %v2352 = vpack.c.b16 %v1820, %v1818
  %v2353 = vpack.c.b16 %v1823, %v1821
  %v2354 = vpack.c.b16 %v1824, %v1822
  %v2355 = vpack.c.b16 %v1827, %v1825
  %v2356 = vpack.c.b16 %v1828, %v1826
  %v2357 = vpack.c.b16 %v1831, %v1829
  %v2358 = vpack.c.b16 %v1832, %v1830
  %v2359 = vpack.c.b16 %v1835, %v1833
  %v2360 = vpack.c.b16 %v1836, %v1834
  %v2361 = vpack.c.b16 %v1839, %v1837
  %v2362 = vpack.c.b16 %v1840, %v1838
  %v2363 = vpack.c.b16 %v1843, %v1841
  %v2364 = vpack.c.b16 %v1844, %v1842
  %v2365 = vpack.c.b16 %v1847, %v1845
  %v2366 = vpack.c.b16 %v1848, %v1846
  %v2367 = vpack.c.b16 %v1851, %v1849
  %v2368 = vpack.c.b16 %v1852, %v1850
  %v2369 = vpack.c.b16 %v1855, %v1853
  %v2370 = vpack.c.b16 %v1856, %v1854
  %v2371 = vpack.c.b16 %v1859, %v1857
  %v2372 = vpack.c.b16 %v1860, %v1858
  %v2373 = vpack.c.b16 %v1863, %v1861
  %v2374 = vpack.c.b16 %v1864, %v1862
  %v2375 = vpack.c.b16 %v1867, %v1865
  %v2376 = vpack.c.b16 %v1868, %v1866
  %v2377 = vpack.c.b16 %v1871, %v1869
  %v2378 = vpack.c.b16 %v1872, %v1870
  %v2379 = vpack.c.b16 %v1875, %v1873
  %v2380 = vpack.c.b16 %v1876, %v1874
  %v2381 = vpack.c.b16 %v1879, %v1877
  %v2382 = vpack.c.b16 %v1880, %v1878
  %v2383 = vpack.c.b16 %v1883, %v1881
  %v2384 = vpack.c.b16 %v1884, %v1882
  %v2385 = vpack.c.b16 %v1887, %v1885
  %v2386 = vpack.c.b16 %v1888, %v1886
  %v2387 = vpack.c.b16 %v1891, %v1889
  %v2388 = vpack.c.b16 %v1892, %v1890
  %v2389 = vpack.c.b16 %v1895, %v1893
  %v2390 = vpack.c.b16 %v1896, %v1894
  %v2391 = vpack.c.b16 %v1899, %v1897
  %v2392 = vpack.c.b16 %v1900, %v1898
  %v2393 = vpack.c.b16 %v1903, %v1901
  %v2394 = vpack.c.b16 %v1904, %v1902
  %v2395 = vpack.c.b16 %v1907, %v1905
  %v2396 = vpack.c.b16 %v1908, %v1906
  %v2397 = vpack.c.b16 %v1911, %v1909
  %v2398 = vpack.c.b16 %v1912, %v1910
  %v2399 = vpack.c.b16 %v1915, %v1913
  %v2400 = vpack.c.b16 %v1916, %v1914
  %v2401 = vpack.c.b16 %v1919, %v1917
  %v2402 = vpack.c.b16 %v1920, %v1918
  %v2403 = vpack.c.b16 %v1923, %v1921
  %v2404 = vpack.c.b16 %v1924, %v1922
  %v2405 = vpack.c.b16 %v1927, %v1925
  %v2406 = vpack.c.b16 %v1928, %v1926
  %v2407 = vpack.c.b16 %v1931, %v1929
  %v2408 = vpack.c.b16 %v1932, %v1930
  %v2409 = vpack.c.b16 %v1935, %v1933
  %v2410 = vpack.c.b16 %v1936, %v1934
  %v2411 = vpack.c.b16 %v1939, %v1937
  %v2412 = vpack.c.b16 %v1940, %v1938
  %v2413 = vpack.c.b16 %v1943, %v1941
  %v2414 = vpack.c.b16 %v1944, %v1942
  %v2415 = vpack.c.b16 %v1947, %v1945
  %v2416 = vpack.c.b16 %v1948, %v1946
  %v2417 = vpack.c.b16 %v1951, %v1949
  %v2418 = vpack.c.b16 %v1952, %v1950
  %v2419 = vpack.c.b16 %v1955, %v1953
  %v2420 = vpack.c.b16 %v1956, %v1954
  %v2421 = vpack.c.b16 %v1959, %v1957
  %v2422 = vpack.c.b16 %v1960, %v1958
  %v2423 = vpack.c.b16 %v1963, %v1961
  %v2424 = vpack.c.b16 %v1964, %v1962
  %v2425 = vpack.c.b16 %v1967, %v1965
  %v2426 = vpack.c.b16 %v1968, %v1966
  %v2427 = vpack.c.b16 %v1971, %v1969
  %v2428 = vpack.c.b16 %v1972, %v1970
  %v2429 = vpack.c.b16 %v1975, %v1973
  %v2430 = vpack.c.b16 %v1976, %v1974
  %v2431 = vpack.c.b16 %v1979, %v1977
  %v2432 = vpack.c.b16 %v1980, %v1978
  %v2433 = vpack.c.b16 %v1983, %v1981
  %v2434 = vpack.c.b16 %v1984, %v1982
  %v2435 = vpack.c.b16 %v1987, %v1985
  %v2436 = vpack.c.b16 %v1988, %v1986
  %v2437 = vpack.c.b16 %v1991, %v1989
  %v2438 = vpack.c.b16 %v1992, %v1990
  %v2439 = vpack.c.b16 %v1995, %v1993
  %v2440 = vpack.c.b16 %v1996, %v1994
  %v2441 = vpack.c.b16 %v1999, %v1997
  %v2442 = vpack.c.b16 %v2000, %v1998
  %v2443 = vpack.c.b16 %v2003, %v2001
  %v2444 = vpack.c.b16 %v2004, %v2002
  %v2445 = vpack.c.b16 %v2007, %v2005
  %v2446 = vpack.c.b16 %v2008, %v2006
  %v2447 = vpack.c.b16 %v2011, %v2009
  %v2448 = vpack.c.b16 %v2012, %v2010
  %v2449 = vpack.c.b16 %v2015, %v2013
  %v2450 = vpack.c.b16 %v2016, %v2014
  %v2451 = vpack.c.b16 %v2019, %v2017
  %v2452 = vpack.c.b16 %v2020, %v2018
  %2885 = vmatpush.bf16.msra.mxu0 %v2035
  %2886 = vmatpush.bf16.msra.mxu0 %v2033
  %2887 = vmatpush.bf16.msra.mxu0 %v2031
  %2888 = vmatpush.bf16.msra.mxu0 %v2029
  %2889 = vmatpush.bf16.msra.mxu0 %v2027
  %2890 = vmatpush.bf16.msra.mxu0 %v2025
  %2891 = vmatpush.bf16.msra.mxu0 %v2023
  %2892 = vmatpush.bf16.msra.mxu0 %v2021
  %2893 = vmatmul.bf16.gmra.mxu0 %v617
  %v2894 = vpop.f32.mrf.mxu0
  %v2895 = vadd.f32 %v490, %v2894
  %v2896 = vpop.f32.mrf.mxu0
  %v2897 = vadd.f32 %v490, %v2896
  %2898 = vmatmul.bf16.gmra.mxu0 %v644
  %v2899 = vpop.f32.mrf.mxu0
  %v2900 = vadd.f32 %v490, %v2899
  %v2901 = vpop.f32.mrf.mxu0
  %2902 = vdwg.mxu0
  %2903 = vmatpush.bf16.msra.mxu0 %v2051
  %2904 = vmatpush.bf16.msra.mxu0 %v2049
  %2905 = vmatpush.bf16.msra.mxu0 %v2047
  %2906 = vmatpush.bf16.msra.mxu0 %v2045
  %2907 = vmatpush.bf16.msra.mxu0 %v2043
  %2908 = vmatpush.bf16.msra.mxu0 %v2041
  %2909 = vmatpush.bf16.msra.mxu0 %v2039
  %2910 = vmatpush.bf16.msra.mxu0 %v2037
  %2911 = vmatmul.bf16.gmra.mxu0 %v618
  %v2912 = vpop.f32.mrf.mxu0
  %v2913 = vadd.f32 %v2895, %v2912
  %v2914 = vpop.f32.mrf.mxu0
  %v2915 = vadd.f32 %v2897, %v2914
  %2916 = vmatmul.bf16.gmra.mxu0 %v645
  %v2917 = vpop.f32.mrf.mxu0
  %v2918 = vadd.f32 %v2900, %v2917
  %v2919 = vpop.f32.mrf.mxu0
  %2920 = vdwg.mxu0
  %2921 = vmatpush.bf16.msra.mxu0 %v2067
  %2922 = vmatpush.bf16.msra.mxu0 %v2065
  %2923 = vmatpush.bf16.msra.mxu0 %v2063
  %2924 = vmatpush.bf16.msra.mxu0 %v2061
  %2925 = vmatpush.bf16.msra.mxu0 %v2059
  %2926 = vmatpush.bf16.msra.mxu0 %v2057
  %2927 = vmatpush.bf16.msra.mxu0 %v2055
  %2928 = vmatpush.bf16.msra.mxu0 %v2053
  %2929 = vmatmul.bf16.gmra.mxu0 %v619
  %v2930 = vpop.f32.mrf.mxu0
  %v2931 = vadd.f32 %v2913, %v2930
  %v2932 = vpop.f32.mrf.mxu0
  %v2933 = vadd.f32 %v2915, %v2932
  %2934 = vmatmul.bf16.gmra.mxu0 %v646
  %v2935 = vpop.f32.mrf.mxu0
  %v2936 = vadd.f32 %v2918, %v2935
  %v2937 = vpop.f32.mrf.mxu0
  %2938 = vdwg.mxu0
  %2939 = vmatpush.bf16.msra.mxu0 %v2083
  %2940 = vmatpush.bf16.msra.mxu0 %v2081
  %2941 = vmatpush.bf16.msra.mxu0 %v2079
  %2942 = vmatpush.bf16.msra.mxu0 %v2077
  %2943 = vmatpush.bf16.msra.mxu0 %v2075
  %2944 = vmatpush.bf16.msra.mxu0 %v2073
  %2945 = vmatpush.bf16.msra.mxu0 %v2071
  %2946 = vmatpush.bf16.msra.mxu0 %v2069
  %2947 = vmatmul.bf16.gmra.mxu0 %v620
  %v2948 = vpop.f32.mrf.mxu0
  %v2949 = vadd.f32 %v2931, %v2948
  %v2950 = vpop.f32.mrf.mxu0
  %v2951 = vadd.f32 %v2933, %v2950
  %2952 = vmatmul.bf16.gmra.mxu0 %v647
  %v2953 = vpop.f32.mrf.mxu0
  %v2954 = vadd.f32 %v2936, %v2953
  %v2955 = vpop.f32.mrf.mxu0
  %2956 = vdwg.mxu0
  %2957 = vmatpush.bf16.msra.mxu0 %v2099
  %2958 = vmatpush.bf16.msra.mxu0 %v2097
  %2959 = vmatpush.bf16.msra.mxu0 %v2095
  %2960 = vmatpush.bf16.msra.mxu0 %v2093
  %2961 = vmatpush.bf16.msra.mxu0 %v2091
  %2962 = vmatpush.bf16.msra.mxu0 %v2089
  %2963 = vmatpush.bf16.msra.mxu0 %v2087
  %2964 = vmatpush.bf16.msra.mxu0 %v2085
  %2965 = vmatmul.bf16.gmra.mxu0 %v621
  %v2966 = vpop.f32.mrf.mxu0
  %v2967 = vadd.f32 %v2949, %v2966
  %v2968 = vpop.f32.mrf.mxu0
  %v2969 = vadd.f32 %v2951, %v2968
  %2970 = vmatmul.bf16.gmra.mxu0 %v648
  %v2971 = vpop.f32.mrf.mxu0
  %v2972 = vadd.f32 %v2954, %v2971
  %v2973 = vpop.f32.mrf.mxu0
  %2974 = vdwg.mxu0
  %2975 = vmatpush.bf16.msra.mxu0 %v2115
  %2976 = vmatpush.bf16.msra.mxu0 %v2113
  %2977 = vmatpush.bf16.msra.mxu0 %v2111
  %2978 = vmatpush.bf16.msra.mxu0 %v2109
  %2979 = vmatpush.bf16.msra.mxu0 %v2107
  %2980 = vmatpush.bf16.msra.mxu0 %v2105
  %2981 = vmatpush.bf16.msra.mxu0 %v2103
  %2982 = vmatpush.bf16.msra.mxu0 %v2101
  %2983 = vmatmul.bf16.gmra.mxu0 %v622
  %v2984 = vpop.f32.mrf.mxu0
  %v2985 = vadd.f32 %v2967, %v2984
  %v2986 = vpop.f32.mrf.mxu0
  %v2987 = vadd.f32 %v2969, %v2986
  %2988 = vmatmul.bf16.gmra.mxu0 %v649
  %v2989 = vpop.f32.mrf.mxu0
  %v2990 = vadd.f32 %v2972, %v2989
  %v2991 = vpop.f32.mrf.mxu0
  %2992 = vdwg.mxu0
  %2993 = vmatpush.bf16.msra.mxu0 %v2131
  %2994 = vmatpush.bf16.msra.mxu0 %v2129
  %2995 = vmatpush.bf16.msra.mxu0 %v2127
  %2996 = vmatpush.bf16.msra.mxu0 %v2125
  %2997 = vmatpush.bf16.msra.mxu0 %v2123
  %2998 = vmatpush.bf16.msra.mxu0 %v2121
  %2999 = vmatpush.bf16.msra.mxu0 %v2119
  %3000 = vmatpush.bf16.msra.mxu0 %v2117
  %3001 = vmatmul.bf16.gmra.mxu0 %v623
  %v3002 = vpop.f32.mrf.mxu0
  %v3003 = vadd.f32 %v2985, %v3002
  %v3004 = vpop.f32.mrf.mxu0
  %v3005 = vadd.f32 %v2987, %v3004
  %3006 = vmatmul.bf16.gmra.mxu0 %v650
  %v3007 = vpop.f32.mrf.mxu0
  %v3008 = vadd.f32 %v2990, %v3007
  %v3009 = vpop.f32.mrf.mxu0
  %3010 = vdwg.mxu0
  %3011 = vmatpush.bf16.msra.mxu0 %v2147
  %3012 = vmatpush.bf16.msra.mxu0 %v2145
  %3013 = vmatpush.bf16.msra.mxu0 %v2143
  %3014 = vmatpush.bf16.msra.mxu0 %v2141
  %3015 = vmatpush.bf16.msra.mxu0 %v2139
  %3016 = vmatpush.bf16.msra.mxu0 %v2137
  %3017 = vmatpush.bf16.msra.mxu0 %v2135
  %3018 = vmatpush.bf16.msra.mxu0 %v2133
  %3019 = vmatmul.bf16.gmra.mxu0 %v624
  %v3020 = vpop.f32.mrf.mxu0
  %v3021 = vadd.f32 %v3003, %v3020
  %v3022 = vpop.f32.mrf.mxu0
  %v3023 = vadd.f32 %v3005, %v3022
  %3024 = vmatmul.bf16.gmra.mxu0 %v651
  %v3025 = vpop.f32.mrf.mxu0
  %v3026 = vadd.f32 %v3008, %v3025
  %v3027 = vpop.f32.mrf.mxu0
  %3028 = vdwg.mxu0
  %3029 = vmatpush.bf16.msra.mxu0 %v2163
  %3030 = vmatpush.bf16.msra.mxu0 %v2161
  %3031 = vmatpush.bf16.msra.mxu0 %v2159
  %3032 = vmatpush.bf16.msra.mxu0 %v2157
  %3033 = vmatpush.bf16.msra.mxu0 %v2155
  %3034 = vmatpush.bf16.msra.mxu0 %v2153
  %3035 = vmatpush.bf16.msra.mxu0 %v2151
  %3036 = vmatpush.bf16.msra.mxu0 %v2149
  %3037 = vmatmul.bf16.gmra.mxu0 %v625
  %v3038 = vpop.f32.mrf.mxu0
  %v3039 = vadd.f32 %v3021, %v3038
  %v3040 = vpop.f32.mrf.mxu0
  %v3041 = vadd.f32 %v3023, %v3040
  %3042 = vmatmul.bf16.gmra.mxu0 %v652
  %v3043 = vpop.f32.mrf.mxu0
  %v3044 = vadd.f32 %v3026, %v3043
  %v3045 = vpop.f32.mrf.mxu0
  %3046 = vdwg.mxu0
  %3047 = vmatpush.bf16.msra.mxu0 %v2179
  %3048 = vmatpush.bf16.msra.mxu0 %v2177
  %3049 = vmatpush.bf16.msra.mxu0 %v2175
  %3050 = vmatpush.bf16.msra.mxu0 %v2173
  %3051 = vmatpush.bf16.msra.mxu0 %v2171
  %3052 = vmatpush.bf16.msra.mxu0 %v2169
  %3053 = vmatpush.bf16.msra.mxu0 %v2167
  %3054 = vmatpush.bf16.msra.mxu0 %v2165
  %3055 = vmatmul.bf16.gmra.mxu0 %v626
  %v3056 = vpop.f32.mrf.mxu0
  %v3057 = vadd.f32 %v3039, %v3056
  %v3058 = vpop.f32.mrf.mxu0
  %v3059 = vadd.f32 %v3041, %v3058
  %3060 = vmatmul.bf16.gmra.mxu0 %v653
  %v3061 = vpop.f32.mrf.mxu0
  %v3062 = vadd.f32 %v3044, %v3061
  %v3063 = vpop.f32.mrf.mxu0
  %3064 = vdwg.mxu0
  %3065 = vmatpush.bf16.msra.mxu0 %v2195
  %3066 = vmatpush.bf16.msra.mxu0 %v2193
  %3067 = vmatpush.bf16.msra.mxu0 %v2191
  %3068 = vmatpush.bf16.msra.mxu0 %v2189
  %3069 = vmatpush.bf16.msra.mxu0 %v2187
  %3070 = vmatpush.bf16.msra.mxu0 %v2185
  %3071 = vmatpush.bf16.msra.mxu0 %v2183
  %3072 = vmatpush.bf16.msra.mxu0 %v2181
  %3073 = vmatmul.bf16.gmra.mxu0 %v627
  %v3074 = vpop.f32.mrf.mxu0
  %v3075 = vadd.f32 %v3057, %v3074
  %v3076 = vpop.f32.mrf.mxu0
  %v3077 = vadd.f32 %v3059, %v3076
  %3078 = vmatmul.bf16.gmra.mxu0 %v654
  %v3079 = vpop.f32.mrf.mxu0
  %v3080 = vadd.f32 %v3062, %v3079
  %v3081 = vpop.f32.mrf.mxu0
  %3082 = vdwg.mxu0
  %3083 = vmatpush.bf16.msra.mxu0 %v2211
  %3084 = vmatpush.bf16.msra.mxu0 %v2209
  %3085 = vmatpush.bf16.msra.mxu0 %v2207
  %3086 = vmatpush.bf16.msra.mxu0 %v2205
  %3087 = vmatpush.bf16.msra.mxu0 %v2203
  %3088 = vmatpush.bf16.msra.mxu0 %v2201
  %3089 = vmatpush.bf16.msra.mxu0 %v2199
  %3090 = vmatpush.bf16.msra.mxu0 %v2197
  %3091 = vmatmul.bf16.gmra.mxu0 %v628
  %v3092 = vpop.f32.mrf.mxu0
  %v3093 = vadd.f32 %v3075, %v3092
  %v3094 = vpop.f32.mrf.mxu0
  %v3095 = vadd.f32 %v3077, %v3094
  %3096 = vmatmul.bf16.gmra.mxu0 %v655
  %v3097 = vpop.f32.mrf.mxu0
  %v3098 = vadd.f32 %v3080, %v3097
  %v3099 = vpop.f32.mrf.mxu0
  %3100 = vdwg.mxu0
  %3101 = vmatpush.bf16.msra.mxu0 %v2227
  %3102 = vmatpush.bf16.msra.mxu0 %v2225
  %3103 = vmatpush.bf16.msra.mxu0 %v2223
  %3104 = vmatpush.bf16.msra.mxu0 %v2221
  %3105 = vmatpush.bf16.msra.mxu0 %v2219
  %3106 = vmatpush.bf16.msra.mxu0 %v2217
  %3107 = vmatpush.bf16.msra.mxu0 %v2215
  %3108 = vmatpush.bf16.msra.mxu0 %v2213
  %3109 = vmatmul.bf16.gmra.mxu0 %v629
  %v3110 = vpop.f32.mrf.mxu0
  %v3111 = vadd.f32 %v3093, %v3110
  %v3112 = vpop.f32.mrf.mxu0
  %v3113 = vadd.f32 %v3095, %v3112
  %3114 = vmatmul.bf16.gmra.mxu0 %v656
  %v3115 = vpop.f32.mrf.mxu0
  %v3116 = vadd.f32 %v3098, %v3115
  %v3117 = vpop.f32.mrf.mxu0
  %3118 = vdwg.mxu0
  %3119 = vmatpush.bf16.msra.mxu0 %v2243
  %3120 = vmatpush.bf16.msra.mxu0 %v2241
  %3121 = vmatpush.bf16.msra.mxu0 %v2239
  %3122 = vmatpush.bf16.msra.mxu0 %v2237
  %3123 = vmatpush.bf16.msra.mxu0 %v2235
  %3124 = vmatpush.bf16.msra.mxu0 %v2233
  %3125 = vmatpush.bf16.msra.mxu0 %v2231
  %3126 = vmatpush.bf16.msra.mxu0 %v2229
  %3127 = vmatmul.bf16.gmra.mxu0 %v630
  %v3128 = vpop.f32.mrf.mxu0
  %v3129 = vadd.f32 %v3111, %v3128
  %v3130 = vpop.f32.mrf.mxu0
  %v3131 = vadd.f32 %v3113, %v3130
  %3132 = vmatmul.bf16.gmra.mxu0 %v657
  %v3133 = vpop.f32.mrf.mxu0
  %v3134 = vadd.f32 %v3116, %v3133
  %v3135 = vpop.f32.mrf.mxu0
  %3136 = vdwg.mxu0
  %3137 = vmatpush.bf16.msra.mxu0 %v2259
  %3138 = vmatpush.bf16.msra.mxu0 %v2257
  %3139 = vmatpush.bf16.msra.mxu0 %v2255
  %3140 = vmatpush.bf16.msra.mxu0 %v2253
  %3141 = vmatpush.bf16.msra.mxu0 %v2251
  %3142 = vmatpush.bf16.msra.mxu0 %v2249
  %3143 = vmatpush.bf16.msra.mxu0 %v2247
  %3144 = vmatpush.bf16.msra.mxu0 %v2245
  %3145 = vmatmul.bf16.gmra.mxu0 %v631
  %v3146 = vpop.f32.mrf.mxu0
  %v3147 = vadd.f32 %v3129, %v3146
  %v3148 = vpop.f32.mrf.mxu0
  %v3149 = vadd.f32 %v3131, %v3148
  %3150 = vmatmul.bf16.gmra.mxu0 %v658
  %v3151 = vpop.f32.mrf.mxu0
  %v3152 = vadd.f32 %v3134, %v3151
  %v3153 = vpop.f32.mrf.mxu0
  %3154 = vdwg.mxu0
  %3155 = vmatpush.bf16.msra.mxu0 %v2275
  %3156 = vmatpush.bf16.msra.mxu0 %v2273
  %3157 = vmatpush.bf16.msra.mxu0 %v2271
  %3158 = vmatpush.bf16.msra.mxu0 %v2269
  %3159 = vmatpush.bf16.msra.mxu0 %v2267
  %3160 = vmatpush.bf16.msra.mxu0 %v2265
  %3161 = vmatpush.bf16.msra.mxu0 %v2263
  %3162 = vmatpush.bf16.msra.mxu0 %v2261
  %3163 = vmatmul.bf16.gmra.mxu0 %v632
  %v3164 = vpop.f32.mrf.mxu0
  %v3165 = vadd.f32 %v3147, %v3164
  %v3166 = vpop.f32.mrf.mxu0
  %v3167 = vadd.f32 %v3149, %v3166
  %3168 = vmatmul.bf16.gmra.mxu0 %v659
  %v3169 = vpop.f32.mrf.mxu0
  %v3170 = vadd.f32 %v3152, %v3169
  %v3171 = vpop.f32.mrf.mxu0
  %3172 = vdwg.mxu0
  %3173 = vmatpush.bf16.msra.mxu0 %v2291
  %3174 = vmatpush.bf16.msra.mxu0 %v2289
  %3175 = vmatpush.bf16.msra.mxu0 %v2287
  %3176 = vmatpush.bf16.msra.mxu0 %v2285
  %3177 = vmatpush.bf16.msra.mxu0 %v2283
  %3178 = vmatpush.bf16.msra.mxu0 %v2281
  %3179 = vmatpush.bf16.msra.mxu0 %v2279
  %3180 = vmatpush.bf16.msra.mxu0 %v2277
  %3181 = vmatmul.bf16.gmra.mxu0 %v633
  %v3182 = vpop.f32.mrf.mxu0
  %v3183 = vadd.f32 %v3165, %v3182
  %v3184 = vpop.f32.mrf.mxu0
  %v3185 = vadd.f32 %v3167, %v3184
  %3186 = vmatmul.bf16.gmra.mxu0 %v660
  %v3187 = vpop.f32.mrf.mxu0
  %v3188 = vadd.f32 %v3170, %v3187
  %v3189 = vpop.f32.mrf.mxu0
  %3190 = vdwg.mxu0
  %3191 = vmatpush.bf16.msra.mxu0 %v2307
  %3192 = vmatpush.bf16.msra.mxu0 %v2305
  %3193 = vmatpush.bf16.msra.mxu0 %v2303
  %3194 = vmatpush.bf16.msra.mxu0 %v2301
  %3195 = vmatpush.bf16.msra.mxu0 %v2299
  %3196 = vmatpush.bf16.msra.mxu0 %v2297
  %3197 = vmatpush.bf16.msra.mxu0 %v2295
  %3198 = vmatpush.bf16.msra.mxu0 %v2293
  %3199 = vmatmul.bf16.gmra.mxu0 %v634
  %v3200 = vpop.f32.mrf.mxu0
  %v3201 = vadd.f32 %v3183, %v3200
  %v3202 = vpop.f32.mrf.mxu0
  %v3203 = vadd.f32 %v3185, %v3202
  %3204 = vmatmul.bf16.gmra.mxu0 %v661
  %v3205 = vpop.f32.mrf.mxu0
  %v3206 = vadd.f32 %v3188, %v3205
  %v3207 = vpop.f32.mrf.mxu0
  %3208 = vdwg.mxu0
  %3209 = vmatpush.bf16.msra.mxu0 %v2323
  %3210 = vmatpush.bf16.msra.mxu0 %v2321
  %3211 = vmatpush.bf16.msra.mxu0 %v2319
  %3212 = vmatpush.bf16.msra.mxu0 %v2317
  %3213 = vmatpush.bf16.msra.mxu0 %v2315
  %3214 = vmatpush.bf16.msra.mxu0 %v2313
  %3215 = vmatpush.bf16.msra.mxu0 %v2311
  %3216 = vmatpush.bf16.msra.mxu0 %v2309
  %3217 = vmatmul.bf16.gmra.mxu0 %v635
  %v3218 = vpop.f32.mrf.mxu0
  %v3219 = vadd.f32 %v3201, %v3218
  %v3220 = vpop.f32.mrf.mxu0
  %v3221 = vadd.f32 %v3203, %v3220
  %3222 = vmatmul.bf16.gmra.mxu0 %v662
  %v3223 = vpop.f32.mrf.mxu0
  %v3224 = vadd.f32 %v3206, %v3223
  %v3225 = vpop.f32.mrf.mxu0
  %3226 = vdwg.mxu0
  %3227 = vmatpush.bf16.msra.mxu0 %v2339
  %3228 = vmatpush.bf16.msra.mxu0 %v2337
  %3229 = vmatpush.bf16.msra.mxu0 %v2335
  %3230 = vmatpush.bf16.msra.mxu0 %v2333
  %3231 = vmatpush.bf16.msra.mxu0 %v2331
  %3232 = vmatpush.bf16.msra.mxu0 %v2329
  %3233 = vmatpush.bf16.msra.mxu0 %v2327
  %3234 = vmatpush.bf16.msra.mxu0 %v2325
  %3235 = vmatmul.bf16.gmra.mxu0 %v636
  %v3236 = vpop.f32.mrf.mxu0
  %v3237 = vadd.f32 %v3219, %v3236
  %v3238 = vpop.f32.mrf.mxu0
  %v3239 = vadd.f32 %v3221, %v3238
  %3240 = vmatmul.bf16.gmra.mxu0 %v663
  %v3241 = vpop.f32.mrf.mxu0
  %v3242 = vadd.f32 %v3224, %v3241
  %v3243 = vpop.f32.mrf.mxu0
  %3244 = vdwg.mxu0
  %3245 = vmatpush.bf16.msra.mxu0 %v2355
  %3246 = vmatpush.bf16.msra.mxu0 %v2353
  %3247 = vmatpush.bf16.msra.mxu0 %v2351
  %3248 = vmatpush.bf16.msra.mxu0 %v2349
  %3249 = vmatpush.bf16.msra.mxu0 %v2347
  %3250 = vmatpush.bf16.msra.mxu0 %v2345
  %3251 = vmatpush.bf16.msra.mxu0 %v2343
  %3252 = vmatpush.bf16.msra.mxu0 %v2341
  %3253 = vmatmul.bf16.gmra.mxu0 %v637
  %v3254 = vpop.f32.mrf.mxu0
  %v3255 = vadd.f32 %v3237, %v3254
  %v3256 = vpop.f32.mrf.mxu0
  %v3257 = vadd.f32 %v3239, %v3256
  %3258 = vmatmul.bf16.gmra.mxu0 %v664
  %v3259 = vpop.f32.mrf.mxu0
  %v3260 = vadd.f32 %v3242, %v3259
  %v3261 = vpop.f32.mrf.mxu0
  %3262 = vdwg.mxu0
  %3263 = vmatpush.bf16.msra.mxu0 %v2371
  %3264 = vmatpush.bf16.msra.mxu0 %v2369
  %3265 = vmatpush.bf16.msra.mxu0 %v2367
  %3266 = vmatpush.bf16.msra.mxu0 %v2365
  %3267 = vmatpush.bf16.msra.mxu0 %v2363
  %3268 = vmatpush.bf16.msra.mxu0 %v2361
  %3269 = vmatpush.bf16.msra.mxu0 %v2359
  %3270 = vmatpush.bf16.msra.mxu0 %v2357
  %3271 = vmatmul.bf16.gmra.mxu0 %v638
  %v3272 = vpop.f32.mrf.mxu0
  %v3273 = vadd.f32 %v3255, %v3272
  %v3274 = vpop.f32.mrf.mxu0
  %v3275 = vadd.f32 %v3257, %v3274
  %3276 = vmatmul.bf16.gmra.mxu0 %v665
  %v3277 = vpop.f32.mrf.mxu0
  %v3278 = vadd.f32 %v3260, %v3277
  %v3279 = vpop.f32.mrf.mxu0
  %3280 = vdwg.mxu0
  %3281 = vmatpush.bf16.msra.mxu0 %v2387
  %3282 = vmatpush.bf16.msra.mxu0 %v2385
  %3283 = vmatpush.bf16.msra.mxu0 %v2383
  %3284 = vmatpush.bf16.msra.mxu0 %v2381
  %3285 = vmatpush.bf16.msra.mxu0 %v2379
  %3286 = vmatpush.bf16.msra.mxu0 %v2377
  %3287 = vmatpush.bf16.msra.mxu0 %v2375
  %3288 = vmatpush.bf16.msra.mxu0 %v2373
  %3289 = vmatmul.bf16.gmra.mxu0 %v639
  %v3290 = vpop.f32.mrf.mxu0
  %v3291 = vadd.f32 %v3273, %v3290
  %v3292 = vpop.f32.mrf.mxu0
  %v3293 = vadd.f32 %v3275, %v3292
  %3294 = vmatmul.bf16.gmra.mxu0 %v666
  %v3295 = vpop.f32.mrf.mxu0
  %v3296 = vadd.f32 %v3278, %v3295
  %v3297 = vpop.f32.mrf.mxu0
  %3298 = vdwg.mxu0
  %3299 = vmatpush.bf16.msra.mxu0 %v2403
  %3300 = vmatpush.bf16.msra.mxu0 %v2401
  %3301 = vmatpush.bf16.msra.mxu0 %v2399
  %3302 = vmatpush.bf16.msra.mxu0 %v2397
  %3303 = vmatpush.bf16.msra.mxu0 %v2395
  %3304 = vmatpush.bf16.msra.mxu0 %v2393
  %3305 = vmatpush.bf16.msra.mxu0 %v2391
  %3306 = vmatpush.bf16.msra.mxu0 %v2389
  %3307 = vmatmul.bf16.gmra.mxu0 %v640
  %v3308 = vpop.f32.mrf.mxu0
  %v3309 = vadd.f32 %v3291, %v3308
  %v3310 = vpop.f32.mrf.mxu0
  %v3311 = vadd.f32 %v3293, %v3310
  %3312 = vmatmul.bf16.gmra.mxu0 %v667
  %v3313 = vpop.f32.mrf.mxu0
  %v3314 = vadd.f32 %v3296, %v3313
  %v3315 = vpop.f32.mrf.mxu0
  %3316 = vdwg.mxu0
  %3317 = vmatpush.bf16.msra.mxu0 %v2419
  %3318 = vmatpush.bf16.msra.mxu0 %v2417
  %3319 = vmatpush.bf16.msra.mxu0 %v2415
  %3320 = vmatpush.bf16.msra.mxu0 %v2413
  %3321 = vmatpush.bf16.msra.mxu0 %v2411
  %3322 = vmatpush.bf16.msra.mxu0 %v2409
  %3323 = vmatpush.bf16.msra.mxu0 %v2407
  %3324 = vmatpush.bf16.msra.mxu0 %v2405
  %3325 = vmatmul.bf16.gmra.mxu0 %v641
  %v3326 = vpop.f32.mrf.mxu0
  %v3327 = vadd.f32 %v3309, %v3326
  %v3328 = vpop.f32.mrf.mxu0
  %v3329 = vadd.f32 %v3311, %v3328
  %3330 = vmatmul.bf16.gmra.mxu0 %v668
  %v3331 = vpop.f32.mrf.mxu0
  %v3332 = vadd.f32 %v3314, %v3331
  %v3333 = vpop.f32.mrf.mxu0
  %3334 = vdwg.mxu0
  %3335 = vmatpush.bf16.msra.mxu0 %v2435
  %3336 = vmatpush.bf16.msra.mxu0 %v2433
  %3337 = vmatpush.bf16.msra.mxu0 %v2431
  %3338 = vmatpush.bf16.msra.mxu0 %v2429
  %3339 = vmatpush.bf16.msra.mxu0 %v2427
  %3340 = vmatpush.bf16.msra.mxu0 %v2425
  %3341 = vmatpush.bf16.msra.mxu0 %v2423
  %3342 = vmatpush.bf16.msra.mxu0 %v2421
  %3343 = vmatmul.bf16.gmra.mxu0 %v642
  %v3344 = vpop.f32.mrf.mxu0
  %v3345 = vadd.f32 %v3327, %v3344
  %v3346 = vpop.f32.mrf.mxu0
  %v3347 = vadd.f32 %v3329, %v3346
  %3348 = vmatmul.bf16.gmra.mxu0 %v669
  %v3349 = vpop.f32.mrf.mxu0
  %v3350 = vadd.f32 %v3332, %v3349
  %v3351 = vpop.f32.mrf.mxu0
  %3352 = vdwg.mxu0
  %3353 = vmatpush.bf16.msra.mxu0 %v2451
  %3354 = vmatpush.bf16.msra.mxu0 %v2449
  %3355 = vmatpush.bf16.msra.mxu0 %v2447
  %3356 = vmatpush.bf16.msra.mxu0 %v2445
  %3357 = vmatpush.bf16.msra.mxu0 %v2443
  %3358 = vmatpush.bf16.msra.mxu0 %v2441
  %3359 = vmatpush.bf16.msra.mxu0 %v2439
  %3360 = vmatpush.bf16.msra.mxu0 %v2437
  %3361 = vmatmul.bf16.gmra.mxu0 %v643
  %v3362 = vpop.f32.mrf.mxu0
  %v3363 = vadd.f32 %v3345, %v3362
  %v3364 = vpop.f32.mrf.mxu0
  %v3365 = vadd.f32 %v3347, %v3364
  %3366 = vmatmul.bf16.gmra.mxu0 %v670
  %v3367 = vpop.f32.mrf.mxu0
  %v3368 = vadd.f32 %v3350, %v3367
  %v3369 = vpop.f32.mrf.mxu0
  %3370 = vdwg.mxu0
  %3371 = vmatpush.bf16.msra.mxu0 %v2036
  %3372 = vmatpush.bf16.msra.mxu0 %v2034
  %3373 = vmatpush.bf16.msra.mxu0 %v2032
  %3374 = vmatpush.bf16.msra.mxu0 %v2030
  %3375 = vmatpush.bf16.msra.mxu0 %v2028
  %3376 = vmatpush.bf16.msra.mxu0 %v2026
  %3377 = vmatpush.bf16.msra.mxu0 %v2024
  %3378 = vmatpush.bf16.msra.mxu0 %v2022
  %3379 = vmatmul.bf16.gmra.mxu0 %v617
  %v3380 = vpop.f32.mrf.mxu0
  %v3381 = vadd.f32 %v491, %v3380
  %v3382 = vpop.f32.mrf.mxu0
  %v3383 = vadd.f32 %v491, %v3382
  %3384 = vmatmul.bf16.gmra.mxu0 %v644
  %v3385 = vpop.f32.mrf.mxu0
  %v3386 = vadd.f32 %v491, %v3385
  %v3387 = vpop.f32.mrf.mxu0
  %3388 = vdwg.mxu0
  %3389 = vmatpush.bf16.msra.mxu0 %v2052
  %3390 = vmatpush.bf16.msra.mxu0 %v2050
  %3391 = vmatpush.bf16.msra.mxu0 %v2048
  %3392 = vmatpush.bf16.msra.mxu0 %v2046
  %3393 = vmatpush.bf16.msra.mxu0 %v2044
  %3394 = vmatpush.bf16.msra.mxu0 %v2042
  %3395 = vmatpush.bf16.msra.mxu0 %v2040
  %3396 = vmatpush.bf16.msra.mxu0 %v2038
  %3397 = vmatmul.bf16.gmra.mxu0 %v618
  %v3398 = vpop.f32.mrf.mxu0
  %v3399 = vadd.f32 %v3381, %v3398
  %v3400 = vpop.f32.mrf.mxu0
  %v3401 = vadd.f32 %v3383, %v3400
  %3402 = vmatmul.bf16.gmra.mxu0 %v645
  %v3403 = vpop.f32.mrf.mxu0
  %v3404 = vadd.f32 %v3386, %v3403
  %v3405 = vpop.f32.mrf.mxu0
  %3406 = vdwg.mxu0
  %3407 = vmatpush.bf16.msra.mxu0 %v2068
  %3408 = vmatpush.bf16.msra.mxu0 %v2066
  %3409 = vmatpush.bf16.msra.mxu0 %v2064
  %3410 = vmatpush.bf16.msra.mxu0 %v2062
  %3411 = vmatpush.bf16.msra.mxu0 %v2060
  %3412 = vmatpush.bf16.msra.mxu0 %v2058
  %3413 = vmatpush.bf16.msra.mxu0 %v2056
  %3414 = vmatpush.bf16.msra.mxu0 %v2054
  %3415 = vmatmul.bf16.gmra.mxu0 %v619
  %v3416 = vpop.f32.mrf.mxu0
  %v3417 = vadd.f32 %v3399, %v3416
  %v3418 = vpop.f32.mrf.mxu0
  %v3419 = vadd.f32 %v3401, %v3418
  %3420 = vmatmul.bf16.gmra.mxu0 %v646
  %v3421 = vpop.f32.mrf.mxu0
  %v3422 = vadd.f32 %v3404, %v3421
  %v3423 = vpop.f32.mrf.mxu0
  %3424 = vdwg.mxu0
  %3425 = vmatpush.bf16.msra.mxu0 %v2084
  %3426 = vmatpush.bf16.msra.mxu0 %v2082
  %3427 = vmatpush.bf16.msra.mxu0 %v2080
  %3428 = vmatpush.bf16.msra.mxu0 %v2078
  %3429 = vmatpush.bf16.msra.mxu0 %v2076
  %3430 = vmatpush.bf16.msra.mxu0 %v2074
  %3431 = vmatpush.bf16.msra.mxu0 %v2072
  %3432 = vmatpush.bf16.msra.mxu0 %v2070
  %3433 = vmatmul.bf16.gmra.mxu0 %v620
  %v3434 = vpop.f32.mrf.mxu0
  %v3435 = vadd.f32 %v3417, %v3434
  %v3436 = vpop.f32.mrf.mxu0
  %v3437 = vadd.f32 %v3419, %v3436
  %3438 = vmatmul.bf16.gmra.mxu0 %v647
  %v3439 = vpop.f32.mrf.mxu0
  %v3440 = vadd.f32 %v3422, %v3439
  %v3441 = vpop.f32.mrf.mxu0
  %3442 = vdwg.mxu0
  %3443 = vmatpush.bf16.msra.mxu0 %v2100
  %3444 = vmatpush.bf16.msra.mxu0 %v2098
  %3445 = vmatpush.bf16.msra.mxu0 %v2096
  %3446 = vmatpush.bf16.msra.mxu0 %v2094
  %3447 = vmatpush.bf16.msra.mxu0 %v2092
  %3448 = vmatpush.bf16.msra.mxu0 %v2090
  %3449 = vmatpush.bf16.msra.mxu0 %v2088
  %3450 = vmatpush.bf16.msra.mxu0 %v2086
  %3451 = vmatmul.bf16.gmra.mxu0 %v621
  %v3452 = vpop.f32.mrf.mxu0
  %v3453 = vadd.f32 %v3435, %v3452
  %v3454 = vpop.f32.mrf.mxu0
  %v3455 = vadd.f32 %v3437, %v3454
  %3456 = vmatmul.bf16.gmra.mxu0 %v648
  %v3457 = vpop.f32.mrf.mxu0
  %v3458 = vadd.f32 %v3440, %v3457
  %v3459 = vpop.f32.mrf.mxu0
  %3460 = vdwg.mxu0
  %3461 = vmatpush.bf16.msra.mxu0 %v2116
  %3462 = vmatpush.bf16.msra.mxu0 %v2114
  %3463 = vmatpush.bf16.msra.mxu0 %v2112
  %3464 = vmatpush.bf16.msra.mxu0 %v2110
  %3465 = vmatpush.bf16.msra.mxu0 %v2108
  %3466 = vmatpush.bf16.msra.mxu0 %v2106
  %3467 = vmatpush.bf16.msra.mxu0 %v2104
  %3468 = vmatpush.bf16.msra.mxu0 %v2102
  %3469 = vmatmul.bf16.gmra.mxu0 %v622
  %v3470 = vpop.f32.mrf.mxu0
  %v3471 = vadd.f32 %v3453, %v3470
  %v3472 = vpop.f32.mrf.mxu0
  %v3473 = vadd.f32 %v3455, %v3472
  %3474 = vmatmul.bf16.gmra.mxu0 %v649
  %v3475 = vpop.f32.mrf.mxu0
  %v3476 = vadd.f32 %v3458, %v3475
  %v3477 = vpop.f32.mrf.mxu0
  %3478 = vdwg.mxu0
  %3479 = vmatpush.bf16.msra.mxu0 %v2132
  %3480 = vmatpush.bf16.msra.mxu0 %v2130
  %3481 = vmatpush.bf16.msra.mxu0 %v2128
  %3482 = vmatpush.bf16.msra.mxu0 %v2126
  %3483 = vmatpush.bf16.msra.mxu0 %v2124
  %3484 = vmatpush.bf16.msra.mxu0 %v2122
  %3485 = vmatpush.bf16.msra.mxu0 %v2120
  %3486 = vmatpush.bf16.msra.mxu0 %v2118
  %3487 = vmatmul.bf16.gmra.mxu0 %v623
  %v3488 = vpop.f32.mrf.mxu0
  %v3489 = vadd.f32 %v3471, %v3488
  %v3490 = vpop.f32.mrf.mxu0
  %v3491 = vadd.f32 %v3473, %v3490
  %3492 = vmatmul.bf16.gmra.mxu0 %v650
  %v3493 = vpop.f32.mrf.mxu0
  %v3494 = vadd.f32 %v3476, %v3493
  %v3495 = vpop.f32.mrf.mxu0
  %3496 = vdwg.mxu0
  %3497 = vmatpush.bf16.msra.mxu0 %v2148
  %3498 = vmatpush.bf16.msra.mxu0 %v2146
  %3499 = vmatpush.bf16.msra.mxu0 %v2144
  %3500 = vmatpush.bf16.msra.mxu0 %v2142
  %3501 = vmatpush.bf16.msra.mxu0 %v2140
  %3502 = vmatpush.bf16.msra.mxu0 %v2138
  %3503 = vmatpush.bf16.msra.mxu0 %v2136
  %3504 = vmatpush.bf16.msra.mxu0 %v2134
  %3505 = vmatmul.bf16.gmra.mxu0 %v624
  %v3506 = vpop.f32.mrf.mxu0
  %v3507 = vadd.f32 %v3489, %v3506
  %v3508 = vpop.f32.mrf.mxu0
  %v3509 = vadd.f32 %v3491, %v3508
  %3510 = vmatmul.bf16.gmra.mxu0 %v651
  %v3511 = vpop.f32.mrf.mxu0
  %v3512 = vadd.f32 %v3494, %v3511
  %v3513 = vpop.f32.mrf.mxu0
  %3514 = vdwg.mxu0
  %3515 = vmatpush.bf16.msra.mxu0 %v2164
  %3516 = vmatpush.bf16.msra.mxu0 %v2162
  %3517 = vmatpush.bf16.msra.mxu0 %v2160
  %3518 = vmatpush.bf16.msra.mxu0 %v2158
  %3519 = vmatpush.bf16.msra.mxu0 %v2156
  %3520 = vmatpush.bf16.msra.mxu0 %v2154
  %3521 = vmatpush.bf16.msra.mxu0 %v2152
  %3522 = vmatpush.bf16.msra.mxu0 %v2150
  %3523 = vmatmul.bf16.gmra.mxu0 %v625
  %v3524 = vpop.f32.mrf.mxu0
  %v3525 = vadd.f32 %v3507, %v3524
  %v3526 = vpop.f32.mrf.mxu0
  %v3527 = vadd.f32 %v3509, %v3526
  %3528 = vmatmul.bf16.gmra.mxu0 %v652
  %v3529 = vpop.f32.mrf.mxu0
  %v3530 = vadd.f32 %v3512, %v3529
  %v3531 = vpop.f32.mrf.mxu0
  %3532 = vdwg.mxu0
  %3533 = vmatpush.bf16.msra.mxu0 %v2180
  %3534 = vmatpush.bf16.msra.mxu0 %v2178
  %3535 = vmatpush.bf16.msra.mxu0 %v2176
  %3536 = vmatpush.bf16.msra.mxu0 %v2174
  %3537 = vmatpush.bf16.msra.mxu0 %v2172
  %3538 = vmatpush.bf16.msra.mxu0 %v2170
  %3539 = vmatpush.bf16.msra.mxu0 %v2168
  %3540 = vmatpush.bf16.msra.mxu0 %v2166
  %3541 = vmatmul.bf16.gmra.mxu0 %v626
  %v3542 = vpop.f32.mrf.mxu0
  %v3543 = vadd.f32 %v3525, %v3542
  %v3544 = vpop.f32.mrf.mxu0
  %v3545 = vadd.f32 %v3527, %v3544
  %3546 = vmatmul.bf16.gmra.mxu0 %v653
  %v3547 = vpop.f32.mrf.mxu0
  %v3548 = vadd.f32 %v3530, %v3547
  %v3549 = vpop.f32.mrf.mxu0
  %3550 = vdwg.mxu0
  %3551 = vmatpush.bf16.msra.mxu0 %v2196
  %3552 = vmatpush.bf16.msra.mxu0 %v2194
  %3553 = vmatpush.bf16.msra.mxu0 %v2192
  %3554 = vmatpush.bf16.msra.mxu0 %v2190
  %3555 = vmatpush.bf16.msra.mxu0 %v2188
  %3556 = vmatpush.bf16.msra.mxu0 %v2186
  %3557 = vmatpush.bf16.msra.mxu0 %v2184
  %3558 = vmatpush.bf16.msra.mxu0 %v2182
  %3559 = vmatmul.bf16.gmra.mxu0 %v627
  %v3560 = vpop.f32.mrf.mxu0
  %v3561 = vadd.f32 %v3543, %v3560
  %v3562 = vpop.f32.mrf.mxu0
  %v3563 = vadd.f32 %v3545, %v3562
  %3564 = vmatmul.bf16.gmra.mxu0 %v654
  %v3565 = vpop.f32.mrf.mxu0
  %v3566 = vadd.f32 %v3548, %v3565
  %v3567 = vpop.f32.mrf.mxu0
  %3568 = vdwg.mxu0
  %3569 = vmatpush.bf16.msra.mxu0 %v2212
  %3570 = vmatpush.bf16.msra.mxu0 %v2210
  %3571 = vmatpush.bf16.msra.mxu0 %v2208
  %3572 = vmatpush.bf16.msra.mxu0 %v2206
  %3573 = vmatpush.bf16.msra.mxu0 %v2204
  %3574 = vmatpush.bf16.msra.mxu0 %v2202
  %3575 = vmatpush.bf16.msra.mxu0 %v2200
  %3576 = vmatpush.bf16.msra.mxu0 %v2198
  %3577 = vmatmul.bf16.gmra.mxu0 %v628
  %v3578 = vpop.f32.mrf.mxu0
  %v3579 = vadd.f32 %v3561, %v3578
  %v3580 = vpop.f32.mrf.mxu0
  %v3581 = vadd.f32 %v3563, %v3580
  %3582 = vmatmul.bf16.gmra.mxu0 %v655
  %v3583 = vpop.f32.mrf.mxu0
  %v3584 = vadd.f32 %v3566, %v3583
  %v3585 = vpop.f32.mrf.mxu0
  %3586 = vdwg.mxu0
  %3587 = vmatpush.bf16.msra.mxu0 %v2228
  %3588 = vmatpush.bf16.msra.mxu0 %v2226
  %3589 = vmatpush.bf16.msra.mxu0 %v2224
  %3590 = vmatpush.bf16.msra.mxu0 %v2222
  %3591 = vmatpush.bf16.msra.mxu0 %v2220
  %3592 = vmatpush.bf16.msra.mxu0 %v2218
  %3593 = vmatpush.bf16.msra.mxu0 %v2216
  %3594 = vmatpush.bf16.msra.mxu0 %v2214
  %3595 = vmatmul.bf16.gmra.mxu0 %v629
  %v3596 = vpop.f32.mrf.mxu0
  %v3597 = vadd.f32 %v3579, %v3596
  %v3598 = vpop.f32.mrf.mxu0
  %v3599 = vadd.f32 %v3581, %v3598
  %3600 = vmatmul.bf16.gmra.mxu0 %v656
  %v3601 = vpop.f32.mrf.mxu0
  %v3602 = vadd.f32 %v3584, %v3601
  %v3603 = vpop.f32.mrf.mxu0
  %3604 = vdwg.mxu0
  %3605 = vmatpush.bf16.msra.mxu0 %v2244
  %3606 = vmatpush.bf16.msra.mxu0 %v2242
  %3607 = vmatpush.bf16.msra.mxu0 %v2240
  %3608 = vmatpush.bf16.msra.mxu0 %v2238
  %3609 = vmatpush.bf16.msra.mxu0 %v2236
  %3610 = vmatpush.bf16.msra.mxu0 %v2234
  %3611 = vmatpush.bf16.msra.mxu0 %v2232
  %3612 = vmatpush.bf16.msra.mxu0 %v2230
  %3613 = vmatmul.bf16.gmra.mxu0 %v630
  %v3614 = vpop.f32.mrf.mxu0
  %v3615 = vadd.f32 %v3597, %v3614
  %v3616 = vpop.f32.mrf.mxu0
  %v3617 = vadd.f32 %v3599, %v3616
  %3618 = vmatmul.bf16.gmra.mxu0 %v657
  %v3619 = vpop.f32.mrf.mxu0
  %v3620 = vadd.f32 %v3602, %v3619
  %v3621 = vpop.f32.mrf.mxu0
  %3622 = vdwg.mxu0
  %3623 = vmatpush.bf16.msra.mxu0 %v2260
  %3624 = vmatpush.bf16.msra.mxu0 %v2258
  %3625 = vmatpush.bf16.msra.mxu0 %v2256
  %3626 = vmatpush.bf16.msra.mxu0 %v2254
  %3627 = vmatpush.bf16.msra.mxu0 %v2252
  %3628 = vmatpush.bf16.msra.mxu0 %v2250
  %3629 = vmatpush.bf16.msra.mxu0 %v2248
  %3630 = vmatpush.bf16.msra.mxu0 %v2246
  %3631 = vmatmul.bf16.gmra.mxu0 %v631
  %v3632 = vpop.f32.mrf.mxu0
  %v3633 = vadd.f32 %v3615, %v3632
  %v3634 = vpop.f32.mrf.mxu0
  %v3635 = vadd.f32 %v3617, %v3634
  %3636 = vmatmul.bf16.gmra.mxu0 %v658
  %v3637 = vpop.f32.mrf.mxu0
  %v3638 = vadd.f32 %v3620, %v3637
  %v3639 = vpop.f32.mrf.mxu0
  %3640 = vdwg.mxu0
  %3641 = vmatpush.bf16.msra.mxu0 %v2276
  %3642 = vmatpush.bf16.msra.mxu0 %v2274
  %3643 = vmatpush.bf16.msra.mxu0 %v2272
  %3644 = vmatpush.bf16.msra.mxu0 %v2270
  %3645 = vmatpush.bf16.msra.mxu0 %v2268
  %3646 = vmatpush.bf16.msra.mxu0 %v2266
  %3647 = vmatpush.bf16.msra.mxu0 %v2264
  %3648 = vmatpush.bf16.msra.mxu0 %v2262
  %3649 = vmatmul.bf16.gmra.mxu0 %v632
  %v3650 = vpop.f32.mrf.mxu0
  %v3651 = vadd.f32 %v3633, %v3650
  %v3652 = vpop.f32.mrf.mxu0
  %v3653 = vadd.f32 %v3635, %v3652
  %3654 = vmatmul.bf16.gmra.mxu0 %v659
  %v3655 = vpop.f32.mrf.mxu0
  %v3656 = vadd.f32 %v3638, %v3655
  %v3657 = vpop.f32.mrf.mxu0
  %3658 = vdwg.mxu0
  %3659 = vmatpush.bf16.msra.mxu0 %v2292
  %3660 = vmatpush.bf16.msra.mxu0 %v2290
  %3661 = vmatpush.bf16.msra.mxu0 %v2288
  %3662 = vmatpush.bf16.msra.mxu0 %v2286
  %3663 = vmatpush.bf16.msra.mxu0 %v2284
  %3664 = vmatpush.bf16.msra.mxu0 %v2282
  %3665 = vmatpush.bf16.msra.mxu0 %v2280
  %3666 = vmatpush.bf16.msra.mxu0 %v2278
  %3667 = vmatmul.bf16.gmra.mxu0 %v633
  %v3668 = vpop.f32.mrf.mxu0
  %v3669 = vadd.f32 %v3651, %v3668
  %v3670 = vpop.f32.mrf.mxu0
  %v3671 = vadd.f32 %v3653, %v3670
  %3672 = vmatmul.bf16.gmra.mxu0 %v660
  %v3673 = vpop.f32.mrf.mxu0
  %v3674 = vadd.f32 %v3656, %v3673
  %v3675 = vpop.f32.mrf.mxu0
  %3676 = vdwg.mxu0
  %3677 = vmatpush.bf16.msra.mxu0 %v2308
  %3678 = vmatpush.bf16.msra.mxu0 %v2306
  %3679 = vmatpush.bf16.msra.mxu0 %v2304
  %3680 = vmatpush.bf16.msra.mxu0 %v2302
  %3681 = vmatpush.bf16.msra.mxu0 %v2300
  %3682 = vmatpush.bf16.msra.mxu0 %v2298
  %3683 = vmatpush.bf16.msra.mxu0 %v2296
  %3684 = vmatpush.bf16.msra.mxu0 %v2294
  %3685 = vmatmul.bf16.gmra.mxu0 %v634
  %v3686 = vpop.f32.mrf.mxu0
  %v3687 = vadd.f32 %v3669, %v3686
  %v3688 = vpop.f32.mrf.mxu0
  %v3689 = vadd.f32 %v3671, %v3688
  %3690 = vmatmul.bf16.gmra.mxu0 %v661
  %v3691 = vpop.f32.mrf.mxu0
  %v3692 = vadd.f32 %v3674, %v3691
  %v3693 = vpop.f32.mrf.mxu0
  %3694 = vdwg.mxu0
  %3695 = vmatpush.bf16.msra.mxu0 %v2324
  %3696 = vmatpush.bf16.msra.mxu0 %v2322
  %3697 = vmatpush.bf16.msra.mxu0 %v2320
  %3698 = vmatpush.bf16.msra.mxu0 %v2318
  %3699 = vmatpush.bf16.msra.mxu0 %v2316
  %3700 = vmatpush.bf16.msra.mxu0 %v2314
  %3701 = vmatpush.bf16.msra.mxu0 %v2312
  %3702 = vmatpush.bf16.msra.mxu0 %v2310
  %3703 = vmatmul.bf16.gmra.mxu0 %v635
  %v3704 = vpop.f32.mrf.mxu0
  %v3705 = vadd.f32 %v3687, %v3704
  %v3706 = vpop.f32.mrf.mxu0
  %v3707 = vadd.f32 %v3689, %v3706
  %3708 = vmatmul.bf16.gmra.mxu0 %v662
  %v3709 = vpop.f32.mrf.mxu0
  %v3710 = vadd.f32 %v3692, %v3709
  %v3711 = vpop.f32.mrf.mxu0
  %3712 = vdwg.mxu0
  %3713 = vmatpush.bf16.msra.mxu0 %v2340
  %3714 = vmatpush.bf16.msra.mxu0 %v2338
  %3715 = vmatpush.bf16.msra.mxu0 %v2336
  %3716 = vmatpush.bf16.msra.mxu0 %v2334
  %3717 = vmatpush.bf16.msra.mxu0 %v2332
  %3718 = vmatpush.bf16.msra.mxu0 %v2330
  %3719 = vmatpush.bf16.msra.mxu0 %v2328
  %3720 = vmatpush.bf16.msra.mxu0 %v2326
  %3721 = vmatmul.bf16.gmra.mxu0 %v636
  %v3722 = vpop.f32.mrf.mxu0
  %v3723 = vadd.f32 %v3705, %v3722
  %v3724 = vpop.f32.mrf.mxu0
  %v3725 = vadd.f32 %v3707, %v3724
  %3726 = vmatmul.bf16.gmra.mxu0 %v663
  %v3727 = vpop.f32.mrf.mxu0
  %v3728 = vadd.f32 %v3710, %v3727
  %v3729 = vpop.f32.mrf.mxu0
  %3730 = vdwg.mxu0
  %3731 = vmatpush.bf16.msra.mxu0 %v2356
  %3732 = vmatpush.bf16.msra.mxu0 %v2354
  %3733 = vmatpush.bf16.msra.mxu0 %v2352
  %3734 = vmatpush.bf16.msra.mxu0 %v2350
  %3735 = vmatpush.bf16.msra.mxu0 %v2348
  %3736 = vmatpush.bf16.msra.mxu0 %v2346
  %3737 = vmatpush.bf16.msra.mxu0 %v2344
  %3738 = vmatpush.bf16.msra.mxu0 %v2342
  %3739 = vmatmul.bf16.gmra.mxu0 %v637
  %v3740 = vpop.f32.mrf.mxu0
  %v3741 = vadd.f32 %v3723, %v3740
  %v3742 = vpop.f32.mrf.mxu0
  %v3743 = vadd.f32 %v3725, %v3742
  %3744 = vmatmul.bf16.gmra.mxu0 %v664
  %v3745 = vpop.f32.mrf.mxu0
  %v3746 = vadd.f32 %v3728, %v3745
  %v3747 = vpop.f32.mrf.mxu0
  %3748 = vdwg.mxu0
  %3749 = vmatpush.bf16.msra.mxu0 %v2372
  %3750 = vmatpush.bf16.msra.mxu0 %v2370
  %3751 = vmatpush.bf16.msra.mxu0 %v2368
  %3752 = vmatpush.bf16.msra.mxu0 %v2366
  %3753 = vmatpush.bf16.msra.mxu0 %v2364
  %3754 = vmatpush.bf16.msra.mxu0 %v2362
  %3755 = vmatpush.bf16.msra.mxu0 %v2360
  %3756 = vmatpush.bf16.msra.mxu0 %v2358
  %3757 = vmatmul.bf16.gmra.mxu0 %v638
  %v3758 = vpop.f32.mrf.mxu0
  %v3759 = vadd.f32 %v3741, %v3758
  %v3760 = vpop.f32.mrf.mxu0
  %v3761 = vadd.f32 %v3743, %v3760
  %3762 = vmatmul.bf16.gmra.mxu0 %v665
  %v3763 = vpop.f32.mrf.mxu0
  %v3764 = vadd.f32 %v3746, %v3763
  %v3765 = vpop.f32.mrf.mxu0
  %3766 = vdwg.mxu0
  %3767 = vmatpush.bf16.msra.mxu0 %v2388
  %3768 = vmatpush.bf16.msra.mxu0 %v2386
  %3769 = vmatpush.bf16.msra.mxu0 %v2384
  %3770 = vmatpush.bf16.msra.mxu0 %v2382
  %3771 = vmatpush.bf16.msra.mxu0 %v2380
  %3772 = vmatpush.bf16.msra.mxu0 %v2378
  %3773 = vmatpush.bf16.msra.mxu0 %v2376
  %3774 = vmatpush.bf16.msra.mxu0 %v2374
  %3775 = vmatmul.bf16.gmra.mxu0 %v639
  %v3776 = vpop.f32.mrf.mxu0
  %v3777 = vadd.f32 %v3759, %v3776
  %v3778 = vpop.f32.mrf.mxu0
  %v3779 = vadd.f32 %v3761, %v3778
  %3780 = vmatmul.bf16.gmra.mxu0 %v666
  %v3781 = vpop.f32.mrf.mxu0
  %v3782 = vadd.f32 %v3764, %v3781
  %v3783 = vpop.f32.mrf.mxu0
  %3784 = vdwg.mxu0
  %3785 = vmatpush.bf16.msra.mxu0 %v2404
  %3786 = vmatpush.bf16.msra.mxu0 %v2402
  %3787 = vmatpush.bf16.msra.mxu0 %v2400
  %3788 = vmatpush.bf16.msra.mxu0 %v2398
  %3789 = vmatpush.bf16.msra.mxu0 %v2396
  %3790 = vmatpush.bf16.msra.mxu0 %v2394
  %3791 = vmatpush.bf16.msra.mxu0 %v2392
  %3792 = vmatpush.bf16.msra.mxu0 %v2390
  %3793 = vmatmul.bf16.gmra.mxu0 %v640
  %v3794 = vpop.f32.mrf.mxu0
  %v3795 = vadd.f32 %v3777, %v3794
  %v3796 = vpop.f32.mrf.mxu0
  %v3797 = vadd.f32 %v3779, %v3796
  %3798 = vmatmul.bf16.gmra.mxu0 %v667
  %v3799 = vpop.f32.mrf.mxu0
  %v3800 = vadd.f32 %v3782, %v3799
  %v3801 = vpop.f32.mrf.mxu0
  %3802 = vdwg.mxu0
  %3803 = vmatpush.bf16.msra.mxu0 %v2420
  %3804 = vmatpush.bf16.msra.mxu0 %v2418
  %3805 = vmatpush.bf16.msra.mxu0 %v2416
  %3806 = vmatpush.bf16.msra.mxu0 %v2414
  %3807 = vmatpush.bf16.msra.mxu0 %v2412
  %3808 = vmatpush.bf16.msra.mxu0 %v2410
  %3809 = vmatpush.bf16.msra.mxu0 %v2408
  %3810 = vmatpush.bf16.msra.mxu0 %v2406
  %3811 = vmatmul.bf16.gmra.mxu0 %v641
  %v3812 = vpop.f32.mrf.mxu0
  %v3813 = vadd.f32 %v3795, %v3812
  %v3814 = vpop.f32.mrf.mxu0
  %v3815 = vadd.f32 %v3797, %v3814
  %3816 = vmatmul.bf16.gmra.mxu0 %v668
  %v3817 = vpop.f32.mrf.mxu0
  %v3818 = vadd.f32 %v3800, %v3817
  %v3819 = vpop.f32.mrf.mxu0
  %3820 = vdwg.mxu0
  %3821 = vmatpush.bf16.msra.mxu0 %v2436
  %3822 = vmatpush.bf16.msra.mxu0 %v2434
  %3823 = vmatpush.bf16.msra.mxu0 %v2432
  %3824 = vmatpush.bf16.msra.mxu0 %v2430
  %3825 = vmatpush.bf16.msra.mxu0 %v2428
  %3826 = vmatpush.bf16.msra.mxu0 %v2426
  %3827 = vmatpush.bf16.msra.mxu0 %v2424
  %3828 = vmatpush.bf16.msra.mxu0 %v2422
  %3829 = vmatmul.bf16.gmra.mxu0 %v642
  %v3830 = vpop.f32.mrf.mxu0
  %v3831 = vadd.f32 %v3813, %v3830
  %v3832 = vpop.f32.mrf.mxu0
  %v3833 = vadd.f32 %v3815, %v3832
  %3834 = vmatmul.bf16.gmra.mxu0 %v669
  %v3835 = vpop.f32.mrf.mxu0
  %v3836 = vadd.f32 %v3818, %v3835
  %v3837 = vpop.f32.mrf.mxu0
  %3838 = vdwg.mxu0
  %3839 = vmatpush.bf16.msra.mxu0 %v2452
  %3840 = vmatpush.bf16.msra.mxu0 %v2450
  %3841 = vmatpush.bf16.msra.mxu0 %v2448
  %3842 = vmatpush.bf16.msra.mxu0 %v2446
  %3843 = vmatpush.bf16.msra.mxu0 %v2444
  %3844 = vmatpush.bf16.msra.mxu0 %v2442
  %3845 = vmatpush.bf16.msra.mxu0 %v2440
  %3846 = vmatpush.bf16.msra.mxu0 %v2438
  %3847 = vmatmul.bf16.gmra.mxu0 %v643
  %v3848 = vpop.f32.mrf.mxu0
  %v3849 = vadd.f32 %v3831, %v3848
  %v3850 = vpop.f32.mrf.mxu0
  %v3851 = vadd.f32 %v3833, %v3850
  %3852 = vmatmul.bf16.gmra.mxu0 %v670
  %v3853 = vpop.f32.mrf.mxu0
  %v3854 = vadd.f32 %v3836, %v3853
  %v3855 = vpop.f32.mrf.mxu0
  %3856 = vdwg.mxu0
  %v3857 = vmax.f32 %v3363, 0.0
  %v3858 = vmax.f32 %v3849, 0.0
  %v3859 = vmax.f32 %v3365, 0.0
  %v3860 = vmax.f32 %v3851, 0.0
  %v3861 = vmax.f32 %v3368, 0.0
  %v3862 = vmax.f32 %v3854, 0.0
  %v3863 = vpack.c.bf16 %v3858, %v3857
  %v3864 = vpack.c.bf16 %v3860, %v3859
  %v3865 = vpack.c.bf16 %v3862, %v3861
  %3866 = vst [vmem:[%s3] sm:$0xff] %v3863
  %3867 = vst [vmem:[%s3 + $0x8] sm:$0xff] %v3864
  %3868 = vst [vmem:[%s3 + $0x10] sm:$0x11] %v3865
  // Predicated region
  $region14: #{feature_forward.8} parent=0 // pred_check
    _
  $region15: #{feature_forward.8} parent=0 // pred_check_branch
    %3870 = sbr.rel (0) target = $region17
  $region16: #{feature_forward.8} parent=0 // pred_region
    _
  $region17: #{feature_forward.8} parent=0 // pred_fallthru
    _
  // Predicated region
  $region18: #{feature_forward.8} parent=0 // pred_check
    _
  $region19: #{feature_forward.8} parent=0 // pred_check_branch
    %3872 = sbr.rel (0) target = $region21
  $region20: #{feature_forward.8} parent=0 // pred_region
    _
  $region21: #{feature_forward.8} parent=0 // pred_fallthru
    _

</llo_original>
